<compile_context>
chip_gen: v6e
topology: v6e:2x2x1
jax: 0.10.0
libtpu: 0.0.40
codegen_flags: <defaults>
</compile_context>

<pallas_src>
import functools
import math

import jax
import jax.numpy as jnp
from jax import lax
from jax.experimental import pallas as pl
from jax.experimental.pallas import tpu as pltpu

LANE = 128


def _round_up(x, m):
    return ((x + m - 1) // m) * m


def _nbytes(shape, dtype):
    return int(math.prod(shape)) * jnp.dtype(dtype).itemsize


# ----------------------------- Pallas kernels ------------------------------


def _conv_accum(x_ref, w_ref, row_base, *, k, stride, ho_tile, wo, cin, cout):
    """Direct conv as a sum of k*k shifted (ho_tile*Wo, Cin) x (Cin, Cout) matmuls.

    x_ref: (Hp, Wp, Cin) padded input block (bf16), sliced per (ky, kx) so only the
    needed rows are live.  f32 accumulation on the MXU.
    """
    acc = jnp.zeros((ho_tile * wo, cout), jnp.float32)
    for ky in range(k):
        for kx in range(k):
            if stride == 1:
                patch = x_ref[pl.ds(row_base + ky, ho_tile), pl.ds(kx, wo), :]
            else:
                # TODO(synk): stride>1 (strided ref slice) path is not exercised by
                # the example below.
                patch = x_ref[pl.ds(row_base + ky, ho_tile, stride=stride),
                              pl.ds(kx, wo, stride=stride), :]
            acc = acc + jnp.dot(patch.reshape(ho_tile * wo, cin), w_ref[ky, kx],
                                preferred_element_type=jnp.float32)
    return acc


def _make_conv1_kernel(*, k, stride, pad, ho_tile, wo, cin, cout, fuse_downsample):
    """conv1 (kxk, stride) + BN + ReLU, optionally fused 1x1 downsample conv + BN."""

    def kernel(*refs):
        if fuse_downsample:
            (x_ref, w_ref, s_ref, b_ref,
             wd_ref, sd_ref, bd_ref, y_ref, yd_ref) = refs
        else:
            x_ref, w_ref, s_ref, b_ref, y_ref = refs

        row_base = pl.multiple_of(pl.program_id(2) * (ho_tile * stride),
                                  ho_tile * stride)

        acc = _conv_accum(x_ref, w_ref, row_base, k=k, stride=stride,
                          ho_tile=ho_tile, wo=wo, cin=cin, cout=cout)
        y = acc * s_ref[...] + b_ref[...]          # folded BN (f32 epilogue)
        y = jnp.maximum(y, 0.0)                    # ReLU
        y_ref[...] = y.reshape(ho_tile, wo, cout).astype(y_ref.dtype)

        if fuse_downsample:
            # 1x1 stride-s downsample conv + BN (no act) on the same input block:
            # saves a complete extra HBM read of x and one kernel launch.
            if stride == 1:
                patch = x_ref[pl.ds(row_base + pad, ho_tile), pl.ds(pad, wo), :]
            else:
                patch = x_ref[pl.ds(row_base + pad, ho_tile, stride=stride),
                              pl.ds(pad, wo, stride=stride), :]
            accd = jnp.dot(patch.reshape(ho_tile * wo, cin), wd_ref[0, 0],
                           preferred_element_type=jnp.float32)
            yd = accd * sd_ref[...] + bd_ref[...]
            yd_ref[...] = yd.reshape(ho_tile, wo, cout).astype(yd_ref.dtype)

    return kernel


def _make_conv2_kernel(*, k, ho_tile, wo, cin, cout):
    """conv2 (kxk, stride 1) + BN + residual add + ReLU, f32 epilogue."""

    def kernel(x_ref, w_ref, s_ref, b_ref, r_ref, o_ref):
        row_base = pl.multiple_of(pl.program_id(2) * ho_tile, ho_tile)
        acc = _conv_accum(x_ref, w_ref, row_base, k=k, stride=1,
                          ho_tile=ho_tile, wo=wo, cin=cin, cout=cout)
        y = acc * s_ref[...] + b_ref[...]                           # folded BN
        y = y + r_ref[...].reshape(ho_tile * wo, cout).astype(jnp.float32)
        y = jnp.maximum(y, 0.0)                                     # final ReLU
        o_ref[...] = y.reshape(ho_tile, wo, cout).astype(o_ref.dtype)

    return kernel


# --------------------------- pallas_call wrappers ---------------------------


def _tiles(ho, cout_p):
    ho_tile = 8 if ho % 8 == 0 else ho          # rows per output tile (mult of 8)
    cout_tile = min(cout_p, LANE)               # lane-dense Cout tile (128)
    return ho_tile, cout_tile


def _specs(*, hp, wp, cin_p, k, ho_tile, wo, cout_tile):
    # Input block index depends only on b  -> stays resident across (j, i) steps.
    x_spec = pl.BlockSpec((None, hp, wp, cin_p), lambda b, j, i: (b, 0, 0, 0))
    # Weight block index depends only on j -> resident across the inner row tiles.
    w_spec = pl.BlockSpec((k, k, cin_p, cout_tile), lambda b, j, i: (0, 0, 0, j))
    v_spec = pl.BlockSpec((1, cout_tile), lambda b, j, i: (0, j))
    o_spec = pl.BlockSpec((None, ho_tile, wo, cout_tile),
                          lambda b, j, i: (b, i, 0, j))
    return x_spec, w_spec, v_spec, o_spec


def conv1_downsample_pallas(xp, w1, s1, b1, wd=None, sd=None, bd=None, *,
                            k, stride, pad, ho, wo,
                            y_dtype=jnp.bfloat16, yd_dtype=jnp.float32):
    B, hp, wp, cin_p = xp.shape
    cout_p = w1.shape[-1]
    ho_tile, cout_tile = _tiles(ho, cout_p)
    grid = (B, cout_p // cout_tile, ho // ho_tile)
    fuse = wd is not None

    x_spec, w_spec, v_spec, o_spec = _specs(hp=hp, wp=wp, cin_p=cin_p, k=k,
                                            ho_tile=ho_tile, wo=wo,
                                            cout_tile=cout_tile)
    in_specs = [x_spec, w_spec, v_spec, v_spec]
    args = [xp, w1, s1, b1]
    out_shapes = [jax.ShapeDtypeStruct((B, ho, wo, cout_p), y_dtype)]
    out_specs = [o_spec]
    if fuse:
        wd_spec = pl.BlockSpec((1, 1, cin_p, cout_tile),
                               lambda b, j, i: (0, 0, 0, j))
        in_specs += [wd_spec, v_spec, v_spec]
        args += [wd, sd, bd]
        out_shapes.append(jax.ShapeDtypeStruct((B, ho, wo, cout_p), yd_dtype))
        out_specs.append(o_spec)

    flops = 2 * B * ho * wo * cin_p * cout_p * k * k
    bytes_accessed = (_nbytes(xp.shape, xp.dtype) + _nbytes(w1.shape, w1.dtype)
                      + 2 * _nbytes(s1.shape, s1.dtype)
                      + _nbytes((B, ho, wo, cout_p), y_dtype))
    if fuse:
        flops += 2 * B * ho * wo * cin_p * cout_p
        bytes_accessed += (_nbytes(wd.shape, wd.dtype)
                           + 2 * _nbytes(sd.shape, sd.dtype)
                           + _nbytes((B, ho, wo, cout_p), yd_dtype))

    out = pl.pallas_call(
        _make_conv1_kernel(k=k, stride=stride, pad=pad, ho_tile=ho_tile, wo=wo,
                           cin=cin_p, cout=cout_tile, fuse_downsample=fuse),
        grid=grid,
        in_specs=in_specs,
        out_specs=out_specs if fuse else out_specs[0],
        out_shape=out_shapes if fuse else out_shapes[0],
        compiler_params=pltpu.CompilerParams(
            dimension_semantics=("parallel", "parallel", "parallel")),
        cost_estimate=pl.CostEstimate(flops=flops, transcendentals=0,
                                      bytes_accessed=bytes_accessed),
    )(*args)
    return out


def conv2_residual_pallas(yp, w2, s2, b2, residual, *, k, ho, wo, out_dtype):
    B, hp, wp, cin_p = yp.shape
    cout_p = w2.shape[-1]
    ho_tile, cout_tile = _tiles(ho, cout_p)
    grid = (B, cout_p // cout_tile, ho // ho_tile)

    x_spec, w_spec, v_spec, o_spec = _specs(hp=hp, wp=wp, cin_p=cin_p, k=k,
                                            ho_tile=ho_tile, wo=wo,
                                            cout_tile=cout_tile)

    flops = 2 * B * ho * wo * cin_p * cout_p * k * k
    bytes_accessed = (_nbytes(yp.shape, yp.dtype) + _nbytes(w2.shape, w2.dtype)
                      + 2 * _nbytes(s2.shape, s2.dtype)
                      + _nbytes(residual.shape, residual.dtype)
                      + _nbytes((B, ho, wo, cout_p), out_dtype))

    return pl.pallas_call(
        _make_conv2_kernel(k=k, ho_tile=ho_tile, wo=wo, cin=cin_p, cout=cout_tile),
        grid=grid,
        in_specs=[x_spec, w_spec, v_spec, v_spec, o_spec],
        out_specs=o_spec,
        out_shape=jax.ShapeDtypeStruct((B, ho, wo, cout_p), out_dtype),
        compiler_params=pltpu.CompilerParams(
            dimension_semantics=("parallel", "parallel", "parallel")),
        cost_estimate=pl.CostEstimate(flops=flops, transcendentals=0,
                                      bytes_accessed=bytes_accessed),
    )(yp, w2, s2, b2, residual)


# --------------------------- BasicBlock wrapper -----------------------------


def fold_bn(gamma, beta, mean, var, eps=1e-5):
    scale = gamma / jnp.sqrt(var + eps)
    bias = beta - mean * scale
    return scale, bias


def _pad_vec(v, cp):
    return jnp.pad(v.astype(jnp.float32), (0, cp - v.shape[0])).reshape(1, cp)


def _pad_w(w, cin_p, cout_p):
    _, _, cin, cout = w.shape
    return jnp.pad(w, ((0, 0), (0, 0), (0, cin_p - cin),
                       (0, cout_p - cout))).astype(jnp.bfloat16)


def basic_block_forward(x_nchw, params, inplanes, planes, stride):
    """Matches BasicBlock.forward (eval-mode BN), bf16 MXU / f32 accumulation."""
    downsample = (stride != 1) or (inplanes != planes)
    x = jnp.transpose(x_nchw, (0, 2, 3, 1))       # NCHW -> NHWC
    B, H, W, _ = x.shape
    cin_p = _round_up(inplanes, LANE)
    cout_p = _round_up(planes, LANE)
    ho = (H + 2 - 3) // stride + 1
    wo = (W + 2 - 3) // stride + 1

    s1, b1 = fold_bn(*params["bn1"])
    s2, b2 = fold_bn(*params["bn2"])

    # conv1 input: spatial halo pad + lane pad of channels, bf16 for the MXU.
    # TODO(synk): the halo pad is still a wrapper-side XLA copy; an Element-indexed
    # halo BlockSpec would remove this extra HBM round trip.
    xp = jnp.pad(x, ((0, 0), (1, 1), (1, 1),
                     (0, cin_p - inplanes))).astype(jnp.bfloat16)

    w1 = _pad_w(params["w1"], cin_p, cout_p)
    w2 = _pad_w(params["w2"], cout_p, cout_p)
    s1p, b1p = _pad_vec(s1, cout_p), _pad_vec(b1, cout_p)
    s2p, b2p = _pad_vec(s2, cout_p), _pad_vec(b2, cout_p)

    if downsample:
        sd, bd = fold_bn(*params["bnd"])
        wd = _pad_w(params["wd"], cin_p, cout_p)
        sdp, bdp = _pad_vec(sd, cout_p), _pad_vec(bd, cout_p)
        y, idn = conv1_downsample_pallas(xp, w1, s1p, b1p, wd, sdp, bdp,
                                         k=3, stride=stride, pad=1, ho=ho, wo=wo,
                                         y_dtype=jnp.bfloat16,
                                         yd_dtype=jnp.float32)
    else:
        y = conv1_downsample_pallas(xp, w1, s1p, b1p, k=3, stride=stride, pad=1,
                                    ho=ho, wo=wo, y_dtype=jnp.bfloat16)
        idn = jnp.pad(x, ((0, 0), (0, 0), (0, 0), (0, cout_p - planes)))

    # conv2 input: halo pad (channels already lane-padded, bf16 from the kernel).
    yp = jnp.pad(y, ((0, 0), (1, 1), (1, 1), (0, 0)))

    out = conv2_residual_pallas(yp, w2, s2p, b2p, idn, k=3, ho=ho, wo=wo,
                                out_dtype=x_nchw.dtype)
    out = out[:, :, :, :planes]                    # drop lane padding
    return jnp.transpose(out, (0, 3, 1, 2))        # NHWC -> NCHW


# ------------------------------ JAX reference -------------------------------


def ref_conv_bn(x, w, scale, bias, stride, pad, relu):
    y = lax.conv_general_dilated(
        x.astype(jnp.bfloat16), w.astype(jnp.bfloat16), (stride, stride),
        [(pad, pad), (pad, pad)],
        dimension_numbers=("NHWC", "HWIO", "NHWC"),
        preferred_element_type=jnp.float32)
    y = y * scale.reshape(1, 1, 1, -1) + bias.reshape(1, 1, 1, -1)
    return jnp.maximum(y, 0.0) if relu else y


def basic_block_ref(x_nchw, params, inplanes, planes, stride):
    downsample = (stride != 1) or (inplanes != planes)
    x = jnp.transpose(x_nchw, (0, 2, 3, 1))
    s1, b1 = fold_bn(*params["bn1"])
    s2, b2 = fold_bn(*params["bn2"])
    y = ref_conv_bn(x, params["w1"], s1, b1, stride, 1, True)
    y = ref_conv_bn(y, params["w2"], s2, b2, 1, 1, False)
    if downsample:
        sd, bd = fold_bn(*params["bnd"])
        idn = ref_conv_bn(x, params["wd"], sd, bd, stride, 0, False)
    else:
        idn = x
    out = jnp.maximum(y + idn, 0.0)
    return jnp.transpose(out, (0, 3, 1, 2))


# ---------------------------------- main ------------------------------------


def make_bn_params(key, c):
    k1, k2, k3, k4 = jax.random.split(key, 4)
    gamma = jax.random.uniform(k1, (c,), jnp.float32, 0.5, 1.5)
    beta = jax.random.normal(k2, (c,), jnp.float32) * 0.1
    mean = jax.random.normal(k3, (c,), jnp.float32) * 0.1
    var = jax.random.uniform(k4, (c,), jnp.float32, 0.5, 1.5)
    return (gamma, beta, mean, var)


if __name__ == "__main__":
    key = jax.random.PRNGKey(0)
    B, inplanes, planes, H, W = 2, 4, 8, 16, 16
    stride = 1  # downsample branch is exercised via channel mismatch (4 -> 8)

    keys = jax.random.split(key, 8)
    x = jax.random.normal(keys[0], (B, inplanes, H, W), jnp.float32)

    params = {
        # weights stored HWIO = (kh, kw, Cin, Cout); equivalent to transposing
        # a PyTorch (Cout, Cin, kh, kw) weight by (2, 3, 1, 0).
        "w1": jax.random.normal(keys[1], (3, 3, inplanes, planes), jnp.float32) * 0.1,
        "w2": jax.random.normal(keys[2], (3, 3, planes, planes), jnp.float32) * 0.1,
        "wd": jax.random.normal(keys[3], (1, 1, inplanes, planes), jnp.float32) * 0.1,
        "bn1": make_bn_params(keys[4], planes),
        "bn2": make_bn_params(keys[5], planes),
        "bnd": make_bn_params(keys[6], planes),
    }

    fwd = functools.partial(basic_block_forward,
                            inplanes=inplanes, planes=planes, stride=stride)
    out = jax.jit(lambda xx: fwd(xx, params))(x)
    out = jax.block_until_ready(out)

    ref = basic_block_ref(x, params, inplanes, planes, stride)
    assert out.shape == (B, planes, H, W), out.shape
    # bf16 MXU inputs with f32 accumulation in both kernel and reference.
    assert jnp.allclose(out, ref, atol=2e-2, rtol=2e-2), \
        float(jnp.max(jnp.abs(out - ref)))

    print("KERNEL_OK")
</pallas_src>

<mosaic_0001>
module attributes {stable_mosaic.version = 11 : i64} {
  func.func @kernel(%arg0: i32, %arg1: i32, %arg2: i32, %arg3: memref<1x18x18x128xbf16, #tpu.memory_space<vmem>>, %arg4: memref<3x3x128x128xbf16, #tpu.memory_space<vmem>>, %arg5: memref<1x128xf32, #tpu.memory_space<vmem>>, %arg6: memref<1x128xf32, #tpu.memory_space<vmem>>, %arg7: memref<1x1x128x128xbf16, #tpu.memory_space<vmem>>, %arg8: memref<1x128xf32, #tpu.memory_space<vmem>>, %arg9: memref<1x128xf32, #tpu.memory_space<vmem>>, %arg10: memref<1x8x16x128xbf16, #tpu.memory_space<vmem>>, %arg11: memref<1x8x16x128xf32, #tpu.memory_space<vmem>>) attributes {dimension_semantics = [#tpu.dimension_semantics<parallel>, #tpu.dimension_semantics<parallel>, #tpu.dimension_semantics<parallel>], iteration_bounds = array<i64: 2, 1, 2>, scalar_prefetch = 0 : i64, scratch_operands = 0 : i64, tpu.core_type = #tpu.core_type<tc>, window_params = [{transform_indices = @transform_0, window_bounds = array<i64: 1, 18, 18, 128>}, {transform_indices = @transform_1, window_bounds = array<i64: 3, 3, 128, 128>}, {transform_indices = @transform_2, window_bounds = array<i64: 1, 128>}, {transform_indices = @transform_3, window_bounds = array<i64: 1, 128>}, {transform_indices = @transform_4, window_bounds = array<i64: 1, 1, 128, 128>}, {transform_indices = @transform_5, window_bounds = array<i64: 1, 128>}, {transform_indices = @transform_6, window_bounds = array<i64: 1, 128>}, {transform_indices = @transform_7, window_bounds = array<i64: 1, 8, 16, 128>}, {transform_indices = @transform_8, window_bounds = array<i64: 1, 8, 16, 128>}]} {
    %c8_i32 = arith.constant 8 : i32
    %0 = arith.muli %arg2, %c8_i32 : i32
    %1 = tpu.assume_multiple %0, 8 : i32
    %cst = arith.constant 0.000000e+00 : f32
    %2 = vector.broadcast %cst : f32 to vector<128x128xf32>
    %c0_i32 = arith.constant 0 : i32
    %3 = arith.addi %1, %c0_i32 : i32
    %c0 = arith.constant 0 : index
    %4 = arith.index_cast %3 : i32 to index
    %c0_0 = arith.constant 0 : index
    %c0_1 = arith.constant 0 : index
    %5 = vector.load %arg3[%c0, %4, %c0_0, %c0_1] : memref<1x18x18x128xbf16, #tpu.memory_space<vmem>>, vector<1x8x16x128xbf16>
    %6 = vector.shape_cast %5 : vector<1x8x16x128xbf16> to vector<8x16x128xbf16>
    %7 = vector.shape_cast %6 : vector<8x16x128xbf16> to vector<128x128xbf16>
    %c0_2 = arith.constant 0 : index
    %c0_3 = arith.constant 0 : index
    %c0_4 = arith.constant 0 : index
    %c0_5 = arith.constant 0 : index
    %8 = vector.load %arg4[%c0_2, %c0_3, %c0_4, %c0_5] : memref<3x3x128x128xbf16, #tpu.memory_space<vmem>>, vector<1x1x128x128xbf16>
    %9 = vector.shape_cast %8 : vector<1x1x128x128xbf16> to vector<128x128xbf16>
    %cst_6 = arith.constant dense<0.000000e+00> : vector<128x128xf32>
    %10 = tpu.matmul %7, %9, %cst_6 {dimension_numbers = #tpu.dot_dimension_numbers<[1], [0], [0], [1], [0, 0, 1, 1], [], []>} : vector<128x128xbf16>, vector<128x128xbf16>, vector<128x128xf32> -> vector<128x128xf32>
    %11 = arith.addf %2, %10 : vector<128x128xf32>
    %c0_i32_7 = arith.constant 0 : i32
    %12 = arith.addi %1, %c0_i32_7 : i32
    %c0_8 = arith.constant 0 : index
    %13 = arith.index_cast %12 : i32 to index
    %c1 = arith.constant 1 : index
    %c0_9 = arith.constant 0 : index
    %14 = vector.load %arg3[%c0_8, %13, %c1, %c0_9] : memref<1x18x18x128xbf16, #tpu.memory_space<vmem>>, vector<1x8x16x128xbf16>
    %15 = vector.shape_cast %14 : vector<1x8x16x128xbf16> to vector<8x16x128xbf16>
    %16 = vector.shape_cast %15 : vector<8x16x128xbf16> to vector<128x128xbf16>
    %c0_10 = arith.constant 0 : index
    %c1_11 = arith.constant 1 : index
    %c0_12 = arith.constant 0 : index
    %c0_13 = arith.constant 0 : index
    %17 = vector.load %arg4[%c0_10, %c1_11, %c0_12, %c0_13] : memref<3x3x128x128xbf16, #tpu.memory_space<vmem>>, vector<1x1x128x128xbf16>
    %18 = vector.shape_cast %17 : vector<1x1x128x128xbf16> to vector<128x128xbf16>
    %cst_14 = arith.constant dense<0.000000e+00> : vector<128x128xf32>
    %19 = tpu.matmul %16, %18, %cst_14 {dimension_numbers = #tpu.dot_dimension_numbers<[1], [0], [0], [1], [0, 0, 1, 1], [], []>} : vector<128x128xbf16>, vector<128x128xbf16>, vector<128x128xf32> -> vector<128x128xf32>
    %20 = arith.addf %11, %19 : vector<128x128xf32>
    %c0_i32_15 = arith.constant 0 : i32
    %21 = arith.addi %1, %c0_i32_15 : i32
    %c0_16 = arith.constant 0 : index
    %22 = arith.index_cast %21 : i32 to index
    %c2 = arith.constant 2 : index
    %c0_17 = arith.constant 0 : index
    %23 = vector.load %arg3[%c0_16, %22, %c2, %c0_17] : memref<1x18x18x128xbf16, #tpu.memory_space<vmem>>, vector<1x8x16x128xbf16>
    %24 = vector.shape_cast %23 : vector<1x8x16x128xbf16> to vector<8x16x128xbf16>
    %25 = vector.shape_cast %24 : vector<8x16x128xbf16> to vector<128x128xbf16>
    %c0_18 = arith.constant 0 : index
    %c2_19 = arith.constant 2 : index
    %c0_20 = arith.constant 0 : index
    %c0_21 = arith.constant 0 : index
    %26 = vector.load %arg4[%c0_18, %c2_19, %c0_20, %c0_21] : memref<3x3x128x128xbf16, #tpu.memory_space<vmem>>, vector<1x1x128x128xbf16>
    %27 = vector.shape_cast %26 : vector<1x1x128x128xbf16> to vector<128x128xbf16>
    %cst_22 = arith.constant dense<0.000000e+00> : vector<128x128xf32>
    %28 = tpu.matmul %25, %27, %cst_22 {dimension_numbers = #tpu.dot_dimension_numbers<[1], [0], [0], [1], [0, 0, 1, 1], [], []>} : vector<128x128xbf16>, vector<128x128xbf16>, vector<128x128xf32> -> vector<128x128xf32>
    %29 = arith.addf %20, %28 : vector<128x128xf32>
    %c1_i32 = arith.constant 1 : i32
    %30 = arith.addi %1, %c1_i32 : i32
    %c0_23 = arith.constant 0 : index
    %31 = arith.index_cast %30 : i32 to index
    %c0_24 = arith.constant 0 : index
    %c0_25 = arith.constant 0 : index
    %32 = vector.load %arg3[%c0_23, %31, %c0_24, %c0_25] : memref<1x18x18x128xbf16, #tpu.memory_space<vmem>>, vector<1x8x16x128xbf16>
    %33 = vector.shape_cast %32 : vector<1x8x16x128xbf16> to vector<8x16x128xbf16>
    %34 = vector.shape_cast %33 : vector<8x16x128xbf16> to vector<128x128xbf16>
    %c1_26 = arith.constant 1 : index
    %c0_27 = arith.constant 0 : index
    %c0_28 = arith.constant 0 : index
    %c0_29 = arith.constant 0 : index
    %35 = vector.load %arg4[%c1_26, %c0_27, %c0_28, %c0_29] : memref<3x3x128x128xbf16, #tpu.memory_space<vmem>>, vector<1x1x128x128xbf16>
    %36 = vector.shape_cast %35 : vector<1x1x128x128xbf16> to vector<128x128xbf16>
    %cst_30 = arith.constant dense<0.000000e+00> : vector<128x128xf32>
    %37 = tpu.matmul %34, %36, %cst_30 {dimension_numbers = #tpu.dot_dimension_numbers<[1], [0], [0], [1], [0, 0, 1, 1], [], []>} : vector<128x128xbf16>, vector<128x128xbf16>, vector<128x128xf32> -> vector<128x128xf32>
    %38 = arith.addf %29, %37 : vector<128x128xf32>
    %c1_i32_31 = arith.constant 1 : i32
    %39 = arith.addi %1, %c1_i32_31 : i32
    %c0_32 = arith.constant 0 : index
    %40 = arith.index_cast %39 : i32 to index
    %c1_33 = arith.constant 1 : index
    %c0_34 = arith.constant 0 : index
    %41 = vector.load %arg3[%c0_32, %40, %c1_33, %c0_34] : memref<1x18x18x128xbf16, #tpu.memory_space<vmem>>, vector<1x8x16x128xbf16>
    %42 = vector.shape_cast %41 : vector<1x8x16x128xbf16> to vector<8x16x128xbf16>
    %43 = vector.shape_cast %42 : vector<8x16x128xbf16> to vector<128x128xbf16>
    %c1_35 = arith.constant 1 : index
    %c1_36 = arith.constant 1 : index
    %c0_37 = arith.constant 0 : index
    %c0_38 = arith.constant 0 : index
    %44 = vector.load %arg4[%c1_35, %c1_36, %c0_37, %c0_38] : memref<3x3x128x128xbf16, #tpu.memory_space<vmem>>, vector<1x1x128x128xbf16>
    %45 = vector.shape_cast %44 : vector<1x1x128x128xbf16> to vector<128x128xbf16>
    %cst_39 = arith.constant dense<0.000000e+00> : vector<128x128xf32>
    %46 = tpu.matmul %43, %45, %cst_39 {dimension_numbers = #tpu.dot_dimension_numbers<[1], [0], [0], [1], [0, 0, 1, 1], [], []>} : vector<128x128xbf16>, vector<128x128xbf16>, vector<128x128xf32> -> vector<128x128xf32>
    %47 = arith.addf %38, %46 : vector<128x128xf32>
    %c1_i32_40 = arith.constant 1 : i32
    %48 = arith.addi %1, %c1_i32_40 : i32
    %c0_41 = arith.constant 0 : index
    %49 = arith.index_cast %48 : i32 to index
    %c2_42 = arith.constant 2 : index
    %c0_43 = arith.constant 0 : index
    %50 = vector.load %arg3[%c0_41, %49, %c2_42, %c0_43] : memref<1x18x18x128xbf16, #tpu.memory_space<vmem>>, vector<1x8x16x128xbf16>
    %51 = vector.shape_cast %50 : vector<1x8x16x128xbf16> to vector<8x16x128xbf16>
    %52 = vector.shape_cast %51 : vector<8x16x128xbf16> to vector<128x128xbf16>
    %c1_44 = arith.constant 1 : index
    %c2_45 = arith.constant 2 : index
    %c0_46 = arith.constant 0 : index
    %c0_47 = arith.constant 0 : index
    %53 = vector.load %arg4[%c1_44, %c2_45, %c0_46, %c0_47] : memref<3x3x128x128xbf16, #tpu.memory_space<vmem>>, vector<1x1x128x128xbf16>
    %54 = vector.shape_cast %53 : vector<1x1x128x128xbf16> to vector<128x128xbf16>
    %cst_48 = arith.constant dense<0.000000e+00> : vector<128x128xf32>
    %55 = tpu.matmul %52, %54, %cst_48 {dimension_numbers = #tpu.dot_dimension_numbers<[1], [0], [0], [1], [0, 0, 1, 1], [], []>} : vector<128x128xbf16>, vector<128x128xbf16>, vector<128x128xf32> -> vector<128x128xf32>
    %56 = arith.addf %47, %55 : vector<128x128xf32>
    %c2_i32 = arith.constant 2 : i32
    %57 = arith.addi %1, %c2_i32 : i32
    %c0_49 = arith.constant 0 : index
    %58 = arith.index_cast %57 : i32 to index
    %c0_50 = arith.constant 0 : index
    %c0_51 = arith.constant 0 : index
    %59 = vector.load %arg3[%c0_49, %58, %c0_50, %c0_51] : memref<1x18x18x128xbf16, #tpu.memory_space<vmem>>, vector<1x8x16x128xbf16>
    %60 = vector.shape_cast %59 : vector<1x8x16x128xbf16> to vector<8x16x128xbf16>
    %61 = vector.shape_cast %60 : vector<8x16x128xbf16> to vector<128x128xbf16>
    %c2_52 = arith.constant 2 : index
    %c0_53 = arith.constant 0 : index
    %c0_54 = arith.constant 0 : index
    %c0_55 = arith.constant 0 : index
    %62 = vector.load %arg4[%c2_52, %c0_53, %c0_54, %c0_55] : memref<3x3x128x128xbf16, #tpu.memory_space<vmem>>, vector<1x1x128x128xbf16>
    %63 = vector.shape_cast %62 : vector<1x1x128x128xbf16> to vector<128x128xbf16>
    %cst_56 = arith.constant dense<0.000000e+00> : vector<128x128xf32>
    %64 = tpu.matmul %61, %63, %cst_56 {dimension_numbers = #tpu.dot_dimension_numbers<[1], [0], [0], [1], [0, 0, 1, 1], [], []>} : vector<128x128xbf16>, vector<128x128xbf16>, vector<128x128xf32> -> vector<128x128xf32>
    %65 = arith.addf %56, %64 : vector<128x128xf32>
    %c2_i32_57 = arith.constant 2 : i32
    %66 = arith.addi %1, %c2_i32_57 : i32
    %c0_58 = arith.constant 0 : index
    %67 = arith.index_cast %66 : i32 to index
    %c1_59 = arith.constant 1 : index
    %c0_60 = arith.constant 0 : index
    %68 = vector.load %arg3[%c0_58, %67, %c1_59, %c0_60] : memref<1x18x18x128xbf16, #tpu.memory_space<vmem>>, vector<1x8x16x128xbf16>
    %69 = vector.shape_cast %68 : vector<1x8x16x128xbf16> to vector<8x16x128xbf16>
    %70 = vector.shape_cast %69 : vector<8x16x128xbf16> to vector<128x128xbf16>
    %c2_61 = arith.constant 2 : index
    %c1_62 = arith.constant 1 : index
    %c0_63 = arith.constant 0 : index
    %c0_64 = arith.constant 0 : index
    %71 = vector.load %arg4[%c2_61, %c1_62, %c0_63, %c0_64] : memref<3x3x128x128xbf16, #tpu.memory_space<vmem>>, vector<1x1x128x128xbf16>
    %72 = vector.shape_cast %71 : vector<1x1x128x128xbf16> to vector<128x128xbf16>
    %cst_65 = arith.constant dense<0.000000e+00> : vector<128x128xf32>
    %73 = tpu.matmul %70, %72, %cst_65 {dimension_numbers = #tpu.dot_dimension_numbers<[1], [0], [0], [1], [0, 0, 1, 1], [], []>} : vector<128x128xbf16>, vector<128x128xbf16>, vector<128x128xf32> -> vector<128x128xf32>
    %74 = arith.addf %65, %73 : vector<128x128xf32>
    %c2_i32_66 = arith.constant 2 : i32
    %75 = arith.addi %1, %c2_i32_66 : i32
    %c0_67 = arith.constant 0 : index
    %76 = arith.index_cast %75 : i32 to index
    %c2_68 = arith.constant 2 : index
    %c0_69 = arith.constant 0 : index
    %77 = vector.load %arg3[%c0_67, %76, %c2_68, %c0_69] : memref<1x18x18x128xbf16, #tpu.memory_space<vmem>>, vector<1x8x16x128xbf16>
    %78 = vector.shape_cast %77 : vector<1x8x16x128xbf16> to vector<8x16x128xbf16>
    %79 = vector.shape_cast %78 : vector<8x16x128xbf16> to vector<128x128xbf16>
    %c2_70 = arith.constant 2 : index
    %c2_71 = arith.constant 2 : index
    %c0_72 = arith.constant 0 : index
    %c0_73 = arith.constant 0 : index
    %80 = vector.load %arg4[%c2_70, %c2_71, %c0_72, %c0_73] : memref<3x3x128x128xbf16, #tpu.memory_space<vmem>>, vector<1x1x128x128xbf16>
    %81 = vector.shape_cast %80 : vector<1x1x128x128xbf16> to vector<128x128xbf16>
    %cst_74 = arith.constant dense<0.000000e+00> : vector<128x128xf32>
    %82 = tpu.matmul %79, %81, %cst_74 {dimension_numbers = #tpu.dot_dimension_numbers<[1], [0], [0], [1], [0, 0, 1, 1], [], []>} : vector<128x128xbf16>, vector<128x128xbf16>, vector<128x128xf32> -> vector<128x128xf32>
    %83 = arith.addf %74, %82 : vector<128x128xf32>
    %c0_75 = arith.constant 0 : index
    %c0_76 = arith.constant 0 : index
    %84 = vector.load %arg5[%c0_75, %c0_76] : memref<1x128xf32, #tpu.memory_space<vmem>>, vector<1x128xf32>
    %85 = vector.broadcast %84 : vector<1x128xf32> to vector<128x128xf32>
    %86 = arith.mulf %83, %85 : vector<128x128xf32>
    %c0_77 = arith.constant 0 : index
    %c0_78 = arith.constant 0 : index
    %87 = vector.load %arg6[%c0_77, %c0_78] : memref<1x128xf32, #tpu.memory_space<vmem>>, vector<1x128xf32>
    %88 = vector.broadcast %87 : vector<1x128xf32> to vector<128x128xf32>
    %89 = arith.addf %86, %88 : vector<128x128xf32>
    %cst_79 = arith.constant 0.000000e+00 : f32
    %90 = vector.broadcast %cst_79 : f32 to vector<128x128xf32>
    %91 = arith.maximumf %89, %90 : vector<128x128xf32>
    %92 = vector.shape_cast %91 : vector<128x128xf32> to vector<8x16x128xf32>
    %93 = arith.truncf %92 : vector<8x16x128xf32> to vector<8x16x128xbf16>
    %c0_80 = arith.constant 0 : index
    %c0_81 = arith.constant 0 : index
    %c0_82 = arith.constant 0 : index
    %c0_83 = arith.constant 0 : index
    %94 = vector.load %arg10[%c0_80, %c0_81, %c0_82, %c0_83] : memref<1x8x16x128xbf16, #tpu.memory_space<vmem>>, vector<1x8x16x128xbf16>
    %95 = vector.shape_cast %94 : vector<1x8x16x128xbf16> to vector<8x16x128xbf16>
    %96 = vector.shape_cast %93 : vector<8x16x128xbf16> to vector<1x8x16x128xbf16>
    tpu.vector_store %arg10[%c0_80, %c0_81, %c0_82, %c0_83], %96 {strides = array<i32>} : memref<1x8x16x128xbf16, #tpu.memory_space<vmem>>, vector<1x8x16x128xbf16>,
    %c1_i32_84 = arith.constant 1 : i32
    %97 = arith.addi %1, %c1_i32_84 : i32
    %c0_85 = arith.constant 0 : index
    %98 = arith.index_cast %97 : i32 to index
    %c1_86 = arith.constant 1 : index
    %c0_87 = arith.constant 0 : index
    %99 = vector.load %arg3[%c0_85, %98, %c1_86, %c0_87] : memref<1x18x18x128xbf16, #tpu.memory_space<vmem>>, vector<1x8x16x128xbf16>
    %100 = vector.shape_cast %99 : vector<1x8x16x128xbf16> to vector<8x16x128xbf16>
    %101 = vector.shape_cast %100 : vector<8x16x128xbf16> to vector<128x128xbf16>
    %c0_88 = arith.constant 0 : index
    %c0_89 = arith.constant 0 : index
    %c0_90 = arith.constant 0 : index
    %c0_91 = arith.constant 0 : index
    %102 = vector.load %arg7[%c0_88, %c0_89, %c0_90, %c0_91] : memref<1x1x128x128xbf16, #tpu.memory_space<vmem>>, vector<1x1x128x128xbf16>
    %103 = vector.shape_cast %102 : vector<1x1x128x128xbf16> to vector<128x128xbf16>
    %cst_92 = arith.constant dense<0.000000e+00> : vector<128x128xf32>
    %104 = tpu.matmul %101, %103, %cst_92 {dimension_numbers = #tpu.dot_dimension_numbers<[1], [0], [0], [1], [0, 0, 1, 1], [], []>} : vector<128x128xbf16>, vector<128x128xbf16>, vector<128x128xf32> -> vector<128x128xf32>
    %c0_93 = arith.constant 0 : index
    %c0_94 = arith.constant 0 : index
    %105 = vector.load %arg8[%c0_93, %c0_94] : memref<1x128xf32, #tpu.memory_space<vmem>>, vector<1x128xf32>
    %106 = vector.broadcast %105 : vector<1x128xf32> to vector<128x128xf32>
    %107 = arith.mulf %104, %106 : vector<128x128xf32>
    %c0_95 = arith.constant 0 : index
    %c0_96 = arith.constant 0 : index
    %108 = vector.load %arg9[%c0_95, %c0_96] : memref<1x128xf32, #tpu.memory_space<vmem>>, vector<1x128xf32>
    %109 = vector.broadcast %108 : vector<1x128xf32> to vector<128x128xf32>
    %110 = arith.addf %107, %109 : vector<128x128xf32>
    %111 = vector.shape_cast %110 : vector<128x128xf32> to vector<8x16x128xf32>
    %c0_97 = arith.constant 0 : index
    %c0_98 = arith.constant 0 : index
    %c0_99 = arith.constant 0 : index
    %c0_100 = arith.constant 0 : index
    %112 = vector.load %arg11[%c0_97, %c0_98, %c0_99, %c0_100] : memref<1x8x16x128xf32, #tpu.memory_space<vmem>>, vector<1x8x16x128xf32>
    %113 = vector.shape_cast %112 : vector<1x8x16x128xf32> to vector<8x16x128xf32>
    %114 = vector.shape_cast %111 : vector<8x16x128xf32> to vector<1x8x16x128xf32>
    tpu.vector_store %arg11[%c0_97, %c0_98, %c0_99, %c0_100], %114 {strides = array<i32>} : memref<1x8x16x128xf32, #tpu.memory_space<vmem>>, vector<1x8x16x128xf32>,
    return
  }
  func.func @transform_0(%arg0: i32, %arg1: i32, %arg2: i32) -> (i32, i32, i32, i32) {
    %c0_i32 = arith.constant 0 : i32
    %c0_i32_0 = arith.constant 0 : i32
    %c0_i32_1 = arith.constant 0 : i32
    %c0_i32_2 = arith.constant 0 : i32
    return %arg0, %c0_i32, %c0_i32_0, %c0_i32_1 : i32, i32, i32, i32
  }
  func.func @transform_1(%arg0: i32, %arg1: i32, %arg2: i32) -> (i32, i32, i32, i32) {
    %c0_i32 = arith.constant 0 : i32
    %c0_i32_0 = arith.constant 0 : i32
    %c0_i32_1 = arith.constant 0 : i32
    %c0_i32_2 = arith.constant 0 : i32
    return %c0_i32, %c0_i32_0, %c0_i32_1, %arg1 : i32, i32, i32, i32
  }
  func.func @transform_2(%arg0: i32, %arg1: i32, %arg2: i32) -> (i32, i32) {
    %c0_i32 = arith.constant 0 : i32
    %c0_i32_0 = arith.constant 0 : i32
    return %c0_i32, %arg1 : i32, i32
  }
  func.func @transform_3(%arg0: i32, %arg1: i32, %arg2: i32) -> (i32, i32) {
    %c0_i32 = arith.constant 0 : i32
    %c0_i32_0 = arith.constant 0 : i32
    return %c0_i32, %arg1 : i32, i32
  }
  func.func @transform_4(%arg0: i32, %arg1: i32, %arg2: i32) -> (i32, i32, i32, i32) {
    %c0_i32 = arith.constant 0 : i32
    %c0_i32_0 = arith.constant 0 : i32
    %c0_i32_1 = arith.constant 0 : i32
    %c0_i32_2 = arith.constant 0 : i32
    return %c0_i32, %c0_i32_0, %c0_i32_1, %arg1 : i32, i32, i32, i32
  }
  func.func @transform_5(%arg0: i32, %arg1: i32, %arg2: i32) -> (i32, i32) {
    %c0_i32 = arith.constant 0 : i32
    %c0_i32_0 = arith.constant 0 : i32
    return %c0_i32, %arg1 : i32, i32
  }
  func.func @transform_6(%arg0: i32, %arg1: i32, %arg2: i32) -> (i32, i32) {
    %c0_i32 = arith.constant 0 : i32
    %c0_i32_0 = arith.constant 0 : i32
    return %c0_i32, %arg1 : i32, i32
  }
  func.func @transform_7(%arg0: i32, %arg1: i32, %arg2: i32) -> (i32, i32, i32, i32) {
    %c0_i32 = arith.constant 0 : i32
    %c0_i32_0 = arith.constant 0 : i32
    return %arg0, %arg2, %c0_i32, %arg1 : i32, i32, i32, i32
  }
  func.func @transform_8(%arg0: i32, %arg1: i32, %arg2: i32) -> (i32, i32, i32, i32) {
    %c0_i32 = arith.constant 0 : i32
    %c0_i32_0 = arith.constant 0 : i32
    return %arg0, %arg2, %c0_i32, %arg1 : i32, i32, i32, i32
  }
}

module attributes {stable_mosaic.version = 11 : i64} {
  func.func @kernel(%arg0: i32, %arg1: i32, %arg2: i32, %arg3: memref<1x18x18x128xbf16, #tpu.memory_space<vmem>>, %arg4: memref<3x3x128x128xbf16, #tpu.memory_space<vmem>>, %arg5: memref<1x128xf32, #tpu.memory_space<vmem>>, %arg6: memref<1x128xf32, #tpu.memory_space<vmem>>, %arg7: memref<1x8x16x128xf32, #tpu.memory_space<vmem>>, %arg8: memref<1x8x16x128xf32, #tpu.memory_space<vmem>>) attributes {dimension_semantics = [#tpu.dimension_semantics<parallel>, #tpu.dimension_semantics<parallel>, #tpu.dimension_semantics<parallel>], iteration_bounds = array<i64: 2, 1, 2>, scalar_prefetch = 0 : i64, scratch_operands = 0 : i64, tpu.core_type = #tpu.core_type<tc>, window_params = [{transform_indices = @transform_0, window_bounds = array<i64: 1, 18, 18, 128>}, {transform_indices = @transform_1, window_bounds = array<i64: 3, 3, 128, 128>}, {transform_indices = @transform_2, window_bounds = array<i64: 1, 128>}, {transform_indices = @transform_3, window_bounds = array<i64: 1, 128>}, {transform_indices = @transform_4, window_bounds = array<i64: 1, 8, 16, 128>}, {transform_indices = @transform_5, window_bounds = array<i64: 1, 8, 16, 128>}]} {
    %c8_i32 = arith.constant 8 : i32
    %0 = arith.muli %arg2, %c8_i32 : i32
    %1 = tpu.assume_multiple %0, 8 : i32
    %cst = arith.constant 0.000000e+00 : f32
    %2 = vector.broadcast %cst : f32 to vector<128x128xf32>
    %c0_i32 = arith.constant 0 : i32
    %3 = arith.addi %1, %c0_i32 : i32
    %c0 = arith.constant 0 : index
    %4 = arith.index_cast %3 : i32 to index
    %c0_0 = arith.constant 0 : index
    %c0_1 = arith.constant 0 : index
    %5 = vector.load %arg3[%c0, %4, %c0_0, %c0_1] : memref<1x18x18x128xbf16, #tpu.memory_space<vmem>>, vector<1x8x16x128xbf16>
    %6 = vector.shape_cast %5 : vector<1x8x16x128xbf16> to vector<8x16x128xbf16>
    %7 = vector.shape_cast %6 : vector<8x16x128xbf16> to vector<128x128xbf16>
    %c0_2 = arith.constant 0 : index
    %c0_3 = arith.constant 0 : index
    %c0_4 = arith.constant 0 : index
    %c0_5 = arith.constant 0 : index
    %8 = vector.load %arg4[%c0_2, %c0_3, %c0_4, %c0_5] : memref<3x3x128x128xbf16, #tpu.memory_space<vmem>>, vector<1x1x128x128xbf16>
    %9 = vector.shape_cast %8 : vector<1x1x128x128xbf16> to vector<128x128xbf16>
    %cst_6 = arith.constant dense<0.000000e+00> : vector<128x128xf32>
    %10 = tpu.matmul %7, %9, %cst_6 {dimension_numbers = #tpu.dot_dimension_numbers<[1], [0], [0], [1], [0, 0, 1, 1], [], []>} : vector<128x128xbf16>, vector<128x128xbf16>, vector<128x128xf32> -> vector<128x128xf32>
    %11 = arith.addf %2, %10 : vector<128x128xf32>
    %c0_i32_7 = arith.constant 0 : i32
    %12 = arith.addi %1, %c0_i32_7 : i32
    %c0_8 = arith.constant 0 : index
    %13 = arith.index_cast %12 : i32 to index
    %c1 = arith.constant 1 : index
    %c0_9 = arith.constant 0 : index
    %14 = vector.load %arg3[%c0_8, %13, %c1, %c0_9] : memref<1x18x18x128xbf16, #tpu.memory_space<vmem>>, vector<1x8x16x128xbf16>
    %15 = vector.shape_cast %14 : vector<1x8x16x128xbf16> to vector<8x16x128xbf16>
    %16 = vector.shape_cast %15 : vector<8x16x128xbf16> to vector<128x128xbf16>
    %c0_10 = arith.constant 0 : index
    %c1_11 = arith.constant 1 : index
    %c0_12 = arith.constant 0 : index
    %c0_13 = arith.constant 0 : index
    %17 = vector.load %arg4[%c0_10, %c1_11, %c0_12, %c0_13] : memref<3x3x128x128xbf16, #tpu.memory_space<vmem>>, vector<1x1x128x128xbf16>
    %18 = vector.shape_cast %17 : vector<1x1x128x128xbf16> to vector<128x128xbf16>
    %cst_14 = arith.constant dense<0.000000e+00> : vector<128x128xf32>
    %19 = tpu.matmul %16, %18, %cst_14 {dimension_numbers = #tpu.dot_dimension_numbers<[1], [0], [0], [1], [0, 0, 1, 1], [], []>} : vector<128x128xbf16>, vector<128x128xbf16>, vector<128x128xf32> -> vector<128x128xf32>
    %20 = arith.addf %11, %19 : vector<128x128xf32>
    %c0_i32_15 = arith.constant 0 : i32
    %21 = arith.addi %1, %c0_i32_15 : i32
    %c0_16 = arith.constant 0 : index
    %22 = arith.index_cast %21 : i32 to index
    %c2 = arith.constant 2 : index
    %c0_17 = arith.constant 0 : index
    %23 = vector.load %arg3[%c0_16, %22, %c2, %c0_17] : memref<1x18x18x128xbf16, #tpu.memory_space<vmem>>, vector<1x8x16x128xbf16>
    %24 = vector.shape_cast %23 : vector<1x8x16x128xbf16> to vector<8x16x128xbf16>
    %25 = vector.shape_cast %24 : vector<8x16x128xbf16> to vector<128x128xbf16>
    %c0_18 = arith.constant 0 : index
    %c2_19 = arith.constant 2 : index
    %c0_20 = arith.constant 0 : index
    %c0_21 = arith.constant 0 : index
    %26 = vector.load %arg4[%c0_18, %c2_19, %c0_20, %c0_21] : memref<3x3x128x128xbf16, #tpu.memory_space<vmem>>, vector<1x1x128x128xbf16>
    %27 = vector.shape_cast %26 : vector<1x1x128x128xbf16> to vector<128x128xbf16>
    %cst_22 = arith.constant dense<0.000000e+00> : vector<128x128xf32>
    %28 = tpu.matmul %25, %27, %cst_22 {dimension_numbers = #tpu.dot_dimension_numbers<[1], [0], [0], [1], [0, 0, 1, 1], [], []>} : vector<128x128xbf16>, vector<128x128xbf16>, vector<128x128xf32> -> vector<128x128xf32>
    %29 = arith.addf %20, %28 : vector<128x128xf32>
    %c1_i32 = arith.constant 1 : i32
    %30 = arith.addi %1, %c1_i32 : i32
    %c0_23 = arith.constant 0 : index
    %31 = arith.index_cast %30 : i32 to index
    %c0_24 = arith.constant 0 : index
    %c0_25 = arith.constant 0 : index
    %32 = vector.load %arg3[%c0_23, %31, %c0_24, %c0_25] : memref<1x18x18x128xbf16, #tpu.memory_space<vmem>>, vector<1x8x16x128xbf16>
    %33 = vector.shape_cast %32 : vector<1x8x16x128xbf16> to vector<8x16x128xbf16>
    %34 = vector.shape_cast %33 : vector<8x16x128xbf16> to vector<128x128xbf16>
    %c1_26 = arith.constant 1 : index
    %c0_27 = arith.constant 0 : index
    %c0_28 = arith.constant 0 : index
    %c0_29 = arith.constant 0 : index
    %35 = vector.load %arg4[%c1_26, %c0_27, %c0_28, %c0_29] : memref<3x3x128x128xbf16, #tpu.memory_space<vmem>>, vector<1x1x128x128xbf16>
    %36 = vector.shape_cast %35 : vector<1x1x128x128xbf16> to vector<128x128xbf16>
    %cst_30 = arith.constant dense<0.000000e+00> : vector<128x128xf32>
    %37 = tpu.matmul %34, %36, %cst_30 {dimension_numbers = #tpu.dot_dimension_numbers<[1], [0], [0], [1], [0, 0, 1, 1], [], []>} : vector<128x128xbf16>, vector<128x128xbf16>, vector<128x128xf32> -> vector<128x128xf32>
    %38 = arith.addf %29, %37 : vector<128x128xf32>
    %c1_i32_31 = arith.constant 1 : i32
    %39 = arith.addi %1, %c1_i32_31 : i32
    %c0_32 = arith.constant 0 : index
    %40 = arith.index_cast %39 : i32 to index
    %c1_33 = arith.constant 1 : index
    %c0_34 = arith.constant 0 : index
    %41 = vector.load %arg3[%c0_32, %40, %c1_33, %c0_34] : memref<1x18x18x128xbf16, #tpu.memory_space<vmem>>, vector<1x8x16x128xbf16>
    %42 = vector.shape_cast %41 : vector<1x8x16x128xbf16> to vector<8x16x128xbf16>
    %43 = vector.shape_cast %42 : vector<8x16x128xbf16> to vector<128x128xbf16>
    %c1_35 = arith.constant 1 : index
    %c1_36 = arith.constant 1 : index
    %c0_37 = arith.constant 0 : index
    %c0_38 = arith.constant 0 : index
    %44 = vector.load %arg4[%c1_35, %c1_36, %c0_37, %c0_38] : memref<3x3x128x128xbf16, #tpu.memory_space<vmem>>, vector<1x1x128x128xbf16>
    %45 = vector.shape_cast %44 : vector<1x1x128x128xbf16> to vector<128x128xbf16>
    %cst_39 = arith.constant dense<0.000000e+00> : vector<128x128xf32>
    %46 = tpu.matmul %43, %45, %cst_39 {dimension_numbers = #tpu.dot_dimension_numbers<[1], [0], [0], [1], [0, 0, 1, 1], [], []>} : vector<128x128xbf16>, vector<128x128xbf16>, vector<128x128xf32> -> vector<128x128xf32>
    %47 = arith.addf %38, %46 : vector<128x128xf32>
    %c1_i32_40 = arith.constant 1 : i32
    %48 = arith.addi %1, %c1_i32_40 : i32
    %c0_41 = arith.constant 0 : index
    %49 = arith.index_cast %48 : i32 to index
    %c2_42 = arith.constant 2 : index
    %c0_43 = arith.constant 0 : index
    %50 = vector.load %arg3[%c0_41, %49, %c2_42, %c0_43] : memref<1x18x18x128xbf16, #tpu.memory_space<vmem>>, vector<1x8x16x128xbf16>
    %51 = vector.shape_cast %50 : vector<1x8x16x128xbf16> to vector<8x16x128xbf16>
    %52 = vector.shape_cast %51 : vector<8x16x128xbf16> to vector<128x128xbf16>
    %c1_44 = arith.constant 1 : index
    %c2_45 = arith.constant 2 : index
    %c0_46 = arith.constant 0 : index
    %c0_47 = arith.constant 0 : index
    %53 = vector.load %arg4[%c1_44, %c2_45, %c0_46, %c0_47] : memref<3x3x128x128xbf16, #tpu.memory_space<vmem>>, vector<1x1x128x128xbf16>
    %54 = vector.shape_cast %53 : vector<1x1x128x128xbf16> to vector<128x128xbf16>
    %cst_48 = arith.constant dense<0.000000e+00> : vector<128x128xf32>
    %55 = tpu.matmul %52, %54, %cst_48 {dimension_numbers = #tpu.dot_dimension_numbers<[1], [0], [0], [1], [0, 0, 1, 1], [], []>} : vector<128x128xbf16>, vector<128x128xbf16>, vector<128x128xf32> -> vector<128x128xf32>
    %56 = arith.addf %47, %55 : vector<128x128xf32>
    %c2_i32 = arith.constant 2 : i32
    %57 = arith.addi %1, %c2_i32 : i32
    %c0_49 = arith.constant 0 : index
    %58 = arith.index_cast %57 : i32 to index
    %c0_50 = arith.constant 0 : index
    %c0_51 = arith.constant 0 : index
    %59 = vector.load %arg3[%c0_49, %58, %c0_50, %c0_51] : memref<1x18x18x128xbf16, #tpu.memory_space<vmem>>, vector<1x8x16x128xbf16>
    %60 = vector.shape_cast %59 : vector<1x8x16x128xbf16> to vector<8x16x128xbf16>
    %61 = vector.shape_cast %60 : vector<8x16x128xbf16> to vector<128x128xbf16>
    %c2_52 = arith.constant 2 : index
    %c0_53 = arith.constant 0 : index
    %c0_54 = arith.constant 0 : index
    %c0_55 = arith.constant 0 : index
    %62 = vector.load %arg4[%c2_52, %c0_53, %c0_54, %c0_55] : memref<3x3x128x128xbf16, #tpu.memory_space<vmem>>, vector<1x1x128x128xbf16>
    %63 = vector.shape_cast %62 : vector<1x1x128x128xbf16> to vector<128x128xbf16>
    %cst_56 = arith.constant dense<0.000000e+00> : vector<128x128xf32>
    %64 = tpu.matmul %61, %63, %cst_56 {dimension_numbers = #tpu.dot_dimension_numbers<[1], [0], [0], [1], [0, 0, 1, 1], [], []>} : vector<128x128xbf16>, vector<128x128xbf16>, vector<128x128xf32> -> vector<128x128xf32>
    %65 = arith.addf %56, %64 : vector<128x128xf32>
    %c2_i32_57 = arith.constant 2 : i32
    %66 = arith.addi %1, %c2_i32_57 : i32
    %c0_58 = arith.constant 0 : index
    %67 = arith.index_cast %66 : i32 to index
    %c1_59 = arith.constant 1 : index
    %c0_60 = arith.constant 0 : index
    %68 = vector.load %arg3[%c0_58, %67, %c1_59, %c0_60] : memref<1x18x18x128xbf16, #tpu.memory_space<vmem>>, vector<1x8x16x128xbf16>
    %69 = vector.shape_cast %68 : vector<1x8x16x128xbf16> to vector<8x16x128xbf16>
    %70 = vector.shape_cast %69 : vector<8x16x128xbf16> to vector<128x128xbf16>
    %c2_61 = arith.constant 2 : index
    %c1_62 = arith.constant 1 : index
    %c0_63 = arith.constant 0 : index
    %c0_64 = arith.constant 0 : index
    %71 = vector.load %arg4[%c2_61, %c1_62, %c0_63, %c0_64] : memref<3x3x128x128xbf16, #tpu.memory_space<vmem>>, vector<1x1x128x128xbf16>
    %72 = vector.shape_cast %71 : vector<1x1x128x128xbf16> to vector<128x128xbf16>
    %cst_65 = arith.constant dense<0.000000e+00> : vector<128x128xf32>
    %73 = tpu.matmul %70, %72, %cst_65 {dimension_numbers = #tpu.dot_dimension_numbers<[1], [0], [0], [1], [0, 0, 1, 1], [], []>} : vector<128x128xbf16>, vector<128x128xbf16>, vector<128x128xf32> -> vector<128x128xf32>
    %74 = arith.addf %65, %73 : vector<128x128xf32>
    %c2_i32_66 = arith.constant 2 : i32
    %75 = arith.addi %1, %c2_i32_66 : i32
    %c0_67 = arith.constant 0 : index
    %76 = arith.index_cast %75 : i32 to index
    %c2_68 = arith.constant 2 : index
    %c0_69 = arith.constant 0 : index
    %77 = vector.load %arg3[%c0_67, %76, %c2_68, %c0_69] : memref<1x18x18x128xbf16, #tpu.memory_space<vmem>>, vector<1x8x16x128xbf16>
    %78 = vector.shape_cast %77 : vector<1x8x16x128xbf16> to vector<8x16x128xbf16>
    %79 = vector.shape_cast %78 : vector<8x16x128xbf16> to vector<128x128xbf16>
    %c2_70 = arith.constant 2 : index
    %c2_71 = arith.constant 2 : index
    %c0_72 = arith.constant 0 : index
    %c0_73 = arith.constant 0 : index
    %80 = vector.load %arg4[%c2_70, %c2_71, %c0_72, %c0_73] : memref<3x3x128x128xbf16, #tpu.memory_space<vmem>>, vector<1x1x128x128xbf16>
    %81 = vector.shape_cast %80 : vector<1x1x128x128xbf16> to vector<128x128xbf16>
    %cst_74 = arith.constant dense<0.000000e+00> : vector<128x128xf32>
    %82 = tpu.matmul %79, %81, %cst_74 {dimension_numbers = #tpu.dot_dimension_numbers<[1], [0], [0], [1], [0, 0, 1, 1], [], []>} : vector<128x128xbf16>, vector<128x128xbf16>, vector<128x128xf32> -> vector<128x128xf32>
    %83 = arith.addf %74, %82 : vector<128x128xf32>
    %c0_75 = arith.constant 0 : index
    %c0_76 = arith.constant 0 : index
    %84 = vector.load %arg5[%c0_75, %c0_76] : memref<1x128xf32, #tpu.memory_space<vmem>>, vector<1x128xf32>
    %85 = vector.broadcast %84 : vector<1x128xf32> to vector<128x128xf32>
    %86 = arith.mulf %83, %85 : vector<128x128xf32>
    %c0_77 = arith.constant 0 : index
    %c0_78 = arith.constant 0 : index
    %87 = vector.load %arg6[%c0_77, %c0_78] : memref<1x128xf32, #tpu.memory_space<vmem>>, vector<1x128xf32>
    %88 = vector.broadcast %87 : vector<1x128xf32> to vector<128x128xf32>
    %89 = arith.addf %86, %88 : vector<128x128xf32>
    %c0_79 = arith.constant 0 : index
    %c0_80 = arith.constant 0 : index
    %c0_81 = arith.constant 0 : index
    %c0_82 = arith.constant 0 : index
    %90 = vector.load %arg7[%c0_79, %c0_80, %c0_81, %c0_82] : memref<1x8x16x128xf32, #tpu.memory_space<vmem>>, vector<1x8x16x128xf32>
    %91 = vector.shape_cast %90 : vector<1x8x16x128xf32> to vector<8x16x128xf32>
    %92 = vector.shape_cast %91 : vector<8x16x128xf32> to vector<128x128xf32>
    %93 = arith.addf %89, %92 : vector<128x128xf32>
    %cst_83 = arith.constant 0.000000e+00 : f32
    %94 = vector.broadcast %cst_83 : f32 to vector<128x128xf32>
    %95 = arith.maximumf %93, %94 : vector<128x128xf32>
    %96 = vector.shape_cast %95 : vector<128x128xf32> to vector<8x16x128xf32>
    %c0_84 = arith.constant 0 : index
    %c0_85 = arith.constant 0 : index
    %c0_86 = arith.constant 0 : index
    %c0_87 = arith.constant 0 : index
    %97 = vector.load %arg8[%c0_84, %c0_85, %c0_86, %c0_87] : memref<1x8x16x128xf32, #tpu.memory_space<vmem>>, vector<1x8x16x128xf32>
    %98 = vector.shape_cast %97 : vector<1x8x16x128xf32> to vector<8x16x128xf32>
    %99 = vector.shape_cast %96 : vector<8x16x128xf32> to vector<1x8x16x128xf32>
    tpu.vector_store %arg8[%c0_84, %c0_85, %c0_86, %c0_87], %99 {strides = array<i32>} : memref<1x8x16x128xf32, #tpu.memory_space<vmem>>, vector<1x8x16x128xf32>,
    return
  }
  func.func @transform_0(%arg0: i32, %arg1: i32, %arg2: i32) -> (i32, i32, i32, i32) {
    %c0_i32 = arith.constant 0 : i32
    %c0_i32_0 = arith.constant 0 : i32
    %c0_i32_1 = arith.constant 0 : i32
    %c0_i32_2 = arith.constant 0 : i32
    return %arg0, %c0_i32, %c0_i32_0, %c0_i32_1 : i32, i32, i32, i32
  }
  func.func @transform_1(%arg0: i32, %arg1: i32, %arg2: i32) -> (i32, i32, i32, i32) {
    %c0_i32 = arith.constant 0 : i32
    %c0_i32_0 = arith.constant 0 : i32
    %c0_i32_1 = arith.constant 0 : i32
    %c0_i32_2 = arith.constant 0 : i32
    return %c0_i32, %c0_i32_0, %c0_i32_1, %arg1 : i32, i32, i32, i32
  }
  func.func @transform_2(%arg0: i32, %arg1: i32, %arg2: i32) -> (i32, i32) {
    %c0_i32 = arith.constant 0 : i32
    %c0_i32_0 = arith.constant 0 : i32
    return %c0_i32, %arg1 : i32, i32
  }
  func.func @transform_3(%arg0: i32, %arg1: i32, %arg2: i32) -> (i32, i32) {
    %c0_i32 = arith.constant 0 : i32
    %c0_i32_0 = arith.constant 0 : i32
    return %c0_i32, %arg1 : i32, i32
  }
  func.func @transform_4(%arg0: i32, %arg1: i32, %arg2: i32) -> (i32, i32, i32, i32) {
    %c0_i32 = arith.constant 0 : i32
    %c0_i32_0 = arith.constant 0 : i32
    return %arg0, %arg2, %c0_i32, %arg1 : i32, i32, i32, i32
  }
  func.func @transform_5(%arg0: i32, %arg1: i32, %arg2: i32) -> (i32, i32, i32, i32) {
    %c0_i32 = arith.constant 0 : i32
    %c0_i32_0 = arith.constant 0 : i32
    return %arg0, %arg2, %c0_i32, %arg1 : i32, i32, i32, i32
  }
}

</mosaic_0001>

<llo_original>
// kernel: _lambda_.3
$region0: #{_lambda_.3}
  #allocation0 [shape = 'u32[]', space=smem, size = 0x4, offset = 0x4, fixed_abs, tag = 'smem constant byte address 0x4 - core index']
  #allocation1 [shape = 'u32[144,128]{1,0:T(1,128)}', space=vmem, size = 0x12000, scoped, tag = 'internal scratch']
  %s0 = inlined_call_operand.vmem [shape: bf16[2,18,18,128], index: 0, kind: input, shape index: {}]
  %s1 = inlined_call_operand.vmem [shape: bf16[3,3,128,128], index: 1, kind: input, shape index: {}]
  %s2 = inlined_call_operand.vmem [shape: f32[1,128], index: 2, kind: input, shape index: {}]
  %s3 = inlined_call_operand.vmem [shape: f32[1,128], index: 3, kind: input, shape index: {}]
  %s4 = inlined_call_operand.vmem [shape: f32[2,16,16,128], index: 4, kind: input, shape index: {}]
  %s5 = inlined_call_operand.vmem [shape: f32[2,16,16,128], index: 5, kind: output, shape index: {}]
  %s6 = sld [smem:[#allocation0]]
  $region53: #{_lambda_.3} parent=0
    _
  %s8 = ssub.s32 1, %s6
  %s9 = scalar_select 0, %s8, %s6
  loop: start=0, step=1, limit=6
  $region2: #{_lambda_.3} parent=0 // loop_pre_header
    _
  $region3: #{_lambda_.3} parent=0 // loop_header
    %s11 = sphi 0, %s15
    %p12 = scmp.ge.s32.totalorder %s11, 6
    %s18 = sphi 0, %s37
    %s19 = sphi 0, %s33
    %s20 = sphi 0, %s29
    %s21 = sphi 0, %s18
    %s22 = sphi 0, %s19
    %s23 = sphi 0, %s20
    %s24 = sphi 0, %s21
    %s25 = sphi 0, %s22
    %s26 = sphi 0, %s23
    %s40 = sphi 0, %s42
    %s43 = sphi 0, %s40
    %s44 = sphi 0, %s43
    %s60 = sphi 0, %s44
    %s66 = sphi 0, %s68
    %s69 = sphi 0, %s66
    %s70 = sphi 0, %s69
    %s86 = sphi 0, %s70
    %s92 = sphi 0, %s94
    %s95 = sphi 0, %s92
    %s96 = sphi 0, %s95
    %s112 = sphi 0, %s96
    %s118 = sphi 0, %s120
    %s121 = sphi 0, %s118
    %s122 = sphi 0, %s121
    %s138 = sphi 0, %s122
    %s148 = sphi 0, %s150
    %s151 = sphi 0, %s148
    %s152 = sphi 0, %s151
    %s168 = sphi 0, %s152
    %s178 = sphi 0, %s180
    %s181 = sphi 0, %s178
    %s182 = sphi 0, %s181
    %s198 = sphi 0, %s182
  $region4: #{_lambda_.3} parent=0 // loop_header_branch
    %14 = sbr.rel (%p12) target = $region8
  $region5: #{_lambda_.3} parent=0 // loop_body
    %s16 = ssub.s32 %s11, 1
    %s17 = ssub.s32 %s11, 2
    %s27 = sadd.s32 1, %s20
    %p28 = scmp.ge.s32.totalorder %s27, 2
    %s29 = scalar_select %p28, 0, %s27
    %s30 = sadd.s32 1, %s19
    %s31 = scalar_select %p28, %s30, %s19
    %p32 = scmp.ge.s32.totalorder %s31, 1
    %s33 = scalar_select %p32, 0, %s31
    %s34 = sadd.s32 1, %s18
    %s35 = scalar_select %p32, %s34, %s18
    %p36 = scmp.ge.s32.totalorder %s35, 2
    %s37 = scalar_select %p36, 0, %s35
    %s38 = ssub.s32 %s18, %s37
    %p39 = scmp.eq.s32.totalorder %s38, 0
    %s41 = sadd.s32 %s40, 1
    %s42 = scalar_select %p39, %s40, %s41
    %p45 = pneg %p39
    %p46 = scmp.eq.s32.totalorder %s11, 3
    %p47 = por %p45, %p46
    %p48 = scmp.ne.s32.totalorder %s40, %s43
    %p49 = scmp.eq.s32.totalorder %s11, 0
    %p50 = por %p48, %p49
    %p51 = scmp.ne.s32.totalorder %s40, %s43
    %p52 = scmp.eq.s32.totalorder %s16, 3
    %p53 = por %p51, %p52
    %p54 = scmp.ne.s32.totalorder %s43, %s44
    %p55 = scmp.eq.s32.totalorder %s16, 0
    %p56 = por %p54, %p55
    %p57 = scmp.ne.s32.totalorder %s43, %s44
    %p58 = scmp.eq.s32.totalorder %s17, 3
    %p59 = por %p57, %p58
    %p61 = scmp.ne.s32.totalorder %s44, %s60
    %p62 = scmp.eq.s32.totalorder %s17, 0
    %p63 = por %p61, %p62
    %s64 = ssub.s32 %s19, %s33
    %p65 = scmp.eq.s32.totalorder %s64, 0
    %s67 = sadd.s32 %s66, 1
    %s68 = scalar_select %p65, %s66, %s67
    %p71 = pneg %p65
    %p72 = scmp.eq.s32.totalorder %s11, 3
    %p73 = por %p71, %p72
    %p74 = scmp.ne.s32.totalorder %s66, %s69
    %p75 = scmp.eq.s32.totalorder %s11, 0
    %p76 = por %p74, %p75
    %p77 = scmp.ne.s32.totalorder %s66, %s69
    %p78 = scmp.eq.s32.totalorder %s16, 3
    %p79 = por %p77, %p78
    %p80 = scmp.ne.s32.totalorder %s69, %s70
    %p81 = scmp.eq.s32.totalorder %s16, 0
    %p82 = por %p80, %p81
    %p83 = scmp.ne.s32.totalorder %s69, %s70
    %p84 = scmp.eq.s32.totalorder %s17, 3
    %p85 = por %p83, %p84
    %p87 = scmp.ne.s32.totalorder %s70, %s86
    %p88 = scmp.eq.s32.totalorder %s17, 0
    %p89 = por %p87, %p88
    %s90 = ssub.s32 %s19, %s33
    %p91 = scmp.eq.s32.totalorder %s90, 0
    %s93 = sadd.s32 %s92, 1
    %s94 = scalar_select %p91, %s92, %s93
    %p97 = pneg %p91
    %p98 = scmp.eq.s32.totalorder %s11, 3
    %p99 = por %p97, %p98
    %p100 = scmp.ne.s32.totalorder %s92, %s95
    %p101 = scmp.eq.s32.totalorder %s11, 0
    %p102 = por %p100, %p101
    %p103 = scmp.ne.s32.totalorder %s92, %s95
    %p104 = scmp.eq.s32.totalorder %s16, 3
    %p105 = por %p103, %p104
    %p106 = scmp.ne.s32.totalorder %s95, %s96
    %p107 = scmp.eq.s32.totalorder %s16, 0
    %p108 = por %p106, %p107
    %p109 = scmp.ne.s32.totalorder %s95, %s96
    %p110 = scmp.eq.s32.totalorder %s17, 3
    %p111 = por %p109, %p110
    %p113 = scmp.ne.s32.totalorder %s96, %s112
    %p114 = scmp.eq.s32.totalorder %s17, 0
    %p115 = por %p113, %p114
    %s116 = ssub.s32 %s19, %s33
    %p117 = scmp.eq.s32.totalorder %s116, 0
    %s119 = sadd.s32 %s118, 1
    %s120 = scalar_select %p117, %s118, %s119
    %p123 = pneg %p117
    %p124 = scmp.eq.s32.totalorder %s11, 3
    %p125 = por %p123, %p124
    %p126 = scmp.ne.s32.totalorder %s118, %s121
    %p127 = scmp.eq.s32.totalorder %s11, 0
    %p128 = por %p126, %p127
    %p129 = scmp.ne.s32.totalorder %s118, %s121
    %p130 = scmp.eq.s32.totalorder %s16, 3
    %p131 = por %p129, %p130
    %p132 = scmp.ne.s32.totalorder %s121, %s122
    %p133 = scmp.eq.s32.totalorder %s16, 0
    %p134 = por %p132, %p133
    %p135 = scmp.ne.s32.totalorder %s121, %s122
    %p136 = scmp.eq.s32.totalorder %s17, 3
    %p137 = por %p135, %p136
    %p139 = scmp.ne.s32.totalorder %s122, %s138
    %p140 = scmp.eq.s32.totalorder %s17, 0
    %p141 = por %p139, %p140
    %s142 = ssub.s32 %s18, %s37
    %s143 = ssub.s32 %s20, %s29
    %s144 = sor.u32 %s142, %s143
    %s145 = ssub.s32 %s19, %s33
    %s146 = sor.u32 %s144, %s145
    %p147 = scmp.eq.s32.totalorder %s146, 0
    %s149 = sadd.s32 %s148, 1
    %s150 = scalar_select %p147, %s148, %s149
    %p153 = pneg %p147
    %p154 = scmp.eq.s32.totalorder %s11, 3
    %p155 = por %p153, %p154
    %p156 = scmp.ne.s32.totalorder %s148, %s151
    %p157 = scmp.eq.s32.totalorder %s11, 0
    %p158 = por %p156, %p157
    %p159 = scmp.ne.s32.totalorder %s148, %s151
    %p160 = scmp.eq.s32.totalorder %s16, 3
    %p161 = por %p159, %p160
    %p162 = scmp.ne.s32.totalorder %s151, %s152
    %p163 = scmp.eq.s32.totalorder %s16, 0
    %p164 = por %p162, %p163
    %p165 = scmp.ne.s32.totalorder %s151, %s152
    %p166 = scmp.eq.s32.totalorder %s17, 3
    %p167 = por %p165, %p166
    %p169 = scmp.ne.s32.totalorder %s152, %s168
    %p170 = scmp.eq.s32.totalorder %s17, 0
    %p171 = por %p169, %p170
    %s172 = ssub.s32 %s18, %s37
    %s173 = ssub.s32 %s20, %s29
    %s174 = sor.u32 %s172, %s173
    %s175 = ssub.s32 %s19, %s33
    %s176 = sor.u32 %s174, %s175
    %p177 = scmp.eq.s32.totalorder %s176, 0
    %s179 = sadd.s32 %s178, 1
    %s180 = scalar_select %p177, %s178, %s179
    %p183 = pneg %p177
    %p184 = scmp.eq.s32.totalorder %s11, 3
    %p185 = por %p183, %p184
    %p186 = scmp.ne.s32.totalorder %s178, %s181
    %p187 = scmp.eq.s32.totalorder %s11, 0
    %p188 = por %p186, %p187
    %p189 = scmp.ne.s32.totalorder %s178, %s181
    %p190 = scmp.eq.s32.totalorder %s16, 3
    %p191 = por %p189, %p190
    %p192 = scmp.ne.s32.totalorder %s181, %s182
    %p193 = scmp.eq.s32.totalorder %s16, 0
    %p194 = por %p192, %p193
    %p195 = scmp.ne.s32.totalorder %s181, %s182
    %p196 = scmp.eq.s32.totalorder %s17, 3
    %p197 = por %p195, %p196
    %p199 = scmp.ne.s32.totalorder %s182, %s198
    %p200 = scmp.eq.s32.totalorder %s17, 0
    %p201 = por %p199, %p200
    %p202 = scmp.le.s32.totalorder 1, %s11
    %p203 = scmp.lt.s32.totalorder %s11, 5
    %p204 = pnand %p202, %p203
    %p205 = pneg %p204
    // Predicated region
    $region9: #{_lambda_.3} parent=5 // pred_check
      _
    $region10: #{_lambda_.3} parent=5 // pred_check_branch
      %207 = sbr.rel (%p204) target = $region12
    $region11: #{_lambda_.3} parent=5 // pred_region
      %s208 = ssub.s32 %s11, 1
      // Predicated region
      $region13: #{_lambda_.3} parent=11 // pred_check
        %p209 = pneg %p82
      $region14: #{_lambda_.3} parent=11 // pred_check_branch
        %211 = sbr.rel (%p209) target = $region16
      $region15: #{_lambda_.3} parent=11 // pred_region
        %p212 = scmp.lt.s32.totalorder %s22, 0
        %s213 = scalar_select %p212, %s22, 0
        %s214 = smul.addr %s213, 4
        %s215 = scalar_lea.vmem %s1, %s214
      $region16: #{_lambda_.3} parent=11 // pred_fallthru
        _
      // Predicated region
      $region17: #{_lambda_.3} parent=11 // pred_check
        %p216 = pneg %p108
      $region18: #{_lambda_.3} parent=11 // pred_check_branch
        %218 = sbr.rel (%p216) target = $region20
      $region19: #{_lambda_.3} parent=11 // pred_region
        %p219 = scmp.lt.s32.totalorder %s22, 0
        %s220 = scalar_select %p219, %s22, 0
        %s221 = scalar_lea.vmem %s2, %s220
      $region20: #{_lambda_.3} parent=11 // pred_fallthru
        _
      // Predicated region
      $region21: #{_lambda_.3} parent=11 // pred_check
        %p222 = pneg %p134
      $region22: #{_lambda_.3} parent=11 // pred_check_branch
        %224 = sbr.rel (%p222) target = $region24
      $region23: #{_lambda_.3} parent=11 // pred_region
        %p225 = scmp.lt.s32.totalorder %s22, 0
        %s226 = scalar_select %p225, %s22, 0
        %s227 = scalar_lea.vmem %s3, %s226
      $region24: #{_lambda_.3} parent=11 // pred_fallthru
        _
    $region12: #{_lambda_.3} parent=5 // pred_fallthru
      _
    %p228 = scmp.lt.s32.totalorder %s11, 4
    // Predicated region
    $region25: #{_lambda_.3} parent=5 // pred_check
      %p229 = pneg %p228
    $region26: #{_lambda_.3} parent=5 // pred_check_branch
      %231 = sbr.rel (%p229) target = $region28
    $region27: #{_lambda_.3} parent=5 // pred_region
      // Predicated region
      $region29: #{_lambda_.3} parent=27 // pred_check
        %p232 = pneg %p50
      $region30: #{_lambda_.3} parent=27 // pred_check_branch
        %234 = sbr.rel (%p232) target = $region32
      $region31: #{_lambda_.3} parent=27 // pred_region
        %p235 = scmp.lt.s32.totalorder %s18, 1
        %s236 = scalar_select %p235, %s18, 1
        %s237 = smul.addr %s236, 54
        %s238 = smul.addr %s237, 4
        %s239 = scalar_lea.vmem %s0, %s238
      $region32: #{_lambda_.3} parent=27 // pred_fallthru
        _
      // Predicated region
      $region33: #{_lambda_.3} parent=27 // pred_check
        %p240 = pneg %p158
      $region34: #{_lambda_.3} parent=27 // pred_check_branch
        %242 = sbr.rel (%p240) target = $region36
      $region35: #{_lambda_.3} parent=27 // pred_region
        %s243 = smul.u32 8, %s20
        %p244 = scmp.lt.s32.totalorder %s18, 1
        %s245 = scalar_select %p244, %s18, 1
        %p246 = scmp.lt.s32.totalorder %s243, 15
        %s247 = scalar_select %p246, %s243, 15
        %p248 = scmp.lt.s32.totalorder %s19, 0
        %s249 = scalar_select %p248, %s19, 0
        %s250 = smul.addr %s247, 2
        %s251 = sadd.s32 %s249, %s250
        %s252 = smul.addr %s245, 32
        %s253 = sadd.s32 %s251, %s252
        %s254 = smul.addr %s253, 8
        %s255 = scalar_lea.vmem %s4, %s254
        %s256 = smul.u32 8, %s20
      $region36: #{_lambda_.3} parent=27 // pred_fallthru
        _
    $region28: #{_lambda_.3} parent=5 // pred_fallthru
      _
    %p257 = scmp.le.s32.totalorder 1, %s11
    %p258 = scmp.lt.s32.totalorder %s11, 5
    %p259 = pnand %p257, %p258
    %p260 = pneg %p259
    // Predicated region
    $region37: #{_lambda_.3} parent=5 // pred_check
      _
    $region38: #{_lambda_.3} parent=5 // pred_check_branch
      %262 = sbr.rel (%p259) target = $region40
    $region39: #{_lambda_.3} parent=5 // pred_region
      %s263 = ssub.s32 %s11, 1
      %p264 = scmp.lt.s32.totalorder %s21, 1
      %s265 = scalar_select %p264, %s21, 1
      %s266 = smul.addr %s265, 54
      %s267 = smul.addr %s266, 4
      %s268 = scalar_lea.vmem %s0, %s267
      %p269 = pneg %p56
      %p270 = pneg %p53
      %p271 = scmp.lt.s32.totalorder %s22, 0
      %s272 = scalar_select %p271, %s22, 0
      %s273 = smul.addr %s272, 4
      %s274 = scalar_lea.vmem %s1, %s273
      %p275 = pneg %p82
      %p276 = pneg %p79
      %p277 = scmp.lt.s32.totalorder %s22, 0
      %s278 = scalar_select %p277, %s22, 0
      %s279 = scalar_lea.vmem %s2, %s278
      %p280 = pneg %p108
      %p281 = pneg %p105
      %p282 = scmp.lt.s32.totalorder %s22, 0
      %s283 = scalar_select %p282, %s22, 0
      %s284 = scalar_lea.vmem %s3, %s283
      %p285 = pneg %p134
      %p286 = pneg %p131
      %s287 = smul.u32 8, %s23
      %p288 = scmp.lt.s32.totalorder %s21, 1
      %s289 = scalar_select %p288, %s21, 1
      %p290 = scmp.lt.s32.totalorder %s287, 15
      %s291 = scalar_select %p290, %s287, 15
      %p292 = scmp.lt.s32.totalorder %s22, 0
      %s293 = scalar_select %p292, %s22, 0
      %s294 = smul.addr %s291, 2
      %s295 = sadd.s32 %s293, %s294
      %s296 = smul.addr %s289, 32
      %s297 = sadd.s32 %s295, %s296
      %s298 = smul.addr %s297, 8
      %s299 = scalar_lea.vmem %s4, %s298
      %p300 = pneg %p164
      %p301 = pneg %p161
      %p302 = pneg %p194
      %p303 = pneg %p191
      %s304 = smul.u32 8, %s23
      %p305 = scmp.lt.s32.totalorder %s21, 1
      %s306 = scalar_select %p305, %s21, 1
      %p307 = scmp.lt.s32.totalorder %s304, 15
      %s308 = scalar_select %p307, %s304, 15
      %p309 = scmp.lt.s32.totalorder %s22, 0
      %s310 = scalar_select %p309, %s22, 0
      %s311 = smul.addr %s308, 2
      %s312 = sadd.s32 %s310, %s311
      %s313 = smul.addr %s306, 32
      %s314 = sadd.s32 %s312, %s313
      %s315 = smul.addr %s314, 8
      %s316 = scalar_lea.vmem %s5, %s315
      %p317 = scmp.lt.s32.totalorder %s21, 1
      %s318 = scalar_select %p317, %s21, 1
      %s319 = smul.addr %s318, 54
      %s320 = smul.addr %s319, 4
      %s321 = scalar_lea.vmem %s0, %s320
      %p322 = scmp.lt.s32.totalorder %s22, 0
      %s323 = scalar_select %p322, %s22, 0
      %s324 = smul.addr %s323, 4
      %s325 = scalar_lea.vmem %s1, %s324
      %p326 = scmp.lt.s32.totalorder %s22, 0
      %s327 = scalar_select %p326, %s22, 0
      %s328 = scalar_lea.vmem %s2, %s327
      %p329 = scmp.lt.s32.totalorder %s22, 0
      %s330 = scalar_select %p329, %s22, 0
      %s331 = scalar_lea.vmem %s3, %s330
      %s332 = smul.u32 8, %s23
      %p333 = scmp.lt.s32.totalorder %s21, 1
      %s334 = scalar_select %p333, %s21, 1
      %p335 = scmp.lt.s32.totalorder %s332, 15
      %s336 = scalar_select %p335, %s332, 15
      %p337 = scmp.lt.s32.totalorder %s22, 0
      %s338 = scalar_select %p337, %s22, 0
      %s339 = smul.addr %s336, 2
      %s340 = sadd.s32 %s338, %s339
      %s341 = smul.addr %s334, 32
      %s342 = sadd.s32 %s340, %s341
      %s343 = smul.addr %s342, 8
      %s344 = scalar_lea.vmem %s4, %s343
      %s345 = smul.u32 8, %s23
      %s346 = smul.u32 8, %s23
      %p347 = scmp.lt.s32.totalorder %s21, 1
      %s348 = scalar_select %p347, %s21, 1
      %p349 = scmp.lt.s32.totalorder %s346, 15
      %s350 = scalar_select %p349, %s346, 15
      %p351 = scmp.lt.s32.totalorder %s22, 0
      %s352 = scalar_select %p351, %s22, 0
      %s353 = smul.addr %s350, 2
      %s354 = sadd.s32 %s352, %s353
      %s355 = smul.addr %s348, 32
      %s356 = sadd.s32 %s354, %s355
      %s357 = smul.addr %s356, 8
      %s358 = scalar_lea.vmem %s5, %s357
      %s359 = smul.u32 8, %s23
      %s361 = smul.u32 %s23, 8
      %s362 = smul.u32 %s361, 3
      %s363 = smul.addr %s362, 4
      %s364 = scalar_lea.vmem %s321, %s363
      %v365 = vld [vmem:[%s364] sm:$0xf]
      %v366 = vld [vmem:[%s364 + $0x4] sm:$0xf]
      %v367 = vld [vmem:[%s364 + $0xc] sm:$0xf]
      %v368 = vld [vmem:[%s364 + $0x10] sm:$0xf]
      %v369 = vld [vmem:[%s364 + $0x18] sm:$0xf]
      %v370 = vld [vmem:[%s364 + $0x1c] sm:$0xf]
      %v371 = vld [vmem:[%s364 + $0x24] sm:$0xf]
      %v372 = vld [vmem:[%s364 + $0x28] sm:$0xf]
      %v373 = vld [vmem:[%s364 + $0x30] sm:$0xf]
      %v374 = vld [vmem:[%s364 + $0x34] sm:$0xf]
      %v375 = vld [vmem:[%s364 + $0x3c] sm:$0xf]
      %v376 = vld [vmem:[%s364 + $0x40] sm:$0xf]
      %v377 = vld [vmem:[%s364 + $0x48] sm:$0xf]
      %v378 = vld [vmem:[%s364 + $0x4c] sm:$0xf]
      %v379 = vld [vmem:[%s364 + $0x54] sm:$0xf]
      %v380 = vld [vmem:[%s364 + $0x58] sm:$0xf]
      %v381 = vld [vmem:[%s325] sm:$0xf]
      %v382 = vld [vmem:[%s325 + $0x4] sm:$0xf]
      %v383 = vld [vmem:[%s325 + $0x8] sm:$0xf]
      %v384 = vld [vmem:[%s325 + $0xc] sm:$0xf]
      %v385 = vld [vmem:[%s325 + $0x10] sm:$0xf]
      %v386 = vld [vmem:[%s325 + $0x14] sm:$0xf]
      %v387 = vld [vmem:[%s325 + $0x18] sm:$0xf]
      %v388 = vld [vmem:[%s325 + $0x1c] sm:$0xf]
      %v389 = vld [vmem:[%s325 + $0x20] sm:$0xf]
      %v390 = vld [vmem:[%s325 + $0x24] sm:$0xf]
      %v391 = vld [vmem:[%s325 + $0x28] sm:$0xf]
      %v392 = vld [vmem:[%s325 + $0x2c] sm:$0xf]
      %v393 = vld [vmem:[%s325 + $0x30] sm:$0xf]
      %v394 = vld [vmem:[%s325 + $0x34] sm:$0xf]
      %v395 = vld [vmem:[%s325 + $0x38] sm:$0xf]
      %v396 = vld [vmem:[%s325 + $0x3c] sm:$0xf]
      %v397 = vld [vmem:[%s364 + $0x8] sm:$0x1]
      %v398 = vld [vmem:[%s364 + $0x14] sm:$0x1]
      %v399 = vld [vmem:[%s364 + $0x20] sm:$0x1]
      %v400 = vld [vmem:[%s364 + $0x2c] sm:$0x1]
      %v401 = vld [vmem:[%s364 + $0x38] sm:$0x1]
      %v402 = vld [vmem:[%s364 + $0x44] sm:$0x1]
      %v403 = vld [vmem:[%s364 + $0x50] sm:$0x1]
      %v404 = vld [vmem:[%s364 + $0x5c] sm:$0x1]
      %vm405 = vsmask.f32 3328
      %vm406 = vsmask.f32 7440
      %vm407 = vmor %vm405, %vm406
      %v409 = vshrl.u32 %v365, 16
      %v411 = vrot.slane %v409, 4
      %v412 = vshll.u32 %v365, 16
      %v414 = vrot.slane %v412, 5
      %v415 = vor.u32 %v411, %v414
      %v416 = vrot.slane %v415, 4
      %v418 = vshll.u32 %v366, 16
      %v420 = vrot.slane %v418, 5
      %v421 = vsel %vm407, %v416, %v420
      %v422 = vshrl.u32 %v366, 16
      %v424 = vrot.slane %v422, 4
      %v425 = vor.u32 %v424, %v420
      %v426 = vrot.slane %v425, 4
      %v428 = vshll.u32 %v397, 16
      %v430 = vrot.slane %v428, 5
      %v431 = vsel %vm407, %v426, %v430
      %v433 = vshrl.u32 %v367, 16
      %v435 = vrot.slane %v433, 4
      %v436 = vshll.u32 %v367, 16
      %v438 = vrot.slane %v436, 5
      %v439 = vor.u32 %v435, %v438
      %v440 = vrot.slane %v439, 4
      %v442 = vshll.u32 %v368, 16
      %v444 = vrot.slane %v442, 5
      %v445 = vsel %vm407, %v440, %v444
      %v446 = vshrl.u32 %v368, 16
      %v448 = vrot.slane %v446, 4
      %v449 = vor.u32 %v448, %v444
      %v450 = vrot.slane %v449, 4
      %v452 = vshll.u32 %v398, 16
      %v454 = vrot.slane %v452, 5
      %v455 = vsel %vm407, %v450, %v454
      %v457 = vshrl.u32 %v369, 16
      %v459 = vrot.slane %v457, 4
      %v460 = vshll.u32 %v369, 16
      %v462 = vrot.slane %v460, 5
      %v463 = vor.u32 %v459, %v462
      %v464 = vrot.slane %v463, 4
      %v466 = vshll.u32 %v370, 16
      %v468 = vrot.slane %v466, 5
      %v469 = vsel %vm407, %v464, %v468
      %v470 = vshrl.u32 %v370, 16
      %v472 = vrot.slane %v470, 4
      %v473 = vor.u32 %v472, %v468
      %v474 = vrot.slane %v473, 4
      %v476 = vshll.u32 %v399, 16
      %v478 = vrot.slane %v476, 5
      %v479 = vsel %vm407, %v474, %v478
      %v481 = vshrl.u32 %v371, 16
      %v483 = vrot.slane %v481, 4
      %v484 = vshll.u32 %v371, 16
      %v486 = vrot.slane %v484, 5
      %v487 = vor.u32 %v483, %v486
      %v488 = vrot.slane %v487, 4
      %v490 = vshll.u32 %v372, 16
      %v492 = vrot.slane %v490, 5
      %v493 = vsel %vm407, %v488, %v492
      %v494 = vshrl.u32 %v372, 16
      %v496 = vrot.slane %v494, 4
      %v497 = vor.u32 %v496, %v492
      %v498 = vrot.slane %v497, 4
      %v500 = vshll.u32 %v400, 16
      %v502 = vrot.slane %v500, 5
      %v503 = vsel %vm407, %v498, %v502
      %v505 = vshrl.u32 %v373, 16
      %v507 = vrot.slane %v505, 4
      %v508 = vshll.u32 %v373, 16
      %v510 = vrot.slane %v508, 5
      %v511 = vor.u32 %v507, %v510
      %v512 = vrot.slane %v511, 4
      %v514 = vshll.u32 %v374, 16
      %v516 = vrot.slane %v514, 5
      %v517 = vsel %vm407, %v512, %v516
      %v518 = vshrl.u32 %v374, 16
      %v520 = vrot.slane %v518, 4
      %v521 = vor.u32 %v520, %v516
      %v522 = vrot.slane %v521, 4
      %v524 = vshll.u32 %v401, 16
      %v526 = vrot.slane %v524, 5
      %v527 = vsel %vm407, %v522, %v526
      %v529 = vshrl.u32 %v375, 16
      %v531 = vrot.slane %v529, 4
      %v532 = vshll.u32 %v375, 16
      %v534 = vrot.slane %v532, 5
      %v535 = vor.u32 %v531, %v534
      %v536 = vrot.slane %v535, 4
      %v538 = vshll.u32 %v376, 16
      %v540 = vrot.slane %v538, 5
      %v541 = vsel %vm407, %v536, %v540
      %v542 = vshrl.u32 %v376, 16
      %v544 = vrot.slane %v542, 4
      %v545 = vor.u32 %v544, %v540
      %v546 = vrot.slane %v545, 4
      %v548 = vshll.u32 %v402, 16
      %v550 = vrot.slane %v548, 5
      %v551 = vsel %vm407, %v546, %v550
      %v553 = vshrl.u32 %v377, 16
      %v555 = vrot.slane %v553, 4
      %v556 = vshll.u32 %v377, 16
      %v558 = vrot.slane %v556, 5
      %v559 = vor.u32 %v555, %v558
      %v560 = vrot.slane %v559, 4
      %v562 = vshll.u32 %v378, 16
      %v564 = vrot.slane %v562, 5
      %v565 = vsel %vm407, %v560, %v564
      %v566 = vshrl.u32 %v378, 16
      %v568 = vrot.slane %v566, 4
      %v569 = vor.u32 %v568, %v564
      %v570 = vrot.slane %v569, 4
      %v572 = vshll.u32 %v403, 16
      %v574 = vrot.slane %v572, 5
      %v575 = vsel %vm407, %v570, %v574
      %v577 = vshrl.u32 %v379, 16
      %v579 = vrot.slane %v577, 4
      %v580 = vshll.u32 %v379, 16
      %v582 = vrot.slane %v580, 5
      %v583 = vor.u32 %v579, %v582
      %v584 = vrot.slane %v583, 4
      %v586 = vshll.u32 %v380, 16
      %v588 = vrot.slane %v586, 5
      %v589 = vsel %vm407, %v584, %v588
      %v590 = vshrl.u32 %v380, 16
      %v592 = vrot.slane %v590, 4
      %v593 = vor.u32 %v592, %v588
      %v594 = vrot.slane %v593, 4
      %v596 = vshll.u32 %v404, 16
      %v598 = vrot.slane %v596, 5
      %v599 = vsel %vm407, %v594, %v598
      %s600 = scalar_lea.vmem %s325, 64
      %v601 = vld [vmem:[%s600] sm:$0xf]
      %v602 = vld [vmem:[%s600 + $0x4] sm:$0xf]
      %v603 = vld [vmem:[%s600 + $0x8] sm:$0xf]
      %v604 = vld [vmem:[%s600 + $0xc] sm:$0xf]
      %v605 = vld [vmem:[%s600 + $0x10] sm:$0xf]
      %v606 = vld [vmem:[%s600 + $0x14] sm:$0xf]
      %v607 = vld [vmem:[%s600 + $0x18] sm:$0xf]
      %v608 = vld [vmem:[%s600 + $0x1c] sm:$0xf]
      %v609 = vld [vmem:[%s600 + $0x20] sm:$0xf]
      %v610 = vld [vmem:[%s600 + $0x24] sm:$0xf]
      %v611 = vld [vmem:[%s600 + $0x28] sm:$0xf]
      %v612 = vld [vmem:[%s600 + $0x2c] sm:$0xf]
      %v613 = vld [vmem:[%s600 + $0x30] sm:$0xf]
      %v614 = vld [vmem:[%s600 + $0x34] sm:$0xf]
      %v615 = vld [vmem:[%s600 + $0x38] sm:$0xf]
      %v616 = vld [vmem:[%s600 + $0x3c] sm:$0xf]
      %v617 = vunpack.c.l.b16 %v421
      %v618 = vunpack.c.l.b16 %v431
      %v619 = vunpack.c.l.b16 %v445
      %v620 = vunpack.c.l.b16 %v455
      %v621 = vunpack.c.l.b16 %v469
      %v622 = vunpack.c.l.b16 %v479
      %v623 = vunpack.c.l.b16 %v493
      %v624 = vunpack.c.l.b16 %v503
      %v625 = vunpack.c.l.b16 %v517
      %v626 = vunpack.c.l.b16 %v527
      %v627 = vunpack.c.l.b16 %v541
      %v628 = vunpack.c.l.b16 %v551
      %v629 = vunpack.c.l.b16 %v565
      %v630 = vunpack.c.l.b16 %v575
      %v631 = vunpack.c.l.b16 %v589
      %v632 = vunpack.c.l.b16 %v599
      %v633 = vpack.c.b16 %v618, %v617
      %v634 = vpack.c.b16 %v620, %v619
      %v635 = vpack.c.b16 %v622, %v621
      %v636 = vpack.c.b16 %v624, %v623
      %v637 = vpack.c.b16 %v626, %v625
      %v638 = vpack.c.b16 %v628, %v627
      %v639 = vpack.c.b16 %v630, %v629
      %v640 = vpack.c.b16 %v632, %v631
      %v665 = vunpack.c.l.b16 %v601
      %v666 = vunpack.c.l.b16 %v602
      %v667 = vunpack.c.l.b16 %v603
      %v668 = vunpack.c.l.b16 %v604
      %v669 = vunpack.c.l.b16 %v605
      %v670 = vunpack.c.l.b16 %v606
      %v671 = vunpack.c.l.b16 %v607
      %v672 = vunpack.c.l.b16 %v608
      %v673 = vunpack.c.l.b16 %v609
      %v674 = vunpack.c.l.b16 %v610
      %v675 = vunpack.c.l.b16 %v611
      %v676 = vunpack.c.l.b16 %v612
      %v677 = vunpack.c.l.b16 %v613
      %v678 = vunpack.c.l.b16 %v614
      %v679 = vunpack.c.l.b16 %v615
      %v680 = vunpack.c.l.b16 %v616
      %v681 = vpack.c.b16 %v666, %v665
      %v682 = vpack.c.b16 %v668, %v667
      %v683 = vpack.c.b16 %v670, %v669
      %v684 = vpack.c.b16 %v672, %v671
      %v685 = vpack.c.b16 %v674, %v673
      %v686 = vpack.c.b16 %v676, %v675
      %v687 = vpack.c.b16 %v678, %v677
      %v688 = vpack.c.b16 %v680, %v679
      %697 = vmatprep.subr.bf16.mxu0 0
      %698 = vmatpush1.bf16.msra.mxu0 %v688
      %699 = vmatprep.subr.bf16.mxu0 0
      %700 = vmatpush1.bf16.msra.mxu0 %v687
      %701 = vmatprep.subr.bf16.mxu0 0
      %702 = vmatpush1.bf16.msra.mxu0 %v686
      %703 = vmatprep.subr.bf16.mxu0 0
      %704 = vmatpush1.bf16.msra.mxu0 %v685
      %705 = vmatprep.subr.bf16.mxu0 0
      %706 = vmatpush1.bf16.msra.mxu0 %v684
      %707 = vmatprep.subr.bf16.mxu0 0
      %708 = vmatpush1.bf16.msra.mxu0 %v683
      %709 = vmatprep.subr.bf16.mxu0 0
      %710 = vmatpush1.bf16.msra.mxu0 %v682
      %711 = vmatprep.subr.bf16.mxu0 0
      %712 = vmatpush1.bf16.msra.mxu0 %v681
      %713 = vmatprep.subr.bf16.mxu0 0
      %714 = vmatpush2.bf16.msra.mxu0 0
      %715 = vmatprep.subr.bf16.mxu0 0
      %716 = vmatpush2.bf16.msra.mxu0 0
      %717 = vmatprep.subr.bf16.mxu0 0
      %718 = vmatpush2.bf16.msra.mxu0 0
      %719 = vmatprep.subr.bf16.mxu0 0
      %720 = vmatpush2.bf16.msra.mxu0 0
      %721 = vmatprep.subr.bf16.mxu0 0
      %722 = vmatpush2.bf16.msra.mxu0 0
      %723 = vmatprep.subr.bf16.mxu0 0
      %724 = vmatpush2.bf16.msra.mxu0 0
      %725 = vmatprep.subr.bf16.mxu0 0
      %726 = vmatpush2.bf16.msra.mxu0 0
      %727 = vmatprep.subr.bf16.mxu0 0
      %728 = vmatpush2.bf16.msra.mxu0 0
      %729 = vmatprep.mubr.bf16.mxu0 0
      %730 = vmatmul.mubr.bf16.gmra.mxu0 %v633
      %v731 = vpop.f32.mrf.mxu0
      %v732 = vadd.f32 0.0, %v731
      %v733 = vpop.f32.mrf.mxu0
      %v734 = vpop.f32.mrf.mxu0
      %v735 = vadd.f32 0.0, %v734
      %v736 = vpop.f32.mrf.mxu0
      %737 = vmatprep.mubr.bf16.mxu0 0
      %738 = vmatmul.mubr.bf16.gmra.mxu0 %v634
      %v739 = vpop.f32.mrf.mxu0
      %v740 = vadd.f32 0.0, %v739
      %v741 = vpop.f32.mrf.mxu0
      %v742 = vpop.f32.mrf.mxu0
      %v743 = vadd.f32 0.0, %v742
      %v744 = vpop.f32.mrf.mxu0
      %745 = vmatprep.mubr.bf16.mxu0 0
      %746 = vmatmul.mubr.bf16.gmra.mxu0 %v635
      %v747 = vpop.f32.mrf.mxu0
      %v748 = vadd.f32 0.0, %v747
      %v749 = vpop.f32.mrf.mxu0
      %v750 = vpop.f32.mrf.mxu0
      %v751 = vadd.f32 0.0, %v750
      %v752 = vpop.f32.mrf.mxu0
      %753 = vmatprep.mubr.bf16.mxu0 0
      %754 = vmatmul.mubr.bf16.gmra.mxu0 %v636
      %v755 = vpop.f32.mrf.mxu0
      %v756 = vadd.f32 0.0, %v755
      %v757 = vpop.f32.mrf.mxu0
      %v758 = vpop.f32.mrf.mxu0
      %v759 = vadd.f32 0.0, %v758
      %v760 = vpop.f32.mrf.mxu0
      %761 = vmatprep.mubr.bf16.mxu0 0
      %762 = vmatmul.mubr.bf16.gmra.mxu0 %v637
      %v763 = vpop.f32.mrf.mxu0
      %v764 = vadd.f32 0.0, %v763
      %v765 = vpop.f32.mrf.mxu0
      %v766 = vpop.f32.mrf.mxu0
      %v767 = vadd.f32 0.0, %v766
      %v768 = vpop.f32.mrf.mxu0
      %769 = vmatprep.mubr.bf16.mxu0 0
      %770 = vmatmul.mubr.bf16.gmra.mxu0 %v638
      %v771 = vpop.f32.mrf.mxu0
      %v772 = vadd.f32 0.0, %v771
      %v773 = vpop.f32.mrf.mxu0
      %v774 = vpop.f32.mrf.mxu0
      %v775 = vadd.f32 0.0, %v774
      %v776 = vpop.f32.mrf.mxu0
      %777 = vmatprep.mubr.bf16.mxu0 0
      %778 = vmatmul.mubr.bf16.gmra.mxu0 %v639
      %v779 = vpop.f32.mrf.mxu0
      %v780 = vadd.f32 0.0, %v779
      %v781 = vpop.f32.mrf.mxu0
      %v782 = vpop.f32.mrf.mxu0
      %v783 = vadd.f32 0.0, %v782
      %v784 = vpop.f32.mrf.mxu0
      %785 = vmatprep.mubr.bf16.mxu0 0
      %786 = vmatmul.mubr.bf16.gmra.mxu0 %v640
      %v787 = vpop.f32.mrf.mxu0
      %v788 = vadd.f32 0.0, %v787
      %v789 = vpop.f32.mrf.mxu0
      %v790 = vpop.f32.mrf.mxu0
      %v791 = vadd.f32 0.0, %v790
      %v792 = vpop.f32.mrf.mxu0
      %793 = vdwg.mxu0
      %v810 = vunpack.c.l.b16 %v365
      %v811 = vunpack.c.l.b16 %v366
      %v812 = vunpack.c.l.b16 %v367
      %v813 = vunpack.c.l.b16 %v368
      %v814 = vunpack.c.l.b16 %v369
      %v815 = vunpack.c.l.b16 %v370
      %v816 = vunpack.c.l.b16 %v371
      %v817 = vunpack.c.l.b16 %v372
      %v818 = vunpack.c.l.b16 %v373
      %v819 = vunpack.c.l.b16 %v374
      %v820 = vunpack.c.l.b16 %v375
      %v821 = vunpack.c.l.b16 %v376
      %v822 = vunpack.c.l.b16 %v377
      %v823 = vunpack.c.l.b16 %v378
      %v824 = vunpack.c.l.b16 %v379
      %v825 = vunpack.c.l.b16 %v380
      %v826 = vpack.c.b16 %v811, %v810
      %v827 = vpack.c.b16 %v813, %v812
      %v828 = vpack.c.b16 %v815, %v814
      %v829 = vpack.c.b16 %v817, %v816
      %v830 = vpack.c.b16 %v819, %v818
      %v831 = vpack.c.b16 %v821, %v820
      %v832 = vpack.c.b16 %v823, %v822
      %v833 = vpack.c.b16 %v825, %v824
      %v858 = vunpack.c.l.b16 %v381
      %v859 = vunpack.c.l.b16 %v382
      %v860 = vunpack.c.l.b16 %v383
      %v861 = vunpack.c.l.b16 %v384
      %v862 = vunpack.c.l.b16 %v385
      %v863 = vunpack.c.l.b16 %v386
      %v864 = vunpack.c.l.b16 %v387
      %v865 = vunpack.c.l.b16 %v388
      %v866 = vunpack.c.l.b16 %v389
      %v867 = vunpack.c.l.b16 %v390
      %v868 = vunpack.c.l.b16 %v391
      %v869 = vunpack.c.l.b16 %v392
      %v870 = vunpack.c.l.b16 %v393
      %v871 = vunpack.c.l.b16 %v394
      %v872 = vunpack.c.l.b16 %v395
      %v873 = vunpack.c.l.b16 %v396
      %v874 = vpack.c.b16 %v859, %v858
      %v875 = vpack.c.b16 %v861, %v860
      %v876 = vpack.c.b16 %v863, %v862
      %v877 = vpack.c.b16 %v865, %v864
      %v878 = vpack.c.b16 %v867, %v866
      %v879 = vpack.c.b16 %v869, %v868
      %v880 = vpack.c.b16 %v871, %v870
      %v881 = vpack.c.b16 %v873, %v872
      %890 = vmatprep.subr.bf16.mxu0 0
      %891 = vmatpush1.bf16.msra.mxu0 %v881
      %892 = vmatprep.subr.bf16.mxu0 0
      %893 = vmatpush1.bf16.msra.mxu0 %v880
      %894 = vmatprep.subr.bf16.mxu0 0
      %895 = vmatpush1.bf16.msra.mxu0 %v879
      %896 = vmatprep.subr.bf16.mxu0 0
      %897 = vmatpush1.bf16.msra.mxu0 %v878
      %898 = vmatprep.subr.bf16.mxu0 0
      %899 = vmatpush1.bf16.msra.mxu0 %v877
      %900 = vmatprep.subr.bf16.mxu0 0
      %901 = vmatpush1.bf16.msra.mxu0 %v876
      %902 = vmatprep.subr.bf16.mxu0 0
      %903 = vmatpush1.bf16.msra.mxu0 %v875
      %904 = vmatprep.subr.bf16.mxu0 0
      %905 = vmatpush1.bf16.msra.mxu0 %v874
      %906 = vmatprep.subr.bf16.mxu0 0
      %907 = vmatpush2.bf16.msra.mxu0 0
      %908 = vmatprep.subr.bf16.mxu0 0
      %909 = vmatpush2.bf16.msra.mxu0 0
      %910 = vmatprep.subr.bf16.mxu0 0
      %911 = vmatpush2.bf16.msra.mxu0 0
      %912 = vmatprep.subr.bf16.mxu0 0
      %913 = vmatpush2.bf16.msra.mxu0 0
      %914 = vmatprep.subr.bf16.mxu0 0
      %915 = vmatpush2.bf16.msra.mxu0 0
      %916 = vmatprep.subr.bf16.mxu0 0
      %917 = vmatpush2.bf16.msra.mxu0 0
      %918 = vmatprep.subr.bf16.mxu0 0
      %919 = vmatpush2.bf16.msra.mxu0 0
      %920 = vmatprep.subr.bf16.mxu0 0
      %921 = vmatpush2.bf16.msra.mxu0 0
      %922 = vmatprep.mubr.bf16.mxu0 0
      %923 = vmatmul.mubr.bf16.gmra.mxu0 %v826
      %v924 = vpop.f32.mrf.mxu0
      %v925 = vadd.f32 %v732, %v924
      %v926 = vpop.f32.mrf.mxu0
      %v927 = vpop.f32.mrf.mxu0
      %v928 = vadd.f32 %v735, %v927
      %v929 = vpop.f32.mrf.mxu0
      %930 = vmatprep.mubr.bf16.mxu0 0
      %931 = vmatmul.mubr.bf16.gmra.mxu0 %v827
      %v932 = vpop.f32.mrf.mxu0
      %v933 = vadd.f32 %v740, %v932
      %v934 = vpop.f32.mrf.mxu0
      %v935 = vpop.f32.mrf.mxu0
      %v936 = vadd.f32 %v743, %v935
      %v937 = vpop.f32.mrf.mxu0
      %938 = vmatprep.mubr.bf16.mxu0 0
      %939 = vmatmul.mubr.bf16.gmra.mxu0 %v828
      %v940 = vpop.f32.mrf.mxu0
      %v941 = vadd.f32 %v748, %v940
      %v942 = vpop.f32.mrf.mxu0
      %v943 = vpop.f32.mrf.mxu0
      %v944 = vadd.f32 %v751, %v943
      %v945 = vpop.f32.mrf.mxu0
      %946 = vmatprep.mubr.bf16.mxu0 0
      %947 = vmatmul.mubr.bf16.gmra.mxu0 %v829
      %v948 = vpop.f32.mrf.mxu0
      %v949 = vadd.f32 %v756, %v948
      %v950 = vpop.f32.mrf.mxu0
      %v951 = vpop.f32.mrf.mxu0
      %v952 = vadd.f32 %v759, %v951
      %v953 = vpop.f32.mrf.mxu0
      %954 = vmatprep.mubr.bf16.mxu0 0
      %955 = vmatmul.mubr.bf16.gmra.mxu0 %v830
      %v956 = vpop.f32.mrf.mxu0
      %v957 = vadd.f32 %v764, %v956
      %v958 = vpop.f32.mrf.mxu0
      %v959 = vpop.f32.mrf.mxu0
      %v960 = vadd.f32 %v767, %v959
      %v961 = vpop.f32.mrf.mxu0
      %962 = vmatprep.mubr.bf16.mxu0 0
      %963 = vmatmul.mubr.bf16.gmra.mxu0 %v831
      %v964 = vpop.f32.mrf.mxu0
      %v965 = vadd.f32 %v772, %v964
      %v966 = vpop.f32.mrf.mxu0
      %v967 = vpop.f32.mrf.mxu0
      %v968 = vadd.f32 %v775, %v967
      %v969 = vpop.f32.mrf.mxu0
      %970 = vmatprep.mubr.bf16.mxu0 0
      %971 = vmatmul.mubr.bf16.gmra.mxu0 %v832
      %v972 = vpop.f32.mrf.mxu0
      %v973 = vadd.f32 %v780, %v972
      %v974 = vpop.f32.mrf.mxu0
      %v975 = vpop.f32.mrf.mxu0
      %v976 = vadd.f32 %v783, %v975
      %v977 = vpop.f32.mrf.mxu0
      %978 = vmatprep.mubr.bf16.mxu0 0
      %979 = vmatmul.mubr.bf16.gmra.mxu0 %v833
      %v980 = vpop.f32.mrf.mxu0
      %v981 = vadd.f32 %v788, %v980
      %v982 = vpop.f32.mrf.mxu0
      %v983 = vpop.f32.mrf.mxu0
      %v984 = vadd.f32 %v791, %v983
      %v985 = vpop.f32.mrf.mxu0
      %986 = vdwg.mxu0
      %v987 = vld [vmem:[%s364] sm:$0xe]
      %v988 = vld [vmem:[%s364 + $0xc] sm:$0xe]
      %v989 = vld [vmem:[%s364 + $0x18] sm:$0xe]
      %v990 = vld [vmem:[%s364 + $0x24] sm:$0xe]
      %v991 = vld [vmem:[%s364 + $0x30] sm:$0xe]
      %v992 = vld [vmem:[%s364 + $0x3c] sm:$0xe]
      %v993 = vld [vmem:[%s364 + $0x48] sm:$0xe]
      %v994 = vld [vmem:[%s364 + $0x54] sm:$0xe]
      %vm1011 = vcmask 1042432
      %vm1012 = vcmask 1046532
      %vm1013 = vmor %vm1011, %vm1012
      %v1014 = vrot.slane %v987, 5
      %v1015 = vrot.slane %v1014, 4
      %v1016 = vrot.slane %v366, 5
      %v1017 = vsel %vm1013, %v1015, %v1016
      %v1018 = vrot.slane %v1016, 4
      %v1019 = vrot.slane %v397, 5
      %v1020 = vsel %vm1013, %v1018, %v1019
      %v1021 = vrot.slane %v988, 5
      %v1022 = vrot.slane %v1021, 4
      %v1023 = vrot.slane %v368, 5
      %v1024 = vsel %vm1013, %v1022, %v1023
      %v1025 = vrot.slane %v1023, 4
      %v1026 = vrot.slane %v398, 5
      %v1027 = vsel %vm1013, %v1025, %v1026
      %v1028 = vrot.slane %v989, 5
      %v1029 = vrot.slane %v1028, 4
      %v1030 = vrot.slane %v370, 5
      %v1031 = vsel %vm1013, %v1029, %v1030
      %v1032 = vrot.slane %v1030, 4
      %v1033 = vrot.slane %v399, 5
      %v1034 = vsel %vm1013, %v1032, %v1033
      %v1035 = vrot.slane %v990, 5
      %v1036 = vrot.slane %v1035, 4
      %v1037 = vrot.slane %v372, 5
      %v1038 = vsel %vm1013, %v1036, %v1037
      %v1039 = vrot.slane %v1037, 4
      %v1040 = vrot.slane %v400, 5
      %v1041 = vsel %vm1013, %v1039, %v1040
      %v1042 = vrot.slane %v991, 5
      %v1043 = vrot.slane %v1042, 4
      %v1044 = vrot.slane %v374, 5
      %v1045 = vsel %vm1013, %v1043, %v1044
      %v1046 = vrot.slane %v1044, 4
      %v1047 = vrot.slane %v401, 5
      %v1048 = vsel %vm1013, %v1046, %v1047
      %v1049 = vrot.slane %v992, 5
      %v1050 = vrot.slane %v1049, 4
      %v1051 = vrot.slane %v376, 5
      %v1052 = vsel %vm1013, %v1050, %v1051
      %v1053 = vrot.slane %v1051, 4
      %v1054 = vrot.slane %v402, 5
      %v1055 = vsel %vm1013, %v1053, %v1054
      %v1056 = vrot.slane %v993, 5
      %v1057 = vrot.slane %v1056, 4
      %v1058 = vrot.slane %v378, 5
      %v1059 = vsel %vm1013, %v1057, %v1058
      %v1060 = vrot.slane %v1058, 4
      %v1061 = vrot.slane %v403, 5
      %v1062 = vsel %vm1013, %v1060, %v1061
      %v1063 = vrot.slane %v994, 5
      %v1064 = vrot.slane %v1063, 4
      %v1065 = vrot.slane %v380, 5
      %v1066 = vsel %vm1013, %v1064, %v1065
      %v1067 = vrot.slane %v1065, 4
      %v1068 = vrot.slane %v404, 5
      %v1069 = vsel %vm1013, %v1067, %v1068
      %s1070 = scalar_lea.vmem %s325, 128
      %v1071 = vld [vmem:[%s1070] sm:$0xf]
      %v1072 = vld [vmem:[%s1070 + $0x4] sm:$0xf]
      %v1073 = vld [vmem:[%s1070 + $0x8] sm:$0xf]
      %v1074 = vld [vmem:[%s1070 + $0xc] sm:$0xf]
      %v1075 = vld [vmem:[%s1070 + $0x10] sm:$0xf]
      %v1076 = vld [vmem:[%s1070 + $0x14] sm:$0xf]
      %v1077 = vld [vmem:[%s1070 + $0x18] sm:$0xf]
      %v1078 = vld [vmem:[%s1070 + $0x1c] sm:$0xf]
      %v1079 = vld [vmem:[%s1070 + $0x20] sm:$0xf]
      %v1080 = vld [vmem:[%s1070 + $0x24] sm:$0xf]
      %v1081 = vld [vmem:[%s1070 + $0x28] sm:$0xf]
      %v1082 = vld [vmem:[%s1070 + $0x2c] sm:$0xf]
      %v1083 = vld [vmem:[%s1070 + $0x30] sm:$0xf]
      %v1084 = vld [vmem:[%s1070 + $0x34] sm:$0xf]
      %v1085 = vld [vmem:[%s1070 + $0x38] sm:$0xf]
      %v1086 = vld [vmem:[%s1070 + $0x3c] sm:$0xf]
      %v1087 = vunpack.c.l.b16 %v1017
      %v1088 = vunpack.c.l.b16 %v1020
      %v1089 = vunpack.c.l.b16 %v1024
      %v1090 = vunpack.c.l.b16 %v1027
      %v1091 = vunpack.c.l.b16 %v1031
      %v1092 = vunpack.c.l.b16 %v1034
      %v1093 = vunpack.c.l.b16 %v1038
      %v1094 = vunpack.c.l.b16 %v1041
      %v1095 = vunpack.c.l.b16 %v1045
      %v1096 = vunpack.c.l.b16 %v1048
      %v1097 = vunpack.c.l.b16 %v1052
      %v1098 = vunpack.c.l.b16 %v1055
      %v1099 = vunpack.c.l.b16 %v1059
      %v1100 = vunpack.c.l.b16 %v1062
      %v1101 = vunpack.c.l.b16 %v1066
      %v1102 = vunpack.c.l.b16 %v1069
      %v1103 = vpack.c.b16 %v1088, %v1087
      %v1104 = vpack.c.b16 %v1090, %v1089
      %v1105 = vpack.c.b16 %v1092, %v1091
      %v1106 = vpack.c.b16 %v1094, %v1093
      %v1107 = vpack.c.b16 %v1096, %v1095
      %v1108 = vpack.c.b16 %v1098, %v1097
      %v1109 = vpack.c.b16 %v1100, %v1099
      %v1110 = vpack.c.b16 %v1102, %v1101
      %v1135 = vunpack.c.l.b16 %v1071
      %v1136 = vunpack.c.l.b16 %v1072
      %v1137 = vunpack.c.l.b16 %v1073
      %v1138 = vunpack.c.l.b16 %v1074
      %v1139 = vunpack.c.l.b16 %v1075
      %v1140 = vunpack.c.l.b16 %v1076
      %v1141 = vunpack.c.l.b16 %v1077
      %v1142 = vunpack.c.l.b16 %v1078
      %v1143 = vunpack.c.l.b16 %v1079
      %v1144 = vunpack.c.l.b16 %v1080
      %v1145 = vunpack.c.l.b16 %v1081
      %v1146 = vunpack.c.l.b16 %v1082
      %v1147 = vunpack.c.l.b16 %v1083
      %v1148 = vunpack.c.l.b16 %v1084
      %v1149 = vunpack.c.l.b16 %v1085
      %v1150 = vunpack.c.l.b16 %v1086
      %v1151 = vpack.c.b16 %v1136, %v1135
      %v1152 = vpack.c.b16 %v1138, %v1137
      %v1153 = vpack.c.b16 %v1140, %v1139
      %v1154 = vpack.c.b16 %v1142, %v1141
      %v1155 = vpack.c.b16 %v1144, %v1143
      %v1156 = vpack.c.b16 %v1146, %v1145
      %v1157 = vpack.c.b16 %v1148, %v1147
      %v1158 = vpack.c.b16 %v1150, %v1149
      %1167 = vmatprep.subr.bf16.mxu0 0
      %1168 = vmatpush1.bf16.msra.mxu0 %v1158
      %1169 = vmatprep.subr.bf16.mxu0 0
      %1170 = vmatpush1.bf16.msra.mxu0 %v1157
      %1171 = vmatprep.subr.bf16.mxu0 0
      %1172 = vmatpush1.bf16.msra.mxu0 %v1156
      %1173 = vmatprep.subr.bf16.mxu0 0
      %1174 = vmatpush1.bf16.msra.mxu0 %v1155
      %1175 = vmatprep.subr.bf16.mxu0 0
      %1176 = vmatpush1.bf16.msra.mxu0 %v1154
      %1177 = vmatprep.subr.bf16.mxu0 0
      %1178 = vmatpush1.bf16.msra.mxu0 %v1153
      %1179 = vmatprep.subr.bf16.mxu0 0
      %1180 = vmatpush1.bf16.msra.mxu0 %v1152
      %1181 = vmatprep.subr.bf16.mxu0 0
      %1182 = vmatpush1.bf16.msra.mxu0 %v1151
      %1183 = vmatprep.subr.bf16.mxu0 0
      %1184 = vmatpush2.bf16.msra.mxu0 0
      %1185 = vmatprep.subr.bf16.mxu0 0
      %1186 = vmatpush2.bf16.msra.mxu0 0
      %1187 = vmatprep.subr.bf16.mxu0 0
      %1188 = vmatpush2.bf16.msra.mxu0 0
      %1189 = vmatprep.subr.bf16.mxu0 0
      %1190 = vmatpush2.bf16.msra.mxu0 0
      %1191 = vmatprep.subr.bf16.mxu0 0
      %1192 = vmatpush2.bf16.msra.mxu0 0
      %1193 = vmatprep.subr.bf16.mxu0 0
      %1194 = vmatpush2.bf16.msra.mxu0 0
      %1195 = vmatprep.subr.bf16.mxu0 0
      %1196 = vmatpush2.bf16.msra.mxu0 0
      %1197 = vmatprep.subr.bf16.mxu0 0
      %1198 = vmatpush2.bf16.msra.mxu0 0
      %1199 = vmatprep.mubr.bf16.mxu0 0
      %1200 = vmatmul.mubr.bf16.gmra.mxu0 %v1103
      %v1201 = vpop.f32.mrf.mxu0
      %v1202 = vadd.f32 0.0, %v1201
      %v1203 = vpop.f32.mrf.mxu0
      %v1204 = vpop.f32.mrf.mxu0
      %v1205 = vadd.f32 0.0, %v1204
      %v1206 = vpop.f32.mrf.mxu0
      %1207 = vmatprep.mubr.bf16.mxu0 0
      %1208 = vmatmul.mubr.bf16.gmra.mxu0 %v1104
      %v1209 = vpop.f32.mrf.mxu0
      %v1210 = vadd.f32 0.0, %v1209
      %v1211 = vpop.f32.mrf.mxu0
      %v1212 = vpop.f32.mrf.mxu0
      %v1213 = vadd.f32 0.0, %v1212
      %v1214 = vpop.f32.mrf.mxu0
      %1215 = vmatprep.mubr.bf16.mxu0 0
      %1216 = vmatmul.mubr.bf16.gmra.mxu0 %v1105
      %v1217 = vpop.f32.mrf.mxu0
      %v1218 = vadd.f32 0.0, %v1217
      %v1219 = vpop.f32.mrf.mxu0
      %v1220 = vpop.f32.mrf.mxu0
      %v1221 = vadd.f32 0.0, %v1220
      %v1222 = vpop.f32.mrf.mxu0
      %1223 = vmatprep.mubr.bf16.mxu0 0
      %1224 = vmatmul.mubr.bf16.gmra.mxu0 %v1106
      %v1225 = vpop.f32.mrf.mxu0
      %v1226 = vadd.f32 0.0, %v1225
      %v1227 = vpop.f32.mrf.mxu0
      %v1228 = vpop.f32.mrf.mxu0
      %v1229 = vadd.f32 0.0, %v1228
      %v1230 = vpop.f32.mrf.mxu0
      %1231 = vmatprep.mubr.bf16.mxu0 0
      %1232 = vmatmul.mubr.bf16.gmra.mxu0 %v1107
      %v1233 = vpop.f32.mrf.mxu0
      %v1234 = vadd.f32 0.0, %v1233
      %v1235 = vpop.f32.mrf.mxu0
      %v1236 = vpop.f32.mrf.mxu0
      %v1237 = vadd.f32 0.0, %v1236
      %v1238 = vpop.f32.mrf.mxu0
      %1239 = vmatprep.mubr.bf16.mxu0 0
      %1240 = vmatmul.mubr.bf16.gmra.mxu0 %v1108
      %v1241 = vpop.f32.mrf.mxu0
      %v1242 = vadd.f32 0.0, %v1241
      %v1243 = vpop.f32.mrf.mxu0
      %v1244 = vpop.f32.mrf.mxu0
      %v1245 = vadd.f32 0.0, %v1244
      %v1246 = vpop.f32.mrf.mxu0
      %1247 = vmatprep.mubr.bf16.mxu0 0
      %1248 = vmatmul.mubr.bf16.gmra.mxu0 %v1109
      %v1249 = vpop.f32.mrf.mxu0
      %v1250 = vadd.f32 0.0, %v1249
      %v1251 = vpop.f32.mrf.mxu0
      %v1252 = vpop.f32.mrf.mxu0
      %v1253 = vadd.f32 0.0, %v1252
      %v1254 = vpop.f32.mrf.mxu0
      %1255 = vmatprep.mubr.bf16.mxu0 0
      %1256 = vmatmul.mubr.bf16.gmra.mxu0 %v1110
      %v1257 = vpop.f32.mrf.mxu0
      %v1258 = vadd.f32 0.0, %v1257
      %v1259 = vpop.f32.mrf.mxu0
      %v1260 = vpop.f32.mrf.mxu0
      %v1261 = vadd.f32 0.0, %v1260
      %v1262 = vpop.f32.mrf.mxu0
      %1263 = vdwg.mxu0
      %v1264 = vadd.f32 %v925, %v1202
      %v1265 = vadd.f32 %v928, %v1205
      %v1266 = vadd.f32 %v933, %v1210
      %v1267 = vadd.f32 %v936, %v1213
      %v1268 = vadd.f32 %v941, %v1218
      %v1269 = vadd.f32 %v944, %v1221
      %v1270 = vadd.f32 %v949, %v1226
      %v1271 = vadd.f32 %v952, %v1229
      %v1272 = vadd.f32 %v957, %v1234
      %v1273 = vadd.f32 %v960, %v1237
      %v1274 = vadd.f32 %v965, %v1242
      %v1275 = vadd.f32 %v968, %v1245
      %v1276 = vadd.f32 %v973, %v1250
      %v1277 = vadd.f32 %v976, %v1253
      %v1278 = vadd.f32 %v981, %v1258
      %v1279 = vadd.f32 %v984, %v1261
      %s1280 = sadd.s32 %s361, 1
      %s1281 = smul.u32 %s1280, 3
      %s1282 = smul.addr %s1281, 4
      %s1283 = scalar_lea.vmem %s321, %s1282
      %v1284 = vld [vmem:[%s1283] sm:$0xf]
      %v1285 = vld [vmem:[%s1283 + $0x4] sm:$0xf]
      %v1286 = vld [vmem:[%s1283 + $0xc] sm:$0xf]
      %v1287 = vld [vmem:[%s1283 + $0x10] sm:$0xf]
      %v1288 = vld [vmem:[%s1283 + $0x18] sm:$0xf]
      %v1289 = vld [vmem:[%s1283 + $0x1c] sm:$0xf]
      %v1290 = vld [vmem:[%s1283 + $0x24] sm:$0xf]
      %v1291 = vld [vmem:[%s1283 + $0x28] sm:$0xf]
      %v1292 = vld [vmem:[%s1283 + $0x30] sm:$0xf]
      %v1293 = vld [vmem:[%s1283 + $0x34] sm:$0xf]
      %v1294 = vld [vmem:[%s1283 + $0x3c] sm:$0xf]
      %v1295 = vld [vmem:[%s1283 + $0x40] sm:$0xf]
      %v1296 = vld [vmem:[%s1283 + $0x48] sm:$0xf]
      %v1297 = vld [vmem:[%s1283 + $0x4c] sm:$0xf]
      %v1298 = vld [vmem:[%s1283 + $0x54] sm:$0xf]
      %v1299 = vld [vmem:[%s1283 + $0x58] sm:$0xf]
      %s1300 = scalar_lea.vmem %s325, 192
      %v1301 = vld [vmem:[%s1300] sm:$0xf]
      %v1302 = vld [vmem:[%s1300 + $0x4] sm:$0xf]
      %v1303 = vld [vmem:[%s1300 + $0x8] sm:$0xf]
      %v1304 = vld [vmem:[%s1300 + $0xc] sm:$0xf]
      %v1305 = vld [vmem:[%s1300 + $0x10] sm:$0xf]
      %v1306 = vld [vmem:[%s1300 + $0x14] sm:$0xf]
      %v1307 = vld [vmem:[%s1300 + $0x18] sm:$0xf]
      %v1308 = vld [vmem:[%s1300 + $0x1c] sm:$0xf]
      %v1309 = vld [vmem:[%s1300 + $0x20] sm:$0xf]
      %v1310 = vld [vmem:[%s1300 + $0x24] sm:$0xf]
      %v1311 = vld [vmem:[%s1300 + $0x28] sm:$0xf]
      %v1312 = vld [vmem:[%s1300 + $0x2c] sm:$0xf]
      %v1313 = vld [vmem:[%s1300 + $0x30] sm:$0xf]
      %v1314 = vld [vmem:[%s1300 + $0x34] sm:$0xf]
      %v1315 = vld [vmem:[%s1300 + $0x38] sm:$0xf]
      %v1316 = vld [vmem:[%s1300 + $0x3c] sm:$0xf]
      %v1333 = vunpack.c.l.b16 %v1284
      %v1334 = vunpack.c.l.b16 %v1285
      %v1335 = vunpack.c.l.b16 %v1286
      %v1336 = vunpack.c.l.b16 %v1287
      %v1337 = vunpack.c.l.b16 %v1288
      %v1338 = vunpack.c.l.b16 %v1289
      %v1339 = vunpack.c.l.b16 %v1290
      %v1340 = vunpack.c.l.b16 %v1291
      %v1341 = vunpack.c.l.b16 %v1292
      %v1342 = vunpack.c.l.b16 %v1293
      %v1343 = vunpack.c.l.b16 %v1294
      %v1344 = vunpack.c.l.b16 %v1295
      %v1345 = vunpack.c.l.b16 %v1296
      %v1346 = vunpack.c.l.b16 %v1297
      %v1347 = vunpack.c.l.b16 %v1298
      %v1348 = vunpack.c.l.b16 %v1299
      %v1349 = vpack.c.b16 %v1334, %v1333
      %v1350 = vpack.c.b16 %v1336, %v1335
      %v1351 = vpack.c.b16 %v1338, %v1337
      %v1352 = vpack.c.b16 %v1340, %v1339
      %v1353 = vpack.c.b16 %v1342, %v1341
      %v1354 = vpack.c.b16 %v1344, %v1343
      %v1355 = vpack.c.b16 %v1346, %v1345
      %v1356 = vpack.c.b16 %v1348, %v1347
      %v1381 = vunpack.c.l.b16 %v1301
      %v1382 = vunpack.c.l.b16 %v1302
      %v1383 = vunpack.c.l.b16 %v1303
      %v1384 = vunpack.c.l.b16 %v1304
      %v1385 = vunpack.c.l.b16 %v1305
      %v1386 = vunpack.c.l.b16 %v1306
      %v1387 = vunpack.c.l.b16 %v1307
      %v1388 = vunpack.c.l.b16 %v1308
      %v1389 = vunpack.c.l.b16 %v1309
      %v1390 = vunpack.c.l.b16 %v1310
      %v1391 = vunpack.c.l.b16 %v1311
      %v1392 = vunpack.c.l.b16 %v1312
      %v1393 = vunpack.c.l.b16 %v1313
      %v1394 = vunpack.c.l.b16 %v1314
      %v1395 = vunpack.c.l.b16 %v1315
      %v1396 = vunpack.c.l.b16 %v1316
      %v1397 = vpack.c.b16 %v1382, %v1381
      %v1398 = vpack.c.b16 %v1384, %v1383
      %v1399 = vpack.c.b16 %v1386, %v1385
      %v1400 = vpack.c.b16 %v1388, %v1387
      %v1401 = vpack.c.b16 %v1390, %v1389
      %v1402 = vpack.c.b16 %v1392, %v1391
      %v1403 = vpack.c.b16 %v1394, %v1393
      %v1404 = vpack.c.b16 %v1396, %v1395
      %1413 = vmatprep.subr.bf16.mxu0 0
      %1414 = vmatpush1.bf16.msra.mxu0 %v1404
      %1415 = vmatprep.subr.bf16.mxu0 0
      %1416 = vmatpush1.bf16.msra.mxu0 %v1403
      %1417 = vmatprep.subr.bf16.mxu0 0
      %1418 = vmatpush1.bf16.msra.mxu0 %v1402
      %1419 = vmatprep.subr.bf16.mxu0 0
      %1420 = vmatpush1.bf16.msra.mxu0 %v1401
      %1421 = vmatprep.subr.bf16.mxu0 0
      %1422 = vmatpush1.bf16.msra.mxu0 %v1400
      %1423 = vmatprep.subr.bf16.mxu0 0
      %1424 = vmatpush1.bf16.msra.mxu0 %v1399
      %1425 = vmatprep.subr.bf16.mxu0 0
      %1426 = vmatpush1.bf16.msra.mxu0 %v1398
      %1427 = vmatprep.subr.bf16.mxu0 0
      %1428 = vmatpush1.bf16.msra.mxu0 %v1397
      %1429 = vmatprep.subr.bf16.mxu0 0
      %1430 = vmatpush2.bf16.msra.mxu0 0
      %1431 = vmatprep.subr.bf16.mxu0 0
      %1432 = vmatpush2.bf16.msra.mxu0 0
      %1433 = vmatprep.subr.bf16.mxu0 0
      %1434 = vmatpush2.bf16.msra.mxu0 0
      %1435 = vmatprep.subr.bf16.mxu0 0
      %1436 = vmatpush2.bf16.msra.mxu0 0
      %1437 = vmatprep.subr.bf16.mxu0 0
      %1438 = vmatpush2.bf16.msra.mxu0 0
      %1439 = vmatprep.subr.bf16.mxu0 0
      %1440 = vmatpush2.bf16.msra.mxu0 0
      %1441 = vmatprep.subr.bf16.mxu0 0
      %1442 = vmatpush2.bf16.msra.mxu0 0
      %1443 = vmatprep.subr.bf16.mxu0 0
      %1444 = vmatpush2.bf16.msra.mxu0 0
      %1445 = vmatprep.mubr.bf16.mxu0 0
      %1446 = vmatmul.mubr.bf16.gmra.mxu0 %v1349
      %v1447 = vpop.f32.mrf.mxu0
      %v1448 = vadd.f32 0.0, %v1447
      %v1449 = vpop.f32.mrf.mxu0
      %v1450 = vpop.f32.mrf.mxu0
      %v1451 = vadd.f32 0.0, %v1450
      %v1452 = vpop.f32.mrf.mxu0
      %1453 = vmatprep.mubr.bf16.mxu0 0
      %1454 = vmatmul.mubr.bf16.gmra.mxu0 %v1350
      %v1455 = vpop.f32.mrf.mxu0
      %v1456 = vadd.f32 0.0, %v1455
      %v1457 = vpop.f32.mrf.mxu0
      %v1458 = vpop.f32.mrf.mxu0
      %v1459 = vadd.f32 0.0, %v1458
      %v1460 = vpop.f32.mrf.mxu0
      %1461 = vmatprep.mubr.bf16.mxu0 0
      %1462 = vmatmul.mubr.bf16.gmra.mxu0 %v1351
      %v1463 = vpop.f32.mrf.mxu0
      %v1464 = vadd.f32 0.0, %v1463
      %v1465 = vpop.f32.mrf.mxu0
      %v1466 = vpop.f32.mrf.mxu0
      %v1467 = vadd.f32 0.0, %v1466
      %v1468 = vpop.f32.mrf.mxu0
      %1469 = vmatprep.mubr.bf16.mxu0 0
      %1470 = vmatmul.mubr.bf16.gmra.mxu0 %v1352
      %v1471 = vpop.f32.mrf.mxu0
      %v1472 = vadd.f32 0.0, %v1471
      %v1473 = vpop.f32.mrf.mxu0
      %v1474 = vpop.f32.mrf.mxu0
      %v1475 = vadd.f32 0.0, %v1474
      %v1476 = vpop.f32.mrf.mxu0
      %1477 = vmatprep.mubr.bf16.mxu0 0
      %1478 = vmatmul.mubr.bf16.gmra.mxu0 %v1353
      %v1479 = vpop.f32.mrf.mxu0
      %v1480 = vadd.f32 0.0, %v1479
      %v1481 = vpop.f32.mrf.mxu0
      %v1482 = vpop.f32.mrf.mxu0
      %v1483 = vadd.f32 0.0, %v1482
      %v1484 = vpop.f32.mrf.mxu0
      %1485 = vmatprep.mubr.bf16.mxu0 0
      %1486 = vmatmul.mubr.bf16.gmra.mxu0 %v1354
      %v1487 = vpop.f32.mrf.mxu0
      %v1488 = vadd.f32 0.0, %v1487
      %v1489 = vpop.f32.mrf.mxu0
      %v1490 = vpop.f32.mrf.mxu0
      %v1491 = vadd.f32 0.0, %v1490
      %v1492 = vpop.f32.mrf.mxu0
      %1493 = vmatprep.mubr.bf16.mxu0 0
      %1494 = vmatmul.mubr.bf16.gmra.mxu0 %v1355
      %v1495 = vpop.f32.mrf.mxu0
      %v1496 = vadd.f32 0.0, %v1495
      %v1497 = vpop.f32.mrf.mxu0
      %v1498 = vpop.f32.mrf.mxu0
      %v1499 = vadd.f32 0.0, %v1498
      %v1500 = vpop.f32.mrf.mxu0
      %1501 = vmatprep.mubr.bf16.mxu0 0
      %1502 = vmatmul.mubr.bf16.gmra.mxu0 %v1356
      %v1503 = vpop.f32.mrf.mxu0
      %v1504 = vadd.f32 0.0, %v1503
      %v1505 = vpop.f32.mrf.mxu0
      %v1506 = vpop.f32.mrf.mxu0
      %v1507 = vadd.f32 0.0, %v1506
      %v1508 = vpop.f32.mrf.mxu0
      %1509 = vdwg.mxu0
      %v1510 = vadd.f32 %v1264, %v1448
      %v1511 = vadd.f32 %v1265, %v1451
      %v1512 = vadd.f32 %v1266, %v1456
      %v1513 = vadd.f32 %v1267, %v1459
      %v1514 = vadd.f32 %v1268, %v1464
      %v1515 = vadd.f32 %v1269, %v1467
      %v1516 = vadd.f32 %v1270, %v1472
      %v1517 = vadd.f32 %v1271, %v1475
      %v1518 = vadd.f32 %v1272, %v1480
      %v1519 = vadd.f32 %v1273, %v1483
      %v1520 = vadd.f32 %v1274, %v1488
      %v1521 = vadd.f32 %v1275, %v1491
      %v1522 = vadd.f32 %v1276, %v1496
      %v1523 = vadd.f32 %v1277, %v1499
      %v1524 = vadd.f32 %v1278, %v1504
      %v1525 = vadd.f32 %v1279, %v1507
      %v1526 = vld [vmem:[%s1283] sm:$0xf]
      %v1527 = vld [vmem:[%s1283 + $0x4] sm:$0xf]
      %v1528 = vld [vmem:[%s1283 + $0x8] sm:$0x1]
      %v1529 = vld [vmem:[%s1283 + $0xc] sm:$0xf]
      %v1530 = vld [vmem:[%s1283 + $0x10] sm:$0xf]
      %v1531 = vld [vmem:[%s1283 + $0x14] sm:$0x1]
      %v1532 = vld [vmem:[%s1283 + $0x18] sm:$0xf]
      %v1533 = vld [vmem:[%s1283 + $0x1c] sm:$0xf]
      %v1534 = vld [vmem:[%s1283 + $0x20] sm:$0x1]
      %v1535 = vld [vmem:[%s1283 + $0x24] sm:$0xf]
      %v1536 = vld [vmem:[%s1283 + $0x28] sm:$0xf]
      %v1537 = vld [vmem:[%s1283 + $0x2c] sm:$0x1]
      %v1538 = vld [vmem:[%s1283 + $0x30] sm:$0xf]
      %v1539 = vld [vmem:[%s1283 + $0x34] sm:$0xf]
      %v1540 = vld [vmem:[%s1283 + $0x38] sm:$0x1]
      %v1541 = vld [vmem:[%s1283 + $0x3c] sm:$0xf]
      %v1542 = vld [vmem:[%s1283 + $0x40] sm:$0xf]
      %v1543 = vld [vmem:[%s1283 + $0x44] sm:$0x1]
      %v1544 = vld [vmem:[%s1283 + $0x48] sm:$0xf]
      %v1545 = vld [vmem:[%s1283 + $0x4c] sm:$0xf]
      %v1546 = vld [vmem:[%s1283 + $0x50] sm:$0x1]
      %v1547 = vld [vmem:[%s1283 + $0x54] sm:$0xf]
      %v1548 = vld [vmem:[%s1283 + $0x58] sm:$0xf]
      %v1549 = vld [vmem:[%s1283 + $0x5c] sm:$0x1]
      %v1551 = vshrl.u32 %v1526, 16
      %v1553 = vrot.slane %v1551, 4
      %v1554 = vshll.u32 %v1526, 16
      %v1556 = vrot.slane %v1554, 5
      %v1557 = vor.u32 %v1553, %v1556
      %v1558 = vrot.slane %v1557, 4
      %v1560 = vshll.u32 %v1527, 16
      %v1562 = vrot.slane %v1560, 5
      %v1563 = vsel %vm407, %v1558, %v1562
      %v1564 = vshrl.u32 %v1527, 16
      %v1566 = vrot.slane %v1564, 4
      %v1567 = vor.u32 %v1566, %v1562
      %v1568 = vrot.slane %v1567, 4
      %v1570 = vshll.u32 %v1528, 16
      %v1572 = vrot.slane %v1570, 5
      %v1573 = vsel %vm407, %v1568, %v1572
      %v1575 = vshrl.u32 %v1529, 16
      %v1577 = vrot.slane %v1575, 4
      %v1578 = vshll.u32 %v1529, 16
      %v1580 = vrot.slane %v1578, 5
      %v1581 = vor.u32 %v1577, %v1580
      %v1582 = vrot.slane %v1581, 4
      %v1584 = vshll.u32 %v1530, 16
      %v1586 = vrot.slane %v1584, 5
      %v1587 = vsel %vm407, %v1582, %v1586
      %v1588 = vshrl.u32 %v1530, 16
      %v1590 = vrot.slane %v1588, 4
      %v1591 = vor.u32 %v1590, %v1586
      %v1592 = vrot.slane %v1591, 4
      %v1594 = vshll.u32 %v1531, 16
      %v1596 = vrot.slane %v1594, 5
      %v1597 = vsel %vm407, %v1592, %v1596
      %v1599 = vshrl.u32 %v1532, 16
      %v1601 = vrot.slane %v1599, 4
      %v1602 = vshll.u32 %v1532, 16
      %v1604 = vrot.slane %v1602, 5
      %v1605 = vor.u32 %v1601, %v1604
      %v1606 = vrot.slane %v1605, 4
      %v1608 = vshll.u32 %v1533, 16
      %v1610 = vrot.slane %v1608, 5
      %v1611 = vsel %vm407, %v1606, %v1610
      %v1612 = vshrl.u32 %v1533, 16
      %v1614 = vrot.slane %v1612, 4
      %v1615 = vor.u32 %v1614, %v1610
      %v1616 = vrot.slane %v1615, 4
      %v1618 = vshll.u32 %v1534, 16
      %v1620 = vrot.slane %v1618, 5
      %v1621 = vsel %vm407, %v1616, %v1620
      %v1623 = vshrl.u32 %v1535, 16
      %v1625 = vrot.slane %v1623, 4
      %v1626 = vshll.u32 %v1535, 16
      %v1628 = vrot.slane %v1626, 5
      %v1629 = vor.u32 %v1625, %v1628
      %v1630 = vrot.slane %v1629, 4
      %v1632 = vshll.u32 %v1536, 16
      %v1634 = vrot.slane %v1632, 5
      %v1635 = vsel %vm407, %v1630, %v1634
      %v1636 = vshrl.u32 %v1536, 16
      %v1638 = vrot.slane %v1636, 4
      %v1639 = vor.u32 %v1638, %v1634
      %v1640 = vrot.slane %v1639, 4
      %v1642 = vshll.u32 %v1537, 16
      %v1644 = vrot.slane %v1642, 5
      %v1645 = vsel %vm407, %v1640, %v1644
      %v1647 = vshrl.u32 %v1538, 16
      %v1649 = vrot.slane %v1647, 4
      %v1650 = vshll.u32 %v1538, 16
      %v1652 = vrot.slane %v1650, 5
      %v1653 = vor.u32 %v1649, %v1652
      %v1654 = vrot.slane %v1653, 4
      %v1656 = vshll.u32 %v1539, 16
      %v1658 = vrot.slane %v1656, 5
      %v1659 = vsel %vm407, %v1654, %v1658
      %v1660 = vshrl.u32 %v1539, 16
      %v1662 = vrot.slane %v1660, 4
      %v1663 = vor.u32 %v1662, %v1658
      %v1664 = vrot.slane %v1663, 4
      %v1666 = vshll.u32 %v1540, 16
      %v1668 = vrot.slane %v1666, 5
      %v1669 = vsel %vm407, %v1664, %v1668
      %v1671 = vshrl.u32 %v1541, 16
      %v1673 = vrot.slane %v1671, 4
      %v1674 = vshll.u32 %v1541, 16
      %v1676 = vrot.slane %v1674, 5
      %v1677 = vor.u32 %v1673, %v1676
      %v1678 = vrot.slane %v1677, 4
      %v1680 = vshll.u32 %v1542, 16
      %v1682 = vrot.slane %v1680, 5
      %v1683 = vsel %vm407, %v1678, %v1682
      %v1684 = vshrl.u32 %v1542, 16
      %v1686 = vrot.slane %v1684, 4
      %v1687 = vor.u32 %v1686, %v1682
      %v1688 = vrot.slane %v1687, 4
      %v1690 = vshll.u32 %v1543, 16
      %v1692 = vrot.slane %v1690, 5
      %v1693 = vsel %vm407, %v1688, %v1692
      %v1695 = vshrl.u32 %v1544, 16
      %v1697 = vrot.slane %v1695, 4
      %v1698 = vshll.u32 %v1544, 16
      %v1700 = vrot.slane %v1698, 5
      %v1701 = vor.u32 %v1697, %v1700
      %v1702 = vrot.slane %v1701, 4
      %v1704 = vshll.u32 %v1545, 16
      %v1706 = vrot.slane %v1704, 5
      %v1707 = vsel %vm407, %v1702, %v1706
      %v1708 = vshrl.u32 %v1545, 16
      %v1710 = vrot.slane %v1708, 4
      %v1711 = vor.u32 %v1710, %v1706
      %v1712 = vrot.slane %v1711, 4
      %v1714 = vshll.u32 %v1546, 16
      %v1716 = vrot.slane %v1714, 5
      %v1717 = vsel %vm407, %v1712, %v1716
      %v1719 = vshrl.u32 %v1547, 16
      %v1721 = vrot.slane %v1719, 4
      %v1722 = vshll.u32 %v1547, 16
      %v1724 = vrot.slane %v1722, 5
      %v1725 = vor.u32 %v1721, %v1724
      %v1726 = vrot.slane %v1725, 4
      %v1728 = vshll.u32 %v1548, 16
      %v1730 = vrot.slane %v1728, 5
      %v1731 = vsel %vm407, %v1726, %v1730
      %v1732 = vshrl.u32 %v1548, 16
      %v1734 = vrot.slane %v1732, 4
      %v1735 = vor.u32 %v1734, %v1730
      %v1736 = vrot.slane %v1735, 4
      %v1738 = vshll.u32 %v1549, 16
      %v1740 = vrot.slane %v1738, 5
      %v1741 = vsel %vm407, %v1736, %v1740
      %s1742 = scalar_lea.vmem %s325, 256
      %v1743 = vld [vmem:[%s1742] sm:$0xf]
      %v1744 = vld [vmem:[%s1742 + $0x4] sm:$0xf]
      %v1745 = vld [vmem:[%s1742 + $0x8] sm:$0xf]
      %v1746 = vld [vmem:[%s1742 + $0xc] sm:$0xf]
      %v1747 = vld [vmem:[%s1742 + $0x10] sm:$0xf]
      %v1748 = vld [vmem:[%s1742 + $0x14] sm:$0xf]
      %v1749 = vld [vmem:[%s1742 + $0x18] sm:$0xf]
      %v1750 = vld [vmem:[%s1742 + $0x1c] sm:$0xf]
      %v1751 = vld [vmem:[%s1742 + $0x20] sm:$0xf]
      %v1752 = vld [vmem:[%s1742 + $0x24] sm:$0xf]
      %v1753 = vld [vmem:[%s1742 + $0x28] sm:$0xf]
      %v1754 = vld [vmem:[%s1742 + $0x2c] sm:$0xf]
      %v1755 = vld [vmem:[%s1742 + $0x30] sm:$0xf]
      %v1756 = vld [vmem:[%s1742 + $0x34] sm:$0xf]
      %v1757 = vld [vmem:[%s1742 + $0x38] sm:$0xf]
      %v1758 = vld [vmem:[%s1742 + $0x3c] sm:$0xf]
      %v1759 = vunpack.c.l.b16 %v1563
      %v1760 = vunpack.c.l.b16 %v1573
      %v1761 = vunpack.c.l.b16 %v1587
      %v1762 = vunpack.c.l.b16 %v1597
      %v1763 = vunpack.c.l.b16 %v1611
      %v1764 = vunpack.c.l.b16 %v1621
      %v1765 = vunpack.c.l.b16 %v1635
      %v1766 = vunpack.c.l.b16 %v1645
      %v1767 = vunpack.c.l.b16 %v1659
      %v1768 = vunpack.c.l.b16 %v1669
      %v1769 = vunpack.c.l.b16 %v1683
      %v1770 = vunpack.c.l.b16 %v1693
      %v1771 = vunpack.c.l.b16 %v1707
      %v1772 = vunpack.c.l.b16 %v1717
      %v1773 = vunpack.c.l.b16 %v1731
      %v1774 = vunpack.c.l.b16 %v1741
      %v1775 = vpack.c.b16 %v1760, %v1759
      %v1776 = vpack.c.b16 %v1762, %v1761
      %v1777 = vpack.c.b16 %v1764, %v1763
      %v1778 = vpack.c.b16 %v1766, %v1765
      %v1779 = vpack.c.b16 %v1768, %v1767
      %v1780 = vpack.c.b16 %v1770, %v1769
      %v1781 = vpack.c.b16 %v1772, %v1771
      %v1782 = vpack.c.b16 %v1774, %v1773
      %v1807 = vunpack.c.l.b16 %v1743
      %v1808 = vunpack.c.l.b16 %v1744
      %v1809 = vunpack.c.l.b16 %v1745
      %v1810 = vunpack.c.l.b16 %v1746
      %v1811 = vunpack.c.l.b16 %v1747
      %v1812 = vunpack.c.l.b16 %v1748
      %v1813 = vunpack.c.l.b16 %v1749
      %v1814 = vunpack.c.l.b16 %v1750
      %v1815 = vunpack.c.l.b16 %v1751
      %v1816 = vunpack.c.l.b16 %v1752
      %v1817 = vunpack.c.l.b16 %v1753
      %v1818 = vunpack.c.l.b16 %v1754
      %v1819 = vunpack.c.l.b16 %v1755
      %v1820 = vunpack.c.l.b16 %v1756
      %v1821 = vunpack.c.l.b16 %v1757
      %v1822 = vunpack.c.l.b16 %v1758
      %v1823 = vpack.c.b16 %v1808, %v1807
      %v1824 = vpack.c.b16 %v1810, %v1809
      %v1825 = vpack.c.b16 %v1812, %v1811
      %v1826 = vpack.c.b16 %v1814, %v1813
      %v1827 = vpack.c.b16 %v1816, %v1815
      %v1828 = vpack.c.b16 %v1818, %v1817
      %v1829 = vpack.c.b16 %v1820, %v1819
      %v1830 = vpack.c.b16 %v1822, %v1821
      %1839 = vmatprep.subr.bf16.mxu0 0
      %1840 = vmatpush1.bf16.msra.mxu0 %v1830
      %1841 = vmatprep.subr.bf16.mxu0 0
      %1842 = vmatpush1.bf16.msra.mxu0 %v1829
      %1843 = vmatprep.subr.bf16.mxu0 0
      %1844 = vmatpush1.bf16.msra.mxu0 %v1828
      %1845 = vmatprep.subr.bf16.mxu0 0
      %1846 = vmatpush1.bf16.msra.mxu0 %v1827
      %1847 = vmatprep.subr.bf16.mxu0 0
      %1848 = vmatpush1.bf16.msra.mxu0 %v1826
      %1849 = vmatprep.subr.bf16.mxu0 0
      %1850 = vmatpush1.bf16.msra.mxu0 %v1825
      %1851 = vmatprep.subr.bf16.mxu0 0
      %1852 = vmatpush1.bf16.msra.mxu0 %v1824
      %1853 = vmatprep.subr.bf16.mxu0 0
      %1854 = vmatpush1.bf16.msra.mxu0 %v1823
      %1855 = vmatprep.subr.bf16.mxu0 0
      %1856 = vmatpush2.bf16.msra.mxu0 0
      %1857 = vmatprep.subr.bf16.mxu0 0
      %1858 = vmatpush2.bf16.msra.mxu0 0
      %1859 = vmatprep.subr.bf16.mxu0 0
      %1860 = vmatpush2.bf16.msra.mxu0 0
      %1861 = vmatprep.subr.bf16.mxu0 0
      %1862 = vmatpush2.bf16.msra.mxu0 0
      %1863 = vmatprep.subr.bf16.mxu0 0
      %1864 = vmatpush2.bf16.msra.mxu0 0
      %1865 = vmatprep.subr.bf16.mxu0 0
      %1866 = vmatpush2.bf16.msra.mxu0 0
      %1867 = vmatprep.subr.bf16.mxu0 0
      %1868 = vmatpush2.bf16.msra.mxu0 0
      %1869 = vmatprep.subr.bf16.mxu0 0
      %1870 = vmatpush2.bf16.msra.mxu0 0
      %1871 = vmatprep.mubr.bf16.mxu0 0
      %1872 = vmatmul.mubr.bf16.gmra.mxu0 %v1775
      %v1873 = vpop.f32.mrf.mxu0
      %v1874 = vadd.f32 0.0, %v1873
      %v1875 = vpop.f32.mrf.mxu0
      %v1876 = vpop.f32.mrf.mxu0
      %v1877 = vadd.f32 0.0, %v1876
      %v1878 = vpop.f32.mrf.mxu0
      %1879 = vmatprep.mubr.bf16.mxu0 0
      %1880 = vmatmul.mubr.bf16.gmra.mxu0 %v1776
      %v1881 = vpop.f32.mrf.mxu0
      %v1882 = vadd.f32 0.0, %v1881
      %v1883 = vpop.f32.mrf.mxu0
      %v1884 = vpop.f32.mrf.mxu0
      %v1885 = vadd.f32 0.0, %v1884
      %v1886 = vpop.f32.mrf.mxu0
      %1887 = vmatprep.mubr.bf16.mxu0 0
      %1888 = vmatmul.mubr.bf16.gmra.mxu0 %v1777
      %v1889 = vpop.f32.mrf.mxu0
      %v1890 = vadd.f32 0.0, %v1889
      %v1891 = vpop.f32.mrf.mxu0
      %v1892 = vpop.f32.mrf.mxu0
      %v1893 = vadd.f32 0.0, %v1892
      %v1894 = vpop.f32.mrf.mxu0
      %1895 = vmatprep.mubr.bf16.mxu0 0
      %1896 = vmatmul.mubr.bf16.gmra.mxu0 %v1778
      %v1897 = vpop.f32.mrf.mxu0
      %v1898 = vadd.f32 0.0, %v1897
      %v1899 = vpop.f32.mrf.mxu0
      %v1900 = vpop.f32.mrf.mxu0
      %v1901 = vadd.f32 0.0, %v1900
      %v1902 = vpop.f32.mrf.mxu0
      %1903 = vmatprep.mubr.bf16.mxu0 0
      %1904 = vmatmul.mubr.bf16.gmra.mxu0 %v1779
      %v1905 = vpop.f32.mrf.mxu0
      %v1906 = vadd.f32 0.0, %v1905
      %v1907 = vpop.f32.mrf.mxu0
      %v1908 = vpop.f32.mrf.mxu0
      %v1909 = vadd.f32 0.0, %v1908
      %v1910 = vpop.f32.mrf.mxu0
      %1911 = vmatprep.mubr.bf16.mxu0 0
      %1912 = vmatmul.mubr.bf16.gmra.mxu0 %v1780
      %v1913 = vpop.f32.mrf.mxu0
      %v1914 = vadd.f32 0.0, %v1913
      %v1915 = vpop.f32.mrf.mxu0
      %v1916 = vpop.f32.mrf.mxu0
      %v1917 = vadd.f32 0.0, %v1916
      %v1918 = vpop.f32.mrf.mxu0
      %1919 = vmatprep.mubr.bf16.mxu0 0
      %1920 = vmatmul.mubr.bf16.gmra.mxu0 %v1781
      %v1921 = vpop.f32.mrf.mxu0
      %v1922 = vadd.f32 0.0, %v1921
      %v1923 = vpop.f32.mrf.mxu0
      %v1924 = vpop.f32.mrf.mxu0
      %v1925 = vadd.f32 0.0, %v1924
      %v1926 = vpop.f32.mrf.mxu0
      %1927 = vmatprep.mubr.bf16.mxu0 0
      %1928 = vmatmul.mubr.bf16.gmra.mxu0 %v1782
      %v1929 = vpop.f32.mrf.mxu0
      %v1930 = vadd.f32 0.0, %v1929
      %v1931 = vpop.f32.mrf.mxu0
      %v1932 = vpop.f32.mrf.mxu0
      %v1933 = vadd.f32 0.0, %v1932
      %v1934 = vpop.f32.mrf.mxu0
      %1935 = vdwg.mxu0
      %v1936 = vadd.f32 %v1510, %v1874
      %v1937 = vadd.f32 %v1511, %v1877
      %v1938 = vadd.f32 %v1512, %v1882
      %v1939 = vadd.f32 %v1513, %v1885
      %v1940 = vadd.f32 %v1514, %v1890
      %v1941 = vadd.f32 %v1515, %v1893
      %v1942 = vadd.f32 %v1516, %v1898
      %v1943 = vadd.f32 %v1517, %v1901
      %v1944 = vadd.f32 %v1518, %v1906
      %v1945 = vadd.f32 %v1519, %v1909
      %v1946 = vadd.f32 %v1520, %v1914
      %v1947 = vadd.f32 %v1521, %v1917
      %v1948 = vadd.f32 %v1522, %v1922
      %v1949 = vadd.f32 %v1523, %v1925
      %v1950 = vadd.f32 %v1524, %v1930
      %v1951 = vadd.f32 %v1525, %v1933
      %v1952 = vld [vmem:[%s1283] sm:$0xe]
      %v1953 = vld [vmem:[%s1283 + $0xc] sm:$0xe]
      %v1954 = vld [vmem:[%s1283 + $0x18] sm:$0xe]
      %v1955 = vld [vmem:[%s1283 + $0x24] sm:$0xe]
      %v1956 = vld [vmem:[%s1283 + $0x30] sm:$0xe]
      %v1957 = vld [vmem:[%s1283 + $0x3c] sm:$0xe]
      %v1958 = vld [vmem:[%s1283 + $0x48] sm:$0xe]
      %v1959 = vld [vmem:[%s1283 + $0x54] sm:$0xe]
      %v1984 = vrot.slane %v1952, 5
      %v1985 = vrot.slane %v1984, 4
      %v1986 = vrot.slane %v1527, 5
      %v1987 = vsel %vm1013, %v1985, %v1986
      %v1988 = vrot.slane %v1986, 4
      %v1989 = vrot.slane %v1528, 5
      %v1990 = vsel %vm1013, %v1988, %v1989
      %v1991 = vrot.slane %v1953, 5
      %v1992 = vrot.slane %v1991, 4
      %v1993 = vrot.slane %v1530, 5
      %v1994 = vsel %vm1013, %v1992, %v1993
      %v1995 = vrot.slane %v1993, 4
      %v1996 = vrot.slane %v1531, 5
      %v1997 = vsel %vm1013, %v1995, %v1996
      %v1998 = vrot.slane %v1954, 5
      %v1999 = vrot.slane %v1998, 4
      %v2000 = vrot.slane %v1533, 5
      %v2001 = vsel %vm1013, %v1999, %v2000
      %v2002 = vrot.slane %v2000, 4
      %v2003 = vrot.slane %v1534, 5
      %v2004 = vsel %vm1013, %v2002, %v2003
      %v2005 = vrot.slane %v1955, 5
      %v2006 = vrot.slane %v2005, 4
      %v2007 = vrot.slane %v1536, 5
      %v2008 = vsel %vm1013, %v2006, %v2007
      %v2009 = vrot.slane %v2007, 4
      %v2010 = vrot.slane %v1537, 5
      %v2011 = vsel %vm1013, %v2009, %v2010
      %v2012 = vrot.slane %v1956, 5
      %v2013 = vrot.slane %v2012, 4
      %v2014 = vrot.slane %v1539, 5
      %v2015 = vsel %vm1013, %v2013, %v2014
      %v2016 = vrot.slane %v2014, 4
      %v2017 = vrot.slane %v1540, 5
      %v2018 = vsel %vm1013, %v2016, %v2017
      %v2019 = vrot.slane %v1957, 5
      %v2020 = vrot.slane %v2019, 4
      %v2021 = vrot.slane %v1542, 5
      %v2022 = vsel %vm1013, %v2020, %v2021
      %v2023 = vrot.slane %v2021, 4
      %v2024 = vrot.slane %v1543, 5
      %v2025 = vsel %vm1013, %v2023, %v2024
      %v2026 = vrot.slane %v1958, 5
      %v2027 = vrot.slane %v2026, 4
      %v2028 = vrot.slane %v1545, 5
      %v2029 = vsel %vm1013, %v2027, %v2028
      %v2030 = vrot.slane %v2028, 4
      %v2031 = vrot.slane %v1546, 5
      %v2032 = vsel %vm1013, %v2030, %v2031
      %v2033 = vrot.slane %v1959, 5
      %v2034 = vrot.slane %v2033, 4
      %v2035 = vrot.slane %v1548, 5
      %v2036 = vsel %vm1013, %v2034, %v2035
      %v2037 = vrot.slane %v2035, 4
      %v2038 = vrot.slane %v1549, 5
      %v2039 = vsel %vm1013, %v2037, %v2038
      %s2040 = scalar_lea.vmem %s325, 320
      %v2041 = vld [vmem:[%s2040] sm:$0xf]
      %v2042 = vld [vmem:[%s2040 + $0x4] sm:$0xf]
      %v2043 = vld [vmem:[%s2040 + $0x8] sm:$0xf]
      %v2044 = vld [vmem:[%s2040 + $0xc] sm:$0xf]
      %v2045 = vld [vmem:[%s2040 + $0x10] sm:$0xf]
      %v2046 = vld [vmem:[%s2040 + $0x14] sm:$0xf]
      %v2047 = vld [vmem:[%s2040 + $0x18] sm:$0xf]
      %v2048 = vld [vmem:[%s2040 + $0x1c] sm:$0xf]
      %v2049 = vld [vmem:[%s2040 + $0x20] sm:$0xf]
      %v2050 = vld [vmem:[%s2040 + $0x24] sm:$0xf]
      %v2051 = vld [vmem:[%s2040 + $0x28] sm:$0xf]
      %v2052 = vld [vmem:[%s2040 + $0x2c] sm:$0xf]
      %v2053 = vld [vmem:[%s2040 + $0x30] sm:$0xf]
      %v2054 = vld [vmem:[%s2040 + $0x34] sm:$0xf]
      %v2055 = vld [vmem:[%s2040 + $0x38] sm:$0xf]
      %v2056 = vld [vmem:[%s2040 + $0x3c] sm:$0xf]
      %v2057 = vunpack.c.l.b16 %v1987
      %v2058 = vunpack.c.l.b16 %v1990
      %v2059 = vunpack.c.l.b16 %v1994
      %v2060 = vunpack.c.l.b16 %v1997
      %v2061 = vunpack.c.l.b16 %v2001
      %v2062 = vunpack.c.l.b16 %v2004
      %v2063 = vunpack.c.l.b16 %v2008
      %v2064 = vunpack.c.l.b16 %v2011
      %v2065 = vunpack.c.l.b16 %v2015
      %v2066 = vunpack.c.l.b16 %v2018
      %v2067 = vunpack.c.l.b16 %v2022
      %v2068 = vunpack.c.l.b16 %v2025
      %v2069 = vunpack.c.l.b16 %v2029
      %v2070 = vunpack.c.l.b16 %v2032
      %v2071 = vunpack.c.l.b16 %v2036
      %v2072 = vunpack.c.l.b16 %v2039
      %v2073 = vpack.c.b16 %v2058, %v2057
      %v2074 = vpack.c.b16 %v2060, %v2059
      %v2075 = vpack.c.b16 %v2062, %v2061
      %v2076 = vpack.c.b16 %v2064, %v2063
      %v2077 = vpack.c.b16 %v2066, %v2065
      %v2078 = vpack.c.b16 %v2068, %v2067
      %v2079 = vpack.c.b16 %v2070, %v2069
      %v2080 = vpack.c.b16 %v2072, %v2071
      %v2105 = vunpack.c.l.b16 %v2041
      %v2106 = vunpack.c.l.b16 %v2042
      %v2107 = vunpack.c.l.b16 %v2043
      %v2108 = vunpack.c.l.b16 %v2044
      %v2109 = vunpack.c.l.b16 %v2045
      %v2110 = vunpack.c.l.b16 %v2046
      %v2111 = vunpack.c.l.b16 %v2047
      %v2112 = vunpack.c.l.b16 %v2048
      %v2113 = vunpack.c.l.b16 %v2049
      %v2114 = vunpack.c.l.b16 %v2050
      %v2115 = vunpack.c.l.b16 %v2051
      %v2116 = vunpack.c.l.b16 %v2052
      %v2117 = vunpack.c.l.b16 %v2053
      %v2118 = vunpack.c.l.b16 %v2054
      %v2119 = vunpack.c.l.b16 %v2055
      %v2120 = vunpack.c.l.b16 %v2056
      %v2121 = vpack.c.b16 %v2106, %v2105
      %v2122 = vpack.c.b16 %v2108, %v2107
      %v2123 = vpack.c.b16 %v2110, %v2109
      %v2124 = vpack.c.b16 %v2112, %v2111
      %v2125 = vpack.c.b16 %v2114, %v2113
      %v2126 = vpack.c.b16 %v2116, %v2115
      %v2127 = vpack.c.b16 %v2118, %v2117
      %v2128 = vpack.c.b16 %v2120, %v2119
      %2137 = vmatprep.subr.bf16.mxu0 0
      %2138 = vmatpush1.bf16.msra.mxu0 %v2128
      %2139 = vmatprep.subr.bf16.mxu0 0
      %2140 = vmatpush1.bf16.msra.mxu0 %v2127
      %2141 = vmatprep.subr.bf16.mxu0 0
      %2142 = vmatpush1.bf16.msra.mxu0 %v2126
      %2143 = vmatprep.subr.bf16.mxu0 0
      %2144 = vmatpush1.bf16.msra.mxu0 %v2125
      %2145 = vmatprep.subr.bf16.mxu0 0
      %2146 = vmatpush1.bf16.msra.mxu0 %v2124
      %2147 = vmatprep.subr.bf16.mxu0 0
      %2148 = vmatpush1.bf16.msra.mxu0 %v2123
      %2149 = vmatprep.subr.bf16.mxu0 0
      %2150 = vmatpush1.bf16.msra.mxu0 %v2122
      %2151 = vmatprep.subr.bf16.mxu0 0
      %2152 = vmatpush1.bf16.msra.mxu0 %v2121
      %2153 = vmatprep.subr.bf16.mxu0 0
      %2154 = vmatpush2.bf16.msra.mxu0 0
      %2155 = vmatprep.subr.bf16.mxu0 0
      %2156 = vmatpush2.bf16.msra.mxu0 0
      %2157 = vmatprep.subr.bf16.mxu0 0
      %2158 = vmatpush2.bf16.msra.mxu0 0
      %2159 = vmatprep.subr.bf16.mxu0 0
      %2160 = vmatpush2.bf16.msra.mxu0 0
      %2161 = vmatprep.subr.bf16.mxu0 0
      %2162 = vmatpush2.bf16.msra.mxu0 0
      %2163 = vmatprep.subr.bf16.mxu0 0
      %2164 = vmatpush2.bf16.msra.mxu0 0
      %2165 = vmatprep.subr.bf16.mxu0 0
      %2166 = vmatpush2.bf16.msra.mxu0 0
      %2167 = vmatprep.subr.bf16.mxu0 0
      %2168 = vmatpush2.bf16.msra.mxu0 0
      %2169 = vmatprep.mubr.bf16.mxu0 0
      %2170 = vmatmul.mubr.bf16.gmra.mxu0 %v2073
      %v2171 = vpop.f32.mrf.mxu0
      %v2172 = vadd.f32 0.0, %v2171
      %v2173 = vpop.f32.mrf.mxu0
      %v2174 = vpop.f32.mrf.mxu0
      %v2175 = vadd.f32 0.0, %v2174
      %v2176 = vpop.f32.mrf.mxu0
      %2177 = vmatprep.mubr.bf16.mxu0 0
      %2178 = vmatmul.mubr.bf16.gmra.mxu0 %v2074
      %v2179 = vpop.f32.mrf.mxu0
      %v2180 = vadd.f32 0.0, %v2179
      %v2181 = vpop.f32.mrf.mxu0
      %v2182 = vpop.f32.mrf.mxu0
      %v2183 = vadd.f32 0.0, %v2182
      %v2184 = vpop.f32.mrf.mxu0
      %2185 = vmatprep.mubr.bf16.mxu0 0
      %2186 = vmatmul.mubr.bf16.gmra.mxu0 %v2075
      %v2187 = vpop.f32.mrf.mxu0
      %v2188 = vadd.f32 0.0, %v2187
      %v2189 = vpop.f32.mrf.mxu0
      %v2190 = vpop.f32.mrf.mxu0
      %v2191 = vadd.f32 0.0, %v2190
      %v2192 = vpop.f32.mrf.mxu0
      %2193 = vmatprep.mubr.bf16.mxu0 0
      %2194 = vmatmul.mubr.bf16.gmra.mxu0 %v2076
      %v2195 = vpop.f32.mrf.mxu0
      %v2196 = vadd.f32 0.0, %v2195
      %v2197 = vpop.f32.mrf.mxu0
      %v2198 = vpop.f32.mrf.mxu0
      %v2199 = vadd.f32 0.0, %v2198
      %v2200 = vpop.f32.mrf.mxu0
      %2201 = vmatprep.mubr.bf16.mxu0 0
      %2202 = vmatmul.mubr.bf16.gmra.mxu0 %v2077
      %v2203 = vpop.f32.mrf.mxu0
      %v2204 = vadd.f32 0.0, %v2203
      %v2205 = vpop.f32.mrf.mxu0
      %v2206 = vpop.f32.mrf.mxu0
      %v2207 = vadd.f32 0.0, %v2206
      %v2208 = vpop.f32.mrf.mxu0
      %2209 = vmatprep.mubr.bf16.mxu0 0
      %2210 = vmatmul.mubr.bf16.gmra.mxu0 %v2078
      %v2211 = vpop.f32.mrf.mxu0
      %v2212 = vadd.f32 0.0, %v2211
      %v2213 = vpop.f32.mrf.mxu0
      %v2214 = vpop.f32.mrf.mxu0
      %v2215 = vadd.f32 0.0, %v2214
      %v2216 = vpop.f32.mrf.mxu0
      %2217 = vmatprep.mubr.bf16.mxu0 0
      %2218 = vmatmul.mubr.bf16.gmra.mxu0 %v2079
      %v2219 = vpop.f32.mrf.mxu0
      %v2220 = vadd.f32 0.0, %v2219
      %v2221 = vpop.f32.mrf.mxu0
      %v2222 = vpop.f32.mrf.mxu0
      %v2223 = vadd.f32 0.0, %v2222
      %v2224 = vpop.f32.mrf.mxu0
      %2225 = vmatprep.mubr.bf16.mxu0 0
      %2226 = vmatmul.mubr.bf16.gmra.mxu0 %v2080
      %v2227 = vpop.f32.mrf.mxu0
      %v2228 = vadd.f32 0.0, %v2227
      %v2229 = vpop.f32.mrf.mxu0
      %v2230 = vpop.f32.mrf.mxu0
      %v2231 = vadd.f32 0.0, %v2230
      %v2232 = vpop.f32.mrf.mxu0
      %2233 = vdwg.mxu0
      %v2234 = vadd.f32 %v1936, %v2172
      %v2235 = vadd.f32 %v1937, %v2175
      %v2236 = vadd.f32 %v1938, %v2180
      %v2237 = vadd.f32 %v1939, %v2183
      %v2238 = vadd.f32 %v1940, %v2188
      %v2239 = vadd.f32 %v1941, %v2191
      %v2240 = vadd.f32 %v1942, %v2196
      %v2241 = vadd.f32 %v1943, %v2199
      %v2242 = vadd.f32 %v1944, %v2204
      %v2243 = vadd.f32 %v1945, %v2207
      %v2244 = vadd.f32 %v1946, %v2212
      %v2245 = vadd.f32 %v1947, %v2215
      %v2246 = vadd.f32 %v1948, %v2220
      %v2247 = vadd.f32 %v1949, %v2223
      %v2248 = vadd.f32 %v1950, %v2228
      %v2249 = vadd.f32 %v1951, %v2231
      %s2250 = sadd.s32 %s361, 2
      %s2251 = smul.u32 %s2250, 3
      %s2252 = smul.addr %s2251, 4
      %s2253 = scalar_lea.vmem %s321, %s2252
      %v2254 = vld [vmem:[%s2253] sm:$0xf]
      %v2255 = vld [vmem:[%s2253 + $0x4] sm:$0xf]
      %v2256 = vld [vmem:[%s2253 + $0xc] sm:$0xf]
      %v2257 = vld [vmem:[%s2253 + $0x10] sm:$0xf]
      %v2258 = vld [vmem:[%s2253 + $0x18] sm:$0xf]
      %v2259 = vld [vmem:[%s2253 + $0x1c] sm:$0xf]
      %v2260 = vld [vmem:[%s2253 + $0x24] sm:$0xf]
      %v2261 = vld [vmem:[%s2253 + $0x28] sm:$0xf]
      %v2262 = vld [vmem:[%s2253 + $0x30] sm:$0xf]
      %v2263 = vld [vmem:[%s2253 + $0x34] sm:$0xf]
      %v2264 = vld [vmem:[%s2253 + $0x3c] sm:$0xf]
      %v2265 = vld [vmem:[%s2253 + $0x40] sm:$0xf]
      %v2266 = vld [vmem:[%s2253 + $0x48] sm:$0xf]
      %v2267 = vld [vmem:[%s2253 + $0x4c] sm:$0xf]
      %v2268 = vld [vmem:[%s2253 + $0x54] sm:$0xf]
      %v2269 = vld [vmem:[%s2253 + $0x58] sm:$0xf]
      %s2270 = scalar_lea.vmem %s325, 384
      %v2271 = vld [vmem:[%s2270] sm:$0xf]
      %v2272 = vld [vmem:[%s2270 + $0x4] sm:$0xf]
      %v2273 = vld [vmem:[%s2270 + $0x8] sm:$0xf]
      %v2274 = vld [vmem:[%s2270 + $0xc] sm:$0xf]
      %v2275 = vld [vmem:[%s2270 + $0x10] sm:$0xf]
      %v2276 = vld [vmem:[%s2270 + $0x14] sm:$0xf]
      %v2277 = vld [vmem:[%s2270 + $0x18] sm:$0xf]
      %v2278 = vld [vmem:[%s2270 + $0x1c] sm:$0xf]
      %v2279 = vld [vmem:[%s2270 + $0x20] sm:$0xf]
      %v2280 = vld [vmem:[%s2270 + $0x24] sm:$0xf]
      %v2281 = vld [vmem:[%s2270 + $0x28] sm:$0xf]
      %v2282 = vld [vmem:[%s2270 + $0x2c] sm:$0xf]
      %v2283 = vld [vmem:[%s2270 + $0x30] sm:$0xf]
      %v2284 = vld [vmem:[%s2270 + $0x34] sm:$0xf]
      %v2285 = vld [vmem:[%s2270 + $0x38] sm:$0xf]
      %v2286 = vld [vmem:[%s2270 + $0x3c] sm:$0xf]
      %v2303 = vunpack.c.l.b16 %v2254
      %v2304 = vunpack.c.l.b16 %v2255
      %v2305 = vunpack.c.l.b16 %v2256
      %v2306 = vunpack.c.l.b16 %v2257
      %v2307 = vunpack.c.l.b16 %v2258
      %v2308 = vunpack.c.l.b16 %v2259
      %v2309 = vunpack.c.l.b16 %v2260
      %v2310 = vunpack.c.l.b16 %v2261
      %v2311 = vunpack.c.l.b16 %v2262
      %v2312 = vunpack.c.l.b16 %v2263
      %v2313 = vunpack.c.l.b16 %v2264
      %v2314 = vunpack.c.l.b16 %v2265
      %v2315 = vunpack.c.l.b16 %v2266
      %v2316 = vunpack.c.l.b16 %v2267
      %v2317 = vunpack.c.l.b16 %v2268
      %v2318 = vunpack.c.l.b16 %v2269
      %v2319 = vpack.c.b16 %v2304, %v2303
      %v2320 = vpack.c.b16 %v2306, %v2305
      %v2321 = vpack.c.b16 %v2308, %v2307
      %v2322 = vpack.c.b16 %v2310, %v2309
      %v2323 = vpack.c.b16 %v2312, %v2311
      %v2324 = vpack.c.b16 %v2314, %v2313
      %v2325 = vpack.c.b16 %v2316, %v2315
      %v2326 = vpack.c.b16 %v2318, %v2317
      %v2351 = vunpack.c.l.b16 %v2271
      %v2352 = vunpack.c.l.b16 %v2272
      %v2353 = vunpack.c.l.b16 %v2273
      %v2354 = vunpack.c.l.b16 %v2274
      %v2355 = vunpack.c.l.b16 %v2275
      %v2356 = vunpack.c.l.b16 %v2276
      %v2357 = vunpack.c.l.b16 %v2277
      %v2358 = vunpack.c.l.b16 %v2278
      %v2359 = vunpack.c.l.b16 %v2279
      %v2360 = vunpack.c.l.b16 %v2280
      %v2361 = vunpack.c.l.b16 %v2281
      %v2362 = vunpack.c.l.b16 %v2282
      %v2363 = vunpack.c.l.b16 %v2283
      %v2364 = vunpack.c.l.b16 %v2284
      %v2365 = vunpack.c.l.b16 %v2285
      %v2366 = vunpack.c.l.b16 %v2286
      %v2367 = vpack.c.b16 %v2352, %v2351
      %v2368 = vpack.c.b16 %v2354, %v2353
      %v2369 = vpack.c.b16 %v2356, %v2355
      %v2370 = vpack.c.b16 %v2358, %v2357
      %v2371 = vpack.c.b16 %v2360, %v2359
      %v2372 = vpack.c.b16 %v2362, %v2361
      %v2373 = vpack.c.b16 %v2364, %v2363
      %v2374 = vpack.c.b16 %v2366, %v2365
      %2383 = vmatprep.subr.bf16.mxu0 0
      %2384 = vmatpush1.bf16.msra.mxu0 %v2374
      %2385 = vmatprep.subr.bf16.mxu0 0
      %2386 = vmatpush1.bf16.msra.mxu0 %v2373
      %2387 = vmatprep.subr.bf16.mxu0 0
      %2388 = vmatpush1.bf16.msra.mxu0 %v2372
      %2389 = vmatprep.subr.bf16.mxu0 0
      %2390 = vmatpush1.bf16.msra.mxu0 %v2371
      %2391 = vmatprep.subr.bf16.mxu0 0
      %2392 = vmatpush1.bf16.msra.mxu0 %v2370
      %2393 = vmatprep.subr.bf16.mxu0 0
      %2394 = vmatpush1.bf16.msra.mxu0 %v2369
      %2395 = vmatprep.subr.bf16.mxu0 0
      %2396 = vmatpush1.bf16.msra.mxu0 %v2368
      %2397 = vmatprep.subr.bf16.mxu0 0
      %2398 = vmatpush1.bf16.msra.mxu0 %v2367
      %2399 = vmatprep.subr.bf16.mxu0 0
      %2400 = vmatpush2.bf16.msra.mxu0 0
      %2401 = vmatprep.subr.bf16.mxu0 0
      %2402 = vmatpush2.bf16.msra.mxu0 0
      %2403 = vmatprep.subr.bf16.mxu0 0
      %2404 = vmatpush2.bf16.msra.mxu0 0
      %2405 = vmatprep.subr.bf16.mxu0 0
      %2406 = vmatpush2.bf16.msra.mxu0 0
      %2407 = vmatprep.subr.bf16.mxu0 0
      %2408 = vmatpush2.bf16.msra.mxu0 0
      %2409 = vmatprep.subr.bf16.mxu0 0
      %2410 = vmatpush2.bf16.msra.mxu0 0
      %2411 = vmatprep.subr.bf16.mxu0 0
      %2412 = vmatpush2.bf16.msra.mxu0 0
      %2413 = vmatprep.subr.bf16.mxu0 0
      %2414 = vmatpush2.bf16.msra.mxu0 0
      %2415 = vmatprep.mubr.bf16.mxu0 0
      %2416 = vmatmul.mubr.bf16.gmra.mxu0 %v2319
      %v2417 = vpop.f32.mrf.mxu0
      %v2418 = vadd.f32 0.0, %v2417
      %v2419 = vpop.f32.mrf.mxu0
      %v2420 = vpop.f32.mrf.mxu0
      %v2421 = vadd.f32 0.0, %v2420
      %v2422 = vpop.f32.mrf.mxu0
      %2423 = vmatprep.mubr.bf16.mxu0 0
      %2424 = vmatmul.mubr.bf16.gmra.mxu0 %v2320
      %v2425 = vpop.f32.mrf.mxu0
      %v2426 = vadd.f32 0.0, %v2425
      %v2427 = vpop.f32.mrf.mxu0
      %v2428 = vpop.f32.mrf.mxu0
      %v2429 = vadd.f32 0.0, %v2428
      %v2430 = vpop.f32.mrf.mxu0
      %2431 = vmatprep.mubr.bf16.mxu0 0
      %2432 = vmatmul.mubr.bf16.gmra.mxu0 %v2321
      %v2433 = vpop.f32.mrf.mxu0
      %v2434 = vadd.f32 0.0, %v2433
      %v2435 = vpop.f32.mrf.mxu0
      %v2436 = vpop.f32.mrf.mxu0
      %v2437 = vadd.f32 0.0, %v2436
      %v2438 = vpop.f32.mrf.mxu0
      %2439 = vmatprep.mubr.bf16.mxu0 0
      %2440 = vmatmul.mubr.bf16.gmra.mxu0 %v2322
      %v2441 = vpop.f32.mrf.mxu0
      %v2442 = vadd.f32 0.0, %v2441
      %v2443 = vpop.f32.mrf.mxu0
      %v2444 = vpop.f32.mrf.mxu0
      %v2445 = vadd.f32 0.0, %v2444
      %v2446 = vpop.f32.mrf.mxu0
      %2447 = vmatprep.mubr.bf16.mxu0 0
      %2448 = vmatmul.mubr.bf16.gmra.mxu0 %v2323
      %v2449 = vpop.f32.mrf.mxu0
      %v2450 = vadd.f32 0.0, %v2449
      %v2451 = vpop.f32.mrf.mxu0
      %v2452 = vpop.f32.mrf.mxu0
      %v2453 = vadd.f32 0.0, %v2452
      %v2454 = vpop.f32.mrf.mxu0
      %2455 = vmatprep.mubr.bf16.mxu0 0
      %2456 = vmatmul.mubr.bf16.gmra.mxu0 %v2324
      %v2457 = vpop.f32.mrf.mxu0
      %v2458 = vadd.f32 0.0, %v2457
      %v2459 = vpop.f32.mrf.mxu0
      %v2460 = vpop.f32.mrf.mxu0
      %v2461 = vadd.f32 0.0, %v2460
      %v2462 = vpop.f32.mrf.mxu0
      %2463 = vmatprep.mubr.bf16.mxu0 0
      %2464 = vmatmul.mubr.bf16.gmra.mxu0 %v2325
      %v2465 = vpop.f32.mrf.mxu0
      %v2466 = vadd.f32 0.0, %v2465
      %v2467 = vpop.f32.mrf.mxu0
      %v2468 = vpop.f32.mrf.mxu0
      %v2469 = vadd.f32 0.0, %v2468
      %v2470 = vpop.f32.mrf.mxu0
      %2471 = vmatprep.mubr.bf16.mxu0 0
      %2472 = vmatmul.mubr.bf16.gmra.mxu0 %v2326
      %v2473 = vpop.f32.mrf.mxu0
      %v2474 = vadd.f32 0.0, %v2473
      %v2475 = vpop.f32.mrf.mxu0
      %v2476 = vpop.f32.mrf.mxu0
      %v2477 = vadd.f32 0.0, %v2476
      %v2478 = vpop.f32.mrf.mxu0
      %2479 = vdwg.mxu0
      %v2480 = vadd.f32 %v2234, %v2418
      %v2481 = vadd.f32 %v2235, %v2421
      %v2482 = vadd.f32 %v2236, %v2426
      %v2483 = vadd.f32 %v2237, %v2429
      %v2484 = vadd.f32 %v2238, %v2434
      %v2485 = vadd.f32 %v2239, %v2437
      %v2486 = vadd.f32 %v2240, %v2442
      %v2487 = vadd.f32 %v2241, %v2445
      %v2488 = vadd.f32 %v2242, %v2450
      %v2489 = vadd.f32 %v2243, %v2453
      %v2490 = vadd.f32 %v2244, %v2458
      %v2491 = vadd.f32 %v2245, %v2461
      %v2492 = vadd.f32 %v2246, %v2466
      %v2493 = vadd.f32 %v2247, %v2469
      %v2494 = vadd.f32 %v2248, %v2474
      %v2495 = vadd.f32 %v2249, %v2477
      %v2496 = vld [vmem:[%s2253] sm:$0xf]
      %v2497 = vld [vmem:[%s2253 + $0x4] sm:$0xf]
      %v2498 = vld [vmem:[%s2253 + $0x8] sm:$0x1]
      %v2499 = vld [vmem:[%s2253 + $0xc] sm:$0xf]
      %v2500 = vld [vmem:[%s2253 + $0x10] sm:$0xf]
      %v2501 = vld [vmem:[%s2253 + $0x14] sm:$0x1]
      %v2502 = vld [vmem:[%s2253 + $0x18] sm:$0xf]
      %v2503 = vld [vmem:[%s2253 + $0x1c] sm:$0xf]
      %v2504 = vld [vmem:[%s2253 + $0x20] sm:$0x1]
      %v2505 = vld [vmem:[%s2253 + $0x24] sm:$0xf]
      %v2506 = vld [vmem:[%s2253 + $0x28] sm:$0xf]
      %v2507 = vld [vmem:[%s2253 + $0x2c] sm:$0x1]
      %v2508 = vld [vmem:[%s2253 + $0x30] sm:$0xf]
      %v2509 = vld [vmem:[%s2253 + $0x34] sm:$0xf]
      %v2510 = vld [vmem:[%s2253 + $0x38] sm:$0x1]
      %v2511 = vld [vmem:[%s2253 + $0x3c] sm:$0xf]
      %v2512 = vld [vmem:[%s2253 + $0x40] sm:$0xf]
      %v2513 = vld [vmem:[%s2253 + $0x44] sm:$0x1]
      %v2514 = vld [vmem:[%s2253 + $0x48] sm:$0xf]
      %v2515 = vld [vmem:[%s2253 + $0x4c] sm:$0xf]
      %v2516 = vld [vmem:[%s2253 + $0x50] sm:$0x1]
      %v2517 = vld [vmem:[%s2253 + $0x54] sm:$0xf]
      %v2518 = vld [vmem:[%s2253 + $0x58] sm:$0xf]
      %v2519 = vld [vmem:[%s2253 + $0x5c] sm:$0x1]
      %v2521 = vshrl.u32 %v2496, 16
      %v2523 = vrot.slane %v2521, 4
      %v2524 = vshll.u32 %v2496, 16
      %v2526 = vrot.slane %v2524, 5
      %v2527 = vor.u32 %v2523, %v2526
      %v2528 = vrot.slane %v2527, 4
      %v2530 = vshll.u32 %v2497, 16
      %v2532 = vrot.slane %v2530, 5
      %v2533 = vsel %vm407, %v2528, %v2532
      %v2534 = vshrl.u32 %v2497, 16
      %v2536 = vrot.slane %v2534, 4
      %v2537 = vor.u32 %v2536, %v2532
      %v2538 = vrot.slane %v2537, 4
      %v2540 = vshll.u32 %v2498, 16
      %v2542 = vrot.slane %v2540, 5
      %v2543 = vsel %vm407, %v2538, %v2542
      %v2545 = vshrl.u32 %v2499, 16
      %v2547 = vrot.slane %v2545, 4
      %v2548 = vshll.u32 %v2499, 16
      %v2550 = vrot.slane %v2548, 5
      %v2551 = vor.u32 %v2547, %v2550
      %v2552 = vrot.slane %v2551, 4
      %v2554 = vshll.u32 %v2500, 16
      %v2556 = vrot.slane %v2554, 5
      %v2557 = vsel %vm407, %v2552, %v2556
      %v2558 = vshrl.u32 %v2500, 16
      %v2560 = vrot.slane %v2558, 4
      %v2561 = vor.u32 %v2560, %v2556
      %v2562 = vrot.slane %v2561, 4
      %v2564 = vshll.u32 %v2501, 16
      %v2566 = vrot.slane %v2564, 5
      %v2567 = vsel %vm407, %v2562, %v2566
      %v2569 = vshrl.u32 %v2502, 16
      %v2571 = vrot.slane %v2569, 4
      %v2572 = vshll.u32 %v2502, 16
      %v2574 = vrot.slane %v2572, 5
      %v2575 = vor.u32 %v2571, %v2574
      %v2576 = vrot.slane %v2575, 4
      %v2578 = vshll.u32 %v2503, 16
      %v2580 = vrot.slane %v2578, 5
      %v2581 = vsel %vm407, %v2576, %v2580
      %v2582 = vshrl.u32 %v2503, 16
      %v2584 = vrot.slane %v2582, 4
      %v2585 = vor.u32 %v2584, %v2580
      %v2586 = vrot.slane %v2585, 4
      %v2588 = vshll.u32 %v2504, 16
      %v2590 = vrot.slane %v2588, 5
      %v2591 = vsel %vm407, %v2586, %v2590
      %v2593 = vshrl.u32 %v2505, 16
      %v2595 = vrot.slane %v2593, 4
      %v2596 = vshll.u32 %v2505, 16
      %v2598 = vrot.slane %v2596, 5
      %v2599 = vor.u32 %v2595, %v2598
      %v2600 = vrot.slane %v2599, 4
      %v2602 = vshll.u32 %v2506, 16
      %v2604 = vrot.slane %v2602, 5
      %v2605 = vsel %vm407, %v2600, %v2604
      %v2606 = vshrl.u32 %v2506, 16
      %v2608 = vrot.slane %v2606, 4
      %v2609 = vor.u32 %v2608, %v2604
      %v2610 = vrot.slane %v2609, 4
      %v2612 = vshll.u32 %v2507, 16
      %v2614 = vrot.slane %v2612, 5
      %v2615 = vsel %vm407, %v2610, %v2614
      %v2617 = vshrl.u32 %v2508, 16
      %v2619 = vrot.slane %v2617, 4
      %v2620 = vshll.u32 %v2508, 16
      %v2622 = vrot.slane %v2620, 5
      %v2623 = vor.u32 %v2619, %v2622
      %v2624 = vrot.slane %v2623, 4
      %v2626 = vshll.u32 %v2509, 16
      %v2628 = vrot.slane %v2626, 5
      %v2629 = vsel %vm407, %v2624, %v2628
      %v2630 = vshrl.u32 %v2509, 16
      %v2632 = vrot.slane %v2630, 4
      %v2633 = vor.u32 %v2632, %v2628
      %v2634 = vrot.slane %v2633, 4
      %v2636 = vshll.u32 %v2510, 16
      %v2638 = vrot.slane %v2636, 5
      %v2639 = vsel %vm407, %v2634, %v2638
      %v2641 = vshrl.u32 %v2511, 16
      %v2643 = vrot.slane %v2641, 4
      %v2644 = vshll.u32 %v2511, 16
      %v2646 = vrot.slane %v2644, 5
      %v2647 = vor.u32 %v2643, %v2646
      %v2648 = vrot.slane %v2647, 4
      %v2650 = vshll.u32 %v2512, 16
      %v2652 = vrot.slane %v2650, 5
      %v2653 = vsel %vm407, %v2648, %v2652
      %v2654 = vshrl.u32 %v2512, 16
      %v2656 = vrot.slane %v2654, 4
      %v2657 = vor.u32 %v2656, %v2652
      %v2658 = vrot.slane %v2657, 4
      %v2660 = vshll.u32 %v2513, 16
      %v2662 = vrot.slane %v2660, 5
      %v2663 = vsel %vm407, %v2658, %v2662
      %v2665 = vshrl.u32 %v2514, 16
      %v2667 = vrot.slane %v2665, 4
      %v2668 = vshll.u32 %v2514, 16
      %v2670 = vrot.slane %v2668, 5
      %v2671 = vor.u32 %v2667, %v2670
      %v2672 = vrot.slane %v2671, 4
      %v2674 = vshll.u32 %v2515, 16
      %v2676 = vrot.slane %v2674, 5
      %v2677 = vsel %vm407, %v2672, %v2676
      %v2678 = vshrl.u32 %v2515, 16
      %v2680 = vrot.slane %v2678, 4
      %v2681 = vor.u32 %v2680, %v2676
      %v2682 = vrot.slane %v2681, 4
      %v2684 = vshll.u32 %v2516, 16
      %v2686 = vrot.slane %v2684, 5
      %v2687 = vsel %vm407, %v2682, %v2686
      %v2689 = vshrl.u32 %v2517, 16
      %v2691 = vrot.slane %v2689, 4
      %v2692 = vshll.u32 %v2517, 16
      %v2694 = vrot.slane %v2692, 5
      %v2695 = vor.u32 %v2691, %v2694
      %v2696 = vrot.slane %v2695, 4
      %v2698 = vshll.u32 %v2518, 16
      %v2700 = vrot.slane %v2698, 5
      %v2701 = vsel %vm407, %v2696, %v2700
      %v2702 = vshrl.u32 %v2518, 16
      %v2704 = vrot.slane %v2702, 4
      %v2705 = vor.u32 %v2704, %v2700
      %v2706 = vrot.slane %v2705, 4
      %v2708 = vshll.u32 %v2519, 16
      %v2710 = vrot.slane %v2708, 5
      %v2711 = vsel %vm407, %v2706, %v2710
      %s2712 = scalar_lea.vmem %s325, 448
      %v2713 = vld [vmem:[%s2712] sm:$0xf]
      %v2714 = vld [vmem:[%s2712 + $0x4] sm:$0xf]
      %v2715 = vld [vmem:[%s2712 + $0x8] sm:$0xf]
      %v2716 = vld [vmem:[%s2712 + $0xc] sm:$0xf]
      %v2717 = vld [vmem:[%s2712 + $0x10] sm:$0xf]
      %v2718 = vld [vmem:[%s2712 + $0x14] sm:$0xf]
      %v2719 = vld [vmem:[%s2712 + $0x18] sm:$0xf]
      %v2720 = vld [vmem:[%s2712 + $0x1c] sm:$0xf]
      %v2721 = vld [vmem:[%s2712 + $0x20] sm:$0xf]
      %v2722 = vld [vmem:[%s2712 + $0x24] sm:$0xf]
      %v2723 = vld [vmem:[%s2712 + $0x28] sm:$0xf]
      %v2724 = vld [vmem:[%s2712 + $0x2c] sm:$0xf]
      %v2725 = vld [vmem:[%s2712 + $0x30] sm:$0xf]
      %v2726 = vld [vmem:[%s2712 + $0x34] sm:$0xf]
      %v2727 = vld [vmem:[%s2712 + $0x38] sm:$0xf]
      %v2728 = vld [vmem:[%s2712 + $0x3c] sm:$0xf]
      %v2729 = vunpack.c.l.b16 %v2533
      %v2730 = vunpack.c.l.b16 %v2543
      %v2731 = vunpack.c.l.b16 %v2557
      %v2732 = vunpack.c.l.b16 %v2567
      %v2733 = vunpack.c.l.b16 %v2581
      %v2734 = vunpack.c.l.b16 %v2591
      %v2735 = vunpack.c.l.b16 %v2605
      %v2736 = vunpack.c.l.b16 %v2615
      %v2737 = vunpack.c.l.b16 %v2629
      %v2738 = vunpack.c.l.b16 %v2639
      %v2739 = vunpack.c.l.b16 %v2653
      %v2740 = vunpack.c.l.b16 %v2663
      %v2741 = vunpack.c.l.b16 %v2677
      %v2742 = vunpack.c.l.b16 %v2687
      %v2743 = vunpack.c.l.b16 %v2701
      %v2744 = vunpack.c.l.b16 %v2711
      %v2745 = vpack.c.b16 %v2730, %v2729
      %v2746 = vpack.c.b16 %v2732, %v2731
      %v2747 = vpack.c.b16 %v2734, %v2733
      %v2748 = vpack.c.b16 %v2736, %v2735
      %v2749 = vpack.c.b16 %v2738, %v2737
      %v2750 = vpack.c.b16 %v2740, %v2739
      %v2751 = vpack.c.b16 %v2742, %v2741
      %v2752 = vpack.c.b16 %v2744, %v2743
      %v2777 = vunpack.c.l.b16 %v2713
      %v2778 = vunpack.c.l.b16 %v2714
      %v2779 = vunpack.c.l.b16 %v2715
      %v2780 = vunpack.c.l.b16 %v2716
      %v2781 = vunpack.c.l.b16 %v2717
      %v2782 = vunpack.c.l.b16 %v2718
      %v2783 = vunpack.c.l.b16 %v2719
      %v2784 = vunpack.c.l.b16 %v2720
      %v2785 = vunpack.c.l.b16 %v2721
      %v2786 = vunpack.c.l.b16 %v2722
      %v2787 = vunpack.c.l.b16 %v2723
      %v2788 = vunpack.c.l.b16 %v2724
      %v2789 = vunpack.c.l.b16 %v2725
      %v2790 = vunpack.c.l.b16 %v2726
      %v2791 = vunpack.c.l.b16 %v2727
      %v2792 = vunpack.c.l.b16 %v2728
      %v2793 = vpack.c.b16 %v2778, %v2777
      %v2794 = vpack.c.b16 %v2780, %v2779
      %v2795 = vpack.c.b16 %v2782, %v2781
      %v2796 = vpack.c.b16 %v2784, %v2783
      %v2797 = vpack.c.b16 %v2786, %v2785
      %v2798 = vpack.c.b16 %v2788, %v2787
      %v2799 = vpack.c.b16 %v2790, %v2789
      %v2800 = vpack.c.b16 %v2792, %v2791
      %2809 = vmatprep.subr.bf16.mxu0 0
      %2810 = vmatpush1.bf16.msra.mxu0 %v2800
      %2811 = vmatprep.subr.bf16.mxu0 0
      %2812 = vmatpush1.bf16.msra.mxu0 %v2799
      %2813 = vmatprep.subr.bf16.mxu0 0
      %2814 = vmatpush1.bf16.msra.mxu0 %v2798
      %2815 = vmatprep.subr.bf16.mxu0 0
      %2816 = vmatpush1.bf16.msra.mxu0 %v2797
      %2817 = vmatprep.subr.bf16.mxu0 0
      %2818 = vmatpush1.bf16.msra.mxu0 %v2796
      %2819 = vmatprep.subr.bf16.mxu0 0
      %2820 = vmatpush1.bf16.msra.mxu0 %v2795
      %2821 = vmatprep.subr.bf16.mxu0 0
      %2822 = vmatpush1.bf16.msra.mxu0 %v2794
      %2823 = vmatprep.subr.bf16.mxu0 0
      %2824 = vmatpush1.bf16.msra.mxu0 %v2793
      %2825 = vmatprep.subr.bf16.mxu0 0
      %2826 = vmatpush2.bf16.msra.mxu0 0
      %2827 = vmatprep.subr.bf16.mxu0 0
      %2828 = vmatpush2.bf16.msra.mxu0 0
      %2829 = vmatprep.subr.bf16.mxu0 0
      %2830 = vmatpush2.bf16.msra.mxu0 0
      %2831 = vmatprep.subr.bf16.mxu0 0
      %2832 = vmatpush2.bf16.msra.mxu0 0
      %2833 = vmatprep.subr.bf16.mxu0 0
      %2834 = vmatpush2.bf16.msra.mxu0 0
      %2835 = vmatprep.subr.bf16.mxu0 0
      %2836 = vmatpush2.bf16.msra.mxu0 0
      %2837 = vmatprep.subr.bf16.mxu0 0
      %2838 = vmatpush2.bf16.msra.mxu0 0
      %2839 = vmatprep.subr.bf16.mxu0 0
      %2840 = vmatpush2.bf16.msra.mxu0 0
      %2841 = vmatprep.mubr.bf16.mxu0 0
      %2842 = vmatmul.mubr.bf16.gmra.mxu0 %v2745
      %v2843 = vpop.f32.mrf.mxu0
      %v2844 = vadd.f32 0.0, %v2843
      %v2845 = vpop.f32.mrf.mxu0
      %v2846 = vpop.f32.mrf.mxu0
      %v2847 = vadd.f32 0.0, %v2846
      %v2848 = vpop.f32.mrf.mxu0
      %2849 = vmatprep.mubr.bf16.mxu0 0
      %2850 = vmatmul.mubr.bf16.gmra.mxu0 %v2746
      %v2851 = vpop.f32.mrf.mxu0
      %v2852 = vadd.f32 0.0, %v2851
      %v2853 = vpop.f32.mrf.mxu0
      %v2854 = vpop.f32.mrf.mxu0
      %v2855 = vadd.f32 0.0, %v2854
      %v2856 = vpop.f32.mrf.mxu0
      %2857 = vmatprep.mubr.bf16.mxu0 0
      %2858 = vmatmul.mubr.bf16.gmra.mxu0 %v2747
      %v2859 = vpop.f32.mrf.mxu0
      %v2860 = vadd.f32 0.0, %v2859
      %v2861 = vpop.f32.mrf.mxu0
      %v2862 = vpop.f32.mrf.mxu0
      %v2863 = vadd.f32 0.0, %v2862
      %v2864 = vpop.f32.mrf.mxu0
      %2865 = vmatprep.mubr.bf16.mxu0 0
      %2866 = vmatmul.mubr.bf16.gmra.mxu0 %v2748
      %v2867 = vpop.f32.mrf.mxu0
      %v2868 = vadd.f32 0.0, %v2867
      %v2869 = vpop.f32.mrf.mxu0
      %v2870 = vpop.f32.mrf.mxu0
      %v2871 = vadd.f32 0.0, %v2870
      %v2872 = vpop.f32.mrf.mxu0
      %2873 = vmatprep.mubr.bf16.mxu0 0
      %2874 = vmatmul.mubr.bf16.gmra.mxu0 %v2749
      %v2875 = vpop.f32.mrf.mxu0
      %v2876 = vadd.f32 0.0, %v2875
      %v2877 = vpop.f32.mrf.mxu0
      %v2878 = vpop.f32.mrf.mxu0
      %v2879 = vadd.f32 0.0, %v2878
      %v2880 = vpop.f32.mrf.mxu0
      %2881 = vmatprep.mubr.bf16.mxu0 0
      %2882 = vmatmul.mubr.bf16.gmra.mxu0 %v2750
      %v2883 = vpop.f32.mrf.mxu0
      %v2884 = vadd.f32 0.0, %v2883
      %v2885 = vpop.f32.mrf.mxu0
      %v2886 = vpop.f32.mrf.mxu0
      %v2887 = vadd.f32 0.0, %v2886
      %v2888 = vpop.f32.mrf.mxu0
      %2889 = vmatprep.mubr.bf16.mxu0 0
      %2890 = vmatmul.mubr.bf16.gmra.mxu0 %v2751
      %v2891 = vpop.f32.mrf.mxu0
      %v2892 = vadd.f32 0.0, %v2891
      %v2893 = vpop.f32.mrf.mxu0
      %v2894 = vpop.f32.mrf.mxu0
      %v2895 = vadd.f32 0.0, %v2894
      %v2896 = vpop.f32.mrf.mxu0
      %2897 = vmatprep.mubr.bf16.mxu0 0
      %2898 = vmatmul.mubr.bf16.gmra.mxu0 %v2752
      %v2899 = vpop.f32.mrf.mxu0
      %v2900 = vadd.f32 0.0, %v2899
      %v2901 = vpop.f32.mrf.mxu0
      %v2902 = vpop.f32.mrf.mxu0
      %v2903 = vadd.f32 0.0, %v2902
      %v2904 = vpop.f32.mrf.mxu0
      %2905 = vdwg.mxu0
      %v2906 = vadd.f32 %v2480, %v2844
      %v2907 = vadd.f32 %v2481, %v2847
      %v2908 = vadd.f32 %v2482, %v2852
      %v2909 = vadd.f32 %v2483, %v2855
      %v2910 = vadd.f32 %v2484, %v2860
      %v2911 = vadd.f32 %v2485, %v2863
      %v2912 = vadd.f32 %v2486, %v2868
      %v2913 = vadd.f32 %v2487, %v2871
      %v2914 = vadd.f32 %v2488, %v2876
      %v2915 = vadd.f32 %v2489, %v2879
      %v2916 = vadd.f32 %v2490, %v2884
      %v2917 = vadd.f32 %v2491, %v2887
      %v2918 = vadd.f32 %v2492, %v2892
      %v2919 = vadd.f32 %v2493, %v2895
      %v2920 = vadd.f32 %v2494, %v2900
      %v2921 = vadd.f32 %v2495, %v2903
      %v2922 = vld [vmem:[%s2253] sm:$0xe]
      %v2923 = vld [vmem:[%s2253 + $0xc] sm:$0xe]
      %v2924 = vld [vmem:[%s2253 + $0x18] sm:$0xe]
      %v2925 = vld [vmem:[%s2253 + $0x24] sm:$0xe]
      %v2926 = vld [vmem:[%s2253 + $0x30] sm:$0xe]
      %v2927 = vld [vmem:[%s2253 + $0x3c] sm:$0xe]
      %v2928 = vld [vmem:[%s2253 + $0x48] sm:$0xe]
      %v2929 = vld [vmem:[%s2253 + $0x54] sm:$0xe]
      %v2954 = vrot.slane %v2922, 5
      %v2955 = vrot.slane %v2954, 4
      %v2956 = vrot.slane %v2497, 5
      %v2957 = vsel %vm1013, %v2955, %v2956
      %v2958 = vrot.slane %v2956, 4
      %v2959 = vrot.slane %v2498, 5
      %v2960 = vsel %vm1013, %v2958, %v2959
      %v2961 = vrot.slane %v2923, 5
      %v2962 = vrot.slane %v2961, 4
      %v2963 = vrot.slane %v2500, 5
      %v2964 = vsel %vm1013, %v2962, %v2963
      %v2965 = vrot.slane %v2963, 4
      %v2966 = vrot.slane %v2501, 5
      %v2967 = vsel %vm1013, %v2965, %v2966
      %v2968 = vrot.slane %v2924, 5
      %v2969 = vrot.slane %v2968, 4
      %v2970 = vrot.slane %v2503, 5
      %v2971 = vsel %vm1013, %v2969, %v2970
      %v2972 = vrot.slane %v2970, 4
      %v2973 = vrot.slane %v2504, 5
      %v2974 = vsel %vm1013, %v2972, %v2973
      %v2975 = vrot.slane %v2925, 5
      %v2976 = vrot.slane %v2975, 4
      %v2977 = vrot.slane %v2506, 5
      %v2978 = vsel %vm1013, %v2976, %v2977
      %v2979 = vrot.slane %v2977, 4
      %v2980 = vrot.slane %v2507, 5
      %v2981 = vsel %vm1013, %v2979, %v2980
      %v2982 = vrot.slane %v2926, 5
      %v2983 = vrot.slane %v2982, 4
      %v2984 = vrot.slane %v2509, 5
      %v2985 = vsel %vm1013, %v2983, %v2984
      %v2986 = vrot.slane %v2984, 4
      %v2987 = vrot.slane %v2510, 5
      %v2988 = vsel %vm1013, %v2986, %v2987
      %v2989 = vrot.slane %v2927, 5
      %v2990 = vrot.slane %v2989, 4
      %v2991 = vrot.slane %v2512, 5
      %v2992 = vsel %vm1013, %v2990, %v2991
      %v2993 = vrot.slane %v2991, 4
      %v2994 = vrot.slane %v2513, 5
      %v2995 = vsel %vm1013, %v2993, %v2994
      %v2996 = vrot.slane %v2928, 5
      %v2997 = vrot.slane %v2996, 4
      %v2998 = vrot.slane %v2515, 5
      %v2999 = vsel %vm1013, %v2997, %v2998
      %v3000 = vrot.slane %v2998, 4
      %v3001 = vrot.slane %v2516, 5
      %v3002 = vsel %vm1013, %v3000, %v3001
      %v3003 = vrot.slane %v2929, 5
      %v3004 = vrot.slane %v3003, 4
      %v3005 = vrot.slane %v2518, 5
      %v3006 = vsel %vm1013, %v3004, %v3005
      %v3007 = vrot.slane %v3005, 4
      %v3008 = vrot.slane %v2519, 5
      %v3009 = vsel %vm1013, %v3007, %v3008
      %s3010 = scalar_lea.vmem %s325, 512
      %v3011 = vld [vmem:[%s3010] sm:$0xf]
      %v3012 = vld [vmem:[%s3010 + $0x4] sm:$0xf]
      %v3013 = vld [vmem:[%s3010 + $0x8] sm:$0xf]
      %v3014 = vld [vmem:[%s3010 + $0xc] sm:$0xf]
      %v3015 = vld [vmem:[%s3010 + $0x10] sm:$0xf]
      %v3016 = vld [vmem:[%s3010 + $0x14] sm:$0xf]
      %v3017 = vld [vmem:[%s3010 + $0x18] sm:$0xf]
      %v3018 = vld [vmem:[%s3010 + $0x1c] sm:$0xf]
      %v3019 = vld [vmem:[%s3010 + $0x20] sm:$0xf]
      %v3020 = vld [vmem:[%s3010 + $0x24] sm:$0xf]
      %v3021 = vld [vmem:[%s3010 + $0x28] sm:$0xf]
      %v3022 = vld [vmem:[%s3010 + $0x2c] sm:$0xf]
      %v3023 = vld [vmem:[%s3010 + $0x30] sm:$0xf]
      %v3024 = vld [vmem:[%s3010 + $0x34] sm:$0xf]
      %v3025 = vld [vmem:[%s3010 + $0x38] sm:$0xf]
      %v3026 = vld [vmem:[%s3010 + $0x3c] sm:$0xf]
      %v3027 = vunpack.c.l.b16 %v2957
      %v3028 = vunpack.c.l.b16 %v2960
      %v3029 = vunpack.c.l.b16 %v2964
      %v3030 = vunpack.c.l.b16 %v2967
      %v3031 = vunpack.c.l.b16 %v2971
      %v3032 = vunpack.c.l.b16 %v2974
      %v3033 = vunpack.c.l.b16 %v2978
      %v3034 = vunpack.c.l.b16 %v2981
      %v3035 = vunpack.c.l.b16 %v2985
      %v3036 = vunpack.c.l.b16 %v2988
      %v3037 = vunpack.c.l.b16 %v2992
      %v3038 = vunpack.c.l.b16 %v2995
      %v3039 = vunpack.c.l.b16 %v2999
      %v3040 = vunpack.c.l.b16 %v3002
      %v3041 = vunpack.c.l.b16 %v3006
      %v3042 = vunpack.c.l.b16 %v3009
      %v3043 = vpack.c.b16 %v3028, %v3027
      %v3044 = vpack.c.b16 %v3030, %v3029
      %v3045 = vpack.c.b16 %v3032, %v3031
      %v3046 = vpack.c.b16 %v3034, %v3033
      %v3047 = vpack.c.b16 %v3036, %v3035
      %v3048 = vpack.c.b16 %v3038, %v3037
      %v3049 = vpack.c.b16 %v3040, %v3039
      %v3050 = vpack.c.b16 %v3042, %v3041
      %v3075 = vunpack.c.l.b16 %v3011
      %v3076 = vunpack.c.l.b16 %v3012
      %v3077 = vunpack.c.l.b16 %v3013
      %v3078 = vunpack.c.l.b16 %v3014
      %v3079 = vunpack.c.l.b16 %v3015
      %v3080 = vunpack.c.l.b16 %v3016
      %v3081 = vunpack.c.l.b16 %v3017
      %v3082 = vunpack.c.l.b16 %v3018
      %v3083 = vunpack.c.l.b16 %v3019
      %v3084 = vunpack.c.l.b16 %v3020
      %v3085 = vunpack.c.l.b16 %v3021
      %v3086 = vunpack.c.l.b16 %v3022
      %v3087 = vunpack.c.l.b16 %v3023
      %v3088 = vunpack.c.l.b16 %v3024
      %v3089 = vunpack.c.l.b16 %v3025
      %v3090 = vunpack.c.l.b16 %v3026
      %v3091 = vpack.c.b16 %v3076, %v3075
      %v3092 = vpack.c.b16 %v3078, %v3077
      %v3093 = vpack.c.b16 %v3080, %v3079
      %v3094 = vpack.c.b16 %v3082, %v3081
      %v3095 = vpack.c.b16 %v3084, %v3083
      %v3096 = vpack.c.b16 %v3086, %v3085
      %v3097 = vpack.c.b16 %v3088, %v3087
      %v3098 = vpack.c.b16 %v3090, %v3089
      %3107 = vmatprep.subr.bf16.mxu0 0
      %3108 = vmatpush1.bf16.msra.mxu0 %v3098
      %3109 = vmatprep.subr.bf16.mxu0 0
      %3110 = vmatpush1.bf16.msra.mxu0 %v3097
      %3111 = vmatprep.subr.bf16.mxu0 0
      %3112 = vmatpush1.bf16.msra.mxu0 %v3096
      %3113 = vmatprep.subr.bf16.mxu0 0
      %3114 = vmatpush1.bf16.msra.mxu0 %v3095
      %3115 = vmatprep.subr.bf16.mxu0 0
      %3116 = vmatpush1.bf16.msra.mxu0 %v3094
      %3117 = vmatprep.subr.bf16.mxu0 0
      %3118 = vmatpush1.bf16.msra.mxu0 %v3093
      %3119 = vmatprep.subr.bf16.mxu0 0
      %3120 = vmatpush1.bf16.msra.mxu0 %v3092
      %3121 = vmatprep.subr.bf16.mxu0 0
      %3122 = vmatpush1.bf16.msra.mxu0 %v3091
      %3123 = vmatprep.subr.bf16.mxu0 0
      %3124 = vmatpush2.bf16.msra.mxu0 0
      %3125 = vmatprep.subr.bf16.mxu0 0
      %3126 = vmatpush2.bf16.msra.mxu0 0
      %3127 = vmatprep.subr.bf16.mxu0 0
      %3128 = vmatpush2.bf16.msra.mxu0 0
      %3129 = vmatprep.subr.bf16.mxu0 0
      %3130 = vmatpush2.bf16.msra.mxu0 0
      %3131 = vmatprep.subr.bf16.mxu0 0
      %3132 = vmatpush2.bf16.msra.mxu0 0
      %3133 = vmatprep.subr.bf16.mxu0 0
      %3134 = vmatpush2.bf16.msra.mxu0 0
      %3135 = vmatprep.subr.bf16.mxu0 0
      %3136 = vmatpush2.bf16.msra.mxu0 0
      %3137 = vmatprep.subr.bf16.mxu0 0
      %3138 = vmatpush2.bf16.msra.mxu0 0
      %3139 = vmatprep.mubr.bf16.mxu0 0
      %3140 = vmatmul.mubr.bf16.gmra.mxu0 %v3043
      %v3141 = vpop.f32.mrf.mxu0
      %v3142 = vadd.f32 0.0, %v3141
      %v3143 = vpop.f32.mrf.mxu0
      %v3144 = vpop.f32.mrf.mxu0
      %v3145 = vadd.f32 0.0, %v3144
      %v3146 = vpop.f32.mrf.mxu0
      %3147 = vmatprep.mubr.bf16.mxu0 0
      %3148 = vmatmul.mubr.bf16.gmra.mxu0 %v3044
      %v3149 = vpop.f32.mrf.mxu0
      %v3150 = vadd.f32 0.0, %v3149
      %v3151 = vpop.f32.mrf.mxu0
      %v3152 = vpop.f32.mrf.mxu0
      %v3153 = vadd.f32 0.0, %v3152
      %v3154 = vpop.f32.mrf.mxu0
      %3155 = vmatprep.mubr.bf16.mxu0 0
      %3156 = vmatmul.mubr.bf16.gmra.mxu0 %v3045
      %v3157 = vpop.f32.mrf.mxu0
      %v3158 = vadd.f32 0.0, %v3157
      %v3159 = vpop.f32.mrf.mxu0
      %v3160 = vpop.f32.mrf.mxu0
      %v3161 = vadd.f32 0.0, %v3160
      %v3162 = vpop.f32.mrf.mxu0
      %3163 = vmatprep.mubr.bf16.mxu0 0
      %3164 = vmatmul.mubr.bf16.gmra.mxu0 %v3046
      %v3165 = vpop.f32.mrf.mxu0
      %v3166 = vadd.f32 0.0, %v3165
      %v3167 = vpop.f32.mrf.mxu0
      %v3168 = vpop.f32.mrf.mxu0
      %v3169 = vadd.f32 0.0, %v3168
      %v3170 = vpop.f32.mrf.mxu0
      %3171 = vmatprep.mubr.bf16.mxu0 0
      %3172 = vmatmul.mubr.bf16.gmra.mxu0 %v3047
      %v3173 = vpop.f32.mrf.mxu0
      %v3174 = vadd.f32 0.0, %v3173
      %v3175 = vpop.f32.mrf.mxu0
      %v3176 = vpop.f32.mrf.mxu0
      %v3177 = vadd.f32 0.0, %v3176
      %v3178 = vpop.f32.mrf.mxu0
      %3179 = vmatprep.mubr.bf16.mxu0 0
      %3180 = vmatmul.mubr.bf16.gmra.mxu0 %v3048
      %v3181 = vpop.f32.mrf.mxu0
      %v3182 = vadd.f32 0.0, %v3181
      %v3183 = vpop.f32.mrf.mxu0
      %v3184 = vpop.f32.mrf.mxu0
      %v3185 = vadd.f32 0.0, %v3184
      %v3186 = vpop.f32.mrf.mxu0
      %3187 = vmatprep.mubr.bf16.mxu0 0
      %3188 = vmatmul.mubr.bf16.gmra.mxu0 %v3049
      %v3189 = vpop.f32.mrf.mxu0
      %v3190 = vadd.f32 0.0, %v3189
      %v3191 = vpop.f32.mrf.mxu0
      %v3192 = vpop.f32.mrf.mxu0
      %v3193 = vadd.f32 0.0, %v3192
      %v3194 = vpop.f32.mrf.mxu0
      %3195 = vmatprep.mubr.bf16.mxu0 0
      %3196 = vmatmul.mubr.bf16.gmra.mxu0 %v3050
      %v3197 = vpop.f32.mrf.mxu0
      %v3198 = vadd.f32 0.0, %v3197
      %v3199 = vpop.f32.mrf.mxu0
      %v3200 = vpop.f32.mrf.mxu0
      %v3201 = vadd.f32 0.0, %v3200
      %v3202 = vpop.f32.mrf.mxu0
      %3203 = vdwg.mxu0
      %v3204 = vadd.f32 %v2906, %v3142
      %v3205 = vadd.f32 %v2907, %v3145
      %v3206 = vadd.f32 %v2908, %v3150
      %v3207 = vadd.f32 %v2909, %v3153
      %v3208 = vadd.f32 %v2910, %v3158
      %v3209 = vadd.f32 %v2911, %v3161
      %v3210 = vadd.f32 %v2912, %v3166
      %v3211 = vadd.f32 %v2913, %v3169
      %v3212 = vadd.f32 %v2914, %v3174
      %v3213 = vadd.f32 %v2915, %v3177
      %v3214 = vadd.f32 %v2916, %v3182
      %v3215 = vadd.f32 %v2917, %v3185
      %v3216 = vadd.f32 %v2918, %v3190
      %v3217 = vadd.f32 %v2919, %v3193
      %v3218 = vadd.f32 %v2920, %v3198
      %v3219 = vadd.f32 %v2921, %v3201
      %v3220 = vld [vmem:[%s328] sm:$0x1]
      %v3222 = vlaneseq
      %v3223 = vshrl.u32 %v3222, 7
      %v3224 = vsub.s32 0, %v3223
      %v3225 = vrot.slane %v3220, %v3224
      %v3227 = vmul.f32 %v3204, %v3225
      %v3228 = vmul.f32 %v3205, %v3225
      %v3229 = vmul.f32 %v3206, %v3225
      %v3230 = vmul.f32 %v3207, %v3225
      %v3231 = vmul.f32 %v3208, %v3225
      %v3232 = vmul.f32 %v3209, %v3225
      %v3233 = vmul.f32 %v3210, %v3225
      %v3234 = vmul.f32 %v3211, %v3225
      %v3235 = vmul.f32 %v3212, %v3225
      %v3236 = vmul.f32 %v3213, %v3225
      %v3237 = vmul.f32 %v3214, %v3225
      %v3238 = vmul.f32 %v3215, %v3225
      %v3239 = vmul.f32 %v3216, %v3225
      %v3240 = vmul.f32 %v3217, %v3225
      %v3241 = vmul.f32 %v3218, %v3225
      %v3242 = vmul.f32 %v3219, %v3225
      %v3243 = vld [vmem:[%s331] sm:$0x1]
      %v3245 = vlaneseq
      %v3246 = vshrl.u32 %v3245, 7
      %v3247 = vsub.s32 0, %v3246
      %v3248 = vrot.slane %v3243, %v3247
      %v3250 = vadd.f32 %v3227, %v3248
      %v3251 = vadd.f32 %v3228, %v3248
      %v3252 = vadd.f32 %v3229, %v3248
      %v3253 = vadd.f32 %v3230, %v3248
      %v3254 = vadd.f32 %v3231, %v3248
      %v3255 = vadd.f32 %v3232, %v3248
      %v3256 = vadd.f32 %v3233, %v3248
      %v3257 = vadd.f32 %v3234, %v3248
      %v3258 = vadd.f32 %v3235, %v3248
      %v3259 = vadd.f32 %v3236, %v3248
      %v3260 = vadd.f32 %v3237, %v3248
      %v3261 = vadd.f32 %v3238, %v3248
      %v3262 = vadd.f32 %v3239, %v3248
      %v3263 = vadd.f32 %v3240, %v3248
      %v3264 = vadd.f32 %v3241, %v3248
      %v3265 = vadd.f32 %v3242, %v3248
      %v3266 = vld [vmem:[%s344] sm:$0xff]
      %v3267 = vld [vmem:[%s344 + $0x8] sm:$0xff]
      %v3268 = vld [vmem:[%s344 + $0x10] sm:$0xff]
      %v3269 = vld [vmem:[%s344 + $0x18] sm:$0xff]
      %v3270 = vld [vmem:[%s344 + $0x20] sm:$0xff]
      %v3271 = vld [vmem:[%s344 + $0x28] sm:$0xff]
      %v3272 = vld [vmem:[%s344 + $0x30] sm:$0xff]
      %v3273 = vld [vmem:[%s344 + $0x38] sm:$0xff]
      %v3274 = vld [vmem:[%s344 + $0x40] sm:$0xff]
      %v3275 = vld [vmem:[%s344 + $0x48] sm:$0xff]
      %v3276 = vld [vmem:[%s344 + $0x50] sm:$0xff]
      %v3277 = vld [vmem:[%s344 + $0x58] sm:$0xff]
      %v3278 = vld [vmem:[%s344 + $0x60] sm:$0xff]
      %v3279 = vld [vmem:[%s344 + $0x68] sm:$0xff]
      %v3280 = vld [vmem:[%s344 + $0x70] sm:$0xff]
      %v3281 = vld [vmem:[%s344 + $0x78] sm:$0xff]
      %v3282 = vadd.f32 %v3250, %v3266
      %v3283 = vadd.f32 %v3251, %v3267
      %v3284 = vadd.f32 %v3252, %v3268
      %v3285 = vadd.f32 %v3253, %v3269
      %v3286 = vadd.f32 %v3254, %v3270
      %v3287 = vadd.f32 %v3255, %v3271
      %v3288 = vadd.f32 %v3256, %v3272
      %v3289 = vadd.f32 %v3257, %v3273
      %v3290 = vadd.f32 %v3258, %v3274
      %v3291 = vadd.f32 %v3259, %v3275
      %v3292 = vadd.f32 %v3260, %v3276
      %v3293 = vadd.f32 %v3261, %v3277
      %v3294 = vadd.f32 %v3262, %v3278
      %v3295 = vadd.f32 %v3263, %v3279
      %v3296 = vadd.f32 %v3264, %v3280
      %v3297 = vadd.f32 %v3265, %v3281
      %v3298 = vmax.f32 %v3282, 0.0
      %v3299 = vmax.f32 %v3283, 0.0
      %v3300 = vmax.f32 %v3284, 0.0
      %v3301 = vmax.f32 %v3285, 0.0
      %v3302 = vmax.f32 %v3286, 0.0
      %v3303 = vmax.f32 %v3287, 0.0
      %v3304 = vmax.f32 %v3288, 0.0
      %v3305 = vmax.f32 %v3289, 0.0
      %v3306 = vmax.f32 %v3290, 0.0
      %v3307 = vmax.f32 %v3291, 0.0
      %v3308 = vmax.f32 %v3292, 0.0
      %v3309 = vmax.f32 %v3293, 0.0
      %v3310 = vmax.f32 %v3294, 0.0
      %v3311 = vmax.f32 %v3295, 0.0
      %v3312 = vmax.f32 %v3296, 0.0
      %v3313 = vmax.f32 %v3297, 0.0
      %3314 = vst [vmem:[%s358] sm:$0xff] %v3298
      %3315 = vst [vmem:[%s358 + $0x8] sm:$0xff] %v3299
      %3316 = vst [vmem:[%s358 + $0x10] sm:$0xff] %v3300
      %3317 = vst [vmem:[%s358 + $0x18] sm:$0xff] %v3301
      %3318 = vst [vmem:[%s358 + $0x20] sm:$0xff] %v3302
      %3319 = vst [vmem:[%s358 + $0x28] sm:$0xff] %v3303
      %3320 = vst [vmem:[%s358 + $0x30] sm:$0xff] %v3304
      %3321 = vst [vmem:[%s358 + $0x38] sm:$0xff] %v3305
      %3322 = vst [vmem:[%s358 + $0x40] sm:$0xff] %v3306
      %3323 = vst [vmem:[%s358 + $0x48] sm:$0xff] %v3307
      %3324 = vst [vmem:[%s358 + $0x50] sm:$0xff] %v3308
      %3325 = vst [vmem:[%s358 + $0x58] sm:$0xff] %v3309
      %3326 = vst [vmem:[%s358 + $0x60] sm:$0xff] %v3310
      %3327 = vst [vmem:[%s358 + $0x68] sm:$0xff] %v3311
      %3328 = vst [vmem:[%s358 + $0x70] sm:$0xff] %v3312
      %3329 = vst [vmem:[%s358 + $0x78] sm:$0xff] %v3313
      %s3330 = smul.u32 8, %s23
      %p3331 = scmp.lt.s32.totalorder %s21, 1
      %s3332 = scalar_select %p3331, %s21, 1
      %p3333 = scmp.lt.s32.totalorder %s3330, 15
      %s3334 = scalar_select %p3333, %s3330, 15
      %p3335 = scmp.lt.s32.totalorder %s22, 0
      %s3336 = scalar_select %p3335, %s22, 0
      %s3337 = smul.addr %s3334, 2
      %s3338 = sadd.s32 %s3336, %s3337
      %s3339 = smul.addr %s3332, 32
      %s3340 = sadd.s32 %s3338, %s3339
      %s3341 = smul.addr %s3340, 8
      %s3342 = scalar_lea.vmem %s5, %s3341
      // Predicated region
      $region41: #{_lambda_.3} parent=39 // pred_check
        %p3343 = pneg %p191
      $region42: #{_lambda_.3} parent=39 // pred_check_branch
        %3345 = sbr.rel (%p3343) target = $region44
      $region43: #{_lambda_.3} parent=39 // pred_region
        %s3346 = smul.u32 8, %s23
      $region44: #{_lambda_.3} parent=39 // pred_fallthru
        _
    $region40: #{_lambda_.3} parent=5 // pred_fallthru
      _
    %p3347 = scmp.le.s32.totalorder 2, %s11
    // Predicated region
    $region45: #{_lambda_.3} parent=5 // pred_check
      %p3348 = pneg %p3347
    $region46: #{_lambda_.3} parent=5 // pred_check_branch
      %3350 = sbr.rel (%p3348) target = $region48
    $region47: #{_lambda_.3} parent=5 // pred_region
      %s3351 = ssub.s32 %s11, 2
      // Predicated region
      $region49: #{_lambda_.3} parent=47 // pred_check
        %p3352 = pneg %p197
      $region50: #{_lambda_.3} parent=47 // pred_check_branch
        %3354 = sbr.rel (%p3352) target = $region52
      $region51: #{_lambda_.3} parent=47 // pred_region
        %s3355 = smul.u32 8, %s26
        %p3356 = scmp.lt.s32.totalorder %s24, 1
        %s3357 = scalar_select %p3356, %s24, 1
        %p3358 = scmp.lt.s32.totalorder %s3355, 15
        %s3359 = scalar_select %p3358, %s3355, 15
        %p3360 = scmp.lt.s32.totalorder %s25, 0
        %s3361 = scalar_select %p3360, %s25, 0
        %s3362 = smul.addr %s3359, 2
        %s3363 = sadd.s32 %s3361, %s3362
        %s3364 = smul.addr %s3357, 32
        %s3365 = sadd.s32 %s3363, %s3364
        %s3366 = smul.addr %s3365, 8
        %s3367 = scalar_lea.vmem %s5, %s3366
      $region52: #{_lambda_.3} parent=47 // pred_fallthru
        _
    $region48: #{_lambda_.3} parent=5 // pred_fallthru
      _
  $region6: #{_lambda_.3} parent=0 // loop_footer
    %s15 = sadd.s32 1, %s11
  $region7: #{_lambda_.3} parent=0 // loop_footer_branch
    %10 = sbr.rel target = $region3
  $region8: #{_lambda_.3} parent=0 // loop_exit
    _

// kernel: _lambda_.2
$region0: #{_lambda_.2}
  #allocation0 [shape = 'u32[]', space=smem, size = 0x4, offset = 0x4, fixed_abs, tag = 'smem constant byte address 0x4 - core index']
  #allocation1 [shape = 'u32[144,128]{1,0:T(1,128)}', space=vmem, size = 0x12000, scoped, tag = 'internal scratch']
  %s0 = inlined_call_operand.vmem [shape: bf16[2,18,18,128], index: 0, kind: input, shape index: {}]
  %s1 = inlined_call_operand.vmem [shape: bf16[3,3,128,128], index: 1, kind: input, shape index: {}]
  %s2 = inlined_call_operand.vmem [shape: f32[1,128], index: 2, kind: input, shape index: {}]
  %s3 = inlined_call_operand.vmem [shape: f32[1,128], index: 3, kind: input, shape index: {}]
  %s4 = inlined_call_operand.vmem [shape: bf16[1,1,128,128], index: 4, kind: input, shape index: {}]
  %s5 = inlined_call_operand.vmem [shape: f32[1,128], index: 5, kind: input, shape index: {}]
  %s6 = inlined_call_operand.vmem [shape: f32[1,128], index: 6, kind: input, shape index: {}]
  %s7 = inlined_call_operand.vmem [shape: bf16[2,16,16,128], index: 7, kind: output, shape index: {0}]
  %s8 = inlined_call_operand.vmem [shape: f32[2,16,16,128], index: 8, kind: output, shape index: {1}]
  %9 = xla_tuple %s7, %s8
  %s10 = sld [smem:[#allocation0]]
  $region69: #{_lambda_.2} parent=0
    _
  %s12 = ssub.s32 1, %s10
  %s13 = scalar_select 0, %s12, %s10
  loop: start=0, step=1, limit=6
  $region2: #{_lambda_.2} parent=0 // loop_pre_header
    _
  $region3: #{_lambda_.2} parent=0 // loop_header
    %s15 = sphi 0, %s19
    %p16 = scmp.ge.s32.totalorder %s15, 6
    %s22 = sphi 0, %s41
    %s23 = sphi 0, %s37
    %s24 = sphi 0, %s33
    %s25 = sphi 0, %s22
    %s26 = sphi 0, %s23
    %s27 = sphi 0, %s24
    %s28 = sphi 0, %s25
    %s29 = sphi 0, %s26
    %s30 = sphi 0, %s27
    %s44 = sphi 0, %s46
    %s47 = sphi 0, %s44
    %s48 = sphi 0, %s47
    %s64 = sphi 0, %s48
    %s70 = sphi 0, %s72
    %s73 = sphi 0, %s70
    %s74 = sphi 0, %s73
    %s90 = sphi 0, %s74
    %s96 = sphi 0, %s98
    %s99 = sphi 0, %s96
    %s100 = sphi 0, %s99
    %s116 = sphi 0, %s100
    %s122 = sphi 0, %s124
    %s125 = sphi 0, %s122
    %s126 = sphi 0, %s125
    %s142 = sphi 0, %s126
    %s148 = sphi 0, %s150
    %s151 = sphi 0, %s148
    %s152 = sphi 0, %s151
    %s168 = sphi 0, %s152
    %s174 = sphi 0, %s176
    %s177 = sphi 0, %s174
    %s178 = sphi 0, %s177
    %s194 = sphi 0, %s178
    %s200 = sphi 0, %s202
    %s203 = sphi 0, %s200
    %s204 = sphi 0, %s203
    %s220 = sphi 0, %s204
    %s230 = sphi 0, %s232
    %s233 = sphi 0, %s230
    %s234 = sphi 0, %s233
    %s250 = sphi 0, %s234
    %s260 = sphi 0, %s262
    %s263 = sphi 0, %s260
    %s264 = sphi 0, %s263
    %s280 = sphi 0, %s264
  $region4: #{_lambda_.2} parent=0 // loop_header_branch
    %18 = sbr.rel (%p16) target = $region8
  $region5: #{_lambda_.2} parent=0 // loop_body
    %s20 = ssub.s32 %s15, 1
    %s21 = ssub.s32 %s15, 2
    %s31 = sadd.s32 1, %s24
    %p32 = scmp.ge.s32.totalorder %s31, 2
    %s33 = scalar_select %p32, 0, %s31
    %s34 = sadd.s32 1, %s23
    %s35 = scalar_select %p32, %s34, %s23
    %p36 = scmp.ge.s32.totalorder %s35, 1
    %s37 = scalar_select %p36, 0, %s35
    %s38 = sadd.s32 1, %s22
    %s39 = scalar_select %p36, %s38, %s22
    %p40 = scmp.ge.s32.totalorder %s39, 2
    %s41 = scalar_select %p40, 0, %s39
    %s42 = ssub.s32 %s22, %s41
    %p43 = scmp.eq.s32.totalorder %s42, 0
    %s45 = sadd.s32 %s44, 1
    %s46 = scalar_select %p43, %s44, %s45
    %p49 = pneg %p43
    %p50 = scmp.eq.s32.totalorder %s15, 3
    %p51 = por %p49, %p50
    %p52 = scmp.ne.s32.totalorder %s44, %s47
    %p53 = scmp.eq.s32.totalorder %s15, 0
    %p54 = por %p52, %p53
    %p55 = scmp.ne.s32.totalorder %s44, %s47
    %p56 = scmp.eq.s32.totalorder %s20, 3
    %p57 = por %p55, %p56
    %p58 = scmp.ne.s32.totalorder %s47, %s48
    %p59 = scmp.eq.s32.totalorder %s20, 0
    %p60 = por %p58, %p59
    %p61 = scmp.ne.s32.totalorder %s47, %s48
    %p62 = scmp.eq.s32.totalorder %s21, 3
    %p63 = por %p61, %p62
    %p65 = scmp.ne.s32.totalorder %s48, %s64
    %p66 = scmp.eq.s32.totalorder %s21, 0
    %p67 = por %p65, %p66
    %s68 = ssub.s32 %s23, %s37
    %p69 = scmp.eq.s32.totalorder %s68, 0
    %s71 = sadd.s32 %s70, 1
    %s72 = scalar_select %p69, %s70, %s71
    %p75 = pneg %p69
    %p76 = scmp.eq.s32.totalorder %s15, 3
    %p77 = por %p75, %p76
    %p78 = scmp.ne.s32.totalorder %s70, %s73
    %p79 = scmp.eq.s32.totalorder %s15, 0
    %p80 = por %p78, %p79
    %p81 = scmp.ne.s32.totalorder %s70, %s73
    %p82 = scmp.eq.s32.totalorder %s20, 3
    %p83 = por %p81, %p82
    %p84 = scmp.ne.s32.totalorder %s73, %s74
    %p85 = scmp.eq.s32.totalorder %s20, 0
    %p86 = por %p84, %p85
    %p87 = scmp.ne.s32.totalorder %s73, %s74
    %p88 = scmp.eq.s32.totalorder %s21, 3
    %p89 = por %p87, %p88
    %p91 = scmp.ne.s32.totalorder %s74, %s90
    %p92 = scmp.eq.s32.totalorder %s21, 0
    %p93 = por %p91, %p92
    %s94 = ssub.s32 %s23, %s37
    %p95 = scmp.eq.s32.totalorder %s94, 0
    %s97 = sadd.s32 %s96, 1
    %s98 = scalar_select %p95, %s96, %s97
    %p101 = pneg %p95
    %p102 = scmp.eq.s32.totalorder %s15, 3
    %p103 = por %p101, %p102
    %p104 = scmp.ne.s32.totalorder %s96, %s99
    %p105 = scmp.eq.s32.totalorder %s15, 0
    %p106 = por %p104, %p105
    %p107 = scmp.ne.s32.totalorder %s96, %s99
    %p108 = scmp.eq.s32.totalorder %s20, 3
    %p109 = por %p107, %p108
    %p110 = scmp.ne.s32.totalorder %s99, %s100
    %p111 = scmp.eq.s32.totalorder %s20, 0
    %p112 = por %p110, %p111
    %p113 = scmp.ne.s32.totalorder %s99, %s100
    %p114 = scmp.eq.s32.totalorder %s21, 3
    %p115 = por %p113, %p114
    %p117 = scmp.ne.s32.totalorder %s100, %s116
    %p118 = scmp.eq.s32.totalorder %s21, 0
    %p119 = por %p117, %p118
    %s120 = ssub.s32 %s23, %s37
    %p121 = scmp.eq.s32.totalorder %s120, 0
    %s123 = sadd.s32 %s122, 1
    %s124 = scalar_select %p121, %s122, %s123
    %p127 = pneg %p121
    %p128 = scmp.eq.s32.totalorder %s15, 3
    %p129 = por %p127, %p128
    %p130 = scmp.ne.s32.totalorder %s122, %s125
    %p131 = scmp.eq.s32.totalorder %s15, 0
    %p132 = por %p130, %p131
    %p133 = scmp.ne.s32.totalorder %s122, %s125
    %p134 = scmp.eq.s32.totalorder %s20, 3
    %p135 = por %p133, %p134
    %p136 = scmp.ne.s32.totalorder %s125, %s126
    %p137 = scmp.eq.s32.totalorder %s20, 0
    %p138 = por %p136, %p137
    %p139 = scmp.ne.s32.totalorder %s125, %s126
    %p140 = scmp.eq.s32.totalorder %s21, 3
    %p141 = por %p139, %p140
    %p143 = scmp.ne.s32.totalorder %s126, %s142
    %p144 = scmp.eq.s32.totalorder %s21, 0
    %p145 = por %p143, %p144
    %s146 = ssub.s32 %s23, %s37
    %p147 = scmp.eq.s32.totalorder %s146, 0
    %s149 = sadd.s32 %s148, 1
    %s150 = scalar_select %p147, %s148, %s149
    %p153 = pneg %p147
    %p154 = scmp.eq.s32.totalorder %s15, 3
    %p155 = por %p153, %p154
    %p156 = scmp.ne.s32.totalorder %s148, %s151
    %p157 = scmp.eq.s32.totalorder %s15, 0
    %p158 = por %p156, %p157
    %p159 = scmp.ne.s32.totalorder %s148, %s151
    %p160 = scmp.eq.s32.totalorder %s20, 3
    %p161 = por %p159, %p160
    %p162 = scmp.ne.s32.totalorder %s151, %s152
    %p163 = scmp.eq.s32.totalorder %s20, 0
    %p164 = por %p162, %p163
    %p165 = scmp.ne.s32.totalorder %s151, %s152
    %p166 = scmp.eq.s32.totalorder %s21, 3
    %p167 = por %p165, %p166
    %p169 = scmp.ne.s32.totalorder %s152, %s168
    %p170 = scmp.eq.s32.totalorder %s21, 0
    %p171 = por %p169, %p170
    %s172 = ssub.s32 %s23, %s37
    %p173 = scmp.eq.s32.totalorder %s172, 0
    %s175 = sadd.s32 %s174, 1
    %s176 = scalar_select %p173, %s174, %s175
    %p179 = pneg %p173
    %p180 = scmp.eq.s32.totalorder %s15, 3
    %p181 = por %p179, %p180
    %p182 = scmp.ne.s32.totalorder %s174, %s177
    %p183 = scmp.eq.s32.totalorder %s15, 0
    %p184 = por %p182, %p183
    %p185 = scmp.ne.s32.totalorder %s174, %s177
    %p186 = scmp.eq.s32.totalorder %s20, 3
    %p187 = por %p185, %p186
    %p188 = scmp.ne.s32.totalorder %s177, %s178
    %p189 = scmp.eq.s32.totalorder %s20, 0
    %p190 = por %p188, %p189
    %p191 = scmp.ne.s32.totalorder %s177, %s178
    %p192 = scmp.eq.s32.totalorder %s21, 3
    %p193 = por %p191, %p192
    %p195 = scmp.ne.s32.totalorder %s178, %s194
    %p196 = scmp.eq.s32.totalorder %s21, 0
    %p197 = por %p195, %p196
    %s198 = ssub.s32 %s23, %s37
    %p199 = scmp.eq.s32.totalorder %s198, 0
    %s201 = sadd.s32 %s200, 1
    %s202 = scalar_select %p199, %s200, %s201
    %p205 = pneg %p199
    %p206 = scmp.eq.s32.totalorder %s15, 3
    %p207 = por %p205, %p206
    %p208 = scmp.ne.s32.totalorder %s200, %s203
    %p209 = scmp.eq.s32.totalorder %s15, 0
    %p210 = por %p208, %p209
    %p211 = scmp.ne.s32.totalorder %s200, %s203
    %p212 = scmp.eq.s32.totalorder %s20, 3
    %p213 = por %p211, %p212
    %p214 = scmp.ne.s32.totalorder %s203, %s204
    %p215 = scmp.eq.s32.totalorder %s20, 0
    %p216 = por %p214, %p215
    %p217 = scmp.ne.s32.totalorder %s203, %s204
    %p218 = scmp.eq.s32.totalorder %s21, 3
    %p219 = por %p217, %p218
    %p221 = scmp.ne.s32.totalorder %s204, %s220
    %p222 = scmp.eq.s32.totalorder %s21, 0
    %p223 = por %p221, %p222
    %s224 = ssub.s32 %s22, %s41
    %s225 = ssub.s32 %s24, %s33
    %s226 = sor.u32 %s224, %s225
    %s227 = ssub.s32 %s23, %s37
    %s228 = sor.u32 %s226, %s227
    %p229 = scmp.eq.s32.totalorder %s228, 0
    %s231 = sadd.s32 %s230, 1
    %s232 = scalar_select %p229, %s230, %s231
    %p235 = pneg %p229
    %p236 = scmp.eq.s32.totalorder %s15, 3
    %p237 = por %p235, %p236
    %p238 = scmp.ne.s32.totalorder %s230, %s233
    %p239 = scmp.eq.s32.totalorder %s15, 0
    %p240 = por %p238, %p239
    %p241 = scmp.ne.s32.totalorder %s230, %s233
    %p242 = scmp.eq.s32.totalorder %s20, 3
    %p243 = por %p241, %p242
    %p244 = scmp.ne.s32.totalorder %s233, %s234
    %p245 = scmp.eq.s32.totalorder %s20, 0
    %p246 = por %p244, %p245
    %p247 = scmp.ne.s32.totalorder %s233, %s234
    %p248 = scmp.eq.s32.totalorder %s21, 3
    %p249 = por %p247, %p248
    %p251 = scmp.ne.s32.totalorder %s234, %s250
    %p252 = scmp.eq.s32.totalorder %s21, 0
    %p253 = por %p251, %p252
    %s254 = ssub.s32 %s22, %s41
    %s255 = ssub.s32 %s24, %s33
    %s256 = sor.u32 %s254, %s255
    %s257 = ssub.s32 %s23, %s37
    %s258 = sor.u32 %s256, %s257
    %p259 = scmp.eq.s32.totalorder %s258, 0
    %s261 = sadd.s32 %s260, 1
    %s262 = scalar_select %p259, %s260, %s261
    %p265 = pneg %p259
    %p266 = scmp.eq.s32.totalorder %s15, 3
    %p267 = por %p265, %p266
    %p268 = scmp.ne.s32.totalorder %s260, %s263
    %p269 = scmp.eq.s32.totalorder %s15, 0
    %p270 = por %p268, %p269
    %p271 = scmp.ne.s32.totalorder %s260, %s263
    %p272 = scmp.eq.s32.totalorder %s20, 3
    %p273 = por %p271, %p272
    %p274 = scmp.ne.s32.totalorder %s263, %s264
    %p275 = scmp.eq.s32.totalorder %s20, 0
    %p276 = por %p274, %p275
    %p277 = scmp.ne.s32.totalorder %s263, %s264
    %p278 = scmp.eq.s32.totalorder %s21, 3
    %p279 = por %p277, %p278
    %p281 = scmp.ne.s32.totalorder %s264, %s280
    %p282 = scmp.eq.s32.totalorder %s21, 0
    %p283 = por %p281, %p282
    %p284 = scmp.le.s32.totalorder 1, %s15
    %p285 = scmp.lt.s32.totalorder %s15, 5
    %p286 = pnand %p284, %p285
    %p287 = pneg %p286
    // Predicated region
    $region9: #{_lambda_.2} parent=5 // pred_check
      _
    $region10: #{_lambda_.2} parent=5 // pred_check_branch
      %289 = sbr.rel (%p286) target = $region12
    $region11: #{_lambda_.2} parent=5 // pred_region
      %s290 = ssub.s32 %s15, 1
      // Predicated region
      $region13: #{_lambda_.2} parent=11 // pred_check
        %p291 = pneg %p86
      $region14: #{_lambda_.2} parent=11 // pred_check_branch
        %293 = sbr.rel (%p291) target = $region16
      $region15: #{_lambda_.2} parent=11 // pred_region
        %p294 = scmp.lt.s32.totalorder %s26, 0
        %s295 = scalar_select %p294, %s26, 0
        %s296 = smul.addr %s295, 4
        %s297 = scalar_lea.vmem %s1, %s296
      $region16: #{_lambda_.2} parent=11 // pred_fallthru
        _
      // Predicated region
      $region17: #{_lambda_.2} parent=11 // pred_check
        %p298 = pneg %p112
      $region18: #{_lambda_.2} parent=11 // pred_check_branch
        %300 = sbr.rel (%p298) target = $region20
      $region19: #{_lambda_.2} parent=11 // pred_region
        %p301 = scmp.lt.s32.totalorder %s26, 0
        %s302 = scalar_select %p301, %s26, 0
        %s303 = scalar_lea.vmem %s2, %s302
      $region20: #{_lambda_.2} parent=11 // pred_fallthru
        _
      // Predicated region
      $region21: #{_lambda_.2} parent=11 // pred_check
        %p304 = pneg %p138
      $region22: #{_lambda_.2} parent=11 // pred_check_branch
        %306 = sbr.rel (%p304) target = $region24
      $region23: #{_lambda_.2} parent=11 // pred_region
        %p307 = scmp.lt.s32.totalorder %s26, 0
        %s308 = scalar_select %p307, %s26, 0
        %s309 = scalar_lea.vmem %s3, %s308
      $region24: #{_lambda_.2} parent=11 // pred_fallthru
        _
      // Predicated region
      $region25: #{_lambda_.2} parent=11 // pred_check
        %p310 = pneg %p164
      $region26: #{_lambda_.2} parent=11 // pred_check_branch
        %312 = sbr.rel (%p310) target = $region28
      $region27: #{_lambda_.2} parent=11 // pred_region
        %p313 = scmp.lt.s32.totalorder %s26, 0
        %s314 = scalar_select %p313, %s26, 0
        %s315 = smul.addr %s314, 4
        %s316 = scalar_lea.vmem %s4, %s315
      $region28: #{_lambda_.2} parent=11 // pred_fallthru
        _
      // Predicated region
      $region29: #{_lambda_.2} parent=11 // pred_check
        %p317 = pneg %p190
      $region30: #{_lambda_.2} parent=11 // pred_check_branch
        %319 = sbr.rel (%p317) target = $region32
      $region31: #{_lambda_.2} parent=11 // pred_region
        %p320 = scmp.lt.s32.totalorder %s26, 0
        %s321 = scalar_select %p320, %s26, 0
        %s322 = scalar_lea.vmem %s5, %s321
      $region32: #{_lambda_.2} parent=11 // pred_fallthru
        _
      // Predicated region
      $region33: #{_lambda_.2} parent=11 // pred_check
        %p323 = pneg %p216
      $region34: #{_lambda_.2} parent=11 // pred_check_branch
        %325 = sbr.rel (%p323) target = $region36
      $region35: #{_lambda_.2} parent=11 // pred_region
        %p326 = scmp.lt.s32.totalorder %s26, 0
        %s327 = scalar_select %p326, %s26, 0
        %s328 = scalar_lea.vmem %s6, %s327
      $region36: #{_lambda_.2} parent=11 // pred_fallthru
        _
    $region12: #{_lambda_.2} parent=5 // pred_fallthru
      _
    %p329 = scmp.lt.s32.totalorder %s15, 4
    // Predicated region
    $region37: #{_lambda_.2} parent=5 // pred_check
      %p330 = pneg %p329
    $region38: #{_lambda_.2} parent=5 // pred_check_branch
      %332 = sbr.rel (%p330) target = $region40
    $region39: #{_lambda_.2} parent=5 // pred_region
      // Predicated region
      $region41: #{_lambda_.2} parent=39 // pred_check
        %p333 = pneg %p54
      $region42: #{_lambda_.2} parent=39 // pred_check_branch
        %335 = sbr.rel (%p333) target = $region44
      $region43: #{_lambda_.2} parent=39 // pred_region
        %p336 = scmp.lt.s32.totalorder %s22, 1
        %s337 = scalar_select %p336, %s22, 1
        %s338 = smul.addr %s337, 54
        %s339 = smul.addr %s338, 4
        %s340 = scalar_lea.vmem %s0, %s339
      $region44: #{_lambda_.2} parent=39 // pred_fallthru
        _
    $region40: #{_lambda_.2} parent=5 // pred_fallthru
      _
    %p341 = scmp.le.s32.totalorder 1, %s15
    %p342 = scmp.lt.s32.totalorder %s15, 5
    %p343 = pnand %p341, %p342
    %p344 = pneg %p343
    // Predicated region
    $region45: #{_lambda_.2} parent=5 // pred_check
      _
    $region46: #{_lambda_.2} parent=5 // pred_check_branch
      %346 = sbr.rel (%p343) target = $region48
    $region47: #{_lambda_.2} parent=5 // pred_region
      %s347 = ssub.s32 %s15, 1
      %p348 = scmp.lt.s32.totalorder %s25, 1
      %s349 = scalar_select %p348, %s25, 1
      %s350 = smul.addr %s349, 54
      %s351 = smul.addr %s350, 4
      %s352 = scalar_lea.vmem %s0, %s351
      %p353 = pneg %p60
      %p354 = pneg %p57
      %p355 = scmp.lt.s32.totalorder %s26, 0
      %s356 = scalar_select %p355, %s26, 0
      %s357 = smul.addr %s356, 4
      %s358 = scalar_lea.vmem %s1, %s357
      %p359 = pneg %p86
      %p360 = pneg %p83
      %p361 = scmp.lt.s32.totalorder %s26, 0
      %s362 = scalar_select %p361, %s26, 0
      %s363 = scalar_lea.vmem %s2, %s362
      %p364 = pneg %p112
      %p365 = pneg %p109
      %p366 = scmp.lt.s32.totalorder %s26, 0
      %s367 = scalar_select %p366, %s26, 0
      %s368 = scalar_lea.vmem %s3, %s367
      %p369 = pneg %p138
      %p370 = pneg %p135
      %p371 = scmp.lt.s32.totalorder %s26, 0
      %s372 = scalar_select %p371, %s26, 0
      %s373 = smul.addr %s372, 4
      %s374 = scalar_lea.vmem %s4, %s373
      %p375 = pneg %p164
      %p376 = pneg %p161
      %p377 = scmp.lt.s32.totalorder %s26, 0
      %s378 = scalar_select %p377, %s26, 0
      %s379 = scalar_lea.vmem %s5, %s378
      %p380 = pneg %p190
      %p381 = pneg %p187
      %p382 = scmp.lt.s32.totalorder %s26, 0
      %s383 = scalar_select %p382, %s26, 0
      %s384 = scalar_lea.vmem %s6, %s383
      %p385 = pneg %p216
      %p386 = pneg %p213
      %p387 = pneg %p246
      %p388 = pneg %p243
      %s389 = smul.u32 8, %s27
      %p390 = scmp.lt.s32.totalorder %s25, 1
      %s391 = scalar_select %p390, %s25, 1
      %p392 = scmp.lt.s32.totalorder %s389, 15
      %s393 = scalar_select %p392, %s389, 15
      %p394 = scmp.lt.s32.totalorder %s26, 0
      %s395 = scalar_select %p394, %s26, 0
      %s396 = smul.addr %s393, 2
      %s397 = sadd.s32 %s395, %s396
      %s398 = smul.addr %s391, 32
      %s399 = sadd.s32 %s397, %s398
      %s400 = smul.addr %s399, 4
      %s401 = scalar_lea.vmem %s7, %s400
      %p402 = pneg %p276
      %p403 = pneg %p273
      %s404 = smul.u32 8, %s27
      %p405 = scmp.lt.s32.totalorder %s25, 1
      %s406 = scalar_select %p405, %s25, 1
      %p407 = scmp.lt.s32.totalorder %s404, 15
      %s408 = scalar_select %p407, %s404, 15
      %p409 = scmp.lt.s32.totalorder %s26, 0
      %s410 = scalar_select %p409, %s26, 0
      %s411 = smul.addr %s408, 2
      %s412 = sadd.s32 %s410, %s411
      %s413 = smul.addr %s406, 32
      %s414 = sadd.s32 %s412, %s413
      %s415 = smul.addr %s414, 8
      %s416 = scalar_lea.vmem %s8, %s415
      %p417 = scmp.lt.s32.totalorder %s25, 1
      %s418 = scalar_select %p417, %s25, 1
      %s419 = smul.addr %s418, 54
      %s420 = smul.addr %s419, 4
      %s421 = scalar_lea.vmem %s0, %s420
      %p422 = scmp.lt.s32.totalorder %s26, 0
      %s423 = scalar_select %p422, %s26, 0
      %s424 = smul.addr %s423, 4
      %s425 = scalar_lea.vmem %s1, %s424
      %p426 = scmp.lt.s32.totalorder %s26, 0
      %s427 = scalar_select %p426, %s26, 0
      %s428 = scalar_lea.vmem %s2, %s427
      %p429 = scmp.lt.s32.totalorder %s26, 0
      %s430 = scalar_select %p429, %s26, 0
      %s431 = scalar_lea.vmem %s3, %s430
      %p432 = scmp.lt.s32.totalorder %s26, 0
      %s433 = scalar_select %p432, %s26, 0
      %s434 = smul.addr %s433, 4
      %s435 = scalar_lea.vmem %s4, %s434
      %p436 = scmp.lt.s32.totalorder %s26, 0
      %s437 = scalar_select %p436, %s26, 0
      %s438 = scalar_lea.vmem %s5, %s437
      %p439 = scmp.lt.s32.totalorder %s26, 0
      %s440 = scalar_select %p439, %s26, 0
      %s441 = scalar_lea.vmem %s6, %s440
      %s442 = smul.u32 8, %s27
      %p443 = scmp.lt.s32.totalorder %s25, 1
      %s444 = scalar_select %p443, %s25, 1
      %p445 = scmp.lt.s32.totalorder %s442, 15
      %s446 = scalar_select %p445, %s442, 15
      %p447 = scmp.lt.s32.totalorder %s26, 0
      %s448 = scalar_select %p447, %s26, 0
      %s449 = smul.addr %s446, 2
      %s450 = sadd.s32 %s448, %s449
      %s451 = smul.addr %s444, 32
      %s452 = sadd.s32 %s450, %s451
      %s453 = smul.addr %s452, 4
      %s454 = scalar_lea.vmem %s7, %s453
      %s455 = smul.u32 8, %s27
      %s456 = smul.u32 8, %s27
      %p457 = scmp.lt.s32.totalorder %s25, 1
      %s458 = scalar_select %p457, %s25, 1
      %p459 = scmp.lt.s32.totalorder %s456, 15
      %s460 = scalar_select %p459, %s456, 15
      %p461 = scmp.lt.s32.totalorder %s26, 0
      %s462 = scalar_select %p461, %s26, 0
      %s463 = smul.addr %s460, 2
      %s464 = sadd.s32 %s462, %s463
      %s465 = smul.addr %s458, 32
      %s466 = sadd.s32 %s464, %s465
      %s467 = smul.addr %s466, 8
      %s468 = scalar_lea.vmem %s8, %s467
      %s469 = smul.u32 8, %s27
      %s471 = smul.u32 %s27, 8
      %s472 = smul.u32 %s471, 3
      %s473 = smul.addr %s472, 4
      %s474 = scalar_lea.vmem %s421, %s473
      %v475 = vld [vmem:[%s474] sm:$0xf]
      %v476 = vld [vmem:[%s474 + $0x4] sm:$0xf]
      %v477 = vld [vmem:[%s474 + $0xc] sm:$0xf]
      %v478 = vld [vmem:[%s474 + $0x10] sm:$0xf]
      %v479 = vld [vmem:[%s474 + $0x18] sm:$0xf]
      %v480 = vld [vmem:[%s474 + $0x1c] sm:$0xf]
      %v481 = vld [vmem:[%s474 + $0x24] sm:$0xf]
      %v482 = vld [vmem:[%s474 + $0x28] sm:$0xf]
      %v483 = vld [vmem:[%s474 + $0x30] sm:$0xf]
      %v484 = vld [vmem:[%s474 + $0x34] sm:$0xf]
      %v485 = vld [vmem:[%s474 + $0x3c] sm:$0xf]
      %v486 = vld [vmem:[%s474 + $0x40] sm:$0xf]
      %v487 = vld [vmem:[%s474 + $0x48] sm:$0xf]
      %v488 = vld [vmem:[%s474 + $0x4c] sm:$0xf]
      %v489 = vld [vmem:[%s474 + $0x54] sm:$0xf]
      %v490 = vld [vmem:[%s474 + $0x58] sm:$0xf]
      %v491 = vld [vmem:[%s425] sm:$0xf]
      %v492 = vld [vmem:[%s425 + $0x4] sm:$0xf]
      %v493 = vld [vmem:[%s425 + $0x8] sm:$0xf]
      %v494 = vld [vmem:[%s425 + $0xc] sm:$0xf]
      %v495 = vld [vmem:[%s425 + $0x10] sm:$0xf]
      %v496 = vld [vmem:[%s425 + $0x14] sm:$0xf]
      %v497 = vld [vmem:[%s425 + $0x18] sm:$0xf]
      %v498 = vld [vmem:[%s425 + $0x1c] sm:$0xf]
      %v499 = vld [vmem:[%s425 + $0x20] sm:$0xf]
      %v500 = vld [vmem:[%s425 + $0x24] sm:$0xf]
      %v501 = vld [vmem:[%s425 + $0x28] sm:$0xf]
      %v502 = vld [vmem:[%s425 + $0x2c] sm:$0xf]
      %v503 = vld [vmem:[%s425 + $0x30] sm:$0xf]
      %v504 = vld [vmem:[%s425 + $0x34] sm:$0xf]
      %v505 = vld [vmem:[%s425 + $0x38] sm:$0xf]
      %v506 = vld [vmem:[%s425 + $0x3c] sm:$0xf]
      %v507 = vld [vmem:[%s474 + $0x8] sm:$0x1]
      %v508 = vld [vmem:[%s474 + $0x14] sm:$0x1]
      %v509 = vld [vmem:[%s474 + $0x20] sm:$0x1]
      %v510 = vld [vmem:[%s474 + $0x2c] sm:$0x1]
      %v511 = vld [vmem:[%s474 + $0x38] sm:$0x1]
      %v512 = vld [vmem:[%s474 + $0x44] sm:$0x1]
      %v513 = vld [vmem:[%s474 + $0x50] sm:$0x1]
      %v514 = vld [vmem:[%s474 + $0x5c] sm:$0x1]
      %vm515 = vsmask.f32 3328
      %vm516 = vsmask.f32 7440
      %vm517 = vmor %vm515, %vm516
      %v519 = vshrl.u32 %v475, 16
      %v521 = vrot.slane %v519, 4
      %v522 = vshll.u32 %v475, 16
      %v524 = vrot.slane %v522, 5
      %v525 = vor.u32 %v521, %v524
      %v526 = vrot.slane %v525, 4
      %v528 = vshll.u32 %v476, 16
      %v530 = vrot.slane %v528, 5
      %v531 = vsel %vm517, %v526, %v530
      %v532 = vshrl.u32 %v476, 16
      %v534 = vrot.slane %v532, 4
      %v535 = vor.u32 %v534, %v530
      %v536 = vrot.slane %v535, 4
      %v538 = vshll.u32 %v507, 16
      %v540 = vrot.slane %v538, 5
      %v541 = vsel %vm517, %v536, %v540
      %v543 = vshrl.u32 %v477, 16
      %v545 = vrot.slane %v543, 4
      %v546 = vshll.u32 %v477, 16
      %v548 = vrot.slane %v546, 5
      %v549 = vor.u32 %v545, %v548
      %v550 = vrot.slane %v549, 4
      %v552 = vshll.u32 %v478, 16
      %v554 = vrot.slane %v552, 5
      %v555 = vsel %vm517, %v550, %v554
      %v556 = vshrl.u32 %v478, 16
      %v558 = vrot.slane %v556, 4
      %v559 = vor.u32 %v558, %v554
      %v560 = vrot.slane %v559, 4
      %v562 = vshll.u32 %v508, 16
      %v564 = vrot.slane %v562, 5
      %v565 = vsel %vm517, %v560, %v564
      %v567 = vshrl.u32 %v479, 16
      %v569 = vrot.slane %v567, 4
      %v570 = vshll.u32 %v479, 16
      %v572 = vrot.slane %v570, 5
      %v573 = vor.u32 %v569, %v572
      %v574 = vrot.slane %v573, 4
      %v576 = vshll.u32 %v480, 16
      %v578 = vrot.slane %v576, 5
      %v579 = vsel %vm517, %v574, %v578
      %v580 = vshrl.u32 %v480, 16
      %v582 = vrot.slane %v580, 4
      %v583 = vor.u32 %v582, %v578
      %v584 = vrot.slane %v583, 4
      %v586 = vshll.u32 %v509, 16
      %v588 = vrot.slane %v586, 5
      %v589 = vsel %vm517, %v584, %v588
      %v591 = vshrl.u32 %v481, 16
      %v593 = vrot.slane %v591, 4
      %v594 = vshll.u32 %v481, 16
      %v596 = vrot.slane %v594, 5
      %v597 = vor.u32 %v593, %v596
      %v598 = vrot.slane %v597, 4
      %v600 = vshll.u32 %v482, 16
      %v602 = vrot.slane %v600, 5
      %v603 = vsel %vm517, %v598, %v602
      %v604 = vshrl.u32 %v482, 16
      %v606 = vrot.slane %v604, 4
      %v607 = vor.u32 %v606, %v602
      %v608 = vrot.slane %v607, 4
      %v610 = vshll.u32 %v510, 16
      %v612 = vrot.slane %v610, 5
      %v613 = vsel %vm517, %v608, %v612
      %v615 = vshrl.u32 %v483, 16
      %v617 = vrot.slane %v615, 4
      %v618 = vshll.u32 %v483, 16
      %v620 = vrot.slane %v618, 5
      %v621 = vor.u32 %v617, %v620
      %v622 = vrot.slane %v621, 4
      %v624 = vshll.u32 %v484, 16
      %v626 = vrot.slane %v624, 5
      %v627 = vsel %vm517, %v622, %v626
      %v628 = vshrl.u32 %v484, 16
      %v630 = vrot.slane %v628, 4
      %v631 = vor.u32 %v630, %v626
      %v632 = vrot.slane %v631, 4
      %v634 = vshll.u32 %v511, 16
      %v636 = vrot.slane %v634, 5
      %v637 = vsel %vm517, %v632, %v636
      %v639 = vshrl.u32 %v485, 16
      %v641 = vrot.slane %v639, 4
      %v642 = vshll.u32 %v485, 16
      %v644 = vrot.slane %v642, 5
      %v645 = vor.u32 %v641, %v644
      %v646 = vrot.slane %v645, 4
      %v648 = vshll.u32 %v486, 16
      %v650 = vrot.slane %v648, 5
      %v651 = vsel %vm517, %v646, %v650
      %v652 = vshrl.u32 %v486, 16
      %v654 = vrot.slane %v652, 4
      %v655 = vor.u32 %v654, %v650
      %v656 = vrot.slane %v655, 4
      %v658 = vshll.u32 %v512, 16
      %v660 = vrot.slane %v658, 5
      %v661 = vsel %vm517, %v656, %v660
      %v663 = vshrl.u32 %v487, 16
      %v665 = vrot.slane %v663, 4
      %v666 = vshll.u32 %v487, 16
      %v668 = vrot.slane %v666, 5
      %v669 = vor.u32 %v665, %v668
      %v670 = vrot.slane %v669, 4
      %v672 = vshll.u32 %v488, 16
      %v674 = vrot.slane %v672, 5
      %v675 = vsel %vm517, %v670, %v674
      %v676 = vshrl.u32 %v488, 16
      %v678 = vrot.slane %v676, 4
      %v679 = vor.u32 %v678, %v674
      %v680 = vrot.slane %v679, 4
      %v682 = vshll.u32 %v513, 16
      %v684 = vrot.slane %v682, 5
      %v685 = vsel %vm517, %v680, %v684
      %v687 = vshrl.u32 %v489, 16
      %v689 = vrot.slane %v687, 4
      %v690 = vshll.u32 %v489, 16
      %v692 = vrot.slane %v690, 5
      %v693 = vor.u32 %v689, %v692
      %v694 = vrot.slane %v693, 4
      %v696 = vshll.u32 %v490, 16
      %v698 = vrot.slane %v696, 5
      %v699 = vsel %vm517, %v694, %v698
      %v700 = vshrl.u32 %v490, 16
      %v702 = vrot.slane %v700, 4
      %v703 = vor.u32 %v702, %v698
      %v704 = vrot.slane %v703, 4
      %v706 = vshll.u32 %v514, 16
      %v708 = vrot.slane %v706, 5
      %v709 = vsel %vm517, %v704, %v708
      %s710 = scalar_lea.vmem %s425, 64
      %v711 = vld [vmem:[%s710] sm:$0xf]
      %v712 = vld [vmem:[%s710 + $0x4] sm:$0xf]
      %v713 = vld [vmem:[%s710 + $0x8] sm:$0xf]
      %v714 = vld [vmem:[%s710 + $0xc] sm:$0xf]
      %v715 = vld [vmem:[%s710 + $0x10] sm:$0xf]
      %v716 = vld [vmem:[%s710 + $0x14] sm:$0xf]
      %v717 = vld [vmem:[%s710 + $0x18] sm:$0xf]
      %v718 = vld [vmem:[%s710 + $0x1c] sm:$0xf]
      %v719 = vld [vmem:[%s710 + $0x20] sm:$0xf]
      %v720 = vld [vmem:[%s710 + $0x24] sm:$0xf]
      %v721 = vld [vmem:[%s710 + $0x28] sm:$0xf]
      %v722 = vld [vmem:[%s710 + $0x2c] sm:$0xf]
      %v723 = vld [vmem:[%s710 + $0x30] sm:$0xf]
      %v724 = vld [vmem:[%s710 + $0x34] sm:$0xf]
      %v725 = vld [vmem:[%s710 + $0x38] sm:$0xf]
      %v726 = vld [vmem:[%s710 + $0x3c] sm:$0xf]
      %v727 = vunpack.c.l.b16 %v531
      %v728 = vunpack.c.l.b16 %v541
      %v729 = vunpack.c.l.b16 %v555
      %v730 = vunpack.c.l.b16 %v565
      %v731 = vunpack.c.l.b16 %v579
      %v732 = vunpack.c.l.b16 %v589
      %v733 = vunpack.c.l.b16 %v603
      %v734 = vunpack.c.l.b16 %v613
      %v735 = vunpack.c.l.b16 %v627
      %v736 = vunpack.c.l.b16 %v637
      %v737 = vunpack.c.l.b16 %v651
      %v738 = vunpack.c.l.b16 %v661
      %v739 = vunpack.c.l.b16 %v675
      %v740 = vunpack.c.l.b16 %v685
      %v741 = vunpack.c.l.b16 %v699
      %v742 = vunpack.c.l.b16 %v709
      %v743 = vpack.c.b16 %v728, %v727
      %v744 = vpack.c.b16 %v730, %v729
      %v745 = vpack.c.b16 %v732, %v731
      %v746 = vpack.c.b16 %v734, %v733
      %v747 = vpack.c.b16 %v736, %v735
      %v748 = vpack.c.b16 %v738, %v737
      %v749 = vpack.c.b16 %v740, %v739
      %v750 = vpack.c.b16 %v742, %v741
      %v775 = vunpack.c.l.b16 %v711
      %v776 = vunpack.c.l.b16 %v712
      %v777 = vunpack.c.l.b16 %v713
      %v778 = vunpack.c.l.b16 %v714
      %v779 = vunpack.c.l.b16 %v715
      %v780 = vunpack.c.l.b16 %v716
      %v781 = vunpack.c.l.b16 %v717
      %v782 = vunpack.c.l.b16 %v718
      %v783 = vunpack.c.l.b16 %v719
      %v784 = vunpack.c.l.b16 %v720
      %v785 = vunpack.c.l.b16 %v721
      %v786 = vunpack.c.l.b16 %v722
      %v787 = vunpack.c.l.b16 %v723
      %v788 = vunpack.c.l.b16 %v724
      %v789 = vunpack.c.l.b16 %v725
      %v790 = vunpack.c.l.b16 %v726
      %v791 = vpack.c.b16 %v776, %v775
      %v792 = vpack.c.b16 %v778, %v777
      %v793 = vpack.c.b16 %v780, %v779
      %v794 = vpack.c.b16 %v782, %v781
      %v795 = vpack.c.b16 %v784, %v783
      %v796 = vpack.c.b16 %v786, %v785
      %v797 = vpack.c.b16 %v788, %v787
      %v798 = vpack.c.b16 %v790, %v789
      %807 = vmatprep.subr.bf16.mxu0 0
      %808 = vmatpush1.bf16.msra.mxu0 %v798
      %809 = vmatprep.subr.bf16.mxu0 0
      %810 = vmatpush1.bf16.msra.mxu0 %v797
      %811 = vmatprep.subr.bf16.mxu0 0
      %812 = vmatpush1.bf16.msra.mxu0 %v796
      %813 = vmatprep.subr.bf16.mxu0 0
      %814 = vmatpush1.bf16.msra.mxu0 %v795
      %815 = vmatprep.subr.bf16.mxu0 0
      %816 = vmatpush1.bf16.msra.mxu0 %v794
      %817 = vmatprep.subr.bf16.mxu0 0
      %818 = vmatpush1.bf16.msra.mxu0 %v793
      %819 = vmatprep.subr.bf16.mxu0 0
      %820 = vmatpush1.bf16.msra.mxu0 %v792
      %821 = vmatprep.subr.bf16.mxu0 0
      %822 = vmatpush1.bf16.msra.mxu0 %v791
      %823 = vmatprep.subr.bf16.mxu0 0
      %824 = vmatpush2.bf16.msra.mxu0 0
      %825 = vmatprep.subr.bf16.mxu0 0
      %826 = vmatpush2.bf16.msra.mxu0 0
      %827 = vmatprep.subr.bf16.mxu0 0
      %828 = vmatpush2.bf16.msra.mxu0 0
      %829 = vmatprep.subr.bf16.mxu0 0
      %830 = vmatpush2.bf16.msra.mxu0 0
      %831 = vmatprep.subr.bf16.mxu0 0
      %832 = vmatpush2.bf16.msra.mxu0 0
      %833 = vmatprep.subr.bf16.mxu0 0
      %834 = vmatpush2.bf16.msra.mxu0 0
      %835 = vmatprep.subr.bf16.mxu0 0
      %836 = vmatpush2.bf16.msra.mxu0 0
      %837 = vmatprep.subr.bf16.mxu0 0
      %838 = vmatpush2.bf16.msra.mxu0 0
      %839 = vmatprep.mubr.bf16.mxu0 0
      %840 = vmatmul.mubr.bf16.gmra.mxu0 %v743
      %v841 = vpop.f32.mrf.mxu0
      %v842 = vadd.f32 0.0, %v841
      %v843 = vpop.f32.mrf.mxu0
      %v844 = vpop.f32.mrf.mxu0
      %v845 = vadd.f32 0.0, %v844
      %v846 = vpop.f32.mrf.mxu0
      %847 = vmatprep.mubr.bf16.mxu0 0
      %848 = vmatmul.mubr.bf16.gmra.mxu0 %v744
      %v849 = vpop.f32.mrf.mxu0
      %v850 = vadd.f32 0.0, %v849
      %v851 = vpop.f32.mrf.mxu0
      %v852 = vpop.f32.mrf.mxu0
      %v853 = vadd.f32 0.0, %v852
      %v854 = vpop.f32.mrf.mxu0
      %855 = vmatprep.mubr.bf16.mxu0 0
      %856 = vmatmul.mubr.bf16.gmra.mxu0 %v745
      %v857 = vpop.f32.mrf.mxu0
      %v858 = vadd.f32 0.0, %v857
      %v859 = vpop.f32.mrf.mxu0
      %v860 = vpop.f32.mrf.mxu0
      %v861 = vadd.f32 0.0, %v860
      %v862 = vpop.f32.mrf.mxu0
      %863 = vmatprep.mubr.bf16.mxu0 0
      %864 = vmatmul.mubr.bf16.gmra.mxu0 %v746
      %v865 = vpop.f32.mrf.mxu0
      %v866 = vadd.f32 0.0, %v865
      %v867 = vpop.f32.mrf.mxu0
      %v868 = vpop.f32.mrf.mxu0
      %v869 = vadd.f32 0.0, %v868
      %v870 = vpop.f32.mrf.mxu0
      %871 = vmatprep.mubr.bf16.mxu0 0
      %872 = vmatmul.mubr.bf16.gmra.mxu0 %v747
      %v873 = vpop.f32.mrf.mxu0
      %v874 = vadd.f32 0.0, %v873
      %v875 = vpop.f32.mrf.mxu0
      %v876 = vpop.f32.mrf.mxu0
      %v877 = vadd.f32 0.0, %v876
      %v878 = vpop.f32.mrf.mxu0
      %879 = vmatprep.mubr.bf16.mxu0 0
      %880 = vmatmul.mubr.bf16.gmra.mxu0 %v748
      %v881 = vpop.f32.mrf.mxu0
      %v882 = vadd.f32 0.0, %v881
      %v883 = vpop.f32.mrf.mxu0
      %v884 = vpop.f32.mrf.mxu0
      %v885 = vadd.f32 0.0, %v884
      %v886 = vpop.f32.mrf.mxu0
      %887 = vmatprep.mubr.bf16.mxu0 0
      %888 = vmatmul.mubr.bf16.gmra.mxu0 %v749
      %v889 = vpop.f32.mrf.mxu0
      %v890 = vadd.f32 0.0, %v889
      %v891 = vpop.f32.mrf.mxu0
      %v892 = vpop.f32.mrf.mxu0
      %v893 = vadd.f32 0.0, %v892
      %v894 = vpop.f32.mrf.mxu0
      %895 = vmatprep.mubr.bf16.mxu0 0
      %896 = vmatmul.mubr.bf16.gmra.mxu0 %v750
      %v897 = vpop.f32.mrf.mxu0
      %v898 = vadd.f32 0.0, %v897
      %v899 = vpop.f32.mrf.mxu0
      %v900 = vpop.f32.mrf.mxu0
      %v901 = vadd.f32 0.0, %v900
      %v902 = vpop.f32.mrf.mxu0
      %903 = vdwg.mxu0
      %v920 = vunpack.c.l.b16 %v475
      %v921 = vunpack.c.l.b16 %v476
      %v922 = vunpack.c.l.b16 %v477
      %v923 = vunpack.c.l.b16 %v478
      %v924 = vunpack.c.l.b16 %v479
      %v925 = vunpack.c.l.b16 %v480
      %v926 = vunpack.c.l.b16 %v481
      %v927 = vunpack.c.l.b16 %v482
      %v928 = vunpack.c.l.b16 %v483
      %v929 = vunpack.c.l.b16 %v484
      %v930 = vunpack.c.l.b16 %v485
      %v931 = vunpack.c.l.b16 %v486
      %v932 = vunpack.c.l.b16 %v487
      %v933 = vunpack.c.l.b16 %v488
      %v934 = vunpack.c.l.b16 %v489
      %v935 = vunpack.c.l.b16 %v490
      %v936 = vpack.c.b16 %v921, %v920
      %v937 = vpack.c.b16 %v923, %v922
      %v938 = vpack.c.b16 %v925, %v924
      %v939 = vpack.c.b16 %v927, %v926
      %v940 = vpack.c.b16 %v929, %v928
      %v941 = vpack.c.b16 %v931, %v930
      %v942 = vpack.c.b16 %v933, %v932
      %v943 = vpack.c.b16 %v935, %v934
      %v968 = vunpack.c.l.b16 %v491
      %v969 = vunpack.c.l.b16 %v492
      %v970 = vunpack.c.l.b16 %v493
      %v971 = vunpack.c.l.b16 %v494
      %v972 = vunpack.c.l.b16 %v495
      %v973 = vunpack.c.l.b16 %v496
      %v974 = vunpack.c.l.b16 %v497
      %v975 = vunpack.c.l.b16 %v498
      %v976 = vunpack.c.l.b16 %v499
      %v977 = vunpack.c.l.b16 %v500
      %v978 = vunpack.c.l.b16 %v501
      %v979 = vunpack.c.l.b16 %v502
      %v980 = vunpack.c.l.b16 %v503
      %v981 = vunpack.c.l.b16 %v504
      %v982 = vunpack.c.l.b16 %v505
      %v983 = vunpack.c.l.b16 %v506
      %v984 = vpack.c.b16 %v969, %v968
      %v985 = vpack.c.b16 %v971, %v970
      %v986 = vpack.c.b16 %v973, %v972
      %v987 = vpack.c.b16 %v975, %v974
      %v988 = vpack.c.b16 %v977, %v976
      %v989 = vpack.c.b16 %v979, %v978
      %v990 = vpack.c.b16 %v981, %v980
      %v991 = vpack.c.b16 %v983, %v982
      %1000 = vmatprep.subr.bf16.mxu0 0
      %1001 = vmatpush1.bf16.msra.mxu0 %v991
      %1002 = vmatprep.subr.bf16.mxu0 0
      %1003 = vmatpush1.bf16.msra.mxu0 %v990
      %1004 = vmatprep.subr.bf16.mxu0 0
      %1005 = vmatpush1.bf16.msra.mxu0 %v989
      %1006 = vmatprep.subr.bf16.mxu0 0
      %1007 = vmatpush1.bf16.msra.mxu0 %v988
      %1008 = vmatprep.subr.bf16.mxu0 0
      %1009 = vmatpush1.bf16.msra.mxu0 %v987
      %1010 = vmatprep.subr.bf16.mxu0 0
      %1011 = vmatpush1.bf16.msra.mxu0 %v986
      %1012 = vmatprep.subr.bf16.mxu0 0
      %1013 = vmatpush1.bf16.msra.mxu0 %v985
      %1014 = vmatprep.subr.bf16.mxu0 0
      %1015 = vmatpush1.bf16.msra.mxu0 %v984
      %1016 = vmatprep.subr.bf16.mxu0 0
      %1017 = vmatpush2.bf16.msra.mxu0 0
      %1018 = vmatprep.subr.bf16.mxu0 0
      %1019 = vmatpush2.bf16.msra.mxu0 0
      %1020 = vmatprep.subr.bf16.mxu0 0
      %1021 = vmatpush2.bf16.msra.mxu0 0
      %1022 = vmatprep.subr.bf16.mxu0 0
      %1023 = vmatpush2.bf16.msra.mxu0 0
      %1024 = vmatprep.subr.bf16.mxu0 0
      %1025 = vmatpush2.bf16.msra.mxu0 0
      %1026 = vmatprep.subr.bf16.mxu0 0
      %1027 = vmatpush2.bf16.msra.mxu0 0
      %1028 = vmatprep.subr.bf16.mxu0 0
      %1029 = vmatpush2.bf16.msra.mxu0 0
      %1030 = vmatprep.subr.bf16.mxu0 0
      %1031 = vmatpush2.bf16.msra.mxu0 0
      %1032 = vmatprep.mubr.bf16.mxu0 0
      %1033 = vmatmul.mubr.bf16.gmra.mxu0 %v936
      %v1034 = vpop.f32.mrf.mxu0
      %v1035 = vadd.f32 %v842, %v1034
      %v1036 = vpop.f32.mrf.mxu0
      %v1037 = vpop.f32.mrf.mxu0
      %v1038 = vadd.f32 %v845, %v1037
      %v1039 = vpop.f32.mrf.mxu0
      %1040 = vmatprep.mubr.bf16.mxu0 0
      %1041 = vmatmul.mubr.bf16.gmra.mxu0 %v937
      %v1042 = vpop.f32.mrf.mxu0
      %v1043 = vadd.f32 %v850, %v1042
      %v1044 = vpop.f32.mrf.mxu0
      %v1045 = vpop.f32.mrf.mxu0
      %v1046 = vadd.f32 %v853, %v1045
      %v1047 = vpop.f32.mrf.mxu0
      %1048 = vmatprep.mubr.bf16.mxu0 0
      %1049 = vmatmul.mubr.bf16.gmra.mxu0 %v938
      %v1050 = vpop.f32.mrf.mxu0
      %v1051 = vadd.f32 %v858, %v1050
      %v1052 = vpop.f32.mrf.mxu0
      %v1053 = vpop.f32.mrf.mxu0
      %v1054 = vadd.f32 %v861, %v1053
      %v1055 = vpop.f32.mrf.mxu0
      %1056 = vmatprep.mubr.bf16.mxu0 0
      %1057 = vmatmul.mubr.bf16.gmra.mxu0 %v939
      %v1058 = vpop.f32.mrf.mxu0
      %v1059 = vadd.f32 %v866, %v1058
      %v1060 = vpop.f32.mrf.mxu0
      %v1061 = vpop.f32.mrf.mxu0
      %v1062 = vadd.f32 %v869, %v1061
      %v1063 = vpop.f32.mrf.mxu0
      %1064 = vmatprep.mubr.bf16.mxu0 0
      %1065 = vmatmul.mubr.bf16.gmra.mxu0 %v940
      %v1066 = vpop.f32.mrf.mxu0
      %v1067 = vadd.f32 %v874, %v1066
      %v1068 = vpop.f32.mrf.mxu0
      %v1069 = vpop.f32.mrf.mxu0
      %v1070 = vadd.f32 %v877, %v1069
      %v1071 = vpop.f32.mrf.mxu0
      %1072 = vmatprep.mubr.bf16.mxu0 0
      %1073 = vmatmul.mubr.bf16.gmra.mxu0 %v941
      %v1074 = vpop.f32.mrf.mxu0
      %v1075 = vadd.f32 %v882, %v1074
      %v1076 = vpop.f32.mrf.mxu0
      %v1077 = vpop.f32.mrf.mxu0
      %v1078 = vadd.f32 %v885, %v1077
      %v1079 = vpop.f32.mrf.mxu0
      %1080 = vmatprep.mubr.bf16.mxu0 0
      %1081 = vmatmul.mubr.bf16.gmra.mxu0 %v942
      %v1082 = vpop.f32.mrf.mxu0
      %v1083 = vadd.f32 %v890, %v1082
      %v1084 = vpop.f32.mrf.mxu0
      %v1085 = vpop.f32.mrf.mxu0
      %v1086 = vadd.f32 %v893, %v1085
      %v1087 = vpop.f32.mrf.mxu0
      %1088 = vmatprep.mubr.bf16.mxu0 0
      %1089 = vmatmul.mubr.bf16.gmra.mxu0 %v943
      %v1090 = vpop.f32.mrf.mxu0
      %v1091 = vadd.f32 %v898, %v1090
      %v1092 = vpop.f32.mrf.mxu0
      %v1093 = vpop.f32.mrf.mxu0
      %v1094 = vadd.f32 %v901, %v1093
      %v1095 = vpop.f32.mrf.mxu0
      %1096 = vdwg.mxu0
      %v1097 = vld [vmem:[%s474] sm:$0xe]
      %v1098 = vld [vmem:[%s474 + $0xc] sm:$0xe]
      %v1099 = vld [vmem:[%s474 + $0x18] sm:$0xe]
      %v1100 = vld [vmem:[%s474 + $0x24] sm:$0xe]
      %v1101 = vld [vmem:[%s474 + $0x30] sm:$0xe]
      %v1102 = vld [vmem:[%s474 + $0x3c] sm:$0xe]
      %v1103 = vld [vmem:[%s474 + $0x48] sm:$0xe]
      %v1104 = vld [vmem:[%s474 + $0x54] sm:$0xe]
      %vm1121 = vcmask 1042432
      %vm1122 = vcmask 1046532
      %vm1123 = vmor %vm1121, %vm1122
      %v1124 = vrot.slane %v1097, 5
      %v1125 = vrot.slane %v1124, 4
      %v1126 = vrot.slane %v476, 5
      %v1127 = vsel %vm1123, %v1125, %v1126
      %v1128 = vrot.slane %v1126, 4
      %v1129 = vrot.slane %v507, 5
      %v1130 = vsel %vm1123, %v1128, %v1129
      %v1131 = vrot.slane %v1098, 5
      %v1132 = vrot.slane %v1131, 4
      %v1133 = vrot.slane %v478, 5
      %v1134 = vsel %vm1123, %v1132, %v1133
      %v1135 = vrot.slane %v1133, 4
      %v1136 = vrot.slane %v508, 5
      %v1137 = vsel %vm1123, %v1135, %v1136
      %v1138 = vrot.slane %v1099, 5
      %v1139 = vrot.slane %v1138, 4
      %v1140 = vrot.slane %v480, 5
      %v1141 = vsel %vm1123, %v1139, %v1140
      %v1142 = vrot.slane %v1140, 4
      %v1143 = vrot.slane %v509, 5
      %v1144 = vsel %vm1123, %v1142, %v1143
      %v1145 = vrot.slane %v1100, 5
      %v1146 = vrot.slane %v1145, 4
      %v1147 = vrot.slane %v482, 5
      %v1148 = vsel %vm1123, %v1146, %v1147
      %v1149 = vrot.slane %v1147, 4
      %v1150 = vrot.slane %v510, 5
      %v1151 = vsel %vm1123, %v1149, %v1150
      %v1152 = vrot.slane %v1101, 5
      %v1153 = vrot.slane %v1152, 4
      %v1154 = vrot.slane %v484, 5
      %v1155 = vsel %vm1123, %v1153, %v1154
      %v1156 = vrot.slane %v1154, 4
      %v1157 = vrot.slane %v511, 5
      %v1158 = vsel %vm1123, %v1156, %v1157
      %v1159 = vrot.slane %v1102, 5
      %v1160 = vrot.slane %v1159, 4
      %v1161 = vrot.slane %v486, 5
      %v1162 = vsel %vm1123, %v1160, %v1161
      %v1163 = vrot.slane %v1161, 4
      %v1164 = vrot.slane %v512, 5
      %v1165 = vsel %vm1123, %v1163, %v1164
      %v1166 = vrot.slane %v1103, 5
      %v1167 = vrot.slane %v1166, 4
      %v1168 = vrot.slane %v488, 5
      %v1169 = vsel %vm1123, %v1167, %v1168
      %v1170 = vrot.slane %v1168, 4
      %v1171 = vrot.slane %v513, 5
      %v1172 = vsel %vm1123, %v1170, %v1171
      %v1173 = vrot.slane %v1104, 5
      %v1174 = vrot.slane %v1173, 4
      %v1175 = vrot.slane %v490, 5
      %v1176 = vsel %vm1123, %v1174, %v1175
      %v1177 = vrot.slane %v1175, 4
      %v1178 = vrot.slane %v514, 5
      %v1179 = vsel %vm1123, %v1177, %v1178
      %s1180 = scalar_lea.vmem %s425, 128
      %v1181 = vld [vmem:[%s1180] sm:$0xf]
      %v1182 = vld [vmem:[%s1180 + $0x4] sm:$0xf]
      %v1183 = vld [vmem:[%s1180 + $0x8] sm:$0xf]
      %v1184 = vld [vmem:[%s1180 + $0xc] sm:$0xf]
      %v1185 = vld [vmem:[%s1180 + $0x10] sm:$0xf]
      %v1186 = vld [vmem:[%s1180 + $0x14] sm:$0xf]
      %v1187 = vld [vmem:[%s1180 + $0x18] sm:$0xf]
      %v1188 = vld [vmem:[%s1180 + $0x1c] sm:$0xf]
      %v1189 = vld [vmem:[%s1180 + $0x20] sm:$0xf]
      %v1190 = vld [vmem:[%s1180 + $0x24] sm:$0xf]
      %v1191 = vld [vmem:[%s1180 + $0x28] sm:$0xf]
      %v1192 = vld [vmem:[%s1180 + $0x2c] sm:$0xf]
      %v1193 = vld [vmem:[%s1180 + $0x30] sm:$0xf]
      %v1194 = vld [vmem:[%s1180 + $0x34] sm:$0xf]
      %v1195 = vld [vmem:[%s1180 + $0x38] sm:$0xf]
      %v1196 = vld [vmem:[%s1180 + $0x3c] sm:$0xf]
      %v1197 = vunpack.c.l.b16 %v1127
      %v1198 = vunpack.c.l.b16 %v1130
      %v1199 = vunpack.c.l.b16 %v1134
      %v1200 = vunpack.c.l.b16 %v1137
      %v1201 = vunpack.c.l.b16 %v1141
      %v1202 = vunpack.c.l.b16 %v1144
      %v1203 = vunpack.c.l.b16 %v1148
      %v1204 = vunpack.c.l.b16 %v1151
      %v1205 = vunpack.c.l.b16 %v1155
      %v1206 = vunpack.c.l.b16 %v1158
      %v1207 = vunpack.c.l.b16 %v1162
      %v1208 = vunpack.c.l.b16 %v1165
      %v1209 = vunpack.c.l.b16 %v1169
      %v1210 = vunpack.c.l.b16 %v1172
      %v1211 = vunpack.c.l.b16 %v1176
      %v1212 = vunpack.c.l.b16 %v1179
      %v1213 = vpack.c.b16 %v1198, %v1197
      %v1214 = vpack.c.b16 %v1200, %v1199
      %v1215 = vpack.c.b16 %v1202, %v1201
      %v1216 = vpack.c.b16 %v1204, %v1203
      %v1217 = vpack.c.b16 %v1206, %v1205
      %v1218 = vpack.c.b16 %v1208, %v1207
      %v1219 = vpack.c.b16 %v1210, %v1209
      %v1220 = vpack.c.b16 %v1212, %v1211
      %v1245 = vunpack.c.l.b16 %v1181
      %v1246 = vunpack.c.l.b16 %v1182
      %v1247 = vunpack.c.l.b16 %v1183
      %v1248 = vunpack.c.l.b16 %v1184
      %v1249 = vunpack.c.l.b16 %v1185
      %v1250 = vunpack.c.l.b16 %v1186
      %v1251 = vunpack.c.l.b16 %v1187
      %v1252 = vunpack.c.l.b16 %v1188
      %v1253 = vunpack.c.l.b16 %v1189
      %v1254 = vunpack.c.l.b16 %v1190
      %v1255 = vunpack.c.l.b16 %v1191
      %v1256 = vunpack.c.l.b16 %v1192
      %v1257 = vunpack.c.l.b16 %v1193
      %v1258 = vunpack.c.l.b16 %v1194
      %v1259 = vunpack.c.l.b16 %v1195
      %v1260 = vunpack.c.l.b16 %v1196
      %v1261 = vpack.c.b16 %v1246, %v1245
      %v1262 = vpack.c.b16 %v1248, %v1247
      %v1263 = vpack.c.b16 %v1250, %v1249
      %v1264 = vpack.c.b16 %v1252, %v1251
      %v1265 = vpack.c.b16 %v1254, %v1253
      %v1266 = vpack.c.b16 %v1256, %v1255
      %v1267 = vpack.c.b16 %v1258, %v1257
      %v1268 = vpack.c.b16 %v1260, %v1259
      %1277 = vmatprep.subr.bf16.mxu0 0
      %1278 = vmatpush1.bf16.msra.mxu0 %v1268
      %1279 = vmatprep.subr.bf16.mxu0 0
      %1280 = vmatpush1.bf16.msra.mxu0 %v1267
      %1281 = vmatprep.subr.bf16.mxu0 0
      %1282 = vmatpush1.bf16.msra.mxu0 %v1266
      %1283 = vmatprep.subr.bf16.mxu0 0
      %1284 = vmatpush1.bf16.msra.mxu0 %v1265
      %1285 = vmatprep.subr.bf16.mxu0 0
      %1286 = vmatpush1.bf16.msra.mxu0 %v1264
      %1287 = vmatprep.subr.bf16.mxu0 0
      %1288 = vmatpush1.bf16.msra.mxu0 %v1263
      %1289 = vmatprep.subr.bf16.mxu0 0
      %1290 = vmatpush1.bf16.msra.mxu0 %v1262
      %1291 = vmatprep.subr.bf16.mxu0 0
      %1292 = vmatpush1.bf16.msra.mxu0 %v1261
      %1293 = vmatprep.subr.bf16.mxu0 0
      %1294 = vmatpush2.bf16.msra.mxu0 0
      %1295 = vmatprep.subr.bf16.mxu0 0
      %1296 = vmatpush2.bf16.msra.mxu0 0
      %1297 = vmatprep.subr.bf16.mxu0 0
      %1298 = vmatpush2.bf16.msra.mxu0 0
      %1299 = vmatprep.subr.bf16.mxu0 0
      %1300 = vmatpush2.bf16.msra.mxu0 0
      %1301 = vmatprep.subr.bf16.mxu0 0
      %1302 = vmatpush2.bf16.msra.mxu0 0
      %1303 = vmatprep.subr.bf16.mxu0 0
      %1304 = vmatpush2.bf16.msra.mxu0 0
      %1305 = vmatprep.subr.bf16.mxu0 0
      %1306 = vmatpush2.bf16.msra.mxu0 0
      %1307 = vmatprep.subr.bf16.mxu0 0
      %1308 = vmatpush2.bf16.msra.mxu0 0
      %1309 = vmatprep.mubr.bf16.mxu0 0
      %1310 = vmatmul.mubr.bf16.gmra.mxu0 %v1213
      %v1311 = vpop.f32.mrf.mxu0
      %v1312 = vadd.f32 0.0, %v1311
      %v1313 = vpop.f32.mrf.mxu0
      %v1314 = vpop.f32.mrf.mxu0
      %v1315 = vadd.f32 0.0, %v1314
      %v1316 = vpop.f32.mrf.mxu0
      %1317 = vmatprep.mubr.bf16.mxu0 0
      %1318 = vmatmul.mubr.bf16.gmra.mxu0 %v1214
      %v1319 = vpop.f32.mrf.mxu0
      %v1320 = vadd.f32 0.0, %v1319
      %v1321 = vpop.f32.mrf.mxu0
      %v1322 = vpop.f32.mrf.mxu0
      %v1323 = vadd.f32 0.0, %v1322
      %v1324 = vpop.f32.mrf.mxu0
      %1325 = vmatprep.mubr.bf16.mxu0 0
      %1326 = vmatmul.mubr.bf16.gmra.mxu0 %v1215
      %v1327 = vpop.f32.mrf.mxu0
      %v1328 = vadd.f32 0.0, %v1327
      %v1329 = vpop.f32.mrf.mxu0
      %v1330 = vpop.f32.mrf.mxu0
      %v1331 = vadd.f32 0.0, %v1330
      %v1332 = vpop.f32.mrf.mxu0
      %1333 = vmatprep.mubr.bf16.mxu0 0
      %1334 = vmatmul.mubr.bf16.gmra.mxu0 %v1216
      %v1335 = vpop.f32.mrf.mxu0
      %v1336 = vadd.f32 0.0, %v1335
      %v1337 = vpop.f32.mrf.mxu0
      %v1338 = vpop.f32.mrf.mxu0
      %v1339 = vadd.f32 0.0, %v1338
      %v1340 = vpop.f32.mrf.mxu0
      %1341 = vmatprep.mubr.bf16.mxu0 0
      %1342 = vmatmul.mubr.bf16.gmra.mxu0 %v1217
      %v1343 = vpop.f32.mrf.mxu0
      %v1344 = vadd.f32 0.0, %v1343
      %v1345 = vpop.f32.mrf.mxu0
      %v1346 = vpop.f32.mrf.mxu0
      %v1347 = vadd.f32 0.0, %v1346
      %v1348 = vpop.f32.mrf.mxu0
      %1349 = vmatprep.mubr.bf16.mxu0 0
      %1350 = vmatmul.mubr.bf16.gmra.mxu0 %v1218
      %v1351 = vpop.f32.mrf.mxu0
      %v1352 = vadd.f32 0.0, %v1351
      %v1353 = vpop.f32.mrf.mxu0
      %v1354 = vpop.f32.mrf.mxu0
      %v1355 = vadd.f32 0.0, %v1354
      %v1356 = vpop.f32.mrf.mxu0
      %1357 = vmatprep.mubr.bf16.mxu0 0
      %1358 = vmatmul.mubr.bf16.gmra.mxu0 %v1219
      %v1359 = vpop.f32.mrf.mxu0
      %v1360 = vadd.f32 0.0, %v1359
      %v1361 = vpop.f32.mrf.mxu0
      %v1362 = vpop.f32.mrf.mxu0
      %v1363 = vadd.f32 0.0, %v1362
      %v1364 = vpop.f32.mrf.mxu0
      %1365 = vmatprep.mubr.bf16.mxu0 0
      %1366 = vmatmul.mubr.bf16.gmra.mxu0 %v1220
      %v1367 = vpop.f32.mrf.mxu0
      %v1368 = vadd.f32 0.0, %v1367
      %v1369 = vpop.f32.mrf.mxu0
      %v1370 = vpop.f32.mrf.mxu0
      %v1371 = vadd.f32 0.0, %v1370
      %v1372 = vpop.f32.mrf.mxu0
      %1373 = vdwg.mxu0
      %v1374 = vadd.f32 %v1035, %v1312
      %v1375 = vadd.f32 %v1038, %v1315
      %v1376 = vadd.f32 %v1043, %v1320
      %v1377 = vadd.f32 %v1046, %v1323
      %v1378 = vadd.f32 %v1051, %v1328
      %v1379 = vadd.f32 %v1054, %v1331
      %v1380 = vadd.f32 %v1059, %v1336
      %v1381 = vadd.f32 %v1062, %v1339
      %v1382 = vadd.f32 %v1067, %v1344
      %v1383 = vadd.f32 %v1070, %v1347
      %v1384 = vadd.f32 %v1075, %v1352
      %v1385 = vadd.f32 %v1078, %v1355
      %v1386 = vadd.f32 %v1083, %v1360
      %v1387 = vadd.f32 %v1086, %v1363
      %v1388 = vadd.f32 %v1091, %v1368
      %v1389 = vadd.f32 %v1094, %v1371
      %s1390 = sadd.s32 %s471, 1
      %s1391 = smul.u32 %s1390, 3
      %s1392 = smul.addr %s1391, 4
      %s1393 = scalar_lea.vmem %s421, %s1392
      %v1394 = vld [vmem:[%s1393] sm:$0xf]
      %v1395 = vld [vmem:[%s1393 + $0x4] sm:$0xf]
      %v1396 = vld [vmem:[%s1393 + $0xc] sm:$0xf]
      %v1397 = vld [vmem:[%s1393 + $0x10] sm:$0xf]
      %v1398 = vld [vmem:[%s1393 + $0x18] sm:$0xf]
      %v1399 = vld [vmem:[%s1393 + $0x1c] sm:$0xf]
      %v1400 = vld [vmem:[%s1393 + $0x24] sm:$0xf]
      %v1401 = vld [vmem:[%s1393 + $0x28] sm:$0xf]
      %v1402 = vld [vmem:[%s1393 + $0x30] sm:$0xf]
      %v1403 = vld [vmem:[%s1393 + $0x34] sm:$0xf]
      %v1404 = vld [vmem:[%s1393 + $0x3c] sm:$0xf]
      %v1405 = vld [vmem:[%s1393 + $0x40] sm:$0xf]
      %v1406 = vld [vmem:[%s1393 + $0x48] sm:$0xf]
      %v1407 = vld [vmem:[%s1393 + $0x4c] sm:$0xf]
      %v1408 = vld [vmem:[%s1393 + $0x54] sm:$0xf]
      %v1409 = vld [vmem:[%s1393 + $0x58] sm:$0xf]
      %s1410 = scalar_lea.vmem %s425, 192
      %v1411 = vld [vmem:[%s1410] sm:$0xf]
      %v1412 = vld [vmem:[%s1410 + $0x4] sm:$0xf]
      %v1413 = vld [vmem:[%s1410 + $0x8] sm:$0xf]
      %v1414 = vld [vmem:[%s1410 + $0xc] sm:$0xf]
      %v1415 = vld [vmem:[%s1410 + $0x10] sm:$0xf]
      %v1416 = vld [vmem:[%s1410 + $0x14] sm:$0xf]
      %v1417 = vld [vmem:[%s1410 + $0x18] sm:$0xf]
      %v1418 = vld [vmem:[%s1410 + $0x1c] sm:$0xf]
      %v1419 = vld [vmem:[%s1410 + $0x20] sm:$0xf]
      %v1420 = vld [vmem:[%s1410 + $0x24] sm:$0xf]
      %v1421 = vld [vmem:[%s1410 + $0x28] sm:$0xf]
      %v1422 = vld [vmem:[%s1410 + $0x2c] sm:$0xf]
      %v1423 = vld [vmem:[%s1410 + $0x30] sm:$0xf]
      %v1424 = vld [vmem:[%s1410 + $0x34] sm:$0xf]
      %v1425 = vld [vmem:[%s1410 + $0x38] sm:$0xf]
      %v1426 = vld [vmem:[%s1410 + $0x3c] sm:$0xf]
      %v1443 = vunpack.c.l.b16 %v1394
      %v1444 = vunpack.c.l.b16 %v1395
      %v1445 = vunpack.c.l.b16 %v1396
      %v1446 = vunpack.c.l.b16 %v1397
      %v1447 = vunpack.c.l.b16 %v1398
      %v1448 = vunpack.c.l.b16 %v1399
      %v1449 = vunpack.c.l.b16 %v1400
      %v1450 = vunpack.c.l.b16 %v1401
      %v1451 = vunpack.c.l.b16 %v1402
      %v1452 = vunpack.c.l.b16 %v1403
      %v1453 = vunpack.c.l.b16 %v1404
      %v1454 = vunpack.c.l.b16 %v1405
      %v1455 = vunpack.c.l.b16 %v1406
      %v1456 = vunpack.c.l.b16 %v1407
      %v1457 = vunpack.c.l.b16 %v1408
      %v1458 = vunpack.c.l.b16 %v1409
      %v1459 = vpack.c.b16 %v1444, %v1443
      %v1460 = vpack.c.b16 %v1446, %v1445
      %v1461 = vpack.c.b16 %v1448, %v1447
      %v1462 = vpack.c.b16 %v1450, %v1449
      %v1463 = vpack.c.b16 %v1452, %v1451
      %v1464 = vpack.c.b16 %v1454, %v1453
      %v1465 = vpack.c.b16 %v1456, %v1455
      %v1466 = vpack.c.b16 %v1458, %v1457
      %v1491 = vunpack.c.l.b16 %v1411
      %v1492 = vunpack.c.l.b16 %v1412
      %v1493 = vunpack.c.l.b16 %v1413
      %v1494 = vunpack.c.l.b16 %v1414
      %v1495 = vunpack.c.l.b16 %v1415
      %v1496 = vunpack.c.l.b16 %v1416
      %v1497 = vunpack.c.l.b16 %v1417
      %v1498 = vunpack.c.l.b16 %v1418
      %v1499 = vunpack.c.l.b16 %v1419
      %v1500 = vunpack.c.l.b16 %v1420
      %v1501 = vunpack.c.l.b16 %v1421
      %v1502 = vunpack.c.l.b16 %v1422
      %v1503 = vunpack.c.l.b16 %v1423
      %v1504 = vunpack.c.l.b16 %v1424
      %v1505 = vunpack.c.l.b16 %v1425
      %v1506 = vunpack.c.l.b16 %v1426
      %v1507 = vpack.c.b16 %v1492, %v1491
      %v1508 = vpack.c.b16 %v1494, %v1493
      %v1509 = vpack.c.b16 %v1496, %v1495
      %v1510 = vpack.c.b16 %v1498, %v1497
      %v1511 = vpack.c.b16 %v1500, %v1499
      %v1512 = vpack.c.b16 %v1502, %v1501
      %v1513 = vpack.c.b16 %v1504, %v1503
      %v1514 = vpack.c.b16 %v1506, %v1505
      %1523 = vmatprep.subr.bf16.mxu0 0
      %1524 = vmatpush1.bf16.msra.mxu0 %v1514
      %1525 = vmatprep.subr.bf16.mxu0 0
      %1526 = vmatpush1.bf16.msra.mxu0 %v1513
      %1527 = vmatprep.subr.bf16.mxu0 0
      %1528 = vmatpush1.bf16.msra.mxu0 %v1512
      %1529 = vmatprep.subr.bf16.mxu0 0
      %1530 = vmatpush1.bf16.msra.mxu0 %v1511
      %1531 = vmatprep.subr.bf16.mxu0 0
      %1532 = vmatpush1.bf16.msra.mxu0 %v1510
      %1533 = vmatprep.subr.bf16.mxu0 0
      %1534 = vmatpush1.bf16.msra.mxu0 %v1509
      %1535 = vmatprep.subr.bf16.mxu0 0
      %1536 = vmatpush1.bf16.msra.mxu0 %v1508
      %1537 = vmatprep.subr.bf16.mxu0 0
      %1538 = vmatpush1.bf16.msra.mxu0 %v1507
      %1539 = vmatprep.subr.bf16.mxu0 0
      %1540 = vmatpush2.bf16.msra.mxu0 0
      %1541 = vmatprep.subr.bf16.mxu0 0
      %1542 = vmatpush2.bf16.msra.mxu0 0
      %1543 = vmatprep.subr.bf16.mxu0 0
      %1544 = vmatpush2.bf16.msra.mxu0 0
      %1545 = vmatprep.subr.bf16.mxu0 0
      %1546 = vmatpush2.bf16.msra.mxu0 0
      %1547 = vmatprep.subr.bf16.mxu0 0
      %1548 = vmatpush2.bf16.msra.mxu0 0
      %1549 = vmatprep.subr.bf16.mxu0 0
      %1550 = vmatpush2.bf16.msra.mxu0 0
      %1551 = vmatprep.subr.bf16.mxu0 0
      %1552 = vmatpush2.bf16.msra.mxu0 0
      %1553 = vmatprep.subr.bf16.mxu0 0
      %1554 = vmatpush2.bf16.msra.mxu0 0
      %1555 = vmatprep.mubr.bf16.mxu0 0
      %1556 = vmatmul.mubr.bf16.gmra.mxu0 %v1459
      %v1557 = vpop.f32.mrf.mxu0
      %v1558 = vadd.f32 0.0, %v1557
      %v1559 = vpop.f32.mrf.mxu0
      %v1560 = vpop.f32.mrf.mxu0
      %v1561 = vadd.f32 0.0, %v1560
      %v1562 = vpop.f32.mrf.mxu0
      %1563 = vmatprep.mubr.bf16.mxu0 0
      %1564 = vmatmul.mubr.bf16.gmra.mxu0 %v1460
      %v1565 = vpop.f32.mrf.mxu0
      %v1566 = vadd.f32 0.0, %v1565
      %v1567 = vpop.f32.mrf.mxu0
      %v1568 = vpop.f32.mrf.mxu0
      %v1569 = vadd.f32 0.0, %v1568
      %v1570 = vpop.f32.mrf.mxu0
      %1571 = vmatprep.mubr.bf16.mxu0 0
      %1572 = vmatmul.mubr.bf16.gmra.mxu0 %v1461
      %v1573 = vpop.f32.mrf.mxu0
      %v1574 = vadd.f32 0.0, %v1573
      %v1575 = vpop.f32.mrf.mxu0
      %v1576 = vpop.f32.mrf.mxu0
      %v1577 = vadd.f32 0.0, %v1576
      %v1578 = vpop.f32.mrf.mxu0
      %1579 = vmatprep.mubr.bf16.mxu0 0
      %1580 = vmatmul.mubr.bf16.gmra.mxu0 %v1462
      %v1581 = vpop.f32.mrf.mxu0
      %v1582 = vadd.f32 0.0, %v1581
      %v1583 = vpop.f32.mrf.mxu0
      %v1584 = vpop.f32.mrf.mxu0
      %v1585 = vadd.f32 0.0, %v1584
      %v1586 = vpop.f32.mrf.mxu0
      %1587 = vmatprep.mubr.bf16.mxu0 0
      %1588 = vmatmul.mubr.bf16.gmra.mxu0 %v1463
      %v1589 = vpop.f32.mrf.mxu0
      %v1590 = vadd.f32 0.0, %v1589
      %v1591 = vpop.f32.mrf.mxu0
      %v1592 = vpop.f32.mrf.mxu0
      %v1593 = vadd.f32 0.0, %v1592
      %v1594 = vpop.f32.mrf.mxu0
      %1595 = vmatprep.mubr.bf16.mxu0 0
      %1596 = vmatmul.mubr.bf16.gmra.mxu0 %v1464
      %v1597 = vpop.f32.mrf.mxu0
      %v1598 = vadd.f32 0.0, %v1597
      %v1599 = vpop.f32.mrf.mxu0
      %v1600 = vpop.f32.mrf.mxu0
      %v1601 = vadd.f32 0.0, %v1600
      %v1602 = vpop.f32.mrf.mxu0
      %1603 = vmatprep.mubr.bf16.mxu0 0
      %1604 = vmatmul.mubr.bf16.gmra.mxu0 %v1465
      %v1605 = vpop.f32.mrf.mxu0
      %v1606 = vadd.f32 0.0, %v1605
      %v1607 = vpop.f32.mrf.mxu0
      %v1608 = vpop.f32.mrf.mxu0
      %v1609 = vadd.f32 0.0, %v1608
      %v1610 = vpop.f32.mrf.mxu0
      %1611 = vmatprep.mubr.bf16.mxu0 0
      %1612 = vmatmul.mubr.bf16.gmra.mxu0 %v1466
      %v1613 = vpop.f32.mrf.mxu0
      %v1614 = vadd.f32 0.0, %v1613
      %v1615 = vpop.f32.mrf.mxu0
      %v1616 = vpop.f32.mrf.mxu0
      %v1617 = vadd.f32 0.0, %v1616
      %v1618 = vpop.f32.mrf.mxu0
      %1619 = vdwg.mxu0
      %v1620 = vadd.f32 %v1374, %v1558
      %v1621 = vadd.f32 %v1375, %v1561
      %v1622 = vadd.f32 %v1376, %v1566
      %v1623 = vadd.f32 %v1377, %v1569
      %v1624 = vadd.f32 %v1378, %v1574
      %v1625 = vadd.f32 %v1379, %v1577
      %v1626 = vadd.f32 %v1380, %v1582
      %v1627 = vadd.f32 %v1381, %v1585
      %v1628 = vadd.f32 %v1382, %v1590
      %v1629 = vadd.f32 %v1383, %v1593
      %v1630 = vadd.f32 %v1384, %v1598
      %v1631 = vadd.f32 %v1385, %v1601
      %v1632 = vadd.f32 %v1386, %v1606
      %v1633 = vadd.f32 %v1387, %v1609
      %v1634 = vadd.f32 %v1388, %v1614
      %v1635 = vadd.f32 %v1389, %v1617
      %v1636 = vld [vmem:[%s1393] sm:$0xf]
      %v1637 = vld [vmem:[%s1393 + $0x4] sm:$0xf]
      %v1638 = vld [vmem:[%s1393 + $0x8] sm:$0x1]
      %v1639 = vld [vmem:[%s1393 + $0xc] sm:$0xf]
      %v1640 = vld [vmem:[%s1393 + $0x10] sm:$0xf]
      %v1641 = vld [vmem:[%s1393 + $0x14] sm:$0x1]
      %v1642 = vld [vmem:[%s1393 + $0x18] sm:$0xf]
      %v1643 = vld [vmem:[%s1393 + $0x1c] sm:$0xf]
      %v1644 = vld [vmem:[%s1393 + $0x20] sm:$0x1]
      %v1645 = vld [vmem:[%s1393 + $0x24] sm:$0xf]
      %v1646 = vld [vmem:[%s1393 + $0x28] sm:$0xf]
      %v1647 = vld [vmem:[%s1393 + $0x2c] sm:$0x1]
      %v1648 = vld [vmem:[%s1393 + $0x30] sm:$0xf]
      %v1649 = vld [vmem:[%s1393 + $0x34] sm:$0xf]
      %v1650 = vld [vmem:[%s1393 + $0x38] sm:$0x1]
      %v1651 = vld [vmem:[%s1393 + $0x3c] sm:$0xf]
      %v1652 = vld [vmem:[%s1393 + $0x40] sm:$0xf]
      %v1653 = vld [vmem:[%s1393 + $0x44] sm:$0x1]
      %v1654 = vld [vmem:[%s1393 + $0x48] sm:$0xf]
      %v1655 = vld [vmem:[%s1393 + $0x4c] sm:$0xf]
      %v1656 = vld [vmem:[%s1393 + $0x50] sm:$0x1]
      %v1657 = vld [vmem:[%s1393 + $0x54] sm:$0xf]
      %v1658 = vld [vmem:[%s1393 + $0x58] sm:$0xf]
      %v1659 = vld [vmem:[%s1393 + $0x5c] sm:$0x1]
      %v1661 = vshrl.u32 %v1636, 16
      %v1663 = vrot.slane %v1661, 4
      %v1664 = vshll.u32 %v1636, 16
      %v1666 = vrot.slane %v1664, 5
      %v1667 = vor.u32 %v1663, %v1666
      %v1668 = vrot.slane %v1667, 4
      %v1670 = vshll.u32 %v1637, 16
      %v1672 = vrot.slane %v1670, 5
      %v1673 = vsel %vm517, %v1668, %v1672
      %v1674 = vshrl.u32 %v1637, 16
      %v1676 = vrot.slane %v1674, 4
      %v1677 = vor.u32 %v1676, %v1672
      %v1678 = vrot.slane %v1677, 4
      %v1680 = vshll.u32 %v1638, 16
      %v1682 = vrot.slane %v1680, 5
      %v1683 = vsel %vm517, %v1678, %v1682
      %v1685 = vshrl.u32 %v1639, 16
      %v1687 = vrot.slane %v1685, 4
      %v1688 = vshll.u32 %v1639, 16
      %v1690 = vrot.slane %v1688, 5
      %v1691 = vor.u32 %v1687, %v1690
      %v1692 = vrot.slane %v1691, 4
      %v1694 = vshll.u32 %v1640, 16
      %v1696 = vrot.slane %v1694, 5
      %v1697 = vsel %vm517, %v1692, %v1696
      %v1698 = vshrl.u32 %v1640, 16
      %v1700 = vrot.slane %v1698, 4
      %v1701 = vor.u32 %v1700, %v1696
      %v1702 = vrot.slane %v1701, 4
      %v1704 = vshll.u32 %v1641, 16
      %v1706 = vrot.slane %v1704, 5
      %v1707 = vsel %vm517, %v1702, %v1706
      %v1709 = vshrl.u32 %v1642, 16
      %v1711 = vrot.slane %v1709, 4
      %v1712 = vshll.u32 %v1642, 16
      %v1714 = vrot.slane %v1712, 5
      %v1715 = vor.u32 %v1711, %v1714
      %v1716 = vrot.slane %v1715, 4
      %v1718 = vshll.u32 %v1643, 16
      %v1720 = vrot.slane %v1718, 5
      %v1721 = vsel %vm517, %v1716, %v1720
      %v1722 = vshrl.u32 %v1643, 16
      %v1724 = vrot.slane %v1722, 4
      %v1725 = vor.u32 %v1724, %v1720
      %v1726 = vrot.slane %v1725, 4
      %v1728 = vshll.u32 %v1644, 16
      %v1730 = vrot.slane %v1728, 5
      %v1731 = vsel %vm517, %v1726, %v1730
      %v1733 = vshrl.u32 %v1645, 16
      %v1735 = vrot.slane %v1733, 4
      %v1736 = vshll.u32 %v1645, 16
      %v1738 = vrot.slane %v1736, 5
      %v1739 = vor.u32 %v1735, %v1738
      %v1740 = vrot.slane %v1739, 4
      %v1742 = vshll.u32 %v1646, 16
      %v1744 = vrot.slane %v1742, 5
      %v1745 = vsel %vm517, %v1740, %v1744
      %v1746 = vshrl.u32 %v1646, 16
      %v1748 = vrot.slane %v1746, 4
      %v1749 = vor.u32 %v1748, %v1744
      %v1750 = vrot.slane %v1749, 4
      %v1752 = vshll.u32 %v1647, 16
      %v1754 = vrot.slane %v1752, 5
      %v1755 = vsel %vm517, %v1750, %v1754
      %v1757 = vshrl.u32 %v1648, 16
      %v1759 = vrot.slane %v1757, 4
      %v1760 = vshll.u32 %v1648, 16
      %v1762 = vrot.slane %v1760, 5
      %v1763 = vor.u32 %v1759, %v1762
      %v1764 = vrot.slane %v1763, 4
      %v1766 = vshll.u32 %v1649, 16
      %v1768 = vrot.slane %v1766, 5
      %v1769 = vsel %vm517, %v1764, %v1768
      %v1770 = vshrl.u32 %v1649, 16
      %v1772 = vrot.slane %v1770, 4
      %v1773 = vor.u32 %v1772, %v1768
      %v1774 = vrot.slane %v1773, 4
      %v1776 = vshll.u32 %v1650, 16
      %v1778 = vrot.slane %v1776, 5
      %v1779 = vsel %vm517, %v1774, %v1778
      %v1781 = vshrl.u32 %v1651, 16
      %v1783 = vrot.slane %v1781, 4
      %v1784 = vshll.u32 %v1651, 16
      %v1786 = vrot.slane %v1784, 5
      %v1787 = vor.u32 %v1783, %v1786
      %v1788 = vrot.slane %v1787, 4
      %v1790 = vshll.u32 %v1652, 16
      %v1792 = vrot.slane %v1790, 5
      %v1793 = vsel %vm517, %v1788, %v1792
      %v1794 = vshrl.u32 %v1652, 16
      %v1796 = vrot.slane %v1794, 4
      %v1797 = vor.u32 %v1796, %v1792
      %v1798 = vrot.slane %v1797, 4
      %v1800 = vshll.u32 %v1653, 16
      %v1802 = vrot.slane %v1800, 5
      %v1803 = vsel %vm517, %v1798, %v1802
      %v1805 = vshrl.u32 %v1654, 16
      %v1807 = vrot.slane %v1805, 4
      %v1808 = vshll.u32 %v1654, 16
      %v1810 = vrot.slane %v1808, 5
      %v1811 = vor.u32 %v1807, %v1810
      %v1812 = vrot.slane %v1811, 4
      %v1814 = vshll.u32 %v1655, 16
      %v1816 = vrot.slane %v1814, 5
      %v1817 = vsel %vm517, %v1812, %v1816
      %v1818 = vshrl.u32 %v1655, 16
      %v1820 = vrot.slane %v1818, 4
      %v1821 = vor.u32 %v1820, %v1816
      %v1822 = vrot.slane %v1821, 4
      %v1824 = vshll.u32 %v1656, 16
      %v1826 = vrot.slane %v1824, 5
      %v1827 = vsel %vm517, %v1822, %v1826
      %v1829 = vshrl.u32 %v1657, 16
      %v1831 = vrot.slane %v1829, 4
      %v1832 = vshll.u32 %v1657, 16
      %v1834 = vrot.slane %v1832, 5
      %v1835 = vor.u32 %v1831, %v1834
      %v1836 = vrot.slane %v1835, 4
      %v1838 = vshll.u32 %v1658, 16
      %v1840 = vrot.slane %v1838, 5
      %v1841 = vsel %vm517, %v1836, %v1840
      %v1842 = vshrl.u32 %v1658, 16
      %v1844 = vrot.slane %v1842, 4
      %v1845 = vor.u32 %v1844, %v1840
      %v1846 = vrot.slane %v1845, 4
      %v1848 = vshll.u32 %v1659, 16
      %v1850 = vrot.slane %v1848, 5
      %v1851 = vsel %vm517, %v1846, %v1850
      %s1852 = scalar_lea.vmem %s425, 256
      %v1853 = vld [vmem:[%s1852] sm:$0xf]
      %v1854 = vld [vmem:[%s1852 + $0x4] sm:$0xf]
      %v1855 = vld [vmem:[%s1852 + $0x8] sm:$0xf]
      %v1856 = vld [vmem:[%s1852 + $0xc] sm:$0xf]
      %v1857 = vld [vmem:[%s1852 + $0x10] sm:$0xf]
      %v1858 = vld [vmem:[%s1852 + $0x14] sm:$0xf]
      %v1859 = vld [vmem:[%s1852 + $0x18] sm:$0xf]
      %v1860 = vld [vmem:[%s1852 + $0x1c] sm:$0xf]
      %v1861 = vld [vmem:[%s1852 + $0x20] sm:$0xf]
      %v1862 = vld [vmem:[%s1852 + $0x24] sm:$0xf]
      %v1863 = vld [vmem:[%s1852 + $0x28] sm:$0xf]
      %v1864 = vld [vmem:[%s1852 + $0x2c] sm:$0xf]
      %v1865 = vld [vmem:[%s1852 + $0x30] sm:$0xf]
      %v1866 = vld [vmem:[%s1852 + $0x34] sm:$0xf]
      %v1867 = vld [vmem:[%s1852 + $0x38] sm:$0xf]
      %v1868 = vld [vmem:[%s1852 + $0x3c] sm:$0xf]
      %v1869 = vunpack.c.l.b16 %v1673
      %v1870 = vunpack.c.l.b16 %v1683
      %v1871 = vunpack.c.l.b16 %v1697
      %v1872 = vunpack.c.l.b16 %v1707
      %v1873 = vunpack.c.l.b16 %v1721
      %v1874 = vunpack.c.l.b16 %v1731
      %v1875 = vunpack.c.l.b16 %v1745
      %v1876 = vunpack.c.l.b16 %v1755
      %v1877 = vunpack.c.l.b16 %v1769
      %v1878 = vunpack.c.l.b16 %v1779
      %v1879 = vunpack.c.l.b16 %v1793
      %v1880 = vunpack.c.l.b16 %v1803
      %v1881 = vunpack.c.l.b16 %v1817
      %v1882 = vunpack.c.l.b16 %v1827
      %v1883 = vunpack.c.l.b16 %v1841
      %v1884 = vunpack.c.l.b16 %v1851
      %v1885 = vpack.c.b16 %v1870, %v1869
      %v1886 = vpack.c.b16 %v1872, %v1871
      %v1887 = vpack.c.b16 %v1874, %v1873
      %v1888 = vpack.c.b16 %v1876, %v1875
      %v1889 = vpack.c.b16 %v1878, %v1877
      %v1890 = vpack.c.b16 %v1880, %v1879
      %v1891 = vpack.c.b16 %v1882, %v1881
      %v1892 = vpack.c.b16 %v1884, %v1883
      %v1917 = vunpack.c.l.b16 %v1853
      %v1918 = vunpack.c.l.b16 %v1854
      %v1919 = vunpack.c.l.b16 %v1855
      %v1920 = vunpack.c.l.b16 %v1856
      %v1921 = vunpack.c.l.b16 %v1857
      %v1922 = vunpack.c.l.b16 %v1858
      %v1923 = vunpack.c.l.b16 %v1859
      %v1924 = vunpack.c.l.b16 %v1860
      %v1925 = vunpack.c.l.b16 %v1861
      %v1926 = vunpack.c.l.b16 %v1862
      %v1927 = vunpack.c.l.b16 %v1863
      %v1928 = vunpack.c.l.b16 %v1864
      %v1929 = vunpack.c.l.b16 %v1865
      %v1930 = vunpack.c.l.b16 %v1866
      %v1931 = vunpack.c.l.b16 %v1867
      %v1932 = vunpack.c.l.b16 %v1868
      %v1933 = vpack.c.b16 %v1918, %v1917
      %v1934 = vpack.c.b16 %v1920, %v1919
      %v1935 = vpack.c.b16 %v1922, %v1921
      %v1936 = vpack.c.b16 %v1924, %v1923
      %v1937 = vpack.c.b16 %v1926, %v1925
      %v1938 = vpack.c.b16 %v1928, %v1927
      %v1939 = vpack.c.b16 %v1930, %v1929
      %v1940 = vpack.c.b16 %v1932, %v1931
      %1949 = vmatprep.subr.bf16.mxu0 0
      %1950 = vmatpush1.bf16.msra.mxu0 %v1940
      %1951 = vmatprep.subr.bf16.mxu0 0
      %1952 = vmatpush1.bf16.msra.mxu0 %v1939
      %1953 = vmatprep.subr.bf16.mxu0 0
      %1954 = vmatpush1.bf16.msra.mxu0 %v1938
      %1955 = vmatprep.subr.bf16.mxu0 0
      %1956 = vmatpush1.bf16.msra.mxu0 %v1937
      %1957 = vmatprep.subr.bf16.mxu0 0
      %1958 = vmatpush1.bf16.msra.mxu0 %v1936
      %1959 = vmatprep.subr.bf16.mxu0 0
      %1960 = vmatpush1.bf16.msra.mxu0 %v1935
      %1961 = vmatprep.subr.bf16.mxu0 0
      %1962 = vmatpush1.bf16.msra.mxu0 %v1934
      %1963 = vmatprep.subr.bf16.mxu0 0
      %1964 = vmatpush1.bf16.msra.mxu0 %v1933
      %1965 = vmatprep.subr.bf16.mxu0 0
      %1966 = vmatpush2.bf16.msra.mxu0 0
      %1967 = vmatprep.subr.bf16.mxu0 0
      %1968 = vmatpush2.bf16.msra.mxu0 0
      %1969 = vmatprep.subr.bf16.mxu0 0
      %1970 = vmatpush2.bf16.msra.mxu0 0
      %1971 = vmatprep.subr.bf16.mxu0 0
      %1972 = vmatpush2.bf16.msra.mxu0 0
      %1973 = vmatprep.subr.bf16.mxu0 0
      %1974 = vmatpush2.bf16.msra.mxu0 0
      %1975 = vmatprep.subr.bf16.mxu0 0
      %1976 = vmatpush2.bf16.msra.mxu0 0
      %1977 = vmatprep.subr.bf16.mxu0 0
      %1978 = vmatpush2.bf16.msra.mxu0 0
      %1979 = vmatprep.subr.bf16.mxu0 0
      %1980 = vmatpush2.bf16.msra.mxu0 0
      %1981 = vmatprep.mubr.bf16.mxu0 0
      %1982 = vmatmul.mubr.bf16.gmra.mxu0 %v1885
      %v1983 = vpop.f32.mrf.mxu0
      %v1984 = vadd.f32 0.0, %v1983
      %v1985 = vpop.f32.mrf.mxu0
      %v1986 = vpop.f32.mrf.mxu0
      %v1987 = vadd.f32 0.0, %v1986
      %v1988 = vpop.f32.mrf.mxu0
      %1989 = vmatprep.mubr.bf16.mxu0 0
      %1990 = vmatmul.mubr.bf16.gmra.mxu0 %v1886
      %v1991 = vpop.f32.mrf.mxu0
      %v1992 = vadd.f32 0.0, %v1991
      %v1993 = vpop.f32.mrf.mxu0
      %v1994 = vpop.f32.mrf.mxu0
      %v1995 = vadd.f32 0.0, %v1994
      %v1996 = vpop.f32.mrf.mxu0
      %1997 = vmatprep.mubr.bf16.mxu0 0
      %1998 = vmatmul.mubr.bf16.gmra.mxu0 %v1887
      %v1999 = vpop.f32.mrf.mxu0
      %v2000 = vadd.f32 0.0, %v1999
      %v2001 = vpop.f32.mrf.mxu0
      %v2002 = vpop.f32.mrf.mxu0
      %v2003 = vadd.f32 0.0, %v2002
      %v2004 = vpop.f32.mrf.mxu0
      %2005 = vmatprep.mubr.bf16.mxu0 0
      %2006 = vmatmul.mubr.bf16.gmra.mxu0 %v1888
      %v2007 = vpop.f32.mrf.mxu0
      %v2008 = vadd.f32 0.0, %v2007
      %v2009 = vpop.f32.mrf.mxu0
      %v2010 = vpop.f32.mrf.mxu0
      %v2011 = vadd.f32 0.0, %v2010
      %v2012 = vpop.f32.mrf.mxu0
      %2013 = vmatprep.mubr.bf16.mxu0 0
      %2014 = vmatmul.mubr.bf16.gmra.mxu0 %v1889
      %v2015 = vpop.f32.mrf.mxu0
      %v2016 = vadd.f32 0.0, %v2015
      %v2017 = vpop.f32.mrf.mxu0
      %v2018 = vpop.f32.mrf.mxu0
      %v2019 = vadd.f32 0.0, %v2018
      %v2020 = vpop.f32.mrf.mxu0
      %2021 = vmatprep.mubr.bf16.mxu0 0
      %2022 = vmatmul.mubr.bf16.gmra.mxu0 %v1890
      %v2023 = vpop.f32.mrf.mxu0
      %v2024 = vadd.f32 0.0, %v2023
      %v2025 = vpop.f32.mrf.mxu0
      %v2026 = vpop.f32.mrf.mxu0
      %v2027 = vadd.f32 0.0, %v2026
      %v2028 = vpop.f32.mrf.mxu0
      %2029 = vmatprep.mubr.bf16.mxu0 0
      %2030 = vmatmul.mubr.bf16.gmra.mxu0 %v1891
      %v2031 = vpop.f32.mrf.mxu0
      %v2032 = vadd.f32 0.0, %v2031
      %v2033 = vpop.f32.mrf.mxu0
      %v2034 = vpop.f32.mrf.mxu0
      %v2035 = vadd.f32 0.0, %v2034
      %v2036 = vpop.f32.mrf.mxu0
      %2037 = vmatprep.mubr.bf16.mxu0 0
      %2038 = vmatmul.mubr.bf16.gmra.mxu0 %v1892
      %v2039 = vpop.f32.mrf.mxu0
      %v2040 = vadd.f32 0.0, %v2039
      %v2041 = vpop.f32.mrf.mxu0
      %v2042 = vpop.f32.mrf.mxu0
      %v2043 = vadd.f32 0.0, %v2042
      %v2044 = vpop.f32.mrf.mxu0
      %2045 = vdwg.mxu0
      %v2046 = vadd.f32 %v1620, %v1984
      %v2047 = vadd.f32 %v1621, %v1987
      %v2048 = vadd.f32 %v1622, %v1992
      %v2049 = vadd.f32 %v1623, %v1995
      %v2050 = vadd.f32 %v1624, %v2000
      %v2051 = vadd.f32 %v1625, %v2003
      %v2052 = vadd.f32 %v1626, %v2008
      %v2053 = vadd.f32 %v1627, %v2011
      %v2054 = vadd.f32 %v1628, %v2016
      %v2055 = vadd.f32 %v1629, %v2019
      %v2056 = vadd.f32 %v1630, %v2024
      %v2057 = vadd.f32 %v1631, %v2027
      %v2058 = vadd.f32 %v1632, %v2032
      %v2059 = vadd.f32 %v1633, %v2035
      %v2060 = vadd.f32 %v1634, %v2040
      %v2061 = vadd.f32 %v1635, %v2043
      %v2062 = vld [vmem:[%s1393] sm:$0xe]
      %v2063 = vld [vmem:[%s1393 + $0xc] sm:$0xe]
      %v2064 = vld [vmem:[%s1393 + $0x18] sm:$0xe]
      %v2065 = vld [vmem:[%s1393 + $0x24] sm:$0xe]
      %v2066 = vld [vmem:[%s1393 + $0x30] sm:$0xe]
      %v2067 = vld [vmem:[%s1393 + $0x3c] sm:$0xe]
      %v2068 = vld [vmem:[%s1393 + $0x48] sm:$0xe]
      %v2069 = vld [vmem:[%s1393 + $0x54] sm:$0xe]
      %v2094 = vrot.slane %v2062, 5
      %v2095 = vrot.slane %v2094, 4
      %v2096 = vrot.slane %v1637, 5
      %v2097 = vsel %vm1123, %v2095, %v2096
      %v2098 = vrot.slane %v2096, 4
      %v2099 = vrot.slane %v1638, 5
      %v2100 = vsel %vm1123, %v2098, %v2099
      %v2101 = vrot.slane %v2063, 5
      %v2102 = vrot.slane %v2101, 4
      %v2103 = vrot.slane %v1640, 5
      %v2104 = vsel %vm1123, %v2102, %v2103
      %v2105 = vrot.slane %v2103, 4
      %v2106 = vrot.slane %v1641, 5
      %v2107 = vsel %vm1123, %v2105, %v2106
      %v2108 = vrot.slane %v2064, 5
      %v2109 = vrot.slane %v2108, 4
      %v2110 = vrot.slane %v1643, 5
      %v2111 = vsel %vm1123, %v2109, %v2110
      %v2112 = vrot.slane %v2110, 4
      %v2113 = vrot.slane %v1644, 5
      %v2114 = vsel %vm1123, %v2112, %v2113
      %v2115 = vrot.slane %v2065, 5
      %v2116 = vrot.slane %v2115, 4
      %v2117 = vrot.slane %v1646, 5
      %v2118 = vsel %vm1123, %v2116, %v2117
      %v2119 = vrot.slane %v2117, 4
      %v2120 = vrot.slane %v1647, 5
      %v2121 = vsel %vm1123, %v2119, %v2120
      %v2122 = vrot.slane %v2066, 5
      %v2123 = vrot.slane %v2122, 4
      %v2124 = vrot.slane %v1649, 5
      %v2125 = vsel %vm1123, %v2123, %v2124
      %v2126 = vrot.slane %v2124, 4
      %v2127 = vrot.slane %v1650, 5
      %v2128 = vsel %vm1123, %v2126, %v2127
      %v2129 = vrot.slane %v2067, 5
      %v2130 = vrot.slane %v2129, 4
      %v2131 = vrot.slane %v1652, 5
      %v2132 = vsel %vm1123, %v2130, %v2131
      %v2133 = vrot.slane %v2131, 4
      %v2134 = vrot.slane %v1653, 5
      %v2135 = vsel %vm1123, %v2133, %v2134
      %v2136 = vrot.slane %v2068, 5
      %v2137 = vrot.slane %v2136, 4
      %v2138 = vrot.slane %v1655, 5
      %v2139 = vsel %vm1123, %v2137, %v2138
      %v2140 = vrot.slane %v2138, 4
      %v2141 = vrot.slane %v1656, 5
      %v2142 = vsel %vm1123, %v2140, %v2141
      %v2143 = vrot.slane %v2069, 5
      %v2144 = vrot.slane %v2143, 4
      %v2145 = vrot.slane %v1658, 5
      %v2146 = vsel %vm1123, %v2144, %v2145
      %v2147 = vrot.slane %v2145, 4
      %v2148 = vrot.slane %v1659, 5
      %v2149 = vsel %vm1123, %v2147, %v2148
      %s2150 = scalar_lea.vmem %s425, 320
      %v2151 = vld [vmem:[%s2150] sm:$0xf]
      %v2152 = vld [vmem:[%s2150 + $0x4] sm:$0xf]
      %v2153 = vld [vmem:[%s2150 + $0x8] sm:$0xf]
      %v2154 = vld [vmem:[%s2150 + $0xc] sm:$0xf]
      %v2155 = vld [vmem:[%s2150 + $0x10] sm:$0xf]
      %v2156 = vld [vmem:[%s2150 + $0x14] sm:$0xf]
      %v2157 = vld [vmem:[%s2150 + $0x18] sm:$0xf]
      %v2158 = vld [vmem:[%s2150 + $0x1c] sm:$0xf]
      %v2159 = vld [vmem:[%s2150 + $0x20] sm:$0xf]
      %v2160 = vld [vmem:[%s2150 + $0x24] sm:$0xf]
      %v2161 = vld [vmem:[%s2150 + $0x28] sm:$0xf]
      %v2162 = vld [vmem:[%s2150 + $0x2c] sm:$0xf]
      %v2163 = vld [vmem:[%s2150 + $0x30] sm:$0xf]
      %v2164 = vld [vmem:[%s2150 + $0x34] sm:$0xf]
      %v2165 = vld [vmem:[%s2150 + $0x38] sm:$0xf]
      %v2166 = vld [vmem:[%s2150 + $0x3c] sm:$0xf]
      %v2167 = vunpack.c.l.b16 %v2097
      %v2168 = vunpack.c.l.b16 %v2100
      %v2169 = vunpack.c.l.b16 %v2104
      %v2170 = vunpack.c.l.b16 %v2107
      %v2171 = vunpack.c.l.b16 %v2111
      %v2172 = vunpack.c.l.b16 %v2114
      %v2173 = vunpack.c.l.b16 %v2118
      %v2174 = vunpack.c.l.b16 %v2121
      %v2175 = vunpack.c.l.b16 %v2125
      %v2176 = vunpack.c.l.b16 %v2128
      %v2177 = vunpack.c.l.b16 %v2132
      %v2178 = vunpack.c.l.b16 %v2135
      %v2179 = vunpack.c.l.b16 %v2139
      %v2180 = vunpack.c.l.b16 %v2142
      %v2181 = vunpack.c.l.b16 %v2146
      %v2182 = vunpack.c.l.b16 %v2149
      %v2183 = vpack.c.b16 %v2168, %v2167
      %v2184 = vpack.c.b16 %v2170, %v2169
      %v2185 = vpack.c.b16 %v2172, %v2171
      %v2186 = vpack.c.b16 %v2174, %v2173
      %v2187 = vpack.c.b16 %v2176, %v2175
      %v2188 = vpack.c.b16 %v2178, %v2177
      %v2189 = vpack.c.b16 %v2180, %v2179
      %v2190 = vpack.c.b16 %v2182, %v2181
      %v2215 = vunpack.c.l.b16 %v2151
      %v2216 = vunpack.c.l.b16 %v2152
      %v2217 = vunpack.c.l.b16 %v2153
      %v2218 = vunpack.c.l.b16 %v2154
      %v2219 = vunpack.c.l.b16 %v2155
      %v2220 = vunpack.c.l.b16 %v2156
      %v2221 = vunpack.c.l.b16 %v2157
      %v2222 = vunpack.c.l.b16 %v2158
      %v2223 = vunpack.c.l.b16 %v2159
      %v2224 = vunpack.c.l.b16 %v2160
      %v2225 = vunpack.c.l.b16 %v2161
      %v2226 = vunpack.c.l.b16 %v2162
      %v2227 = vunpack.c.l.b16 %v2163
      %v2228 = vunpack.c.l.b16 %v2164
      %v2229 = vunpack.c.l.b16 %v2165
      %v2230 = vunpack.c.l.b16 %v2166
      %v2231 = vpack.c.b16 %v2216, %v2215
      %v2232 = vpack.c.b16 %v2218, %v2217
      %v2233 = vpack.c.b16 %v2220, %v2219
      %v2234 = vpack.c.b16 %v2222, %v2221
      %v2235 = vpack.c.b16 %v2224, %v2223
      %v2236 = vpack.c.b16 %v2226, %v2225
      %v2237 = vpack.c.b16 %v2228, %v2227
      %v2238 = vpack.c.b16 %v2230, %v2229
      %2247 = vmatprep.subr.bf16.mxu0 0
      %2248 = vmatpush1.bf16.msra.mxu0 %v2238
      %2249 = vmatprep.subr.bf16.mxu0 0
      %2250 = vmatpush1.bf16.msra.mxu0 %v2237
      %2251 = vmatprep.subr.bf16.mxu0 0
      %2252 = vmatpush1.bf16.msra.mxu0 %v2236
      %2253 = vmatprep.subr.bf16.mxu0 0
      %2254 = vmatpush1.bf16.msra.mxu0 %v2235
      %2255 = vmatprep.subr.bf16.mxu0 0
      %2256 = vmatpush1.bf16.msra.mxu0 %v2234
      %2257 = vmatprep.subr.bf16.mxu0 0
      %2258 = vmatpush1.bf16.msra.mxu0 %v2233
      %2259 = vmatprep.subr.bf16.mxu0 0
      %2260 = vmatpush1.bf16.msra.mxu0 %v2232
      %2261 = vmatprep.subr.bf16.mxu0 0
      %2262 = vmatpush1.bf16.msra.mxu0 %v2231
      %2263 = vmatprep.subr.bf16.mxu0 0
      %2264 = vmatpush2.bf16.msra.mxu0 0
      %2265 = vmatprep.subr.bf16.mxu0 0
      %2266 = vmatpush2.bf16.msra.mxu0 0
      %2267 = vmatprep.subr.bf16.mxu0 0
      %2268 = vmatpush2.bf16.msra.mxu0 0
      %2269 = vmatprep.subr.bf16.mxu0 0
      %2270 = vmatpush2.bf16.msra.mxu0 0
      %2271 = vmatprep.subr.bf16.mxu0 0
      %2272 = vmatpush2.bf16.msra.mxu0 0
      %2273 = vmatprep.subr.bf16.mxu0 0
      %2274 = vmatpush2.bf16.msra.mxu0 0
      %2275 = vmatprep.subr.bf16.mxu0 0
      %2276 = vmatpush2.bf16.msra.mxu0 0
      %2277 = vmatprep.subr.bf16.mxu0 0
      %2278 = vmatpush2.bf16.msra.mxu0 0
      %2279 = vmatprep.mubr.bf16.mxu0 0
      %2280 = vmatmul.mubr.bf16.gmra.mxu0 %v2183
      %v2281 = vpop.f32.mrf.mxu0
      %v2282 = vadd.f32 0.0, %v2281
      %v2283 = vpop.f32.mrf.mxu0
      %v2284 = vpop.f32.mrf.mxu0
      %v2285 = vadd.f32 0.0, %v2284
      %v2286 = vpop.f32.mrf.mxu0
      %2287 = vmatprep.mubr.bf16.mxu0 0
      %2288 = vmatmul.mubr.bf16.gmra.mxu0 %v2184
      %v2289 = vpop.f32.mrf.mxu0
      %v2290 = vadd.f32 0.0, %v2289
      %v2291 = vpop.f32.mrf.mxu0
      %v2292 = vpop.f32.mrf.mxu0
      %v2293 = vadd.f32 0.0, %v2292
      %v2294 = vpop.f32.mrf.mxu0
      %2295 = vmatprep.mubr.bf16.mxu0 0
      %2296 = vmatmul.mubr.bf16.gmra.mxu0 %v2185
      %v2297 = vpop.f32.mrf.mxu0
      %v2298 = vadd.f32 0.0, %v2297
      %v2299 = vpop.f32.mrf.mxu0
      %v2300 = vpop.f32.mrf.mxu0
      %v2301 = vadd.f32 0.0, %v2300
      %v2302 = vpop.f32.mrf.mxu0
      %2303 = vmatprep.mubr.bf16.mxu0 0
      %2304 = vmatmul.mubr.bf16.gmra.mxu0 %v2186
      %v2305 = vpop.f32.mrf.mxu0
      %v2306 = vadd.f32 0.0, %v2305
      %v2307 = vpop.f32.mrf.mxu0
      %v2308 = vpop.f32.mrf.mxu0
      %v2309 = vadd.f32 0.0, %v2308
      %v2310 = vpop.f32.mrf.mxu0
      %2311 = vmatprep.mubr.bf16.mxu0 0
      %2312 = vmatmul.mubr.bf16.gmra.mxu0 %v2187
      %v2313 = vpop.f32.mrf.mxu0
      %v2314 = vadd.f32 0.0, %v2313
      %v2315 = vpop.f32.mrf.mxu0
      %v2316 = vpop.f32.mrf.mxu0
      %v2317 = vadd.f32 0.0, %v2316
      %v2318 = vpop.f32.mrf.mxu0
      %2319 = vmatprep.mubr.bf16.mxu0 0
      %2320 = vmatmul.mubr.bf16.gmra.mxu0 %v2188
      %v2321 = vpop.f32.mrf.mxu0
      %v2322 = vadd.f32 0.0, %v2321
      %v2323 = vpop.f32.mrf.mxu0
      %v2324 = vpop.f32.mrf.mxu0
      %v2325 = vadd.f32 0.0, %v2324
      %v2326 = vpop.f32.mrf.mxu0
      %2327 = vmatprep.mubr.bf16.mxu0 0
      %2328 = vmatmul.mubr.bf16.gmra.mxu0 %v2189
      %v2329 = vpop.f32.mrf.mxu0
      %v2330 = vadd.f32 0.0, %v2329
      %v2331 = vpop.f32.mrf.mxu0
      %v2332 = vpop.f32.mrf.mxu0
      %v2333 = vadd.f32 0.0, %v2332
      %v2334 = vpop.f32.mrf.mxu0
      %2335 = vmatprep.mubr.bf16.mxu0 0
      %2336 = vmatmul.mubr.bf16.gmra.mxu0 %v2190
      %v2337 = vpop.f32.mrf.mxu0
      %v2338 = vadd.f32 0.0, %v2337
      %v2339 = vpop.f32.mrf.mxu0
      %v2340 = vpop.f32.mrf.mxu0
      %v2341 = vadd.f32 0.0, %v2340
      %v2342 = vpop.f32.mrf.mxu0
      %2343 = vdwg.mxu0
      %v2344 = vadd.f32 %v2046, %v2282
      %v2345 = vadd.f32 %v2047, %v2285
      %v2346 = vadd.f32 %v2048, %v2290
      %v2347 = vadd.f32 %v2049, %v2293
      %v2348 = vadd.f32 %v2050, %v2298
      %v2349 = vadd.f32 %v2051, %v2301
      %v2350 = vadd.f32 %v2052, %v2306
      %v2351 = vadd.f32 %v2053, %v2309
      %v2352 = vadd.f32 %v2054, %v2314
      %v2353 = vadd.f32 %v2055, %v2317
      %v2354 = vadd.f32 %v2056, %v2322
      %v2355 = vadd.f32 %v2057, %v2325
      %v2356 = vadd.f32 %v2058, %v2330
      %v2357 = vadd.f32 %v2059, %v2333
      %v2358 = vadd.f32 %v2060, %v2338
      %v2359 = vadd.f32 %v2061, %v2341
      %s2360 = sadd.s32 %s471, 2
      %s2361 = smul.u32 %s2360, 3
      %s2362 = smul.addr %s2361, 4
      %s2363 = scalar_lea.vmem %s421, %s2362
      %v2364 = vld [vmem:[%s2363] sm:$0xf]
      %v2365 = vld [vmem:[%s2363 + $0x4] sm:$0xf]
      %v2366 = vld [vmem:[%s2363 + $0xc] sm:$0xf]
      %v2367 = vld [vmem:[%s2363 + $0x10] sm:$0xf]
      %v2368 = vld [vmem:[%s2363 + $0x18] sm:$0xf]
      %v2369 = vld [vmem:[%s2363 + $0x1c] sm:$0xf]
      %v2370 = vld [vmem:[%s2363 + $0x24] sm:$0xf]
      %v2371 = vld [vmem:[%s2363 + $0x28] sm:$0xf]
      %v2372 = vld [vmem:[%s2363 + $0x30] sm:$0xf]
      %v2373 = vld [vmem:[%s2363 + $0x34] sm:$0xf]
      %v2374 = vld [vmem:[%s2363 + $0x3c] sm:$0xf]
      %v2375 = vld [vmem:[%s2363 + $0x40] sm:$0xf]
      %v2376 = vld [vmem:[%s2363 + $0x48] sm:$0xf]
      %v2377 = vld [vmem:[%s2363 + $0x4c] sm:$0xf]
      %v2378 = vld [vmem:[%s2363 + $0x54] sm:$0xf]
      %v2379 = vld [vmem:[%s2363 + $0x58] sm:$0xf]
      %s2380 = scalar_lea.vmem %s425, 384
      %v2381 = vld [vmem:[%s2380] sm:$0xf]
      %v2382 = vld [vmem:[%s2380 + $0x4] sm:$0xf]
      %v2383 = vld [vmem:[%s2380 + $0x8] sm:$0xf]
      %v2384 = vld [vmem:[%s2380 + $0xc] sm:$0xf]
      %v2385 = vld [vmem:[%s2380 + $0x10] sm:$0xf]
      %v2386 = vld [vmem:[%s2380 + $0x14] sm:$0xf]
      %v2387 = vld [vmem:[%s2380 + $0x18] sm:$0xf]
      %v2388 = vld [vmem:[%s2380 + $0x1c] sm:$0xf]
      %v2389 = vld [vmem:[%s2380 + $0x20] sm:$0xf]
      %v2390 = vld [vmem:[%s2380 + $0x24] sm:$0xf]
      %v2391 = vld [vmem:[%s2380 + $0x28] sm:$0xf]
      %v2392 = vld [vmem:[%s2380 + $0x2c] sm:$0xf]
      %v2393 = vld [vmem:[%s2380 + $0x30] sm:$0xf]
      %v2394 = vld [vmem:[%s2380 + $0x34] sm:$0xf]
      %v2395 = vld [vmem:[%s2380 + $0x38] sm:$0xf]
      %v2396 = vld [vmem:[%s2380 + $0x3c] sm:$0xf]
      %v2413 = vunpack.c.l.b16 %v2364
      %v2414 = vunpack.c.l.b16 %v2365
      %v2415 = vunpack.c.l.b16 %v2366
      %v2416 = vunpack.c.l.b16 %v2367
      %v2417 = vunpack.c.l.b16 %v2368
      %v2418 = vunpack.c.l.b16 %v2369
      %v2419 = vunpack.c.l.b16 %v2370
      %v2420 = vunpack.c.l.b16 %v2371
      %v2421 = vunpack.c.l.b16 %v2372
      %v2422 = vunpack.c.l.b16 %v2373
      %v2423 = vunpack.c.l.b16 %v2374
      %v2424 = vunpack.c.l.b16 %v2375
      %v2425 = vunpack.c.l.b16 %v2376
      %v2426 = vunpack.c.l.b16 %v2377
      %v2427 = vunpack.c.l.b16 %v2378
      %v2428 = vunpack.c.l.b16 %v2379
      %v2429 = vpack.c.b16 %v2414, %v2413
      %v2430 = vpack.c.b16 %v2416, %v2415
      %v2431 = vpack.c.b16 %v2418, %v2417
      %v2432 = vpack.c.b16 %v2420, %v2419
      %v2433 = vpack.c.b16 %v2422, %v2421
      %v2434 = vpack.c.b16 %v2424, %v2423
      %v2435 = vpack.c.b16 %v2426, %v2425
      %v2436 = vpack.c.b16 %v2428, %v2427
      %v2461 = vunpack.c.l.b16 %v2381
      %v2462 = vunpack.c.l.b16 %v2382
      %v2463 = vunpack.c.l.b16 %v2383
      %v2464 = vunpack.c.l.b16 %v2384
      %v2465 = vunpack.c.l.b16 %v2385
      %v2466 = vunpack.c.l.b16 %v2386
      %v2467 = vunpack.c.l.b16 %v2387
      %v2468 = vunpack.c.l.b16 %v2388
      %v2469 = vunpack.c.l.b16 %v2389
      %v2470 = vunpack.c.l.b16 %v2390
      %v2471 = vunpack.c.l.b16 %v2391
      %v2472 = vunpack.c.l.b16 %v2392
      %v2473 = vunpack.c.l.b16 %v2393
      %v2474 = vunpack.c.l.b16 %v2394
      %v2475 = vunpack.c.l.b16 %v2395
      %v2476 = vunpack.c.l.b16 %v2396
      %v2477 = vpack.c.b16 %v2462, %v2461
      %v2478 = vpack.c.b16 %v2464, %v2463
      %v2479 = vpack.c.b16 %v2466, %v2465
      %v2480 = vpack.c.b16 %v2468, %v2467
      %v2481 = vpack.c.b16 %v2470, %v2469
      %v2482 = vpack.c.b16 %v2472, %v2471
      %v2483 = vpack.c.b16 %v2474, %v2473
      %v2484 = vpack.c.b16 %v2476, %v2475
      %2493 = vmatprep.subr.bf16.mxu0 0
      %2494 = vmatpush1.bf16.msra.mxu0 %v2484
      %2495 = vmatprep.subr.bf16.mxu0 0
      %2496 = vmatpush1.bf16.msra.mxu0 %v2483
      %2497 = vmatprep.subr.bf16.mxu0 0
      %2498 = vmatpush1.bf16.msra.mxu0 %v2482
      %2499 = vmatprep.subr.bf16.mxu0 0
      %2500 = vmatpush1.bf16.msra.mxu0 %v2481
      %2501 = vmatprep.subr.bf16.mxu0 0
      %2502 = vmatpush1.bf16.msra.mxu0 %v2480
      %2503 = vmatprep.subr.bf16.mxu0 0
      %2504 = vmatpush1.bf16.msra.mxu0 %v2479
      %2505 = vmatprep.subr.bf16.mxu0 0
      %2506 = vmatpush1.bf16.msra.mxu0 %v2478
      %2507 = vmatprep.subr.bf16.mxu0 0
      %2508 = vmatpush1.bf16.msra.mxu0 %v2477
      %2509 = vmatprep.subr.bf16.mxu0 0
      %2510 = vmatpush2.bf16.msra.mxu0 0
      %2511 = vmatprep.subr.bf16.mxu0 0
      %2512 = vmatpush2.bf16.msra.mxu0 0
      %2513 = vmatprep.subr.bf16.mxu0 0
      %2514 = vmatpush2.bf16.msra.mxu0 0
      %2515 = vmatprep.subr.bf16.mxu0 0
      %2516 = vmatpush2.bf16.msra.mxu0 0
      %2517 = vmatprep.subr.bf16.mxu0 0
      %2518 = vmatpush2.bf16.msra.mxu0 0
      %2519 = vmatprep.subr.bf16.mxu0 0
      %2520 = vmatpush2.bf16.msra.mxu0 0
      %2521 = vmatprep.subr.bf16.mxu0 0
      %2522 = vmatpush2.bf16.msra.mxu0 0
      %2523 = vmatprep.subr.bf16.mxu0 0
      %2524 = vmatpush2.bf16.msra.mxu0 0
      %2525 = vmatprep.mubr.bf16.mxu0 0
      %2526 = vmatmul.mubr.bf16.gmra.mxu0 %v2429
      %v2527 = vpop.f32.mrf.mxu0
      %v2528 = vadd.f32 0.0, %v2527
      %v2529 = vpop.f32.mrf.mxu0
      %v2530 = vpop.f32.mrf.mxu0
      %v2531 = vadd.f32 0.0, %v2530
      %v2532 = vpop.f32.mrf.mxu0
      %2533 = vmatprep.mubr.bf16.mxu0 0
      %2534 = vmatmul.mubr.bf16.gmra.mxu0 %v2430
      %v2535 = vpop.f32.mrf.mxu0
      %v2536 = vadd.f32 0.0, %v2535
      %v2537 = vpop.f32.mrf.mxu0
      %v2538 = vpop.f32.mrf.mxu0
      %v2539 = vadd.f32 0.0, %v2538
      %v2540 = vpop.f32.mrf.mxu0
      %2541 = vmatprep.mubr.bf16.mxu0 0
      %2542 = vmatmul.mubr.bf16.gmra.mxu0 %v2431
      %v2543 = vpop.f32.mrf.mxu0
      %v2544 = vadd.f32 0.0, %v2543
      %v2545 = vpop.f32.mrf.mxu0
      %v2546 = vpop.f32.mrf.mxu0
      %v2547 = vadd.f32 0.0, %v2546
      %v2548 = vpop.f32.mrf.mxu0
      %2549 = vmatprep.mubr.bf16.mxu0 0
      %2550 = vmatmul.mubr.bf16.gmra.mxu0 %v2432
      %v2551 = vpop.f32.mrf.mxu0
      %v2552 = vadd.f32 0.0, %v2551
      %v2553 = vpop.f32.mrf.mxu0
      %v2554 = vpop.f32.mrf.mxu0
      %v2555 = vadd.f32 0.0, %v2554
      %v2556 = vpop.f32.mrf.mxu0
      %2557 = vmatprep.mubr.bf16.mxu0 0
      %2558 = vmatmul.mubr.bf16.gmra.mxu0 %v2433
      %v2559 = vpop.f32.mrf.mxu0
      %v2560 = vadd.f32 0.0, %v2559
      %v2561 = vpop.f32.mrf.mxu0
      %v2562 = vpop.f32.mrf.mxu0
      %v2563 = vadd.f32 0.0, %v2562
      %v2564 = vpop.f32.mrf.mxu0
      %2565 = vmatprep.mubr.bf16.mxu0 0
      %2566 = vmatmul.mubr.bf16.gmra.mxu0 %v2434
      %v2567 = vpop.f32.mrf.mxu0
      %v2568 = vadd.f32 0.0, %v2567
      %v2569 = vpop.f32.mrf.mxu0
      %v2570 = vpop.f32.mrf.mxu0
      %v2571 = vadd.f32 0.0, %v2570
      %v2572 = vpop.f32.mrf.mxu0
      %2573 = vmatprep.mubr.bf16.mxu0 0
      %2574 = vmatmul.mubr.bf16.gmra.mxu0 %v2435
      %v2575 = vpop.f32.mrf.mxu0
      %v2576 = vadd.f32 0.0, %v2575
      %v2577 = vpop.f32.mrf.mxu0
      %v2578 = vpop.f32.mrf.mxu0
      %v2579 = vadd.f32 0.0, %v2578
      %v2580 = vpop.f32.mrf.mxu0
      %2581 = vmatprep.mubr.bf16.mxu0 0
      %2582 = vmatmul.mubr.bf16.gmra.mxu0 %v2436
      %v2583 = vpop.f32.mrf.mxu0
      %v2584 = vadd.f32 0.0, %v2583
      %v2585 = vpop.f32.mrf.mxu0
      %v2586 = vpop.f32.mrf.mxu0
      %v2587 = vadd.f32 0.0, %v2586
      %v2588 = vpop.f32.mrf.mxu0
      %2589 = vdwg.mxu0
      %v2590 = vadd.f32 %v2344, %v2528
      %v2591 = vadd.f32 %v2345, %v2531
      %v2592 = vadd.f32 %v2346, %v2536
      %v2593 = vadd.f32 %v2347, %v2539
      %v2594 = vadd.f32 %v2348, %v2544
      %v2595 = vadd.f32 %v2349, %v2547
      %v2596 = vadd.f32 %v2350, %v2552
      %v2597 = vadd.f32 %v2351, %v2555
      %v2598 = vadd.f32 %v2352, %v2560
      %v2599 = vadd.f32 %v2353, %v2563
      %v2600 = vadd.f32 %v2354, %v2568
      %v2601 = vadd.f32 %v2355, %v2571
      %v2602 = vadd.f32 %v2356, %v2576
      %v2603 = vadd.f32 %v2357, %v2579
      %v2604 = vadd.f32 %v2358, %v2584
      %v2605 = vadd.f32 %v2359, %v2587
      %v2606 = vld [vmem:[%s2363] sm:$0xf]
      %v2607 = vld [vmem:[%s2363 + $0x4] sm:$0xf]
      %v2608 = vld [vmem:[%s2363 + $0x8] sm:$0x1]
      %v2609 = vld [vmem:[%s2363 + $0xc] sm:$0xf]
      %v2610 = vld [vmem:[%s2363 + $0x10] sm:$0xf]
      %v2611 = vld [vmem:[%s2363 + $0x14] sm:$0x1]
      %v2612 = vld [vmem:[%s2363 + $0x18] sm:$0xf]
      %v2613 = vld [vmem:[%s2363 + $0x1c] sm:$0xf]
      %v2614 = vld [vmem:[%s2363 + $0x20] sm:$0x1]
      %v2615 = vld [vmem:[%s2363 + $0x24] sm:$0xf]
      %v2616 = vld [vmem:[%s2363 + $0x28] sm:$0xf]
      %v2617 = vld [vmem:[%s2363 + $0x2c] sm:$0x1]
      %v2618 = vld [vmem:[%s2363 + $0x30] sm:$0xf]
      %v2619 = vld [vmem:[%s2363 + $0x34] sm:$0xf]
      %v2620 = vld [vmem:[%s2363 + $0x38] sm:$0x1]
      %v2621 = vld [vmem:[%s2363 + $0x3c] sm:$0xf]
      %v2622 = vld [vmem:[%s2363 + $0x40] sm:$0xf]
      %v2623 = vld [vmem:[%s2363 + $0x44] sm:$0x1]
      %v2624 = vld [vmem:[%s2363 + $0x48] sm:$0xf]
      %v2625 = vld [vmem:[%s2363 + $0x4c] sm:$0xf]
      %v2626 = vld [vmem:[%s2363 + $0x50] sm:$0x1]
      %v2627 = vld [vmem:[%s2363 + $0x54] sm:$0xf]
      %v2628 = vld [vmem:[%s2363 + $0x58] sm:$0xf]
      %v2629 = vld [vmem:[%s2363 + $0x5c] sm:$0x1]
      %v2631 = vshrl.u32 %v2606, 16
      %v2633 = vrot.slane %v2631, 4
      %v2634 = vshll.u32 %v2606, 16
      %v2636 = vrot.slane %v2634, 5
      %v2637 = vor.u32 %v2633, %v2636
      %v2638 = vrot.slane %v2637, 4
      %v2640 = vshll.u32 %v2607, 16
      %v2642 = vrot.slane %v2640, 5
      %v2643 = vsel %vm517, %v2638, %v2642
      %v2644 = vshrl.u32 %v2607, 16
      %v2646 = vrot.slane %v2644, 4
      %v2647 = vor.u32 %v2646, %v2642
      %v2648 = vrot.slane %v2647, 4
      %v2650 = vshll.u32 %v2608, 16
      %v2652 = vrot.slane %v2650, 5
      %v2653 = vsel %vm517, %v2648, %v2652
      %v2655 = vshrl.u32 %v2609, 16
      %v2657 = vrot.slane %v2655, 4
      %v2658 = vshll.u32 %v2609, 16
      %v2660 = vrot.slane %v2658, 5
      %v2661 = vor.u32 %v2657, %v2660
      %v2662 = vrot.slane %v2661, 4
      %v2664 = vshll.u32 %v2610, 16
      %v2666 = vrot.slane %v2664, 5
      %v2667 = vsel %vm517, %v2662, %v2666
      %v2668 = vshrl.u32 %v2610, 16
      %v2670 = vrot.slane %v2668, 4
      %v2671 = vor.u32 %v2670, %v2666
      %v2672 = vrot.slane %v2671, 4
      %v2674 = vshll.u32 %v2611, 16
      %v2676 = vrot.slane %v2674, 5
      %v2677 = vsel %vm517, %v2672, %v2676
      %v2679 = vshrl.u32 %v2612, 16
      %v2681 = vrot.slane %v2679, 4
      %v2682 = vshll.u32 %v2612, 16
      %v2684 = vrot.slane %v2682, 5
      %v2685 = vor.u32 %v2681, %v2684
      %v2686 = vrot.slane %v2685, 4
      %v2688 = vshll.u32 %v2613, 16
      %v2690 = vrot.slane %v2688, 5
      %v2691 = vsel %vm517, %v2686, %v2690
      %v2692 = vshrl.u32 %v2613, 16
      %v2694 = vrot.slane %v2692, 4
      %v2695 = vor.u32 %v2694, %v2690
      %v2696 = vrot.slane %v2695, 4
      %v2698 = vshll.u32 %v2614, 16
      %v2700 = vrot.slane %v2698, 5
      %v2701 = vsel %vm517, %v2696, %v2700
      %v2703 = vshrl.u32 %v2615, 16
      %v2705 = vrot.slane %v2703, 4
      %v2706 = vshll.u32 %v2615, 16
      %v2708 = vrot.slane %v2706, 5
      %v2709 = vor.u32 %v2705, %v2708
      %v2710 = vrot.slane %v2709, 4
      %v2712 = vshll.u32 %v2616, 16
      %v2714 = vrot.slane %v2712, 5
      %v2715 = vsel %vm517, %v2710, %v2714
      %v2716 = vshrl.u32 %v2616, 16
      %v2718 = vrot.slane %v2716, 4
      %v2719 = vor.u32 %v2718, %v2714
      %v2720 = vrot.slane %v2719, 4
      %v2722 = vshll.u32 %v2617, 16
      %v2724 = vrot.slane %v2722, 5
      %v2725 = vsel %vm517, %v2720, %v2724
      %v2727 = vshrl.u32 %v2618, 16
      %v2729 = vrot.slane %v2727, 4
      %v2730 = vshll.u32 %v2618, 16
      %v2732 = vrot.slane %v2730, 5
      %v2733 = vor.u32 %v2729, %v2732
      %v2734 = vrot.slane %v2733, 4
      %v2736 = vshll.u32 %v2619, 16
      %v2738 = vrot.slane %v2736, 5
      %v2739 = vsel %vm517, %v2734, %v2738
      %v2740 = vshrl.u32 %v2619, 16
      %v2742 = vrot.slane %v2740, 4
      %v2743 = vor.u32 %v2742, %v2738
      %v2744 = vrot.slane %v2743, 4
      %v2746 = vshll.u32 %v2620, 16
      %v2748 = vrot.slane %v2746, 5
      %v2749 = vsel %vm517, %v2744, %v2748
      %v2751 = vshrl.u32 %v2621, 16
      %v2753 = vrot.slane %v2751, 4
      %v2754 = vshll.u32 %v2621, 16
      %v2756 = vrot.slane %v2754, 5
      %v2757 = vor.u32 %v2753, %v2756
      %v2758 = vrot.slane %v2757, 4
      %v2760 = vshll.u32 %v2622, 16
      %v2762 = vrot.slane %v2760, 5
      %v2763 = vsel %vm517, %v2758, %v2762
      %v2764 = vshrl.u32 %v2622, 16
      %v2766 = vrot.slane %v2764, 4
      %v2767 = vor.u32 %v2766, %v2762
      %v2768 = vrot.slane %v2767, 4
      %v2770 = vshll.u32 %v2623, 16
      %v2772 = vrot.slane %v2770, 5
      %v2773 = vsel %vm517, %v2768, %v2772
      %v2775 = vshrl.u32 %v2624, 16
      %v2777 = vrot.slane %v2775, 4
      %v2778 = vshll.u32 %v2624, 16
      %v2780 = vrot.slane %v2778, 5
      %v2781 = vor.u32 %v2777, %v2780
      %v2782 = vrot.slane %v2781, 4
      %v2784 = vshll.u32 %v2625, 16
      %v2786 = vrot.slane %v2784, 5
      %v2787 = vsel %vm517, %v2782, %v2786
      %v2788 = vshrl.u32 %v2625, 16
      %v2790 = vrot.slane %v2788, 4
      %v2791 = vor.u32 %v2790, %v2786
      %v2792 = vrot.slane %v2791, 4
      %v2794 = vshll.u32 %v2626, 16
      %v2796 = vrot.slane %v2794, 5
      %v2797 = vsel %vm517, %v2792, %v2796
      %v2799 = vshrl.u32 %v2627, 16
      %v2801 = vrot.slane %v2799, 4
      %v2802 = vshll.u32 %v2627, 16
      %v2804 = vrot.slane %v2802, 5
      %v2805 = vor.u32 %v2801, %v2804
      %v2806 = vrot.slane %v2805, 4
      %v2808 = vshll.u32 %v2628, 16
      %v2810 = vrot.slane %v2808, 5
      %v2811 = vsel %vm517, %v2806, %v2810
      %v2812 = vshrl.u32 %v2628, 16
      %v2814 = vrot.slane %v2812, 4
      %v2815 = vor.u32 %v2814, %v2810
      %v2816 = vrot.slane %v2815, 4
      %v2818 = vshll.u32 %v2629, 16
      %v2820 = vrot.slane %v2818, 5
      %v2821 = vsel %vm517, %v2816, %v2820
      %s2822 = scalar_lea.vmem %s425, 448
      %v2823 = vld [vmem:[%s2822] sm:$0xf]
      %v2824 = vld [vmem:[%s2822 + $0x4] sm:$0xf]
      %v2825 = vld [vmem:[%s2822 + $0x8] sm:$0xf]
      %v2826 = vld [vmem:[%s2822 + $0xc] sm:$0xf]
      %v2827 = vld [vmem:[%s2822 + $0x10] sm:$0xf]
      %v2828 = vld [vmem:[%s2822 + $0x14] sm:$0xf]
      %v2829 = vld [vmem:[%s2822 + $0x18] sm:$0xf]
      %v2830 = vld [vmem:[%s2822 + $0x1c] sm:$0xf]
      %v2831 = vld [vmem:[%s2822 + $0x20] sm:$0xf]
      %v2832 = vld [vmem:[%s2822 + $0x24] sm:$0xf]
      %v2833 = vld [vmem:[%s2822 + $0x28] sm:$0xf]
      %v2834 = vld [vmem:[%s2822 + $0x2c] sm:$0xf]
      %v2835 = vld [vmem:[%s2822 + $0x30] sm:$0xf]
      %v2836 = vld [vmem:[%s2822 + $0x34] sm:$0xf]
      %v2837 = vld [vmem:[%s2822 + $0x38] sm:$0xf]
      %v2838 = vld [vmem:[%s2822 + $0x3c] sm:$0xf]
      %v2839 = vunpack.c.l.b16 %v2643
      %v2840 = vunpack.c.l.b16 %v2653
      %v2841 = vunpack.c.l.b16 %v2667
      %v2842 = vunpack.c.l.b16 %v2677
      %v2843 = vunpack.c.l.b16 %v2691
      %v2844 = vunpack.c.l.b16 %v2701
      %v2845 = vunpack.c.l.b16 %v2715
      %v2846 = vunpack.c.l.b16 %v2725
      %v2847 = vunpack.c.l.b16 %v2739
      %v2848 = vunpack.c.l.b16 %v2749
      %v2849 = vunpack.c.l.b16 %v2763
      %v2850 = vunpack.c.l.b16 %v2773
      %v2851 = vunpack.c.l.b16 %v2787
      %v2852 = vunpack.c.l.b16 %v2797
      %v2853 = vunpack.c.l.b16 %v2811
      %v2854 = vunpack.c.l.b16 %v2821
      %v2855 = vpack.c.b16 %v2840, %v2839
      %v2856 = vpack.c.b16 %v2842, %v2841
      %v2857 = vpack.c.b16 %v2844, %v2843
      %v2858 = vpack.c.b16 %v2846, %v2845
      %v2859 = vpack.c.b16 %v2848, %v2847
      %v2860 = vpack.c.b16 %v2850, %v2849
      %v2861 = vpack.c.b16 %v2852, %v2851
      %v2862 = vpack.c.b16 %v2854, %v2853
      %v2887 = vunpack.c.l.b16 %v2823
      %v2888 = vunpack.c.l.b16 %v2824
      %v2889 = vunpack.c.l.b16 %v2825
      %v2890 = vunpack.c.l.b16 %v2826
      %v2891 = vunpack.c.l.b16 %v2827
      %v2892 = vunpack.c.l.b16 %v2828
      %v2893 = vunpack.c.l.b16 %v2829
      %v2894 = vunpack.c.l.b16 %v2830
      %v2895 = vunpack.c.l.b16 %v2831
      %v2896 = vunpack.c.l.b16 %v2832
      %v2897 = vunpack.c.l.b16 %v2833
      %v2898 = vunpack.c.l.b16 %v2834
      %v2899 = vunpack.c.l.b16 %v2835
      %v2900 = vunpack.c.l.b16 %v2836
      %v2901 = vunpack.c.l.b16 %v2837
      %v2902 = vunpack.c.l.b16 %v2838
      %v2903 = vpack.c.b16 %v2888, %v2887
      %v2904 = vpack.c.b16 %v2890, %v2889
      %v2905 = vpack.c.b16 %v2892, %v2891
      %v2906 = vpack.c.b16 %v2894, %v2893
      %v2907 = vpack.c.b16 %v2896, %v2895
      %v2908 = vpack.c.b16 %v2898, %v2897
      %v2909 = vpack.c.b16 %v2900, %v2899
      %v2910 = vpack.c.b16 %v2902, %v2901
      %2919 = vmatprep.subr.bf16.mxu0 0
      %2920 = vmatpush1.bf16.msra.mxu0 %v2910
      %2921 = vmatprep.subr.bf16.mxu0 0
      %2922 = vmatpush1.bf16.msra.mxu0 %v2909
      %2923 = vmatprep.subr.bf16.mxu0 0
      %2924 = vmatpush1.bf16.msra.mxu0 %v2908
      %2925 = vmatprep.subr.bf16.mxu0 0
      %2926 = vmatpush1.bf16.msra.mxu0 %v2907
      %2927 = vmatprep.subr.bf16.mxu0 0
      %2928 = vmatpush1.bf16.msra.mxu0 %v2906
      %2929 = vmatprep.subr.bf16.mxu0 0
      %2930 = vmatpush1.bf16.msra.mxu0 %v2905
      %2931 = vmatprep.subr.bf16.mxu0 0
      %2932 = vmatpush1.bf16.msra.mxu0 %v2904
      %2933 = vmatprep.subr.bf16.mxu0 0
      %2934 = vmatpush1.bf16.msra.mxu0 %v2903
      %2935 = vmatprep.subr.bf16.mxu0 0
      %2936 = vmatpush2.bf16.msra.mxu0 0
      %2937 = vmatprep.subr.bf16.mxu0 0
      %2938 = vmatpush2.bf16.msra.mxu0 0
      %2939 = vmatprep.subr.bf16.mxu0 0
      %2940 = vmatpush2.bf16.msra.mxu0 0
      %2941 = vmatprep.subr.bf16.mxu0 0
      %2942 = vmatpush2.bf16.msra.mxu0 0
      %2943 = vmatprep.subr.bf16.mxu0 0
      %2944 = vmatpush2.bf16.msra.mxu0 0
      %2945 = vmatprep.subr.bf16.mxu0 0
      %2946 = vmatpush2.bf16.msra.mxu0 0
      %2947 = vmatprep.subr.bf16.mxu0 0
      %2948 = vmatpush2.bf16.msra.mxu0 0
      %2949 = vmatprep.subr.bf16.mxu0 0
      %2950 = vmatpush2.bf16.msra.mxu0 0
      %2951 = vmatprep.mubr.bf16.mxu0 0
      %2952 = vmatmul.mubr.bf16.gmra.mxu0 %v2855
      %v2953 = vpop.f32.mrf.mxu0
      %v2954 = vadd.f32 0.0, %v2953
      %v2955 = vpop.f32.mrf.mxu0
      %v2956 = vpop.f32.mrf.mxu0
      %v2957 = vadd.f32 0.0, %v2956
      %v2958 = vpop.f32.mrf.mxu0
      %2959 = vmatprep.mubr.bf16.mxu0 0
      %2960 = vmatmul.mubr.bf16.gmra.mxu0 %v2856
      %v2961 = vpop.f32.mrf.mxu0
      %v2962 = vadd.f32 0.0, %v2961
      %v2963 = vpop.f32.mrf.mxu0
      %v2964 = vpop.f32.mrf.mxu0
      %v2965 = vadd.f32 0.0, %v2964
      %v2966 = vpop.f32.mrf.mxu0
      %2967 = vmatprep.mubr.bf16.mxu0 0
      %2968 = vmatmul.mubr.bf16.gmra.mxu0 %v2857
      %v2969 = vpop.f32.mrf.mxu0
      %v2970 = vadd.f32 0.0, %v2969
      %v2971 = vpop.f32.mrf.mxu0
      %v2972 = vpop.f32.mrf.mxu0
      %v2973 = vadd.f32 0.0, %v2972
      %v2974 = vpop.f32.mrf.mxu0
      %2975 = vmatprep.mubr.bf16.mxu0 0
      %2976 = vmatmul.mubr.bf16.gmra.mxu0 %v2858
      %v2977 = vpop.f32.mrf.mxu0
      %v2978 = vadd.f32 0.0, %v2977
      %v2979 = vpop.f32.mrf.mxu0
      %v2980 = vpop.f32.mrf.mxu0
      %v2981 = vadd.f32 0.0, %v2980
      %v2982 = vpop.f32.mrf.mxu0
      %2983 = vmatprep.mubr.bf16.mxu0 0
      %2984 = vmatmul.mubr.bf16.gmra.mxu0 %v2859
      %v2985 = vpop.f32.mrf.mxu0
      %v2986 = vadd.f32 0.0, %v2985
      %v2987 = vpop.f32.mrf.mxu0
      %v2988 = vpop.f32.mrf.mxu0
      %v2989 = vadd.f32 0.0, %v2988
      %v2990 = vpop.f32.mrf.mxu0
      %2991 = vmatprep.mubr.bf16.mxu0 0
      %2992 = vmatmul.mubr.bf16.gmra.mxu0 %v2860
      %v2993 = vpop.f32.mrf.mxu0
      %v2994 = vadd.f32 0.0, %v2993
      %v2995 = vpop.f32.mrf.mxu0
      %v2996 = vpop.f32.mrf.mxu0
      %v2997 = vadd.f32 0.0, %v2996
      %v2998 = vpop.f32.mrf.mxu0
      %2999 = vmatprep.mubr.bf16.mxu0 0
      %3000 = vmatmul.mubr.bf16.gmra.mxu0 %v2861
      %v3001 = vpop.f32.mrf.mxu0
      %v3002 = vadd.f32 0.0, %v3001
      %v3003 = vpop.f32.mrf.mxu0
      %v3004 = vpop.f32.mrf.mxu0
      %v3005 = vadd.f32 0.0, %v3004
      %v3006 = vpop.f32.mrf.mxu0
      %3007 = vmatprep.mubr.bf16.mxu0 0
      %3008 = vmatmul.mubr.bf16.gmra.mxu0 %v2862
      %v3009 = vpop.f32.mrf.mxu0
      %v3010 = vadd.f32 0.0, %v3009
      %v3011 = vpop.f32.mrf.mxu0
      %v3012 = vpop.f32.mrf.mxu0
      %v3013 = vadd.f32 0.0, %v3012
      %v3014 = vpop.f32.mrf.mxu0
      %3015 = vdwg.mxu0
      %v3016 = vadd.f32 %v2590, %v2954
      %v3017 = vadd.f32 %v2591, %v2957
      %v3018 = vadd.f32 %v2592, %v2962
      %v3019 = vadd.f32 %v2593, %v2965
      %v3020 = vadd.f32 %v2594, %v2970
      %v3021 = vadd.f32 %v2595, %v2973
      %v3022 = vadd.f32 %v2596, %v2978
      %v3023 = vadd.f32 %v2597, %v2981
      %v3024 = vadd.f32 %v2598, %v2986
      %v3025 = vadd.f32 %v2599, %v2989
      %v3026 = vadd.f32 %v2600, %v2994
      %v3027 = vadd.f32 %v2601, %v2997
      %v3028 = vadd.f32 %v2602, %v3002
      %v3029 = vadd.f32 %v2603, %v3005
      %v3030 = vadd.f32 %v2604, %v3010
      %v3031 = vadd.f32 %v2605, %v3013
      %v3032 = vld [vmem:[%s2363] sm:$0xe]
      %v3033 = vld [vmem:[%s2363 + $0xc] sm:$0xe]
      %v3034 = vld [vmem:[%s2363 + $0x18] sm:$0xe]
      %v3035 = vld [vmem:[%s2363 + $0x24] sm:$0xe]
      %v3036 = vld [vmem:[%s2363 + $0x30] sm:$0xe]
      %v3037 = vld [vmem:[%s2363 + $0x3c] sm:$0xe]
      %v3038 = vld [vmem:[%s2363 + $0x48] sm:$0xe]
      %v3039 = vld [vmem:[%s2363 + $0x54] sm:$0xe]
      %v3064 = vrot.slane %v3032, 5
      %v3065 = vrot.slane %v3064, 4
      %v3066 = vrot.slane %v2607, 5
      %v3067 = vsel %vm1123, %v3065, %v3066
      %v3068 = vrot.slane %v3066, 4
      %v3069 = vrot.slane %v2608, 5
      %v3070 = vsel %vm1123, %v3068, %v3069
      %v3071 = vrot.slane %v3033, 5
      %v3072 = vrot.slane %v3071, 4
      %v3073 = vrot.slane %v2610, 5
      %v3074 = vsel %vm1123, %v3072, %v3073
      %v3075 = vrot.slane %v3073, 4
      %v3076 = vrot.slane %v2611, 5
      %v3077 = vsel %vm1123, %v3075, %v3076
      %v3078 = vrot.slane %v3034, 5
      %v3079 = vrot.slane %v3078, 4
      %v3080 = vrot.slane %v2613, 5
      %v3081 = vsel %vm1123, %v3079, %v3080
      %v3082 = vrot.slane %v3080, 4
      %v3083 = vrot.slane %v2614, 5
      %v3084 = vsel %vm1123, %v3082, %v3083
      %v3085 = vrot.slane %v3035, 5
      %v3086 = vrot.slane %v3085, 4
      %v3087 = vrot.slane %v2616, 5
      %v3088 = vsel %vm1123, %v3086, %v3087
      %v3089 = vrot.slane %v3087, 4
      %v3090 = vrot.slane %v2617, 5
      %v3091 = vsel %vm1123, %v3089, %v3090
      %v3092 = vrot.slane %v3036, 5
      %v3093 = vrot.slane %v3092, 4
      %v3094 = vrot.slane %v2619, 5
      %v3095 = vsel %vm1123, %v3093, %v3094
      %v3096 = vrot.slane %v3094, 4
      %v3097 = vrot.slane %v2620, 5
      %v3098 = vsel %vm1123, %v3096, %v3097
      %v3099 = vrot.slane %v3037, 5
      %v3100 = vrot.slane %v3099, 4
      %v3101 = vrot.slane %v2622, 5
      %v3102 = vsel %vm1123, %v3100, %v3101
      %v3103 = vrot.slane %v3101, 4
      %v3104 = vrot.slane %v2623, 5
      %v3105 = vsel %vm1123, %v3103, %v3104
      %v3106 = vrot.slane %v3038, 5
      %v3107 = vrot.slane %v3106, 4
      %v3108 = vrot.slane %v2625, 5
      %v3109 = vsel %vm1123, %v3107, %v3108
      %v3110 = vrot.slane %v3108, 4
      %v3111 = vrot.slane %v2626, 5
      %v3112 = vsel %vm1123, %v3110, %v3111
      %v3113 = vrot.slane %v3039, 5
      %v3114 = vrot.slane %v3113, 4
      %v3115 = vrot.slane %v2628, 5
      %v3116 = vsel %vm1123, %v3114, %v3115
      %v3117 = vrot.slane %v3115, 4
      %v3118 = vrot.slane %v2629, 5
      %v3119 = vsel %vm1123, %v3117, %v3118
      %s3120 = scalar_lea.vmem %s425, 512
      %v3121 = vld [vmem:[%s3120] sm:$0xf]
      %v3122 = vld [vmem:[%s3120 + $0x4] sm:$0xf]
      %v3123 = vld [vmem:[%s3120 + $0x8] sm:$0xf]
      %v3124 = vld [vmem:[%s3120 + $0xc] sm:$0xf]
      %v3125 = vld [vmem:[%s3120 + $0x10] sm:$0xf]
      %v3126 = vld [vmem:[%s3120 + $0x14] sm:$0xf]
      %v3127 = vld [vmem:[%s3120 + $0x18] sm:$0xf]
      %v3128 = vld [vmem:[%s3120 + $0x1c] sm:$0xf]
      %v3129 = vld [vmem:[%s3120 + $0x20] sm:$0xf]
      %v3130 = vld [vmem:[%s3120 + $0x24] sm:$0xf]
      %v3131 = vld [vmem:[%s3120 + $0x28] sm:$0xf]
      %v3132 = vld [vmem:[%s3120 + $0x2c] sm:$0xf]
      %v3133 = vld [vmem:[%s3120 + $0x30] sm:$0xf]
      %v3134 = vld [vmem:[%s3120 + $0x34] sm:$0xf]
      %v3135 = vld [vmem:[%s3120 + $0x38] sm:$0xf]
      %v3136 = vld [vmem:[%s3120 + $0x3c] sm:$0xf]
      %v3137 = vunpack.c.l.b16 %v3067
      %v3138 = vunpack.c.l.b16 %v3070
      %v3139 = vunpack.c.l.b16 %v3074
      %v3140 = vunpack.c.l.b16 %v3077
      %v3141 = vunpack.c.l.b16 %v3081
      %v3142 = vunpack.c.l.b16 %v3084
      %v3143 = vunpack.c.l.b16 %v3088
      %v3144 = vunpack.c.l.b16 %v3091
      %v3145 = vunpack.c.l.b16 %v3095
      %v3146 = vunpack.c.l.b16 %v3098
      %v3147 = vunpack.c.l.b16 %v3102
      %v3148 = vunpack.c.l.b16 %v3105
      %v3149 = vunpack.c.l.b16 %v3109
      %v3150 = vunpack.c.l.b16 %v3112
      %v3151 = vunpack.c.l.b16 %v3116
      %v3152 = vunpack.c.l.b16 %v3119
      %v3153 = vpack.c.b16 %v3138, %v3137
      %v3154 = vpack.c.b16 %v3140, %v3139
      %v3155 = vpack.c.b16 %v3142, %v3141
      %v3156 = vpack.c.b16 %v3144, %v3143
      %v3157 = vpack.c.b16 %v3146, %v3145
      %v3158 = vpack.c.b16 %v3148, %v3147
      %v3159 = vpack.c.b16 %v3150, %v3149
      %v3160 = vpack.c.b16 %v3152, %v3151
      %v3185 = vunpack.c.l.b16 %v3121
      %v3186 = vunpack.c.l.b16 %v3122
      %v3187 = vunpack.c.l.b16 %v3123
      %v3188 = vunpack.c.l.b16 %v3124
      %v3189 = vunpack.c.l.b16 %v3125
      %v3190 = vunpack.c.l.b16 %v3126
      %v3191 = vunpack.c.l.b16 %v3127
      %v3192 = vunpack.c.l.b16 %v3128
      %v3193 = vunpack.c.l.b16 %v3129
      %v3194 = vunpack.c.l.b16 %v3130
      %v3195 = vunpack.c.l.b16 %v3131
      %v3196 = vunpack.c.l.b16 %v3132
      %v3197 = vunpack.c.l.b16 %v3133
      %v3198 = vunpack.c.l.b16 %v3134
      %v3199 = vunpack.c.l.b16 %v3135
      %v3200 = vunpack.c.l.b16 %v3136
      %v3201 = vpack.c.b16 %v3186, %v3185
      %v3202 = vpack.c.b16 %v3188, %v3187
      %v3203 = vpack.c.b16 %v3190, %v3189
      %v3204 = vpack.c.b16 %v3192, %v3191
      %v3205 = vpack.c.b16 %v3194, %v3193
      %v3206 = vpack.c.b16 %v3196, %v3195
      %v3207 = vpack.c.b16 %v3198, %v3197
      %v3208 = vpack.c.b16 %v3200, %v3199
      %3217 = vmatprep.subr.bf16.mxu0 0
      %3218 = vmatpush1.bf16.msra.mxu0 %v3208
      %3219 = vmatprep.subr.bf16.mxu0 0
      %3220 = vmatpush1.bf16.msra.mxu0 %v3207
      %3221 = vmatprep.subr.bf16.mxu0 0
      %3222 = vmatpush1.bf16.msra.mxu0 %v3206
      %3223 = vmatprep.subr.bf16.mxu0 0
      %3224 = vmatpush1.bf16.msra.mxu0 %v3205
      %3225 = vmatprep.subr.bf16.mxu0 0
      %3226 = vmatpush1.bf16.msra.mxu0 %v3204
      %3227 = vmatprep.subr.bf16.mxu0 0
      %3228 = vmatpush1.bf16.msra.mxu0 %v3203
      %3229 = vmatprep.subr.bf16.mxu0 0
      %3230 = vmatpush1.bf16.msra.mxu0 %v3202
      %3231 = vmatprep.subr.bf16.mxu0 0
      %3232 = vmatpush1.bf16.msra.mxu0 %v3201
      %3233 = vmatprep.subr.bf16.mxu0 0
      %3234 = vmatpush2.bf16.msra.mxu0 0
      %3235 = vmatprep.subr.bf16.mxu0 0
      %3236 = vmatpush2.bf16.msra.mxu0 0
      %3237 = vmatprep.subr.bf16.mxu0 0
      %3238 = vmatpush2.bf16.msra.mxu0 0
      %3239 = vmatprep.subr.bf16.mxu0 0
      %3240 = vmatpush2.bf16.msra.mxu0 0
      %3241 = vmatprep.subr.bf16.mxu0 0
      %3242 = vmatpush2.bf16.msra.mxu0 0
      %3243 = vmatprep.subr.bf16.mxu0 0
      %3244 = vmatpush2.bf16.msra.mxu0 0
      %3245 = vmatprep.subr.bf16.mxu0 0
      %3246 = vmatpush2.bf16.msra.mxu0 0
      %3247 = vmatprep.subr.bf16.mxu0 0
      %3248 = vmatpush2.bf16.msra.mxu0 0
      %3249 = vmatprep.mubr.bf16.mxu0 0
      %3250 = vmatmul.mubr.bf16.gmra.mxu0 %v3153
      %v3251 = vpop.f32.mrf.mxu0
      %v3252 = vadd.f32 0.0, %v3251
      %v3253 = vpop.f32.mrf.mxu0
      %v3254 = vpop.f32.mrf.mxu0
      %v3255 = vadd.f32 0.0, %v3254
      %v3256 = vpop.f32.mrf.mxu0
      %3257 = vmatprep.mubr.bf16.mxu0 0
      %3258 = vmatmul.mubr.bf16.gmra.mxu0 %v3154
      %v3259 = vpop.f32.mrf.mxu0
      %v3260 = vadd.f32 0.0, %v3259
      %v3261 = vpop.f32.mrf.mxu0
      %v3262 = vpop.f32.mrf.mxu0
      %v3263 = vadd.f32 0.0, %v3262
      %v3264 = vpop.f32.mrf.mxu0
      %3265 = vmatprep.mubr.bf16.mxu0 0
      %3266 = vmatmul.mubr.bf16.gmra.mxu0 %v3155
      %v3267 = vpop.f32.mrf.mxu0
      %v3268 = vadd.f32 0.0, %v3267
      %v3269 = vpop.f32.mrf.mxu0
      %v3270 = vpop.f32.mrf.mxu0
      %v3271 = vadd.f32 0.0, %v3270
      %v3272 = vpop.f32.mrf.mxu0
      %3273 = vmatprep.mubr.bf16.mxu0 0
      %3274 = vmatmul.mubr.bf16.gmra.mxu0 %v3156
      %v3275 = vpop.f32.mrf.mxu0
      %v3276 = vadd.f32 0.0, %v3275
      %v3277 = vpop.f32.mrf.mxu0
      %v3278 = vpop.f32.mrf.mxu0
      %v3279 = vadd.f32 0.0, %v3278
      %v3280 = vpop.f32.mrf.mxu0
      %3281 = vmatprep.mubr.bf16.mxu0 0
      %3282 = vmatmul.mubr.bf16.gmra.mxu0 %v3157
      %v3283 = vpop.f32.mrf.mxu0
      %v3284 = vadd.f32 0.0, %v3283
      %v3285 = vpop.f32.mrf.mxu0
      %v3286 = vpop.f32.mrf.mxu0
      %v3287 = vadd.f32 0.0, %v3286
      %v3288 = vpop.f32.mrf.mxu0
      %3289 = vmatprep.mubr.bf16.mxu0 0
      %3290 = vmatmul.mubr.bf16.gmra.mxu0 %v3158
      %v3291 = vpop.f32.mrf.mxu0
      %v3292 = vadd.f32 0.0, %v3291
      %v3293 = vpop.f32.mrf.mxu0
      %v3294 = vpop.f32.mrf.mxu0
      %v3295 = vadd.f32 0.0, %v3294
      %v3296 = vpop.f32.mrf.mxu0
      %3297 = vmatprep.mubr.bf16.mxu0 0
      %3298 = vmatmul.mubr.bf16.gmra.mxu0 %v3159
      %v3299 = vpop.f32.mrf.mxu0
      %v3300 = vadd.f32 0.0, %v3299
      %v3301 = vpop.f32.mrf.mxu0
      %v3302 = vpop.f32.mrf.mxu0
      %v3303 = vadd.f32 0.0, %v3302
      %v3304 = vpop.f32.mrf.mxu0
      %3305 = vmatprep.mubr.bf16.mxu0 0
      %3306 = vmatmul.mubr.bf16.gmra.mxu0 %v3160
      %v3307 = vpop.f32.mrf.mxu0
      %v3308 = vadd.f32 0.0, %v3307
      %v3309 = vpop.f32.mrf.mxu0
      %v3310 = vpop.f32.mrf.mxu0
      %v3311 = vadd.f32 0.0, %v3310
      %v3312 = vpop.f32.mrf.mxu0
      %3313 = vdwg.mxu0
      %v3314 = vadd.f32 %v3016, %v3252
      %v3315 = vadd.f32 %v3017, %v3255
      %v3316 = vadd.f32 %v3018, %v3260
      %v3317 = vadd.f32 %v3019, %v3263
      %v3318 = vadd.f32 %v3020, %v3268
      %v3319 = vadd.f32 %v3021, %v3271
      %v3320 = vadd.f32 %v3022, %v3276
      %v3321 = vadd.f32 %v3023, %v3279
      %v3322 = vadd.f32 %v3024, %v3284
      %v3323 = vadd.f32 %v3025, %v3287
      %v3324 = vadd.f32 %v3026, %v3292
      %v3325 = vadd.f32 %v3027, %v3295
      %v3326 = vadd.f32 %v3028, %v3300
      %v3327 = vadd.f32 %v3029, %v3303
      %v3328 = vadd.f32 %v3030, %v3308
      %v3329 = vadd.f32 %v3031, %v3311
      %v3330 = vld [vmem:[%s428] sm:$0x1]
      %v3332 = vlaneseq
      %v3333 = vshrl.u32 %v3332, 7
      %v3334 = vsub.s32 0, %v3333
      %v3335 = vrot.slane %v3330, %v3334
      %v3337 = vmul.f32 %v3314, %v3335
      %v3338 = vmul.f32 %v3315, %v3335
      %v3339 = vmul.f32 %v3316, %v3335
      %v3340 = vmul.f32 %v3317, %v3335
      %v3341 = vmul.f32 %v3318, %v3335
      %v3342 = vmul.f32 %v3319, %v3335
      %v3343 = vmul.f32 %v3320, %v3335
      %v3344 = vmul.f32 %v3321, %v3335
      %v3345 = vmul.f32 %v3322, %v3335
      %v3346 = vmul.f32 %v3323, %v3335
      %v3347 = vmul.f32 %v3324, %v3335
      %v3348 = vmul.f32 %v3325, %v3335
      %v3349 = vmul.f32 %v3326, %v3335
      %v3350 = vmul.f32 %v3327, %v3335
      %v3351 = vmul.f32 %v3328, %v3335
      %v3352 = vmul.f32 %v3329, %v3335
      %v3353 = vld [vmem:[%s431] sm:$0x1]
      %v3355 = vlaneseq
      %v3356 = vshrl.u32 %v3355, 7
      %v3357 = vsub.s32 0, %v3356
      %v3358 = vrot.slane %v3353, %v3357
      %v3360 = vadd.f32 %v3337, %v3358
      %v3361 = vadd.f32 %v3338, %v3358
      %v3362 = vadd.f32 %v3339, %v3358
      %v3363 = vadd.f32 %v3340, %v3358
      %v3364 = vadd.f32 %v3341, %v3358
      %v3365 = vadd.f32 %v3342, %v3358
      %v3366 = vadd.f32 %v3343, %v3358
      %v3367 = vadd.f32 %v3344, %v3358
      %v3368 = vadd.f32 %v3345, %v3358
      %v3369 = vadd.f32 %v3346, %v3358
      %v3370 = vadd.f32 %v3347, %v3358
      %v3371 = vadd.f32 %v3348, %v3358
      %v3372 = vadd.f32 %v3349, %v3358
      %v3373 = vadd.f32 %v3350, %v3358
      %v3374 = vadd.f32 %v3351, %v3358
      %v3375 = vadd.f32 %v3352, %v3358
      %v3376 = vmax.f32 %v3360, 0.0
      %v3377 = vmax.f32 %v3361, 0.0
      %v3378 = vmax.f32 %v3362, 0.0
      %v3379 = vmax.f32 %v3363, 0.0
      %v3380 = vmax.f32 %v3364, 0.0
      %v3381 = vmax.f32 %v3365, 0.0
      %v3382 = vmax.f32 %v3366, 0.0
      %v3383 = vmax.f32 %v3367, 0.0
      %v3384 = vmax.f32 %v3368, 0.0
      %v3385 = vmax.f32 %v3369, 0.0
      %v3386 = vmax.f32 %v3370, 0.0
      %v3387 = vmax.f32 %v3371, 0.0
      %v3388 = vmax.f32 %v3372, 0.0
      %v3389 = vmax.f32 %v3373, 0.0
      %v3390 = vmax.f32 %v3374, 0.0
      %v3391 = vmax.f32 %v3375, 0.0
      %v3392 = vpack.c.bf16 %v3377, %v3376
      %v3393 = vpack.c.bf16 %v3379, %v3378
      %v3394 = vpack.c.bf16 %v3381, %v3380
      %v3395 = vpack.c.bf16 %v3383, %v3382
      %v3396 = vpack.c.bf16 %v3385, %v3384
      %v3397 = vpack.c.bf16 %v3387, %v3386
      %v3398 = vpack.c.bf16 %v3389, %v3388
      %v3399 = vpack.c.bf16 %v3391, %v3390
      %v3408 = vunpack.c.l.b16 %v3392
      %v3409 = vunpack.c.h.b16 %v3392
      %v3410 = vunpack.c.l.b16 %v3393
      %v3411 = vunpack.c.h.b16 %v3393
      %v3412 = vunpack.c.l.b16 %v3394
      %v3413 = vunpack.c.h.b16 %v3394
      %v3414 = vunpack.c.l.b16 %v3395
      %v3415 = vunpack.c.h.b16 %v3395
      %v3416 = vunpack.c.l.b16 %v3396
      %v3417 = vunpack.c.h.b16 %v3396
      %v3418 = vunpack.c.l.b16 %v3397
      %v3419 = vunpack.c.h.b16 %v3397
      %v3420 = vunpack.c.l.b16 %v3398
      %v3421 = vunpack.c.h.b16 %v3398
      %v3422 = vunpack.c.l.b16 %v3399
      %v3423 = vunpack.c.h.b16 %v3399
      %v3424 = vpack.c.b16 %v3408, %v3408
      %v3425 = vpack.c.b16 %v3409, %v3409
      %v3426 = vpack.c.b16 %v3410, %v3410
      %v3427 = vpack.c.b16 %v3411, %v3411
      %v3428 = vpack.c.b16 %v3412, %v3412
      %v3429 = vpack.c.b16 %v3413, %v3413
      %v3430 = vpack.c.b16 %v3414, %v3414
      %v3431 = vpack.c.b16 %v3415, %v3415
      %v3432 = vpack.c.b16 %v3416, %v3416
      %v3433 = vpack.c.b16 %v3417, %v3417
      %v3434 = vpack.c.b16 %v3418, %v3418
      %v3435 = vpack.c.b16 %v3419, %v3419
      %v3436 = vpack.c.b16 %v3420, %v3420
      %v3437 = vpack.c.b16 %v3421, %v3421
      %v3438 = vpack.c.b16 %v3422, %v3422
      %v3439 = vpack.c.b16 %v3423, %v3423
      %3456 = vst [vmem:[%s454] sm:$0xf] %v3424
      %3457 = vst [vmem:[%s454 + $0x4] sm:$0xf] %v3425
      %3458 = vst [vmem:[%s454 + $0x8] sm:$0xf] %v3426
      %3459 = vst [vmem:[%s454 + $0xc] sm:$0xf] %v3427
      %3460 = vst [vmem:[%s454 + $0x10] sm:$0xf] %v3428
      %3461 = vst [vmem:[%s454 + $0x14] sm:$0xf] %v3429
      %3462 = vst [vmem:[%s454 + $0x18] sm:$0xf] %v3430
      %3463 = vst [vmem:[%s454 + $0x1c] sm:$0xf] %v3431
      %3464 = vst [vmem:[%s454 + $0x20] sm:$0xf] %v3432
      %3465 = vst [vmem:[%s454 + $0x24] sm:$0xf] %v3433
      %3466 = vst [vmem:[%s454 + $0x28] sm:$0xf] %v3434
      %3467 = vst [vmem:[%s454 + $0x2c] sm:$0xf] %v3435
      %3468 = vst [vmem:[%s454 + $0x30] sm:$0xf] %v3436
      %3469 = vst [vmem:[%s454 + $0x34] sm:$0xf] %v3437
      %3470 = vst [vmem:[%s454 + $0x38] sm:$0xf] %v3438
      %3471 = vst [vmem:[%s454 + $0x3c] sm:$0xf] %v3439
      %v3472 = vld [vmem:[%s1393] sm:$0xf]
      %v3473 = vld [vmem:[%s1393 + $0x4] sm:$0xf]
      %v3474 = vld [vmem:[%s1393 + $0x8] sm:$0x1]
      %v3475 = vld [vmem:[%s1393 + $0xc] sm:$0xf]
      %v3476 = vld [vmem:[%s1393 + $0x10] sm:$0xf]
      %v3477 = vld [vmem:[%s1393 + $0x14] sm:$0x1]
      %v3478 = vld [vmem:[%s1393 + $0x18] sm:$0xf]
      %v3479 = vld [vmem:[%s1393 + $0x1c] sm:$0xf]
      %v3480 = vld [vmem:[%s1393 + $0x20] sm:$0x1]
      %v3481 = vld [vmem:[%s1393 + $0x24] sm:$0xf]
      %v3482 = vld [vmem:[%s1393 + $0x28] sm:$0xf]
      %v3483 = vld [vmem:[%s1393 + $0x2c] sm:$0x1]
      %v3484 = vld [vmem:[%s1393 + $0x30] sm:$0xf]
      %v3485 = vld [vmem:[%s1393 + $0x34] sm:$0xf]
      %v3486 = vld [vmem:[%s1393 + $0x38] sm:$0x1]
      %v3487 = vld [vmem:[%s1393 + $0x3c] sm:$0xf]
      %v3488 = vld [vmem:[%s1393 + $0x40] sm:$0xf]
      %v3489 = vld [vmem:[%s1393 + $0x44] sm:$0x1]
      %v3490 = vld [vmem:[%s1393 + $0x48] sm:$0xf]
      %v3491 = vld [vmem:[%s1393 + $0x4c] sm:$0xf]
      %v3492 = vld [vmem:[%s1393 + $0x50] sm:$0x1]
      %v3493 = vld [vmem:[%s1393 + $0x54] sm:$0xf]
      %v3494 = vld [vmem:[%s1393 + $0x58] sm:$0xf]
      %v3495 = vld [vmem:[%s1393 + $0x5c] sm:$0x1]
      %v3497 = vshrl.u32 %v3472, 16
      %v3499 = vrot.slane %v3497, 4
      %v3500 = vshll.u32 %v3472, 16
      %v3502 = vrot.slane %v3500, 5
      %v3503 = vor.u32 %v3499, %v3502
      %v3504 = vrot.slane %v3503, 4
      %v3506 = vshll.u32 %v3473, 16
      %v3508 = vrot.slane %v3506, 5
      %v3509 = vsel %vm517, %v3504, %v3508
      %v3510 = vshrl.u32 %v3473, 16
      %v3512 = vrot.slane %v3510, 4
      %v3513 = vor.u32 %v3512, %v3508
      %v3514 = vrot.slane %v3513, 4
      %v3516 = vshll.u32 %v3474, 16
      %v3518 = vrot.slane %v3516, 5
      %v3519 = vsel %vm517, %v3514, %v3518
      %v3521 = vshrl.u32 %v3475, 16
      %v3523 = vrot.slane %v3521, 4
      %v3524 = vshll.u32 %v3475, 16
      %v3526 = vrot.slane %v3524, 5
      %v3527 = vor.u32 %v3523, %v3526
      %v3528 = vrot.slane %v3527, 4
      %v3530 = vshll.u32 %v3476, 16
      %v3532 = vrot.slane %v3530, 5
      %v3533 = vsel %vm517, %v3528, %v3532
      %v3534 = vshrl.u32 %v3476, 16
      %v3536 = vrot.slane %v3534, 4
      %v3537 = vor.u32 %v3536, %v3532
      %v3538 = vrot.slane %v3537, 4
      %v3540 = vshll.u32 %v3477, 16
      %v3542 = vrot.slane %v3540, 5
      %v3543 = vsel %vm517, %v3538, %v3542
      %v3545 = vshrl.u32 %v3478, 16
      %v3547 = vrot.slane %v3545, 4
      %v3548 = vshll.u32 %v3478, 16
      %v3550 = vrot.slane %v3548, 5
      %v3551 = vor.u32 %v3547, %v3550
      %v3552 = vrot.slane %v3551, 4
      %v3554 = vshll.u32 %v3479, 16
      %v3556 = vrot.slane %v3554, 5
      %v3557 = vsel %vm517, %v3552, %v3556
      %v3558 = vshrl.u32 %v3479, 16
      %v3560 = vrot.slane %v3558, 4
      %v3561 = vor.u32 %v3560, %v3556
      %v3562 = vrot.slane %v3561, 4
      %v3564 = vshll.u32 %v3480, 16
      %v3566 = vrot.slane %v3564, 5
      %v3567 = vsel %vm517, %v3562, %v3566
      %v3569 = vshrl.u32 %v3481, 16
      %v3571 = vrot.slane %v3569, 4
      %v3572 = vshll.u32 %v3481, 16
      %v3574 = vrot.slane %v3572, 5
      %v3575 = vor.u32 %v3571, %v3574
      %v3576 = vrot.slane %v3575, 4
      %v3578 = vshll.u32 %v3482, 16
      %v3580 = vrot.slane %v3578, 5
      %v3581 = vsel %vm517, %v3576, %v3580
      %v3582 = vshrl.u32 %v3482, 16
      %v3584 = vrot.slane %v3582, 4
      %v3585 = vor.u32 %v3584, %v3580
      %v3586 = vrot.slane %v3585, 4
      %v3588 = vshll.u32 %v3483, 16
      %v3590 = vrot.slane %v3588, 5
      %v3591 = vsel %vm517, %v3586, %v3590
      %v3593 = vshrl.u32 %v3484, 16
      %v3595 = vrot.slane %v3593, 4
      %v3596 = vshll.u32 %v3484, 16
      %v3598 = vrot.slane %v3596, 5
      %v3599 = vor.u32 %v3595, %v3598
      %v3600 = vrot.slane %v3599, 4
      %v3602 = vshll.u32 %v3485, 16
      %v3604 = vrot.slane %v3602, 5
      %v3605 = vsel %vm517, %v3600, %v3604
      %v3606 = vshrl.u32 %v3485, 16
      %v3608 = vrot.slane %v3606, 4
      %v3609 = vor.u32 %v3608, %v3604
      %v3610 = vrot.slane %v3609, 4
      %v3612 = vshll.u32 %v3486, 16
      %v3614 = vrot.slane %v3612, 5
      %v3615 = vsel %vm517, %v3610, %v3614
      %v3617 = vshrl.u32 %v3487, 16
      %v3619 = vrot.slane %v3617, 4
      %v3620 = vshll.u32 %v3487, 16
      %v3622 = vrot.slane %v3620, 5
      %v3623 = vor.u32 %v3619, %v3622
      %v3624 = vrot.slane %v3623, 4
      %v3626 = vshll.u32 %v3488, 16
      %v3628 = vrot.slane %v3626, 5
      %v3629 = vsel %vm517, %v3624, %v3628
      %v3630 = vshrl.u32 %v3488, 16
      %v3632 = vrot.slane %v3630, 4
      %v3633 = vor.u32 %v3632, %v3628
      %v3634 = vrot.slane %v3633, 4
      %v3636 = vshll.u32 %v3489, 16
      %v3638 = vrot.slane %v3636, 5
      %v3639 = vsel %vm517, %v3634, %v3638
      %v3641 = vshrl.u32 %v3490, 16
      %v3643 = vrot.slane %v3641, 4
      %v3644 = vshll.u32 %v3490, 16
      %v3646 = vrot.slane %v3644, 5
      %v3647 = vor.u32 %v3643, %v3646
      %v3648 = vrot.slane %v3647, 4
      %v3650 = vshll.u32 %v3491, 16
      %v3652 = vrot.slane %v3650, 5
      %v3653 = vsel %vm517, %v3648, %v3652
      %v3654 = vshrl.u32 %v3491, 16
      %v3656 = vrot.slane %v3654, 4
      %v3657 = vor.u32 %v3656, %v3652
      %v3658 = vrot.slane %v3657, 4
      %v3660 = vshll.u32 %v3492, 16
      %v3662 = vrot.slane %v3660, 5
      %v3663 = vsel %vm517, %v3658, %v3662
      %v3665 = vshrl.u32 %v3493, 16
      %v3667 = vrot.slane %v3665, 4
      %v3668 = vshll.u32 %v3493, 16
      %v3670 = vrot.slane %v3668, 5
      %v3671 = vor.u32 %v3667, %v3670
      %v3672 = vrot.slane %v3671, 4
      %v3674 = vshll.u32 %v3494, 16
      %v3676 = vrot.slane %v3674, 5
      %v3677 = vsel %vm517, %v3672, %v3676
      %v3678 = vshrl.u32 %v3494, 16
      %v3680 = vrot.slane %v3678, 4
      %v3681 = vor.u32 %v3680, %v3676
      %v3682 = vrot.slane %v3681, 4
      %v3684 = vshll.u32 %v3495, 16
      %v3686 = vrot.slane %v3684, 5
      %v3687 = vsel %vm517, %v3682, %v3686
      %v3688 = vld [vmem:[%s435] sm:$0xf]
      %v3689 = vld [vmem:[%s435 + $0x4] sm:$0xf]
      %v3690 = vld [vmem:[%s435 + $0x8] sm:$0xf]
      %v3691 = vld [vmem:[%s435 + $0xc] sm:$0xf]
      %v3692 = vld [vmem:[%s435 + $0x10] sm:$0xf]
      %v3693 = vld [vmem:[%s435 + $0x14] sm:$0xf]
      %v3694 = vld [vmem:[%s435 + $0x18] sm:$0xf]
      %v3695 = vld [vmem:[%s435 + $0x1c] sm:$0xf]
      %v3696 = vld [vmem:[%s435 + $0x20] sm:$0xf]
      %v3697 = vld [vmem:[%s435 + $0x24] sm:$0xf]
      %v3698 = vld [vmem:[%s435 + $0x28] sm:$0xf]
      %v3699 = vld [vmem:[%s435 + $0x2c] sm:$0xf]
      %v3700 = vld [vmem:[%s435 + $0x30] sm:$0xf]
      %v3701 = vld [vmem:[%s435 + $0x34] sm:$0xf]
      %v3702 = vld [vmem:[%s435 + $0x38] sm:$0xf]
      %v3703 = vld [vmem:[%s435 + $0x3c] sm:$0xf]
      %v3704 = vunpack.c.l.b16 %v3509
      %v3705 = vunpack.c.l.b16 %v3519
      %v3706 = vunpack.c.l.b16 %v3533
      %v3707 = vunpack.c.l.b16 %v3543
      %v3708 = vunpack.c.l.b16 %v3557
      %v3709 = vunpack.c.l.b16 %v3567
      %v3710 = vunpack.c.l.b16 %v3581
      %v3711 = vunpack.c.l.b16 %v3591
      %v3712 = vunpack.c.l.b16 %v3605
      %v3713 = vunpack.c.l.b16 %v3615
      %v3714 = vunpack.c.l.b16 %v3629
      %v3715 = vunpack.c.l.b16 %v3639
      %v3716 = vunpack.c.l.b16 %v3653
      %v3717 = vunpack.c.l.b16 %v3663
      %v3718 = vunpack.c.l.b16 %v3677
      %v3719 = vunpack.c.l.b16 %v3687
      %v3720 = vpack.c.b16 %v3705, %v3704
      %v3721 = vpack.c.b16 %v3707, %v3706
      %v3722 = vpack.c.b16 %v3709, %v3708
      %v3723 = vpack.c.b16 %v3711, %v3710
      %v3724 = vpack.c.b16 %v3713, %v3712
      %v3725 = vpack.c.b16 %v3715, %v3714
      %v3726 = vpack.c.b16 %v3717, %v3716
      %v3727 = vpack.c.b16 %v3719, %v3718
      %v3752 = vunpack.c.l.b16 %v3688
      %v3753 = vunpack.c.l.b16 %v3689
      %v3754 = vunpack.c.l.b16 %v3690
      %v3755 = vunpack.c.l.b16 %v3691
      %v3756 = vunpack.c.l.b16 %v3692
      %v3757 = vunpack.c.l.b16 %v3693
      %v3758 = vunpack.c.l.b16 %v3694
      %v3759 = vunpack.c.l.b16 %v3695
      %v3760 = vunpack.c.l.b16 %v3696
      %v3761 = vunpack.c.l.b16 %v3697
      %v3762 = vunpack.c.l.b16 %v3698
      %v3763 = vunpack.c.l.b16 %v3699
      %v3764 = vunpack.c.l.b16 %v3700
      %v3765 = vunpack.c.l.b16 %v3701
      %v3766 = vunpack.c.l.b16 %v3702
      %v3767 = vunpack.c.l.b16 %v3703
      %v3768 = vpack.c.b16 %v3753, %v3752
      %v3769 = vpack.c.b16 %v3755, %v3754
      %v3770 = vpack.c.b16 %v3757, %v3756
      %v3771 = vpack.c.b16 %v3759, %v3758
      %v3772 = vpack.c.b16 %v3761, %v3760
      %v3773 = vpack.c.b16 %v3763, %v3762
      %v3774 = vpack.c.b16 %v3765, %v3764
      %v3775 = vpack.c.b16 %v3767, %v3766
      %3784 = vmatprep.subr.bf16.mxu0 0
      %3785 = vmatpush1.bf16.msra.mxu0 %v3775
      %3786 = vmatprep.subr.bf16.mxu0 0
      %3787 = vmatpush1.bf16.msra.mxu0 %v3774
      %3788 = vmatprep.subr.bf16.mxu0 0
      %3789 = vmatpush1.bf16.msra.mxu0 %v3773
      %3790 = vmatprep.subr.bf16.mxu0 0
      %3791 = vmatpush1.bf16.msra.mxu0 %v3772
      %3792 = vmatprep.subr.bf16.mxu0 0
      %3793 = vmatpush1.bf16.msra.mxu0 %v3771
      %3794 = vmatprep.subr.bf16.mxu0 0
      %3795 = vmatpush1.bf16.msra.mxu0 %v3770
      %3796 = vmatprep.subr.bf16.mxu0 0
      %3797 = vmatpush1.bf16.msra.mxu0 %v3769
      %3798 = vmatprep.subr.bf16.mxu0 0
      %3799 = vmatpush1.bf16.msra.mxu0 %v3768
      %3800 = vmatprep.subr.bf16.mxu0 0
      %3801 = vmatpush2.bf16.msra.mxu0 0
      %3802 = vmatprep.subr.bf16.mxu0 0
      %3803 = vmatpush2.bf16.msra.mxu0 0
      %3804 = vmatprep.subr.bf16.mxu0 0
      %3805 = vmatpush2.bf16.msra.mxu0 0
      %3806 = vmatprep.subr.bf16.mxu0 0
      %3807 = vmatpush2.bf16.msra.mxu0 0
      %3808 = vmatprep.subr.bf16.mxu0 0
      %3809 = vmatpush2.bf16.msra.mxu0 0
      %3810 = vmatprep.subr.bf16.mxu0 0
      %3811 = vmatpush2.bf16.msra.mxu0 0
      %3812 = vmatprep.subr.bf16.mxu0 0
      %3813 = vmatpush2.bf16.msra.mxu0 0
      %3814 = vmatprep.subr.bf16.mxu0 0
      %3815 = vmatpush2.bf16.msra.mxu0 0
      %3816 = vmatprep.mubr.bf16.mxu0 0
      %3817 = vmatmul.mubr.bf16.gmra.mxu0 %v3720
      %v3818 = vpop.f32.mrf.mxu0
      %v3819 = vadd.f32 0.0, %v3818
      %v3820 = vpop.f32.mrf.mxu0
      %v3821 = vpop.f32.mrf.mxu0
      %v3822 = vadd.f32 0.0, %v3821
      %v3823 = vpop.f32.mrf.mxu0
      %3824 = vmatprep.mubr.bf16.mxu0 0
      %3825 = vmatmul.mubr.bf16.gmra.mxu0 %v3721
      %v3826 = vpop.f32.mrf.mxu0
      %v3827 = vadd.f32 0.0, %v3826
      %v3828 = vpop.f32.mrf.mxu0
      %v3829 = vpop.f32.mrf.mxu0
      %v3830 = vadd.f32 0.0, %v3829
      %v3831 = vpop.f32.mrf.mxu0
      %3832 = vmatprep.mubr.bf16.mxu0 0
      %3833 = vmatmul.mubr.bf16.gmra.mxu0 %v3722
      %v3834 = vpop.f32.mrf.mxu0
      %v3835 = vadd.f32 0.0, %v3834
      %v3836 = vpop.f32.mrf.mxu0
      %v3837 = vpop.f32.mrf.mxu0
      %v3838 = vadd.f32 0.0, %v3837
      %v3839 = vpop.f32.mrf.mxu0
      %3840 = vmatprep.mubr.bf16.mxu0 0
      %3841 = vmatmul.mubr.bf16.gmra.mxu0 %v3723
      %v3842 = vpop.f32.mrf.mxu0
      %v3843 = vadd.f32 0.0, %v3842
      %v3844 = vpop.f32.mrf.mxu0
      %v3845 = vpop.f32.mrf.mxu0
      %v3846 = vadd.f32 0.0, %v3845
      %v3847 = vpop.f32.mrf.mxu0
      %3848 = vmatprep.mubr.bf16.mxu0 0
      %3849 = vmatmul.mubr.bf16.gmra.mxu0 %v3724
      %v3850 = vpop.f32.mrf.mxu0
      %v3851 = vadd.f32 0.0, %v3850
      %v3852 = vpop.f32.mrf.mxu0
      %v3853 = vpop.f32.mrf.mxu0
      %v3854 = vadd.f32 0.0, %v3853
      %v3855 = vpop.f32.mrf.mxu0
      %3856 = vmatprep.mubr.bf16.mxu0 0
      %3857 = vmatmul.mubr.bf16.gmra.mxu0 %v3725
      %v3858 = vpop.f32.mrf.mxu0
      %v3859 = vadd.f32 0.0, %v3858
      %v3860 = vpop.f32.mrf.mxu0
      %v3861 = vpop.f32.mrf.mxu0
      %v3862 = vadd.f32 0.0, %v3861
      %v3863 = vpop.f32.mrf.mxu0
      %3864 = vmatprep.mubr.bf16.mxu0 0
      %3865 = vmatmul.mubr.bf16.gmra.mxu0 %v3726
      %v3866 = vpop.f32.mrf.mxu0
      %v3867 = vadd.f32 0.0, %v3866
      %v3868 = vpop.f32.mrf.mxu0
      %v3869 = vpop.f32.mrf.mxu0
      %v3870 = vadd.f32 0.0, %v3869
      %v3871 = vpop.f32.mrf.mxu0
      %3872 = vmatprep.mubr.bf16.mxu0 0
      %3873 = vmatmul.mubr.bf16.gmra.mxu0 %v3727
      %v3874 = vpop.f32.mrf.mxu0
      %v3875 = vadd.f32 0.0, %v3874
      %v3876 = vpop.f32.mrf.mxu0
      %v3877 = vpop.f32.mrf.mxu0
      %v3878 = vadd.f32 0.0, %v3877
      %v3879 = vpop.f32.mrf.mxu0
      %3880 = vdwg.mxu0
      %v3881 = vld [vmem:[%s438] sm:$0x1]
      %v3883 = vlaneseq
      %v3884 = vshrl.u32 %v3883, 7
      %v3885 = vsub.s32 0, %v3884
      %v3886 = vrot.slane %v3881, %v3885
      %v3888 = vmul.f32 %v3819, %v3886
      %v3889 = vmul.f32 %v3822, %v3886
      %v3890 = vmul.f32 %v3827, %v3886
      %v3891 = vmul.f32 %v3830, %v3886
      %v3892 = vmul.f32 %v3835, %v3886
      %v3893 = vmul.f32 %v3838, %v3886
      %v3894 = vmul.f32 %v3843, %v3886
      %v3895 = vmul.f32 %v3846, %v3886
      %v3896 = vmul.f32 %v3851, %v3886
      %v3897 = vmul.f32 %v3854, %v3886
      %v3898 = vmul.f32 %v3859, %v3886
      %v3899 = vmul.f32 %v3862, %v3886
      %v3900 = vmul.f32 %v3867, %v3886
      %v3901 = vmul.f32 %v3870, %v3886
      %v3902 = vmul.f32 %v3875, %v3886
      %v3903 = vmul.f32 %v3878, %v3886
      %v3904 = vld [vmem:[%s441] sm:$0x1]
      %v3906 = vlaneseq
      %v3907 = vshrl.u32 %v3906, 7
      %v3908 = vsub.s32 0, %v3907
      %v3909 = vrot.slane %v3904, %v3908
      %v3911 = vadd.f32 %v3888, %v3909
      %v3912 = vadd.f32 %v3889, %v3909
      %v3913 = vadd.f32 %v3890, %v3909
      %v3914 = vadd.f32 %v3891, %v3909
      %v3915 = vadd.f32 %v3892, %v3909
      %v3916 = vadd.f32 %v3893, %v3909
      %v3917 = vadd.f32 %v3894, %v3909
      %v3918 = vadd.f32 %v3895, %v3909
      %v3919 = vadd.f32 %v3896, %v3909
      %v3920 = vadd.f32 %v3897, %v3909
      %v3921 = vadd.f32 %v3898, %v3909
      %v3922 = vadd.f32 %v3899, %v3909
      %v3923 = vadd.f32 %v3900, %v3909
      %v3924 = vadd.f32 %v3901, %v3909
      %v3925 = vadd.f32 %v3902, %v3909
      %v3926 = vadd.f32 %v3903, %v3909
      %3927 = vst [vmem:[%s468] sm:$0xff] %v3911
      %3928 = vst [vmem:[%s468 + $0x8] sm:$0xff] %v3912
      %3929 = vst [vmem:[%s468 + $0x10] sm:$0xff] %v3913
      %3930 = vst [vmem:[%s468 + $0x18] sm:$0xff] %v3914
      %3931 = vst [vmem:[%s468 + $0x20] sm:$0xff] %v3915
      %3932 = vst [vmem:[%s468 + $0x28] sm:$0xff] %v3916
      %3933 = vst [vmem:[%s468 + $0x30] sm:$0xff] %v3917
      %3934 = vst [vmem:[%s468 + $0x38] sm:$0xff] %v3918
      %3935 = vst [vmem:[%s468 + $0x40] sm:$0xff] %v3919
      %3936 = vst [vmem:[%s468 + $0x48] sm:$0xff] %v3920
      %3937 = vst [vmem:[%s468 + $0x50] sm:$0xff] %v3921
      %3938 = vst [vmem:[%s468 + $0x58] sm:$0xff] %v3922
      %3939 = vst [vmem:[%s468 + $0x60] sm:$0xff] %v3923
      %3940 = vst [vmem:[%s468 + $0x68] sm:$0xff] %v3924
      %3941 = vst [vmem:[%s468 + $0x70] sm:$0xff] %v3925
      %3942 = vst [vmem:[%s468 + $0x78] sm:$0xff] %v3926
      %s3943 = smul.u32 8, %s27
      %p3944 = scmp.lt.s32.totalorder %s25, 1
      %s3945 = scalar_select %p3944, %s25, 1
      %p3946 = scmp.lt.s32.totalorder %s3943, 15
      %s3947 = scalar_select %p3946, %s3943, 15
      %p3948 = scmp.lt.s32.totalorder %s26, 0
      %s3949 = scalar_select %p3948, %s26, 0
      %s3950 = smul.addr %s3947, 2
      %s3951 = sadd.s32 %s3949, %s3950
      %s3952 = smul.addr %s3945, 32
      %s3953 = sadd.s32 %s3951, %s3952
      %s3954 = smul.addr %s3953, 4
      %s3955 = scalar_lea.vmem %s7, %s3954
      %s3956 = smul.u32 8, %s27
      %p3957 = scmp.lt.s32.totalorder %s25, 1
      %s3958 = scalar_select %p3957, %s25, 1
      %p3959 = scmp.lt.s32.totalorder %s3956, 15
      %s3960 = scalar_select %p3959, %s3956, 15
      %p3961 = scmp.lt.s32.totalorder %s26, 0
      %s3962 = scalar_select %p3961, %s26, 0
      %s3963 = smul.addr %s3960, 2
      %s3964 = sadd.s32 %s3962, %s3963
      %s3965 = smul.addr %s3958, 32
      %s3966 = sadd.s32 %s3964, %s3965
      %s3967 = smul.addr %s3966, 8
      %s3968 = scalar_lea.vmem %s8, %s3967
      // Predicated region
      $region49: #{_lambda_.2} parent=47 // pred_check
        %p3969 = pneg %p243
      $region50: #{_lambda_.2} parent=47 // pred_check_branch
        %3971 = sbr.rel (%p3969) target = $region52
      $region51: #{_lambda_.2} parent=47 // pred_region
        %s3972 = smul.u32 8, %s27
      $region52: #{_lambda_.2} parent=47 // pred_fallthru
        _
      // Predicated region
      $region53: #{_lambda_.2} parent=47 // pred_check
        %p3973 = pneg %p273
      $region54: #{_lambda_.2} parent=47 // pred_check_branch
        %3975 = sbr.rel (%p3973) target = $region56
      $region55: #{_lambda_.2} parent=47 // pred_region
        %s3976 = smul.u32 8, %s27
      $region56: #{_lambda_.2} parent=47 // pred_fallthru
        _
    $region48: #{_lambda_.2} parent=5 // pred_fallthru
      _
    %p3977 = scmp.le.s32.totalorder 2, %s15
    // Predicated region
    $region57: #{_lambda_.2} parent=5 // pred_check
      %p3978 = pneg %p3977
    $region58: #{_lambda_.2} parent=5 // pred_check_branch
      %3980 = sbr.rel (%p3978) target = $region60
    $region59: #{_lambda_.2} parent=5 // pred_region
      %s3981 = ssub.s32 %s15, 2
      // Predicated region
      $region61: #{_lambda_.2} parent=59 // pred_check
        %p3982 = pneg %p249
      $region62: #{_lambda_.2} parent=59 // pred_check_branch
        %3984 = sbr.rel (%p3982) target = $region64
      $region63: #{_lambda_.2} parent=59 // pred_region
        %s3985 = smul.u32 8, %s30
        %p3986 = scmp.lt.s32.totalorder %s28, 1
        %s3987 = scalar_select %p3986, %s28, 1
        %p3988 = scmp.lt.s32.totalorder %s3985, 15
        %s3989 = scalar_select %p3988, %s3985, 15
        %p3990 = scmp.lt.s32.totalorder %s29, 0
        %s3991 = scalar_select %p3990, %s29, 0
        %s3992 = smul.addr %s3989, 2
        %s3993 = sadd.s32 %s3991, %s3992
        %s3994 = smul.addr %s3987, 32
        %s3995 = sadd.s32 %s3993, %s3994
        %s3996 = smul.addr %s3995, 4
        %s3997 = scalar_lea.vmem %s7, %s3996
      $region64: #{_lambda_.2} parent=59 // pred_fallthru
        _
      // Predicated region
      $region65: #{_lambda_.2} parent=59 // pred_check
        %p3998 = pneg %p279
      $region66: #{_lambda_.2} parent=59 // pred_check_branch
        %4000 = sbr.rel (%p3998) target = $region68
      $region67: #{_lambda_.2} parent=59 // pred_region
        %s4001 = smul.u32 8, %s30
        %p4002 = scmp.lt.s32.totalorder %s28, 1
        %s4003 = scalar_select %p4002, %s28, 1
        %p4004 = scmp.lt.s32.totalorder %s4001, 15
        %s4005 = scalar_select %p4004, %s4001, 15
        %p4006 = scmp.lt.s32.totalorder %s29, 0
        %s4007 = scalar_select %p4006, %s29, 0
        %s4008 = smul.addr %s4005, 2
        %s4009 = sadd.s32 %s4007, %s4008
        %s4010 = smul.addr %s4003, 32
        %s4011 = sadd.s32 %s4009, %s4010
        %s4012 = smul.addr %s4011, 8
        %s4013 = scalar_lea.vmem %s8, %s4012
      $region68: #{_lambda_.2} parent=59 // pred_fallthru
        _
    $region60: #{_lambda_.2} parent=5 // pred_fallthru
      _
  $region6: #{_lambda_.2} parent=0 // loop_footer
    %s19 = sadd.s32 1, %s15
  $region7: #{_lambda_.2} parent=0 // loop_footer_branch
    %14 = sbr.rel target = $region3
  $region8: #{_lambda_.2} parent=0 // loop_exit
    _

</llo_original>
